<compile_context>
chip_gen: v5e
topology: v5e:2x2
jax: 0.10.0
libtpu: 0.0.40
codegen_flags: <defaults>
</compile_context>

<pallas_src>
import numpy as np
import jax
import jax.numpy as jnp
from jax.experimental import pallas as pl
from jax.experimental.pallas import tpu as pltpu

EPS = 1e-5


# ----------------------------------------------------------------------------
# Eval-mode BN folding
# ----------------------------------------------------------------------------
def _bn_scale_shift(bn):
    scale = bn["gamma"] / jnp.sqrt(bn["var"] + EPS)
    shift = bn["beta"] - bn["mean"] * scale
    return scale.astype(jnp.float32), shift.astype(jnp.float32)


def _pad8(n):
    return ((n + 7) // 8) * 8


# ----------------------------------------------------------------------------
# Constant selection / pooling matrices (host-side, numpy, built once)
# ----------------------------------------------------------------------------
def _emb_np(N, h, w, ph, pw):
    """(N*h*w, Lext): compact -> zero-padded flat layout (input at offset ph,pw)."""
    Hp, Wp = h + 2 * ph, w + 2 * pw
    Lw = N * Hp * Wp
    Lext = Lw + 2 * (ph * Wp + pw)          # room for the largest tap shift
    m = np.zeros((N * h * w, Lext), np.float32)
    for n in range(N):
        for r in range(h):
            for s in range(w):
                m[n * h * w + r * w + s,
                  n * Hp * Wp + (r + ph) * Wp + (s + pw)] = 1.0
    return m


def _ext_np(N, h, w, ph, pw):
    """(N*Hp*Wp, N*h*w): padded-grid flat layout (output at top-left) -> compact."""
    Hp, Wp = h + 2 * ph, w + 2 * pw
    m = np.zeros((N * Hp * Wp, N * h * w), np.float32)
    for n in range(N):
        for r in range(h):
            for s in range(w):
                m[n * Hp * Wp + r * Wp + s, n * h * w + r * w + s] = 1.0
    return m


def _pool_np(N, h, w, k):
    """(N*h*w, N*(h//k)*(w//k)): AvgPool2d(k) as a right-matmul matrix."""
    ho, wo = h // k, w // k
    m = np.zeros((N * h * w, N * ho * wo), np.float32)
    inv = 1.0 / (k * k)
    for n in range(N):
        for i in range(h):
            for j in range(w):
                m[n * h * w + i * w + j,
                  n * ho * wo + (i // k) * wo + (j // k)] = inv
    return m


# ----------------------------------------------------------------------------
# Parameter / constant packing
# ----------------------------------------------------------------------------
class _Packer:
    """Packs all per-channel vectors into one (R,1) bank and all small weight
    matrices into one (R, Cmax) bank, so the kernel has ~2 parameter inputs."""

    def __init__(self):
        self._vecs, self._voff = [], 0
        self._wmats, self._woff = [], 0

    def add_vec(self, v):
        v = jnp.asarray(v, jnp.float32).reshape(-1)
        c = int(v.shape[0])
        cp = _pad8(c)
        if cp != c:
            v = jnp.concatenate([v, jnp.zeros((cp - c,), jnp.float32)])
        off = self._voff
        self._vecs.append(v)
        self._voff += cp
        return off

    def add_mat(self, m):
        m = jnp.asarray(m, jnp.float32)
        assert m.shape[0] % 8 == 0, m.shape       # Cout is 8 or 16 here
        off = self._woff
        self._wmats.append(m)
        self._woff += int(m.shape[0])
        return off

    def finalize(self):
        vec_pack = jnp.concatenate(self._vecs, axis=0).reshape(-1, 1)
        wc = max(int(m.shape[1]) for m in self._wmats)
        wms = []
        for m in self._wmats:
            if int(m.shape[1]) < wc:
                m = jnp.concatenate(
                    [m, jnp.zeros((m.shape[0], wc - m.shape[1]), jnp.float32)],
                    axis=1)
            wms.append(m)
        w_pack = jnp.concatenate(wms, axis=0)
        return vec_pack, w_pack


class _Mats:
    def __init__(self):
        self.arrays = []
        self._cache = {}

    def get(self, key, builder):
        if key not in self._cache:
            self._cache[key] = len(self.arrays)
            self.arrays.append(jnp.asarray(builder(), jnp.float32))
        return self._cache[key]


# ----------------------------------------------------------------------------
# Stage builders (host-side; produce static descriptors + packed params)
# ----------------------------------------------------------------------------
def _conv1x1_stage(pk, cb, keep=None):
    """BN -> ReLU -> Conv2d 1x1. `keep`: #input channels actually present; the
    reference's zero-channel blocks fold exactly into the bias (eval BN)."""
    scale, shift = _bn_scale_shift(cb["bn"])
    w = jnp.asarray(cb["conv"]["w"], jnp.float32)          # (1,1,cin,cout)
    b = jnp.asarray(cb["conv"]["b"], jnp.float32)
    assert w.shape[0] == 1 and w.shape[1] == 1
    cin_full, cout = int(w.shape[2]), int(w.shape[3])
    keep = cin_full if keep is None else keep
    if keep < cin_full:
        zero_act = jnp.maximum(shift[keep:], 0.0)           # ReLU(BN(0))
        b = b + zero_act @ w[0, 0, keep:, :]
    if keep == 0:
        return ("bias0", pk.add_vec(b), cout)
    so = pk.add_vec(scale[:keep])
    to = pk.add_vec(shift[:keep])
    wo = pk.add_mat(w[0, 0, :keep, :].T)                    # (cout, keep)
    bo = pk.add_vec(b)
    return ("conv1x1", so, to, wo, bo, keep, cout)


def _convk_stage(pk, mats, cb, N, h, w):
    """BN -> ReLU -> Conv2d('same', KxK) via embed matmul + tap shifts."""
    scale, shift = _bn_scale_shift(cb["bn"])
    wt = jnp.asarray(cb["conv"]["w"], jnp.float32)          # (KH,KW,cin,cout)
    b = jnp.asarray(cb["conv"]["b"], jnp.float32)
    KH, KW, cin, cout = (int(d) for d in wt.shape)
    ph, pw = KH // 2, KW // 2
    Hp, Wp = h + 2 * ph, w + 2 * pw
    Lw = N * Hp * Wp
    emb_i = mats.get(("emb", N, h, w, ph, pw), lambda: _emb_np(N, h, w, ph, pw))
    ext_i = mats.get(("ext", N, h, w, ph, pw), lambda: _ext_np(N, h, w, ph, pw))
    so = pk.add_vec(scale)
    to = pk.add_vec(shift)
    wo = None
    for kh in range(KH):
        for kw in range(KW):
            o = pk.add_mat(wt[kh, kw].T)                     # (cout, cin)
            if wo is None:
                wo = o
    bo = pk.add_vec(b)
    return ("convk", so, to, wo, bo, cin, cout, KH, KW, emb_i, ext_i, Wp, Lw)


def _bnrelu_stage(pk, bn):
    scale, shift = _bn_scale_shift(bn)
    return ("bnrelu", pk.add_vec(scale), pk.add_vec(shift), int(scale.shape[0]))


def _pool3_stage(mats, op, N, h, w):
    Hp, Wp = h + 2, w + 2
    emb_i = mats.get(("emb", N, h, w, 1, 1), lambda: _emb_np(N, h, w, 1, 1))
    ext_i = mats.get(("ext", N, h, w, 1, 1), lambda: _ext_np(N, h, w, 1, 1))
    return ("pool3", op, emb_i, ext_i, Wp, N * Hp * Wp)


def _choice_branch(pk, mats, cparams, bid, keep, N, h, w):
    if bid in (1, 2, 3, 4):
        b0, b1, b2 = cparams[bid]
        stages = [_conv1x1_stage(pk, b0, keep=keep)]
        for blk in (b1, b2):
            kh, kw = (int(d) for d in blk["conv"]["w"].shape[:2])
            if kh == 1 and kw == 1:
                stages.append(_conv1x1_stage(pk, blk))
            else:
                stages.append(_convk_stage(pk, mats, blk, N, h, w))
        return stages
    if bid in (5, 6, 7):
        br = cparams[bid]
        stages = [_conv1x1_stage(pk, br["cb"], keep=keep),
                  _bnrelu_stage(pk, br["bn"])]
        if bid == 5:
            stages.append(_pool3_stage(mats, "max", N, h, w))
        elif bid == 6:
            stages.append(_pool3_stage(mats, "avg", N, h, w))
        return stages                                         # 7: Identity
    raise ValueError(f"Wrong ID {bid}")


def build_cell_program(params, cell_list, block_list, *, N, H, W, C,
                       flag=True, not_first=True):
    pk, mats = _Packer(), _Mats()

    def pool_idx(h, w, k):
        return mats.get(("pool", N, h, w, k), lambda: _pool_np(N, h, w, k))

    headA = [_conv1x1_stage(pk, params["l1A"])]
    headB = [_conv1x1_stage(pk, params["l1B"])]
    hA = hB = H
    wA = wB = W
    if flag:
        headA += [_bnrelu_stage(pk, params["avg1_bn"]),
                  ("downpool", pool_idx(hA, wA, 2))]
        hA, wA = hA // 2, wA // 2
        kB = 4 if not_first else 2
        headB += [_bnrelu_stage(pk, params["avg2_bn"]),
                  ("downpool", pool_idx(hB, wB, kB))]
        hB, wB = hB // kB, wB // kB
    elif not_first:
        headB += [_bnrelu_stage(pk, params["avg1_bn"]),
                  ("downpool", pool_idx(hB, wB, 2))]
        hB, wB = hB // 2, wB // 2
    assert (hA, wA) == (hB, wB), "branch spatial sizes must match for concat"
    h, w = hA, wA

    choices = []
    for k in range(4):
        cell_ids, block_ids = cell_list[k], block_list[k]
        cin = C * (k + 2)
        sel = []
        for i in cell_ids:
            if 1 <= i <= 5:
                assert i - 1 < 2 + k, "cell_list selects a not-yet-computed block"
                sel.append(i - 1)
        keep = C * len(sel)
        assert keep <= cin
        cparams = params[f"choice{k + 1}"]
        ids = [block_ids[0]] + [b for b in block_ids[1:] if b != 0]
        branches = [_choice_branch(pk, mats, cparams, bid, keep, N, h, w)
                    for bid in ids]
        choices.append(dict(select=sel, branches=branches))

    vec_pack, w_pack = pk.finalize()
    prog = dict(headA=headA, headB=headB, choices=choices,
                npix=N * h * w, h=h, w=w)
    packed = dict(vec=vec_pack, w=w_pack, mats=list(mats.arrays))
    return prog, packed


# ----------------------------------------------------------------------------
# The single fused Cell kernel
# ----------------------------------------------------------------------------
def _make_cell_kernel(prog, n_mats):
    npix = prog["npix"]

    def kernel(*refs):
        xA_ref, xB_ref, vec_ref, w_ref = refs[:4]
        mat_refs = refs[4:4 + n_mats]
        o_ref = refs[4 + n_mats]

        def vec(off, c):
            return vec_ref[off:off + c, :]                    # (c, 1) column

        def wmat(off, cout, cin):
            return w_ref[off:off + cout, :cin]                # (cout, cin)

        def run_chain(y, stages):
            for st in stages:
                kind = st[0]
                if kind == "bnrelu":
                    _, so, to, c = st
                    y = jnp.maximum(y * vec(so, c) + vec(to, c), 0.0)
                elif kind == "conv1x1":
                    _, so, to, wo, bo, cin, cout = st
                    y = jnp.maximum(y * vec(so, cin) + vec(to, cin), 0.0)
                    y = jnp.dot(wmat(wo, cout, cin), y,
                                preferred_element_type=jnp.float32) + vec(bo, cout)
                elif kind == "bias0":
                    _, bo, cout = st
                    y = jnp.zeros((cout, npix), jnp.float32) + vec(bo, cout)
                elif kind == "convk":
                    (_, so, to, wo, bo, cin, cout, KH, KW,
                     emb_i, ext_i, Wp, Lw) = st
                    y = jnp.maximum(y * vec(so, cin) + vec(to, cin), 0.0)
                    # zero 'same' padding == one matmul with a constant 0/1 matrix
                    p = jnp.dot(y, mat_refs[emb_i][...],
                                preferred_element_type=jnp.float32)
                    acc = None
                    for kh in range(KH):
                        for kw in range(KW):
                            off = kh * Wp + kw
                            t = kh * KW + kw
                            part = jnp.dot(wmat(wo + t * cout, cout, cin),
                                           p[:, off:off + Lw],
                                           preferred_element_type=jnp.float32)
                            acc = part if acc is None else acc + part
                    y = jnp.dot(acc, mat_refs[ext_i][...],
                                preferred_element_type=jnp.float32) + vec(bo, cout)
                elif kind == "pool3":
                    _, op, emb_i, ext_i, Wp, Lw = st
                    p = jnp.dot(y, mat_refs[emb_i][...],
                                preferred_element_type=jnp.float32)
                    r = None
                    for kh in range(3):
                        for kw in range(3):
                            off = kh * Wp + kw
                            sl = p[:, off:off + Lw]
                            if r is None:
                                r = sl
                            elif op == "max":
                                r = jnp.maximum(r, sl)
                            else:
                                r = r + sl
                    if op == "avg":
                        r = r * (1.0 / 9.0)
                    y = jnp.dot(r, mat_refs[ext_i][...],
                                preferred_element_type=jnp.float32)
                elif kind == "downpool":
                    _, mi = st
                    y = jnp.dot(y, mat_refs[mi][...],
                                preferred_element_type=jnp.float32)
                else:
                    raise ValueError(kind)
            return y

        blocks = [run_chain(xA_ref[...], prog["headA"]),
                  run_chain(xB_ref[...], prog["headB"])]
        for ch in prog["choices"]:
            sel = ch["select"]
            if len(sel) == 0:
                xin = blocks[0]                # unused: first stage is bias0
            elif len(sel) == 1:
                xin = blocks[sel[0]]
            else:
                xin = jnp.concatenate([blocks[i] for i in sel], axis=0)
            out = None
            for br in ch["branches"]:
                o = run_chain(xin, br)
                out = o if out is None else out + o
            blocks.append(out)
        # final 6-way channel concat == one lane-dense (48, 128) store
        o_ref[...] = jnp.concatenate(blocks, axis=0)

    return kernel


def _full_spec(shape):
    nd = len(shape)
    return pl.BlockSpec(tuple(shape), lambda i, _nd=nd: (0,) * _nd)


def make_cell_call(prog, n_mats, out_channels_total):
    kernel = _make_cell_kernel(prog, n_mats)
    npix = prog["npix"]

    def call(xA2d, xB2d, vec_pack, w_pack, mats):
        args = [xA2d, xB2d, vec_pack, w_pack] + list(mats)
        in_specs = [_full_spec(a.shape) for a in args]
        return pl.pallas_call(
            kernel,
            out_shape=jax.ShapeDtypeStruct((out_channels_total, npix),
                                           jnp.float32),
            grid=(1,),
            in_specs=in_specs,
            out_specs=_full_spec((out_channels_total, npix)),
            compiler_params=pltpu.CompilerParams(
                dimension_semantics=("arbitrary",)),
        )(*args)

    return call


def cell_forward(call_fn, prog, N, C, xA_nchw, xB_nchw, vec, wp, mats):
    """PyTorch-convention NCHW in / NCHW out; layout plumbing only."""
    CA, CB = xA_nchw.shape[1], xB_nchw.shape[1]
    xA2 = jnp.transpose(xA_nchw, (1, 0, 2, 3)).reshape(CA, -1)
    xB2 = jnp.transpose(xB_nchw, (1, 0, 2, 3)).reshape(CB, -1)
    out2d = call_fn(xA2, xB2, vec, wp, mats)                 # (6C, N*h*w)
    h, w = prog["h"], prog["w"]
    return out2d.reshape(6 * C, N, h, w).transpose(1, 0, 2, 3)


# ----------------------------------------------------------------------------
# Deterministic parameter initialization (mirrors module __init__ shapes)
# ----------------------------------------------------------------------------
def init_bn(key, c):
    k1, k2, k3, k4 = jax.random.split(key, 4)
    return dict(
        gamma=jax.random.uniform(k1, (c,), minval=0.5, maxval=1.5),
        beta=jax.random.normal(k2, (c,)) * 0.1,
        mean=jax.random.normal(k3, (c,)) * 0.1,
        var=jax.random.uniform(k4, (c,), minval=0.5, maxval=1.5),
    )


def init_conv(key, cin, cout, kh, kw):
    k1, k2 = jax.random.split(key)
    fan_in = cin * kh * kw
    w = jax.random.normal(k1, (kh, kw, cin, cout)) / jnp.sqrt(fan_in)
    b = jax.random.normal(k2, (cout,)) * 0.01
    return dict(w=w.astype(jnp.float32), b=b.astype(jnp.float32))


def init_convblock(key, cin, cout, ksize):
    kh, kw = ksize if isinstance(ksize, tuple) else (ksize, ksize)
    kb, kc = jax.random.split(key)
    return dict(bn=init_bn(kb, cin), conv=init_conv(kc, cin, cout, kh, kw))


def init_choiceblock(key, cin, cout):
    ks = jax.random.split(key, 18)
    p = {}
    p[1] = [init_convblock(ks[0], cin, 8, 1),
            init_convblock(ks[1], 8, 16, 3),
            init_convblock(ks[2], 16, cout, 3)]
    p[2] = [init_convblock(ks[3], cin, 8, 1),
            init_convblock(ks[4], 8, 16, 5),
            init_convblock(ks[5], 16, cout, 5)]
    p[3] = [init_convblock(ks[6], cin, 8, 1),
            init_convblock(ks[7], 8, 16, 7),
            init_convblock(ks[8], 16, cout, 7)]
    p[4] = [init_convblock(ks[9], cin, 8, 1),
            init_convblock(ks[10], 8, 16, (1, 7)),
            init_convblock(ks[11], 16, cout, (7, 1))]
    p[5] = dict(cb=init_convblock(ks[12], cin, cout, 1), bn=init_bn(ks[13], cout))
    p[6] = dict(cb=init_convblock(ks[14], cin, cout, 1), bn=init_bn(ks[15], cout))
    p[7] = dict(cb=init_convblock(ks[16], cin, cout, 1), bn=init_bn(ks[17], cout))
    return p


def init_cell(key, cinA, cinB, cout):
    ks = jax.random.split(key, 8)
    return dict(
        l1A=init_convblock(ks[0], cinA, cout, 1),
        l1B=init_convblock(ks[1], cinB, cout, 1),
        avg1_bn=init_bn(ks[2], cout),
        avg2_bn=init_bn(ks[3], cout),
        choice1=init_choiceblock(ks[4], cout * 2, cout),
        choice2=init_choiceblock(ks[5], cout * 3, cout),
        choice3=init_choiceblock(ks[6], cout * 4, cout),
        choice4=init_choiceblock(ks[7], cout * 5, cout),
    )


# ----------------------------------------------------------------------------
if __name__ == "__main__":
    key = jax.random.PRNGKey(0)
    kp, ka, kb = jax.random.split(key, 3)

    N, CA, CB, C, H, W = 2, 4, 4, 8, 16, 16
    params = init_cell(kp, CA, CB, C)

    # Inputs in PyTorch NCHW convention.
    xA = jax.random.normal(ka, (N, CA, H, W), jnp.float32)
    xB = jax.random.normal(kb, (N, CB, H, W), jnp.float32)

    # NAS architecture choices (static Python control flow, like the reference).
    cell_list = [[1, 2], [1, 3], [2, 3, 4], [1, 2, 3, 4, 5]]
    block_list = [[1, 6], [5, 0], [7], [2]]
    flag, not_first = True, False

    # One-time host-side packing of parameters + constant selection matrices.
    prog, packed = build_cell_program(params, cell_list, block_list,
                                      N=N, H=H, W=W, C=C,
                                      flag=flag, not_first=not_first)
    call_fn = make_cell_call(prog, len(packed["mats"]), 6 * C)

    @jax.jit
    def fwd(xa, xb, vec, wp, *mats):
        return cell_forward(call_fn, prog, N, C, xa, xb, vec, wp, list(mats))

    out = jax.block_until_ready(
        fwd(xA, xB, packed["vec"], packed["w"], *packed["mats"]))

    assert out.shape == (N, 6 * C, H // 2, W // 2), out.shape
    assert bool(jnp.all(jnp.isfinite(out)))
    print("KERNEL_OK")
</pallas_src>

<mosaic_0001>
module attributes {stable_mosaic.version = 11 : i64} {
  func.func @kernel(%arg0: i32, %arg1: memref<4x512xf32, #tpu.memory_space<vmem>>, %arg2: memref<4x512xf32, #tpu.memory_space<vmem>>, %arg3: memref<536x1xf32, #tpu.memory_space<vmem>>, %arg4: memref<872x40xf32, #tpu.memory_space<vmem>>, %arg5: memref<512x128xf32, #tpu.memory_space<vmem>>, %arg6: memref<128x222xf32, #tpu.memory_space<vmem>>, %arg7: memref<200x128xf32, #tpu.memory_space<vmem>>, %arg8: memref<128x340xf32, #tpu.memory_space<vmem>>, %arg9: memref<288x128xf32, #tpu.memory_space<vmem>>, %arg10: memref<48x128xf32, #tpu.memory_space<vmem>>) attributes {dimension_semantics = [#tpu.dimension_semantics<arbitrary>], iteration_bounds = array<i64: 1>, scalar_prefetch = 0 : i64, scratch_operands = 0 : i64, tpu.core_type = #tpu.core_type<tc>, window_params = [{pipeline_mode = #tpu.pipeline_mode<synchronous>, transform_indices = @transform_0, window_bounds = array<i64: 4, 512>}, {pipeline_mode = #tpu.pipeline_mode<synchronous>, transform_indices = @transform_1, window_bounds = array<i64: 4, 512>}, {pipeline_mode = #tpu.pipeline_mode<synchronous>, transform_indices = @transform_2, window_bounds = array<i64: 536, 1>}, {pipeline_mode = #tpu.pipeline_mode<synchronous>, transform_indices = @transform_3, window_bounds = array<i64: 872, 40>}, {pipeline_mode = #tpu.pipeline_mode<synchronous>, transform_indices = @transform_4, window_bounds = array<i64: 512, 128>}, {pipeline_mode = #tpu.pipeline_mode<synchronous>, transform_indices = @transform_5, window_bounds = array<i64: 128, 222>}, {pipeline_mode = #tpu.pipeline_mode<synchronous>, transform_indices = @transform_6, window_bounds = array<i64: 200, 128>}, {pipeline_mode = #tpu.pipeline_mode<synchronous>, transform_indices = @transform_7, window_bounds = array<i64: 128, 340>}, {pipeline_mode = #tpu.pipeline_mode<synchronous>, transform_indices = @transform_8, window_bounds = array<i64: 288, 128>}, {pipeline_mode = #tpu.pipeline_mode<synchronous>, transform_indices = @transform_9, window_bounds = array<i64: 48, 128>}]} {
    %c0 = arith.constant 0 : index
    %c0_0 = arith.constant 0 : index
    %0 = vector.load %arg1[%c0, %c0_0] : memref<4x512xf32, #tpu.memory_space<vmem>>, vector<4x512xf32>
    %c0_1 = arith.constant 0 : index
    %c0_2 = arith.constant 0 : index
    %1 = vector.load %arg3[%c0_1, %c0_2] : memref<536x1xf32, #tpu.memory_space<vmem>>, vector<4x1xf32>
    %2 = vector.broadcast %1 : vector<4x1xf32> to vector<4x512xf32>
    %3 = arith.mulf %0, %2 : vector<4x512xf32>
    %c8 = arith.constant 8 : index
    %c0_3 = arith.constant 0 : index
    %4 = vector.load %arg3[%c8, %c0_3] : memref<536x1xf32, #tpu.memory_space<vmem>>, vector<4x1xf32>
    %5 = vector.broadcast %4 : vector<4x1xf32> to vector<4x512xf32>
    %6 = arith.addf %3, %5 : vector<4x512xf32>
    %cst = arith.constant 0.000000e+00 : f32
    %7 = vector.broadcast %cst : f32 to vector<4x512xf32>
    %8 = arith.maximumf %6, %7 : vector<4x512xf32>
    %c0_4 = arith.constant 0 : index
    %c0_5 = arith.constant 0 : index
    %9 = vector.load %arg4[%c0_4, %c0_5] : memref<872x40xf32, #tpu.memory_space<vmem>>, vector<8x4xf32>
    %cst_6 = arith.constant dense<0.000000e+00> : vector<8x512xf32>
    %10 = tpu.matmul %9, %8, %cst_6 {dimension_numbers = #tpu.dot_dimension_numbers<[1], [0], [0], [1], [0, 0, 1, 1], [], []>} : vector<8x4xf32>, vector<4x512xf32>, vector<8x512xf32> -> vector<8x512xf32>
    %c16 = arith.constant 16 : index
    %c0_7 = arith.constant 0 : index
    %11 = vector.load %arg3[%c16, %c0_7] : memref<536x1xf32, #tpu.memory_space<vmem>>, vector<8x1xf32>
    %12 = vector.broadcast %11 : vector<8x1xf32> to vector<8x512xf32>
    %13 = arith.addf %10, %12 : vector<8x512xf32>
    %c48 = arith.constant 48 : index
    %c0_8 = arith.constant 0 : index
    %14 = vector.load %arg3[%c48, %c0_8] : memref<536x1xf32, #tpu.memory_space<vmem>>, vector<8x1xf32>
    %15 = vector.broadcast %14 : vector<8x1xf32> to vector<8x512xf32>
    %16 = arith.mulf %13, %15 : vector<8x512xf32>
    %c56 = arith.constant 56 : index
    %c0_9 = arith.constant 0 : index
    %17 = vector.load %arg3[%c56, %c0_9] : memref<536x1xf32, #tpu.memory_space<vmem>>, vector<8x1xf32>
    %18 = vector.broadcast %17 : vector<8x1xf32> to vector<8x512xf32>
    %19 = arith.addf %16, %18 : vector<8x512xf32>
    %cst_10 = arith.constant 0.000000e+00 : f32
    %20 = vector.broadcast %cst_10 : f32 to vector<8x512xf32>
    %21 = arith.maximumf %19, %20 : vector<8x512xf32>
    %c0_11 = arith.constant 0 : index
    %c0_12 = arith.constant 0 : index
    %22 = vector.load %arg5[%c0_11, %c0_12] : memref<512x128xf32, #tpu.memory_space<vmem>>, vector<512x128xf32>
    %cst_13 = arith.constant dense<0.000000e+00> : vector<8x128xf32>
    %23 = tpu.matmul %21, %22, %cst_13 {dimension_numbers = #tpu.dot_dimension_numbers<[1], [0], [0], [1], [0, 0, 1, 1], [], []>} : vector<8x512xf32>, vector<512x128xf32>, vector<8x128xf32> -> vector<8x128xf32>
    %c0_14 = arith.constant 0 : index
    %c0_15 = arith.constant 0 : index
    %24 = vector.load %arg2[%c0_14, %c0_15] : memref<4x512xf32, #tpu.memory_space<vmem>>, vector<4x512xf32>
    %c24 = arith.constant 24 : index
    %c0_16 = arith.constant 0 : index
    %25 = vector.load %arg3[%c24, %c0_16] : memref<536x1xf32, #tpu.memory_space<vmem>>, vector<4x1xf32>
    %26 = vector.broadcast %25 : vector<4x1xf32> to vector<4x512xf32>
    %27 = arith.mulf %24, %26 : vector<4x512xf32>
    %c32 = arith.constant 32 : index
    %c0_17 = arith.constant 0 : index
    %28 = vector.load %arg3[%c32, %c0_17] : memref<536x1xf32, #tpu.memory_space<vmem>>, vector<4x1xf32>
    %29 = vector.broadcast %28 : vector<4x1xf32> to vector<4x512xf32>
    %30 = arith.addf %27, %29 : vector<4x512xf32>
    %cst_18 = arith.constant 0.000000e+00 : f32
    %31 = vector.broadcast %cst_18 : f32 to vector<4x512xf32>
    %32 = arith.maximumf %30, %31 : vector<4x512xf32>
    %c8_19 = arith.constant 8 : index
    %c0_20 = arith.constant 0 : index
    %33 = vector.load %arg4[%c8_19, %c0_20] : memref<872x40xf32, #tpu.memory_space<vmem>>, vector<8x4xf32>
    %cst_21 = arith.constant dense<0.000000e+00> : vector<8x512xf32>
    %34 = tpu.matmul %33, %32, %cst_21 {dimension_numbers = #tpu.dot_dimension_numbers<[1], [0], [0], [1], [0, 0, 1, 1], [], []>} : vector<8x4xf32>, vector<4x512xf32>, vector<8x512xf32> -> vector<8x512xf32>
    %c40 = arith.constant 40 : index
    %c0_22 = arith.constant 0 : index
    %35 = vector.load %arg3[%c40, %c0_22] : memref<536x1xf32, #tpu.memory_space<vmem>>, vector<8x1xf32>
    %36 = vector.broadcast %35 : vector<8x1xf32> to vector<8x512xf32>
    %37 = arith.addf %34, %36 : vector<8x512xf32>
    %c64 = arith.constant 64 : index
    %c0_23 = arith.constant 0 : index
    %38 = vector.load %arg3[%c64, %c0_23] : memref<536x1xf32, #tpu.memory_space<vmem>>, vector<8x1xf32>
    %39 = vector.broadcast %38 : vector<8x1xf32> to vector<8x512xf32>
    %40 = arith.mulf %37, %39 : vector<8x512xf32>
    %c72 = arith.constant 72 : index
    %c0_24 = arith.constant 0 : index
    %41 = vector.load %arg3[%c72, %c0_24] : memref<536x1xf32, #tpu.memory_space<vmem>>, vector<8x1xf32>
    %42 = vector.broadcast %41 : vector<8x1xf32> to vector<8x512xf32>
    %43 = arith.addf %40, %42 : vector<8x512xf32>
    %cst_25 = arith.constant 0.000000e+00 : f32
    %44 = vector.broadcast %cst_25 : f32 to vector<8x512xf32>
    %45 = arith.maximumf %43, %44 : vector<8x512xf32>
    %c0_26 = arith.constant 0 : index
    %c0_27 = arith.constant 0 : index
    %46 = vector.load %arg5[%c0_26, %c0_27] : memref<512x128xf32, #tpu.memory_space<vmem>>, vector<512x128xf32>
    %cst_28 = arith.constant dense<0.000000e+00> : vector<8x128xf32>
    %47 = tpu.matmul %45, %46, %cst_28 {dimension_numbers = #tpu.dot_dimension_numbers<[1], [0], [0], [1], [0, 0, 1, 1], [], []>} : vector<8x512xf32>, vector<512x128xf32>, vector<8x128xf32> -> vector<8x128xf32>
    %48 = tpu.concatenate %23, %47 in 0 : vector<8x128xf32>, vector<8x128xf32> -> vector<16x128xf32>
    %c80 = arith.constant 80 : index
    %c0_29 = arith.constant 0 : index
    %49 = vector.load %arg3[%c80, %c0_29] : memref<536x1xf32, #tpu.memory_space<vmem>>, vector<16x1xf32>
    %50 = vector.broadcast %49 : vector<16x1xf32> to vector<16x128xf32>
    %51 = arith.mulf %48, %50 : vector<16x128xf32>
    %c96 = arith.constant 96 : index
    %c0_30 = arith.constant 0 : index
    %52 = vector.load %arg3[%c96, %c0_30] : memref<536x1xf32, #tpu.memory_space<vmem>>, vector<16x1xf32>
    %53 = vector.broadcast %52 : vector<16x1xf32> to vector<16x128xf32>
    %54 = arith.addf %51, %53 : vector<16x128xf32>
    %cst_31 = arith.constant 0.000000e+00 : f32
    %55 = vector.broadcast %cst_31 : f32 to vector<16x128xf32>
    %56 = arith.maximumf %54, %55 : vector<16x128xf32>
    %c16_32 = arith.constant 16 : index
    %c0_33 = arith.constant 0 : index
    %57 = vector.load %arg4[%c16_32, %c0_33] : memref<872x40xf32, #tpu.memory_space<vmem>>, vector<8x16xf32>
    %cst_34 = arith.constant dense<0.000000e+00> : vector<8x128xf32>
    %58 = tpu.matmul %57, %56, %cst_34 {dimension_numbers = #tpu.dot_dimension_numbers<[1], [0], [0], [1], [0, 0, 1, 1], [], []>} : vector<8x16xf32>, vector<16x128xf32>, vector<8x128xf32> -> vector<8x128xf32>
    %c112 = arith.constant 112 : index
    %c0_35 = arith.constant 0 : index
    %59 = vector.load %arg3[%c112, %c0_35] : memref<536x1xf32, #tpu.memory_space<vmem>>, vector<8x1xf32>
    %60 = vector.broadcast %59 : vector<8x1xf32> to vector<8x128xf32>
    %61 = arith.addf %58, %60 : vector<8x128xf32>
    %c120 = arith.constant 120 : index
    %c0_36 = arith.constant 0 : index
    %62 = vector.load %arg3[%c120, %c0_36] : memref<536x1xf32, #tpu.memory_space<vmem>>, vector<8x1xf32>
    %63 = vector.broadcast %62 : vector<8x1xf32> to vector<8x128xf32>
    %64 = arith.mulf %61, %63 : vector<8x128xf32>
    %c128 = arith.constant 128 : index
    %c0_37 = arith.constant 0 : index
    %65 = vector.load %arg3[%c128, %c0_37] : memref<536x1xf32, #tpu.memory_space<vmem>>, vector<8x1xf32>
    %66 = vector.broadcast %65 : vector<8x1xf32> to vector<8x128xf32>
    %67 = arith.addf %64, %66 : vector<8x128xf32>
    %cst_38 = arith.constant 0.000000e+00 : f32
    %68 = vector.broadcast %cst_38 : f32 to vector<8x128xf32>
    %69 = arith.maximumf %67, %68 : vector<8x128xf32>
    %c0_39 = arith.constant 0 : index
    %c0_40 = arith.constant 0 : index
    %70 = vector.load %arg6[%c0_39, %c0_40] : memref<128x222xf32, #tpu.memory_space<vmem>>, vector<128x222xf32>
    %cst_41 = arith.constant dense<0.000000e+00> : vector<8x222xf32>
    %71 = tpu.matmul %69, %70, %cst_41 {dimension_numbers = #tpu.dot_dimension_numbers<[1], [0], [0], [1], [0, 0, 1, 1], [], []>} : vector<8x128xf32>, vector<128x222xf32>, vector<8x222xf32> -> vector<8x222xf32>
    %c24_42 = arith.constant 24 : index
    %c0_43 = arith.constant 0 : index
    %72 = vector.load %arg4[%c24_42, %c0_43] : memref<872x40xf32, #tpu.memory_space<vmem>>, vector<16x8xf32>
    %73 = vector.extract_strided_slice %71 {offsets = [0, 0], sizes = [8, 200], strides = [1, 1]} : vector<8x222xf32> to vector<8x200xf32>
    %cst_44 = arith.constant dense<0.000000e+00> : vector<16x200xf32>
    %74 = tpu.matmul %72, %73, %cst_44 {dimension_numbers = #tpu.dot_dimension_numbers<[1], [0], [0], [1], [0, 0, 1, 1], [], []>} : vector<16x8xf32>, vector<8x200xf32>, vector<16x200xf32> -> vector<16x200xf32>
    %c40_45 = arith.constant 40 : index
    %c0_46 = arith.constant 0 : index
    %75 = vector.load %arg4[%c40_45, %c0_46] : memref<872x40xf32, #tpu.memory_space<vmem>>, vector<16x8xf32>
    %76 = vector.extract_strided_slice %71 {offsets = [0, 1], sizes = [8, 200], strides = [1, 1]} : vector<8x222xf32> to vector<8x200xf32>
    %cst_47 = arith.constant dense<0.000000e+00> : vector<16x200xf32>
    %77 = tpu.matmul %75, %76, %cst_47 {dimension_numbers = #tpu.dot_dimension_numbers<[1], [0], [0], [1], [0, 0, 1, 1], [], []>} : vector<16x8xf32>, vector<8x200xf32>, vector<16x200xf32> -> vector<16x200xf32>
    %78 = arith.addf %74, %77 : vector<16x200xf32>
    %c56_48 = arith.constant 56 : index
    %c0_49 = arith.constant 0 : index
    %79 = vector.load %arg4[%c56_48, %c0_49] : memref<872x40xf32, #tpu.memory_space<vmem>>, vector<16x8xf32>
    %80 = vector.extract_strided_slice %71 {offsets = [0, 2], sizes = [8, 200], strides = [1, 1]} : vector<8x222xf32> to vector<8x200xf32>
    %cst_50 = arith.constant dense<0.000000e+00> : vector<16x200xf32>
    %81 = tpu.matmul %79, %80, %cst_50 {dimension_numbers = #tpu.dot_dimension_numbers<[1], [0], [0], [1], [0, 0, 1, 1], [], []>} : vector<16x8xf32>, vector<8x200xf32>, vector<16x200xf32> -> vector<16x200xf32>
    %82 = arith.addf %78, %81 : vector<16x200xf32>
    %c72_51 = arith.constant 72 : index
    %c0_52 = arith.constant 0 : index
    %83 = vector.load %arg4[%c72_51, %c0_52] : memref<872x40xf32, #tpu.memory_space<vmem>>, vector<16x8xf32>
    %84 = vector.extract_strided_slice %71 {offsets = [0, 10], sizes = [8, 200], strides = [1, 1]} : vector<8x222xf32> to vector<8x200xf32>
    %cst_53 = arith.constant dense<0.000000e+00> : vector<16x200xf32>
    %85 = tpu.matmul %83, %84, %cst_53 {dimension_numbers = #tpu.dot_dimension_numbers<[1], [0], [0], [1], [0, 0, 1, 1], [], []>} : vector<16x8xf32>, vector<8x200xf32>, vector<16x200xf32> -> vector<16x200xf32>
    %86 = arith.addf %82, %85 : vector<16x200xf32>
    %c88 = arith.constant 88 : index
    %c0_54 = arith.constant 0 : index
    %87 = vector.load %arg4[%c88, %c0_54] : memref<872x40xf32, #tpu.memory_space<vmem>>, vector<16x8xf32>
    %88 = vector.extract_strided_slice %71 {offsets = [0, 11], sizes = [8, 200], strides = [1, 1]} : vector<8x222xf32> to vector<8x200xf32>
    %cst_55 = arith.constant dense<0.000000e+00> : vector<16x200xf32>
    %89 = tpu.matmul %87, %88, %cst_55 {dimension_numbers = #tpu.dot_dimension_numbers<[1], [0], [0], [1], [0, 0, 1, 1], [], []>} : vector<16x8xf32>, vector<8x200xf32>, vector<16x200xf32> -> vector<16x200xf32>
    %90 = arith.addf %86, %89 : vector<16x200xf32>
    %c104 = arith.constant 104 : index
    %c0_56 = arith.constant 0 : index
    %91 = vector.load %arg4[%c104, %c0_56] : memref<872x40xf32, #tpu.memory_space<vmem>>, vector<16x8xf32>
    %92 = vector.extract_strided_slice %71 {offsets = [0, 12], sizes = [8, 200], strides = [1, 1]} : vector<8x222xf32> to vector<8x200xf32>
    %cst_57 = arith.constant dense<0.000000e+00> : vector<16x200xf32>
    %93 = tpu.matmul %91, %92, %cst_57 {dimension_numbers = #tpu.dot_dimension_numbers<[1], [0], [0], [1], [0, 0, 1, 1], [], []>} : vector<16x8xf32>, vector<8x200xf32>, vector<16x200xf32> -> vector<16x200xf32>
    %94 = arith.addf %90, %93 : vector<16x200xf32>
    %c120_58 = arith.constant 120 : index
    %c0_59 = arith.constant 0 : index
    %95 = vector.load %arg4[%c120_58, %c0_59] : memref<872x40xf32, #tpu.memory_space<vmem>>, vector<16x8xf32>
    %96 = vector.extract_strided_slice %71 {offsets = [0, 20], sizes = [8, 200], strides = [1, 1]} : vector<8x222xf32> to vector<8x200xf32>
    %cst_60 = arith.constant dense<0.000000e+00> : vector<16x200xf32>
    %97 = tpu.matmul %95, %96, %cst_60 {dimension_numbers = #tpu.dot_dimension_numbers<[1], [0], [0], [1], [0, 0, 1, 1], [], []>} : vector<16x8xf32>, vector<8x200xf32>, vector<16x200xf32> -> vector<16x200xf32>
    %98 = arith.addf %94, %97 : vector<16x200xf32>
    %c136 = arith.constant 136 : index
    %c0_61 = arith.constant 0 : index
    %99 = vector.load %arg4[%c136, %c0_61] : memref<872x40xf32, #tpu.memory_space<vmem>>, vector<16x8xf32>
    %100 = vector.extract_strided_slice %71 {offsets = [0, 21], sizes = [8, 200], strides = [1, 1]} : vector<8x222xf32> to vector<8x200xf32>
    %cst_62 = arith.constant dense<0.000000e+00> : vector<16x200xf32>
    %101 = tpu.matmul %99, %100, %cst_62 {dimension_numbers = #tpu.dot_dimension_numbers<[1], [0], [0], [1], [0, 0, 1, 1], [], []>} : vector<16x8xf32>, vector<8x200xf32>, vector<16x200xf32> -> vector<16x200xf32>
    %102 = arith.addf %98, %101 : vector<16x200xf32>
    %c152 = arith.constant 152 : index
    %c0_63 = arith.constant 0 : index
    %103 = vector.load %arg4[%c152, %c0_63] : memref<872x40xf32, #tpu.memory_space<vmem>>, vector<16x8xf32>
    %104 = vector.extract_strided_slice %71 {offsets = [0, 22], sizes = [8, 200], strides = [1, 1]} : vector<8x222xf32> to vector<8x200xf32>
    %cst_64 = arith.constant dense<0.000000e+00> : vector<16x200xf32>
    %105 = tpu.matmul %103, %104, %cst_64 {dimension_numbers = #tpu.dot_dimension_numbers<[1], [0], [0], [1], [0, 0, 1, 1], [], []>} : vector<16x8xf32>, vector<8x200xf32>, vector<16x200xf32> -> vector<16x200xf32>
    %106 = arith.addf %102, %105 : vector<16x200xf32>
    %c0_65 = arith.constant 0 : index
    %c0_66 = arith.constant 0 : index
    %107 = vector.load %arg7[%c0_65, %c0_66] : memref<200x128xf32, #tpu.memory_space<vmem>>, vector<200x128xf32>
    %cst_67 = arith.constant dense<0.000000e+00> : vector<16x128xf32>
    %108 = tpu.matmul %106, %107, %cst_67 {dimension_numbers = #tpu.dot_dimension_numbers<[1], [0], [0], [1], [0, 0, 1, 1], [], []>} : vector<16x200xf32>, vector<200x128xf32>, vector<16x128xf32> -> vector<16x128xf32>
    %c136_68 = arith.constant 136 : index
    %c0_69 = arith.constant 0 : index
    %109 = vector.load %arg3[%c136_68, %c0_69] : memref<536x1xf32, #tpu.memory_space<vmem>>, vector<16x1xf32>
    %110 = vector.broadcast %109 : vector<16x1xf32> to vector<16x128xf32>
    %111 = arith.addf %108, %110 : vector<16x128xf32>
    %c152_70 = arith.constant 152 : index
    %c0_71 = arith.constant 0 : index
    %112 = vector.load %arg3[%c152_70, %c0_71] : memref<536x1xf32, #tpu.memory_space<vmem>>, vector<16x1xf32>
    %113 = vector.broadcast %112 : vector<16x1xf32> to vector<16x128xf32>
    %114 = arith.mulf %111, %113 : vector<16x128xf32>
    %c168 = arith.constant 168 : index
    %c0_72 = arith.constant 0 : index
    %115 = vector.load %arg3[%c168, %c0_72] : memref<536x1xf32, #tpu.memory_space<vmem>>, vector<16x1xf32>
    %116 = vector.broadcast %115 : vector<16x1xf32> to vector<16x128xf32>
    %117 = arith.addf %114, %116 : vector<16x128xf32>
    %cst_73 = arith.constant 0.000000e+00 : f32
    %118 = vector.broadcast %cst_73 : f32 to vector<16x128xf32>
    %119 = arith.maximumf %117, %118 : vector<16x128xf32>
    %c0_74 = arith.constant 0 : index
    %c0_75 = arith.constant 0 : index
    %120 = vector.load %arg6[%c0_74, %c0_75] : memref<128x222xf32, #tpu.memory_space<vmem>>, vector<128x222xf32>
    %cst_76 = arith.constant dense<0.000000e+00> : vector<16x222xf32>
    %121 = tpu.matmul %119, %120, %cst_76 {dimension_numbers = #tpu.dot_dimension_numbers<[1], [0], [0], [1], [0, 0, 1, 1], [], []>} : vector<16x128xf32>, vector<128x222xf32>, vector<16x222xf32> -> vector<16x222xf32>
    %c168_77 = arith.constant 168 : index
    %c0_78 = arith.constant 0 : index
    %122 = vector.load %arg4[%c168_77, %c0_78] : memref<872x40xf32, #tpu.memory_space<vmem>>, vector<8x16xf32>
    %123 = vector.extract_strided_slice %121 {offsets = [0, 0], sizes = [16, 200], strides = [1, 1]} : vector<16x222xf32> to vector<16x200xf32>
    %cst_79 = arith.constant dense<0.000000e+00> : vector<8x200xf32>
    %124 = tpu.matmul %122, %123, %cst_79 {dimension_numbers = #tpu.dot_dimension_numbers<[1], [0], [0], [1], [0, 0, 1, 1], [], []>} : vector<8x16xf32>, vector<16x200xf32>, vector<8x200xf32> -> vector<8x200xf32>
    %c176 = arith.constant 176 : index
    %c0_80 = arith.constant 0 : index
    %125 = vector.load %arg4[%c176, %c0_80] : memref<872x40xf32, #tpu.memory_space<vmem>>, vector<8x16xf32>
    %126 = vector.extract_strided_slice %121 {offsets = [0, 1], sizes = [16, 200], strides = [1, 1]} : vector<16x222xf32> to vector<16x200xf32>
    %cst_81 = arith.constant dense<0.000000e+00> : vector<8x200xf32>
    %127 = tpu.matmul %125, %126, %cst_81 {dimension_numbers = #tpu.dot_dimension_numbers<[1], [0], [0], [1], [0, 0, 1, 1], [], []>} : vector<8x16xf32>, vector<16x200xf32>, vector<8x200xf32> -> vector<8x200xf32>
    %128 = arith.addf %124, %127 : vector<8x200xf32>
    %c184 = arith.constant 184 : index
    %c0_82 = arith.constant 0 : index
    %129 = vector.load %arg4[%c184, %c0_82] : memref<872x40xf32, #tpu.memory_space<vmem>>, vector<8x16xf32>
    %130 = vector.extract_strided_slice %121 {offsets = [0, 2], sizes = [16, 200], strides = [1, 1]} : vector<16x222xf32> to vector<16x200xf32>
    %cst_83 = arith.constant dense<0.000000e+00> : vector<8x200xf32>
    %131 = tpu.matmul %129, %130, %cst_83 {dimension_numbers = #tpu.dot_dimension_numbers<[1], [0], [0], [1], [0, 0, 1, 1], [], []>} : vector<8x16xf32>, vector<16x200xf32>, vector<8x200xf32> -> vector<8x200xf32>
    %132 = arith.addf %128, %131 : vector<8x200xf32>
    %c192 = arith.constant 192 : index
    %c0_84 = arith.constant 0 : index
    %133 = vector.load %arg4[%c192, %c0_84] : memref<872x40xf32, #tpu.memory_space<vmem>>, vector<8x16xf32>
    %134 = vector.extract_strided_slice %121 {offsets = [0, 10], sizes = [16, 200], strides = [1, 1]} : vector<16x222xf32> to vector<16x200xf32>
    %cst_85 = arith.constant dense<0.000000e+00> : vector<8x200xf32>
    %135 = tpu.matmul %133, %134, %cst_85 {dimension_numbers = #tpu.dot_dimension_numbers<[1], [0], [0], [1], [0, 0, 1, 1], [], []>} : vector<8x16xf32>, vector<16x200xf32>, vector<8x200xf32> -> vector<8x200xf32>
    %136 = arith.addf %132, %135 : vector<8x200xf32>
    %c200 = arith.constant 200 : index
    %c0_86 = arith.constant 0 : index
    %137 = vector.load %arg4[%c200, %c0_86] : memref<872x40xf32, #tpu.memory_space<vmem>>, vector<8x16xf32>
    %138 = vector.extract_strided_slice %121 {offsets = [0, 11], sizes = [16, 200], strides = [1, 1]} : vector<16x222xf32> to vector<16x200xf32>
    %cst_87 = arith.constant dense<0.000000e+00> : vector<8x200xf32>
    %139 = tpu.matmul %137, %138, %cst_87 {dimension_numbers = #tpu.dot_dimension_numbers<[1], [0], [0], [1], [0, 0, 1, 1], [], []>} : vector<8x16xf32>, vector<16x200xf32>, vector<8x200xf32> -> vector<8x200xf32>
    %140 = arith.addf %136, %139 : vector<8x200xf32>
    %c208 = arith.constant 208 : index
    %c0_88 = arith.constant 0 : index
    %141 = vector.load %arg4[%c208, %c0_88] : memref<872x40xf32, #tpu.memory_space<vmem>>, vector<8x16xf32>
    %142 = vector.extract_strided_slice %121 {offsets = [0, 12], sizes = [16, 200], strides = [1, 1]} : vector<16x222xf32> to vector<16x200xf32>
    %cst_89 = arith.constant dense<0.000000e+00> : vector<8x200xf32>
    %143 = tpu.matmul %141, %142, %cst_89 {dimension_numbers = #tpu.dot_dimension_numbers<[1], [0], [0], [1], [0, 0, 1, 1], [], []>} : vector<8x16xf32>, vector<16x200xf32>, vector<8x200xf32> -> vector<8x200xf32>
    %144 = arith.addf %140, %143 : vector<8x200xf32>
    %c216 = arith.constant 216 : index
    %c0_90 = arith.constant 0 : index
    %145 = vector.load %arg4[%c216, %c0_90] : memref<872x40xf32, #tpu.memory_space<vmem>>, vector<8x16xf32>
    %146 = vector.extract_strided_slice %121 {offsets = [0, 20], sizes = [16, 200], strides = [1, 1]} : vector<16x222xf32> to vector<16x200xf32>
    %cst_91 = arith.constant dense<0.000000e+00> : vector<8x200xf32>
    %147 = tpu.matmul %145, %146, %cst_91 {dimension_numbers = #tpu.dot_dimension_numbers<[1], [0], [0], [1], [0, 0, 1, 1], [], []>} : vector<8x16xf32>, vector<16x200xf32>, vector<8x200xf32> -> vector<8x200xf32>
    %148 = arith.addf %144, %147 : vector<8x200xf32>
    %c224 = arith.constant 224 : index
    %c0_92 = arith.constant 0 : index
    %149 = vector.load %arg4[%c224, %c0_92] : memref<872x40xf32, #tpu.memory_space<vmem>>, vector<8x16xf32>
    %150 = vector.extract_strided_slice %121 {offsets = [0, 21], sizes = [16, 200], strides = [1, 1]} : vector<16x222xf32> to vector<16x200xf32>
    %cst_93 = arith.constant dense<0.000000e+00> : vector<8x200xf32>
    %151 = tpu.matmul %149, %150, %cst_93 {dimension_numbers = #tpu.dot_dimension_numbers<[1], [0], [0], [1], [0, 0, 1, 1], [], []>} : vector<8x16xf32>, vector<16x200xf32>, vector<8x200xf32> -> vector<8x200xf32>
    %152 = arith.addf %148, %151 : vector<8x200xf32>
    %c232 = arith.constant 232 : index
    %c0_94 = arith.constant 0 : index
    %153 = vector.load %arg4[%c232, %c0_94] : memref<872x40xf32, #tpu.memory_space<vmem>>, vector<8x16xf32>
    %154 = vector.extract_strided_slice %121 {offsets = [0, 22], sizes = [16, 200], strides = [1, 1]} : vector<16x222xf32> to vector<16x200xf32>
    %cst_95 = arith.constant dense<0.000000e+00> : vector<8x200xf32>
    %155 = tpu.matmul %153, %154, %cst_95 {dimension_numbers = #tpu.dot_dimension_numbers<[1], [0], [0], [1], [0, 0, 1, 1], [], []>} : vector<8x16xf32>, vector<16x200xf32>, vector<8x200xf32> -> vector<8x200xf32>
    %156 = arith.addf %152, %155 : vector<8x200xf32>
    %c0_96 = arith.constant 0 : index
    %c0_97 = arith.constant 0 : index
    %157 = vector.load %arg7[%c0_96, %c0_97] : memref<200x128xf32, #tpu.memory_space<vmem>>, vector<200x128xf32>
    %cst_98 = arith.constant dense<0.000000e+00> : vector<8x128xf32>
    %158 = tpu.matmul %156, %157, %cst_98 {dimension_numbers = #tpu.dot_dimension_numbers<[1], [0], [0], [1], [0, 0, 1, 1], [], []>} : vector<8x200xf32>, vector<200x128xf32>, vector<8x128xf32> -> vector<8x128xf32>
    %c184_99 = arith.constant 184 : index
    %c0_100 = arith.constant 0 : index
    %159 = vector.load %arg3[%c184_99, %c0_100] : memref<536x1xf32, #tpu.memory_space<vmem>>, vector<8x1xf32>
    %160 = vector.broadcast %159 : vector<8x1xf32> to vector<8x128xf32>
    %161 = arith.addf %158, %160 : vector<8x128xf32>
    %c192_101 = arith.constant 192 : index
    %c0_102 = arith.constant 0 : index
    %162 = vector.load %arg3[%c192_101, %c0_102] : memref<536x1xf32, #tpu.memory_space<vmem>>, vector<16x1xf32>
    %163 = vector.broadcast %162 : vector<16x1xf32> to vector<16x128xf32>
    %164 = arith.mulf %48, %163 : vector<16x128xf32>
    %c208_103 = arith.constant 208 : index
    %c0_104 = arith.constant 0 : index
    %165 = vector.load %arg3[%c208_103, %c0_104] : memref<536x1xf32, #tpu.memory_space<vmem>>, vector<16x1xf32>
    %166 = vector.broadcast %165 : vector<16x1xf32> to vector<16x128xf32>
    %167 = arith.addf %164, %166 : vector<16x128xf32>
    %cst_105 = arith.constant 0.000000e+00 : f32
    %168 = vector.broadcast %cst_105 : f32 to vector<16x128xf32>
    %169 = arith.maximumf %167, %168 : vector<16x128xf32>
    %c240 = arith.constant 240 : index
    %c0_106 = arith.constant 0 : index
    %170 = vector.load %arg4[%c240, %c0_106] : memref<872x40xf32, #tpu.memory_space<vmem>>, vector<8x16xf32>
    %cst_107 = arith.constant dense<0.000000e+00> : vector<8x128xf32>
    %171 = tpu.matmul %170, %169, %cst_107 {dimension_numbers = #tpu.dot_dimension_numbers<[1], [0], [0], [1], [0, 0, 1, 1], [], []>} : vector<8x16xf32>, vector<16x128xf32>, vector<8x128xf32> -> vector<8x128xf32>
    %c224_108 = arith.constant 224 : index
    %c0_109 = arith.constant 0 : index
    %172 = vector.load %arg3[%c224_108, %c0_109] : memref<536x1xf32, #tpu.memory_space<vmem>>, vector<8x1xf32>
    %173 = vector.broadcast %172 : vector<8x1xf32> to vector<8x128xf32>
    %174 = arith.addf %171, %173 : vector<8x128xf32>
    %c232_110 = arith.constant 232 : index
    %c0_111 = arith.constant 0 : index
    %175 = vector.load %arg3[%c232_110, %c0_111] : memref<536x1xf32, #tpu.memory_space<vmem>>, vector<8x1xf32>
    %176 = vector.broadcast %175 : vector<8x1xf32> to vector<8x128xf32>
    %177 = arith.mulf %174, %176 : vector<8x128xf32>
    %c240_112 = arith.constant 240 : index
    %c0_113 = arith.constant 0 : index
    %178 = vector.load %arg3[%c240_112, %c0_113] : memref<536x1xf32, #tpu.memory_space<vmem>>, vector<8x1xf32>
    %179 = vector.broadcast %178 : vector<8x1xf32> to vector<8x128xf32>
    %180 = arith.addf %177, %179 : vector<8x128xf32>
    %cst_114 = arith.constant 0.000000e+00 : f32
    %181 = vector.broadcast %cst_114 : f32 to vector<8x128xf32>
    %182 = arith.maximumf %180, %181 : vector<8x128xf32>
    %c0_115 = arith.constant 0 : index
    %c0_116 = arith.constant 0 : index
    %183 = vector.load %arg6[%c0_115, %c0_116] : memref<128x222xf32, #tpu.memory_space<vmem>>, vector<128x222xf32>
    %cst_117 = arith.constant dense<0.000000e+00> : vector<8x222xf32>
    %184 = tpu.matmul %182, %183, %cst_117 {dimension_numbers = #tpu.dot_dimension_numbers<[1], [0], [0], [1], [0, 0, 1, 1], [], []>} : vector<8x128xf32>, vector<128x222xf32>, vector<8x222xf32> -> vector<8x222xf32>
    %185 = vector.extract_strided_slice %184 {offsets = [0, 0], sizes = [8, 200], strides = [1, 1]} : vector<8x222xf32> to vector<8x200xf32>
    %186 = vector.extract_strided_slice %184 {offsets = [0, 1], sizes = [8, 200], strides = [1, 1]} : vector<8x222xf32> to vector<8x200xf32>
    %187 = arith.addf %185, %186 : vector<8x200xf32>
    %188 = vector.extract_strided_slice %184 {offsets = [0, 2], sizes = [8, 200], strides = [1, 1]} : vector<8x222xf32> to vector<8x200xf32>
    %189 = arith.addf %187, %188 : vector<8x200xf32>
    %190 = vector.extract_strided_slice %184 {offsets = [0, 10], sizes = [8, 200], strides = [1, 1]} : vector<8x222xf32> to vector<8x200xf32>
    %191 = arith.addf %189, %190 : vector<8x200xf32>
    %192 = vector.extract_strided_slice %184 {offsets = [0, 11], sizes = [8, 200], strides = [1, 1]} : vector<8x222xf32> to vector<8x200xf32>
    %193 = arith.addf %191, %192 : vector<8x200xf32>
    %194 = vector.extract_strided_slice %184 {offsets = [0, 12], sizes = [8, 200], strides = [1, 1]} : vector<8x222xf32> to vector<8x200xf32>
    %195 = arith.addf %193, %194 : vector<8x200xf32>
    %196 = vector.extract_strided_slice %184 {offsets = [0, 20], sizes = [8, 200], strides = [1, 1]} : vector<8x222xf32> to vector<8x200xf32>
    %197 = arith.addf %195, %196 : vector<8x200xf32>
    %198 = vector.extract_strided_slice %184 {offsets = [0, 21], sizes = [8, 200], strides = [1, 1]} : vector<8x222xf32> to vector<8x200xf32>
    %199 = arith.addf %197, %198 : vector<8x200xf32>
    %200 = vector.extract_strided_slice %184 {offsets = [0, 22], sizes = [8, 200], strides = [1, 1]} : vector<8x222xf32> to vector<8x200xf32>
    %201 = arith.addf %199, %200 : vector<8x200xf32>
    %cst_118 = arith.constant 0.111111112 : f32
    %202 = vector.broadcast %cst_118 : f32 to vector<8x200xf32>
    %203 = arith.mulf %201, %202 : vector<8x200xf32>
    %c0_119 = arith.constant 0 : index
    %c0_120 = arith.constant 0 : index
    %204 = vector.load %arg7[%c0_119, %c0_120] : memref<200x128xf32, #tpu.memory_space<vmem>>, vector<200x128xf32>
    %cst_121 = arith.constant dense<0.000000e+00> : vector<8x128xf32>
    %205 = tpu.matmul %203, %204, %cst_121 {dimension_numbers = #tpu.dot_dimension_numbers<[1], [0], [0], [1], [0, 0, 1, 1], [], []>} : vector<8x200xf32>, vector<200x128xf32>, vector<8x128xf32> -> vector<8x128xf32>
    %206 = arith.addf %161, %205 : vector<8x128xf32>
    %207 = tpu.concatenate %23, %206 in 0 : vector<8x128xf32>, vector<8x128xf32> -> vector<16x128xf32>
    %c248 = arith.constant 248 : index
    %c0_122 = arith.constant 0 : index
    %208 = vector.load %arg3[%c248, %c0_122] : memref<536x1xf32, #tpu.memory_space<vmem>>, vector<16x1xf32>
    %209 = vector.broadcast %208 : vector<16x1xf32> to vector<16x128xf32>
    %210 = arith.mulf %207, %209 : vector<16x128xf32>
    %c264 = arith.constant 264 : index
    %c0_123 = arith.constant 0 : index
    %211 = vector.load %arg3[%c264, %c0_123] : memref<536x1xf32, #tpu.memory_space<vmem>>, vector<16x1xf32>
    %212 = vector.broadcast %211 : vector<16x1xf32> to vector<16x128xf32>
    %213 = arith.addf %210, %212 : vector<16x128xf32>
    %cst_124 = arith.constant 0.000000e+00 : f32
    %214 = vector.broadcast %cst_124 : f32 to vector<16x128xf32>
    %215 = arith.maximumf %213, %214 : vector<16x128xf32>
    %c248_125 = arith.constant 248 : index
    %c0_126 = arith.constant 0 : index
    %216 = vector.load %arg4[%c248_125, %c0_126] : memref<872x40xf32, #tpu.memory_space<vmem>>, vector<8x16xf32>
    %cst_127 = arith.constant dense<0.000000e+00> : vector<8x128xf32>
    %217 = tpu.matmul %216, %215, %cst_127 {dimension_numbers = #tpu.dot_dimension_numbers<[1], [0], [0], [1], [0, 0, 1, 1], [], []>} : vector<8x16xf32>, vector<16x128xf32>, vector<8x128xf32> -> vector<8x128xf32>
    %c280 = arith.constant 280 : index
    %c0_128 = arith.constant 0 : index
    %218 = vector.load %arg3[%c280, %c0_128] : memref<536x1xf32, #tpu.memory_space<vmem>>, vector<8x1xf32>
    %219 = vector.broadcast %218 : vector<8x1xf32> to vector<8x128xf32>
    %220 = arith.addf %217, %219 : vector<8x128xf32>
    %c288 = arith.constant 288 : index
    %c0_129 = arith.constant 0 : index
    %221 = vector.load %arg3[%c288, %c0_129] : memref<536x1xf32, #tpu.memory_space<vmem>>, vector<8x1xf32>
    %222 = vector.broadcast %221 : vector<8x1xf32> to vector<8x128xf32>
    %223 = arith.mulf %220, %222 : vector<8x128xf32>
    %c296 = arith.constant 296 : index
    %c0_130 = arith.constant 0 : index
    %224 = vector.load %arg3[%c296, %c0_130] : memref<536x1xf32, #tpu.memory_space<vmem>>, vector<8x1xf32>
    %225 = vector.broadcast %224 : vector<8x1xf32> to vector<8x128xf32>
    %226 = arith.addf %223, %225 : vector<8x128xf32>
    %cst_131 = arith.constant 0.000000e+00 : f32
    %227 = vector.broadcast %cst_131 : f32 to vector<8x128xf32>
    %228 = arith.maximumf %226, %227 : vector<8x128xf32>
    %c0_132 = arith.constant 0 : index
    %c0_133 = arith.constant 0 : index
    %229 = vector.load %arg6[%c0_132, %c0_133] : memref<128x222xf32, #tpu.memory_space<vmem>>, vector<128x222xf32>
    %cst_134 = arith.constant dense<0.000000e+00> : vector<8x222xf32>
    %230 = tpu.matmul %228, %229, %cst_134 {dimension_numbers = #tpu.dot_dimension_numbers<[1], [0], [0], [1], [0, 0, 1, 1], [], []>} : vector<8x128xf32>, vector<128x222xf32>, vector<8x222xf32> -> vector<8x222xf32>
    %231 = vector.extract_strided_slice %230 {offsets = [0, 0], sizes = [8, 200], strides = [1, 1]} : vector<8x222xf32> to vector<8x200xf32>
    %232 = vector.extract_strided_slice %230 {offsets = [0, 1], sizes = [8, 200], strides = [1, 1]} : vector<8x222xf32> to vector<8x200xf32>
    %233 = arith.maximumf %231, %232 : vector<8x200xf32>
    %234 = vector.extract_strided_slice %230 {offsets = [0, 2], sizes = [8, 200], strides = [1, 1]} : vector<8x222xf32> to vector<8x200xf32>
    %235 = arith.maximumf %233, %234 : vector<8x200xf32>
    %236 = vector.extract_strided_slice %230 {offsets = [0, 10], sizes = [8, 200], strides = [1, 1]} : vector<8x222xf32> to vector<8x200xf32>
    %237 = arith.maximumf %235, %236 : vector<8x200xf32>
    %238 = vector.extract_strided_slice %230 {offsets = [0, 11], sizes = [8, 200], strides = [1, 1]} : vector<8x222xf32> to vector<8x200xf32>
    %239 = arith.maximumf %237, %238 : vector<8x200xf32>
    %240 = vector.extract_strided_slice %230 {offsets = [0, 12], sizes = [8, 200], strides = [1, 1]} : vector<8x222xf32> to vector<8x200xf32>
    %241 = arith.maximumf %239, %240 : vector<8x200xf32>
    %242 = vector.extract_strided_slice %230 {offsets = [0, 20], sizes = [8, 200], strides = [1, 1]} : vector<8x222xf32> to vector<8x200xf32>
    %243 = arith.maximumf %241, %242 : vector<8x200xf32>
    %244 = vector.extract_strided_slice %230 {offsets = [0, 21], sizes = [8, 200], strides = [1, 1]} : vector<8x222xf32> to vector<8x200xf32>
    %245 = arith.maximumf %243, %244 : vector<8x200xf32>
    %246 = vector.extract_strided_slice %230 {offsets = [0, 22], sizes = [8, 200], strides = [1, 1]} : vector<8x222xf32> to vector<8x200xf32>
    %247 = arith.maximumf %245, %246 : vector<8x200xf32>
    %c0_135 = arith.constant 0 : index
    %c0_136 = arith.constant 0 : index
    %248 = vector.load %arg7[%c0_135, %c0_136] : memref<200x128xf32, #tpu.memory_space<vmem>>, vector<200x128xf32>
    %cst_137 = arith.constant dense<0.000000e+00> : vector<8x128xf32>
    %249 = tpu.matmul %247, %248, %cst_137 {dimension_numbers = #tpu.dot_dimension_numbers<[1], [0], [0], [1], [0, 0, 1, 1], [], []>} : vector<8x200xf32>, vector<200x128xf32>, vector<8x128xf32> -> vector<8x128xf32>
    %250 = tpu.concatenate %47, %206, %249 in 0 : vector<8x128xf32>, vector<8x128xf32>, vector<8x128xf32> -> vector<24x128xf32>
    %c304 = arith.constant 304 : index
    %c0_138 = arith.constant 0 : index
    %251 = vector.load %arg3[%c304, %c0_138] : memref<536x1xf32, #tpu.memory_space<vmem>>, vector<24x1xf32>
    %252 = vector.broadcast %251 : vector<24x1xf32> to vector<24x128xf32>
    %253 = arith.mulf %250, %252 : vector<24x128xf32>
    %c328 = arith.constant 328 : index
    %c0_139 = arith.constant 0 : index
    %254 = vector.load %arg3[%c328, %c0_139] : memref<536x1xf32, #tpu.memory_space<vmem>>, vector<24x1xf32>
    %255 = vector.broadcast %254 : vector<24x1xf32> to vector<24x128xf32>
    %256 = arith.addf %253, %255 : vector<24x128xf32>
    %cst_140 = arith.constant 0.000000e+00 : f32
    %257 = vector.broadcast %cst_140 : f32 to vector<24x128xf32>
    %258 = arith.maximumf %256, %257 : vector<24x128xf32>
    %c256 = arith.constant 256 : index
    %c0_141 = arith.constant 0 : index
    %259 = vector.load %arg4[%c256, %c0_141] : memref<872x40xf32, #tpu.memory_space<vmem>>, vector<8x24xf32>
    %cst_142 = arith.constant dense<0.000000e+00> : vector<8x128xf32>
    %260 = tpu.matmul %259, %258, %cst_142 {dimension_numbers = #tpu.dot_dimension_numbers<[1], [0], [0], [1], [0, 0, 1, 1], [], []>} : vector<8x24xf32>, vector<24x128xf32>, vector<8x128xf32> -> vector<8x128xf32>
    %c352 = arith.constant 352 : index
    %c0_143 = arith.constant 0 : index
    %261 = vector.load %arg3[%c352, %c0_143] : memref<536x1xf32, #tpu.memory_space<vmem>>, vector<8x1xf32>
    %262 = vector.broadcast %261 : vector<8x1xf32> to vector<8x128xf32>
    %263 = arith.addf %260, %262 : vector<8x128xf32>
    %c360 = arith.constant 360 : index
    %c0_144 = arith.constant 0 : index
    %264 = vector.load %arg3[%c360, %c0_144] : memref<536x1xf32, #tpu.memory_space<vmem>>, vector<8x1xf32>
    %265 = vector.broadcast %264 : vector<8x1xf32> to vector<8x128xf32>
    %266 = arith.mulf %263, %265 : vector<8x128xf32>
    %c368 = arith.constant 368 : index
    %c0_145 = arith.constant 0 : index
    %267 = vector.load %arg3[%c368, %c0_145] : memref<536x1xf32, #tpu.memory_space<vmem>>, vector<8x1xf32>
    %268 = vector.broadcast %267 : vector<8x1xf32> to vector<8x128xf32>
    %269 = arith.addf %266, %268 : vector<8x128xf32>
    %cst_146 = arith.constant 0.000000e+00 : f32
    %270 = vector.broadcast %cst_146 : f32 to vector<8x128xf32>
    %271 = arith.maximumf %269, %270 : vector<8x128xf32>
    %272 = tpu.concatenate %23, %47, %206, %249, %271 in 0 : vector<8x128xf32>, vector<8x128xf32>, vector<8x128xf32>, vector<8x128xf32>, vector<8x128xf32> -> vector<40x128xf32>
    %c376 = arith.constant 376 : index
    %c0_147 = arith.constant 0 : index
    %273 = vector.load %arg3[%c376, %c0_147] : memref<536x1xf32, #tpu.memory_space<vmem>>, vector<40x1xf32>
    %274 = vector.broadcast %273 : vector<40x1xf32> to vector<40x128xf32>
    %275 = arith.mulf %272, %274 : vector<40x128xf32>
    %c416 = arith.constant 416 : index
    %c0_148 = arith.constant 0 : index
    %276 = vector.load %arg3[%c416, %c0_148] : memref<536x1xf32, #tpu.memory_space<vmem>>, vector<40x1xf32>
    %277 = vector.broadcast %276 : vector<40x1xf32> to vector<40x128xf32>
    %278 = arith.addf %275, %277 : vector<40x128xf32>
    %cst_149 = arith.constant 0.000000e+00 : f32
    %279 = vector.broadcast %cst_149 : f32 to vector<40x128xf32>
    %280 = arith.maximumf %278, %279 : vector<40x128xf32>
    %c264_150 = arith.constant 264 : index
    %c0_151 = arith.constant 0 : index
    %281 = vector.load %arg4[%c264_150, %c0_151] : memref<872x40xf32, #tpu.memory_space<vmem>>, vector<8x40xf32>
    %cst_152 = arith.constant dense<0.000000e+00> : vector<8x128xf32>
    %282 = tpu.matmul %281, %280, %cst_152 {dimension_numbers = #tpu.dot_dimension_numbers<[1], [0], [0], [1], [0, 0, 1, 1], [], []>} : vector<8x40xf32>, vector<40x128xf32>, vector<8x128xf32> -> vector<8x128xf32>
    %c456 = arith.constant 456 : index
    %c0_153 = arith.constant 0 : index
    %283 = vector.load %arg3[%c456, %c0_153] : memref<536x1xf32, #tpu.memory_space<vmem>>, vector<8x1xf32>
    %284 = vector.broadcast %283 : vector<8x1xf32> to vector<8x128xf32>
    %285 = arith.addf %282, %284 : vector<8x128xf32>
    %c464 = arith.constant 464 : index
    %c0_154 = arith.constant 0 : index
    %286 = vector.load %arg3[%c464, %c0_154] : memref<536x1xf32, #tpu.memory_space<vmem>>, vector<8x1xf32>
    %287 = vector.broadcast %286 : vector<8x1xf32> to vector<8x128xf32>
    %288 = arith.mulf %285, %287 : vector<8x128xf32>
    %c472 = arith.constant 472 : index
    %c0_155 = arith.constant 0 : index
    %289 = vector.load %arg3[%c472, %c0_155] : memref<536x1xf32, #tpu.memory_space<vmem>>, vector<8x1xf32>
    %290 = vector.broadcast %289 : vector<8x1xf32> to vector<8x128xf32>
    %291 = arith.addf %288, %290 : vector<8x128xf32>
    %cst_156 = arith.constant 0.000000e+00 : f32
    %292 = vector.broadcast %cst_156 : f32 to vector<8x128xf32>
    %293 = arith.maximumf %291, %292 : vector<8x128xf32>
    %c0_157 = arith.constant 0 : index
    %c0_158 = arith.constant 0 : index
    %294 = vector.load %arg8[%c0_157, %c0_158] : memref<128x340xf32, #tpu.memory_space<vmem>>, vector<128x340xf32>
    %cst_159 = arith.constant dense<0.000000e+00> : vector<8x340xf32>
    %295 = tpu.matmul %293, %294, %cst_159 {dimension_numbers = #tpu.dot_dimension_numbers<[1], [0], [0], [1], [0, 0, 1, 1], [], []>} : vector<8x128xf32>, vector<128x340xf32>, vector<8x340xf32> -> vector<8x340xf32>
    %c272 = arith.constant 272 : index
    %c0_160 = arith.constant 0 : index
    %296 = vector.load %arg4[%c272, %c0_160] : memref<872x40xf32, #tpu.memory_space<vmem>>, vector<16x8xf32>
    %297 = vector.extract_strided_slice %295 {offsets = [0, 0], sizes = [8, 288], strides = [1, 1]} : vector<8x340xf32> to vector<8x288xf32>
    %cst_161 = arith.constant dense<0.000000e+00> : vector<16x288xf32>
    %298 = tpu.matmul %296, %297, %cst_161 {dimension_numbers = #tpu.dot_dimension_numbers<[1], [0], [0], [1], [0, 0, 1, 1], [], []>} : vector<16x8xf32>, vector<8x288xf32>, vector<16x288xf32> -> vector<16x288xf32>
    %c288_162 = arith.constant 288 : index
    %c0_163 = arith.constant 0 : index
    %299 = vector.load %arg4[%c288_162, %c0_163] : memref<872x40xf32, #tpu.memory_space<vmem>>, vector<16x8xf32>
    %300 = vector.extract_strided_slice %295 {offsets = [0, 1], sizes = [8, 288], strides = [1, 1]} : vector<8x340xf32> to vector<8x288xf32>
    %cst_164 = arith.constant dense<0.000000e+00> : vector<16x288xf32>
    %301 = tpu.matmul %299, %300, %cst_164 {dimension_numbers = #tpu.dot_dimension_numbers<[1], [0], [0], [1], [0, 0, 1, 1], [], []>} : vector<16x8xf32>, vector<8x288xf32>, vector<16x288xf32> -> vector<16x288xf32>
    %302 = arith.addf %298, %301 : vector<16x288xf32>
    %c304_165 = arith.constant 304 : index
    %c0_166 = arith.constant 0 : index
    %303 = vector.load %arg4[%c304_165, %c0_166] : memref<872x40xf32, #tpu.memory_space<vmem>>, vector<16x8xf32>
    %304 = vector.extract_strided_slice %295 {offsets = [0, 2], sizes = [8, 288], strides = [1, 1]} : vector<8x340xf32> to vector<8x288xf32>
    %cst_167 = arith.constant dense<0.000000e+00> : vector<16x288xf32>
    %305 = tpu.matmul %303, %304, %cst_167 {dimension_numbers = #tpu.dot_dimension_numbers<[1], [0], [0], [1], [0, 0, 1, 1], [], []>} : vector<16x8xf32>, vector<8x288xf32>, vector<16x288xf32> -> vector<16x288xf32>
    %306 = arith.addf %302, %305 : vector<16x288xf32>
    %c320 = arith.constant 320 : index
    %c0_168 = arith.constant 0 : index
    %307 = vector.load %arg4[%c320, %c0_168] : memref<872x40xf32, #tpu.memory_space<vmem>>, vector<16x8xf32>
    %308 = vector.extract_strided_slice %295 {offsets = [0, 3], sizes = [8, 288], strides = [1, 1]} : vector<8x340xf32> to vector<8x288xf32>
    %cst_169 = arith.constant dense<0.000000e+00> : vector<16x288xf32>
    %309 = tpu.matmul %307, %308, %cst_169 {dimension_numbers = #tpu.dot_dimension_numbers<[1], [0], [0], [1], [0, 0, 1, 1], [], []>} : vector<16x8xf32>, vector<8x288xf32>, vector<16x288xf32> -> vector<16x288xf32>
    %310 = arith.addf %306, %309 : vector<16x288xf32>
    %c336 = arith.constant 336 : index
    %c0_170 = arith.constant 0 : index
    %311 = vector.load %arg4[%c336, %c0_170] : memref<872x40xf32, #tpu.memory_space<vmem>>, vector<16x8xf32>
    %312 = vector.extract_strided_slice %295 {offsets = [0, 4], sizes = [8, 288], strides = [1, 1]} : vector<8x340xf32> to vector<8x288xf32>
    %cst_171 = arith.constant dense<0.000000e+00> : vector<16x288xf32>
    %313 = tpu.matmul %311, %312, %cst_171 {dimension_numbers = #tpu.dot_dimension_numbers<[1], [0], [0], [1], [0, 0, 1, 1], [], []>} : vector<16x8xf32>, vector<8x288xf32>, vector<16x288xf32> -> vector<16x288xf32>
    %314 = arith.addf %310, %313 : vector<16x288xf32>
    %c352_172 = arith.constant 352 : index
    %c0_173 = arith.constant 0 : index
    %315 = vector.load %arg4[%c352_172, %c0_173] : memref<872x40xf32, #tpu.memory_space<vmem>>, vector<16x8xf32>
    %316 = vector.extract_strided_slice %295 {offsets = [0, 12], sizes = [8, 288], strides = [1, 1]} : vector<8x340xf32> to vector<8x288xf32>
    %cst_174 = arith.constant dense<0.000000e+00> : vector<16x288xf32>
    %317 = tpu.matmul %315, %316, %cst_174 {dimension_numbers = #tpu.dot_dimension_numbers<[1], [0], [0], [1], [0, 0, 1, 1], [], []>} : vector<16x8xf32>, vector<8x288xf32>, vector<16x288xf32> -> vector<16x288xf32>
    %318 = arith.addf %314, %317 : vector<16x288xf32>
    %c368_175 = arith.constant 368 : index
    %c0_176 = arith.constant 0 : index
    %319 = vector.load %arg4[%c368_175, %c0_176] : memref<872x40xf32, #tpu.memory_space<vmem>>, vector<16x8xf32>
    %320 = vector.extract_strided_slice %295 {offsets = [0, 13], sizes = [8, 288], strides = [1, 1]} : vector<8x340xf32> to vector<8x288xf32>
    %cst_177 = arith.constant dense<0.000000e+00> : vector<16x288xf32>
    %321 = tpu.matmul %319, %320, %cst_177 {dimension_numbers = #tpu.dot_dimension_numbers<[1], [0], [0], [1], [0, 0, 1, 1], [], []>} : vector<16x8xf32>, vector<8x288xf32>, vector<16x288xf32> -> vector<16x288xf32>
    %322 = arith.addf %318, %321 : vector<16x288xf32>
    %c384 = arith.constant 384 : index
    %c0_178 = arith.constant 0 : index
    %323 = vector.load %arg4[%c384, %c0_178] : memref<872x40xf32, #tpu.memory_space<vmem>>, vector<16x8xf32>
    %324 = vector.extract_strided_slice %295 {offsets = [0, 14], sizes = [8, 288], strides = [1, 1]} : vector<8x340xf32> to vector<8x288xf32>
    %cst_179 = arith.constant dense<0.000000e+00> : vector<16x288xf32>
    %325 = tpu.matmul %323, %324, %cst_179 {dimension_numbers = #tpu.dot_dimension_numbers<[1], [0], [0], [1], [0, 0, 1, 1], [], []>} : vector<16x8xf32>, vector<8x288xf32>, vector<16x288xf32> -> vector<16x288xf32>
    %326 = arith.addf %322, %325 : vector<16x288xf32>
    %c400 = arith.constant 400 : index
    %c0_180 = arith.constant 0 : index
    %327 = vector.load %arg4[%c400, %c0_180] : memref<872x40xf32, #tpu.memory_space<vmem>>, vector<16x8xf32>
    %328 = vector.extract_strided_slice %295 {offsets = [0, 15], sizes = [8, 288], strides = [1, 1]} : vector<8x340xf32> to vector<8x288xf32>
    %cst_181 = arith.constant dense<0.000000e+00> : vector<16x288xf32>
    %329 = tpu.matmul %327, %328, %cst_181 {dimension_numbers = #tpu.dot_dimension_numbers<[1], [0], [0], [1], [0, 0, 1, 1], [], []>} : vector<16x8xf32>, vector<8x288xf32>, vector<16x288xf32> -> vector<16x288xf32>
    %330 = arith.addf %326, %329 : vector<16x288xf32>
    %c416_182 = arith.constant 416 : index
    %c0_183 = arith.constant 0 : index
    %331 = vector.load %arg4[%c416_182, %c0_183] : memref<872x40xf32, #tpu.memory_space<vmem>>, vector<16x8xf32>
    %332 = vector.extract_strided_slice %295 {offsets = [0, 16], sizes = [8, 288], strides = [1, 1]} : vector<8x340xf32> to vector<8x288xf32>
    %cst_184 = arith.constant dense<0.000000e+00> : vector<16x288xf32>
    %333 = tpu.matmul %331, %332, %cst_184 {dimension_numbers = #tpu.dot_dimension_numbers<[1], [0], [0], [1], [0, 0, 1, 1], [], []>} : vector<16x8xf32>, vector<8x288xf32>, vector<16x288xf32> -> vector<16x288xf32>
    %334 = arith.addf %330, %333 : vector<16x288xf32>
    %c432 = arith.constant 432 : index
    %c0_185 = arith.constant 0 : index
    %335 = vector.load %arg4[%c432, %c0_185] : memref<872x40xf32, #tpu.memory_space<vmem>>, vector<16x8xf32>
    %336 = vector.extract_strided_slice %295 {offsets = [0, 24], sizes = [8, 288], strides = [1, 1]} : vector<8x340xf32> to vector<8x288xf32>
    %cst_186 = arith.constant dense<0.000000e+00> : vector<16x288xf32>
    %337 = tpu.matmul %335, %336, %cst_186 {dimension_numbers = #tpu.dot_dimension_numbers<[1], [0], [0], [1], [0, 0, 1, 1], [], []>} : vector<16x8xf32>, vector<8x288xf32>, vector<16x288xf32> -> vector<16x288xf32>
    %338 = arith.addf %334, %337 : vector<16x288xf32>
    %c448 = arith.constant 448 : index
    %c0_187 = arith.constant 0 : index
    %339 = vector.load %arg4[%c448, %c0_187] : memref<872x40xf32, #tpu.memory_space<vmem>>, vector<16x8xf32>
    %340 = vector.extract_strided_slice %295 {offsets = [0, 25], sizes = [8, 288], strides = [1, 1]} : vector<8x340xf32> to vector<8x288xf32>
    %cst_188 = arith.constant dense<0.000000e+00> : vector<16x288xf32>
    %341 = tpu.matmul %339, %340, %cst_188 {dimension_numbers = #tpu.dot_dimension_numbers<[1], [0], [0], [1], [0, 0, 1, 1], [], []>} : vector<16x8xf32>, vector<8x288xf32>, vector<16x288xf32> -> vector<16x288xf32>
    %342 = arith.addf %338, %341 : vector<16x288xf32>
    %c464_189 = arith.constant 464 : index
    %c0_190 = arith.constant 0 : index
    %343 = vector.load %arg4[%c464_189, %c0_190] : memref<872x40xf32, #tpu.memory_space<vmem>>, vector<16x8xf32>
    %344 = vector.extract_strided_slice %295 {offsets = [0, 26], sizes = [8, 288], strides = [1, 1]} : vector<8x340xf32> to vector<8x288xf32>
    %cst_191 = arith.constant dense<0.000000e+00> : vector<16x288xf32>
    %345 = tpu.matmul %343, %344, %cst_191 {dimension_numbers = #tpu.dot_dimension_numbers<[1], [0], [0], [1], [0, 0, 1, 1], [], []>} : vector<16x8xf32>, vector<8x288xf32>, vector<16x288xf32> -> vector<16x288xf32>
    %346 = arith.addf %342, %345 : vector<16x288xf32>
    %c480 = arith.constant 480 : index
    %c0_192 = arith.constant 0 : index
    %347 = vector.load %arg4[%c480, %c0_192] : memref<872x40xf32, #tpu.memory_space<vmem>>, vector<16x8xf32>
    %348 = vector.extract_strided_slice %295 {offsets = [0, 27], sizes = [8, 288], strides = [1, 1]} : vector<8x340xf32> to vector<8x288xf32>
    %cst_193 = arith.constant dense<0.000000e+00> : vector<16x288xf32>
    %349 = tpu.matmul %347, %348, %cst_193 {dimension_numbers = #tpu.dot_dimension_numbers<[1], [0], [0], [1], [0, 0, 1, 1], [], []>} : vector<16x8xf32>, vector<8x288xf32>, vector<16x288xf32> -> vector<16x288xf32>
    %350 = arith.addf %346, %349 : vector<16x288xf32>
    %c496 = arith.constant 496 : index
    %c0_194 = arith.constant 0 : index
    %351 = vector.load %arg4[%c496, %c0_194] : memref<872x40xf32, #tpu.memory_space<vmem>>, vector<16x8xf32>
    %352 = vector.extract_strided_slice %295 {offsets = [0, 28], sizes = [8, 288], strides = [1, 1]} : vector<8x340xf32> to vector<8x288xf32>
    %cst_195 = arith.constant dense<0.000000e+00> : vector<16x288xf32>
    %353 = tpu.matmul %351, %352, %cst_195 {dimension_numbers = #tpu.dot_dimension_numbers<[1], [0], [0], [1], [0, 0, 1, 1], [], []>} : vector<16x8xf32>, vector<8x288xf32>, vector<16x288xf32> -> vector<16x288xf32>
    %354 = arith.addf %350, %353 : vector<16x288xf32>
    %c512 = arith.constant 512 : index
    %c0_196 = arith.constant 0 : index
    %355 = vector.load %arg4[%c512, %c0_196] : memref<872x40xf32, #tpu.memory_space<vmem>>, vector<16x8xf32>
    %356 = vector.extract_strided_slice %295 {offsets = [0, 36], sizes = [8, 288], strides = [1, 1]} : vector<8x340xf32> to vector<8x288xf32>
    %cst_197 = arith.constant dense<0.000000e+00> : vector<16x288xf32>
    %357 = tpu.matmul %355, %356, %cst_197 {dimension_numbers = #tpu.dot_dimension_numbers<[1], [0], [0], [1], [0, 0, 1, 1], [], []>} : vector<16x8xf32>, vector<8x288xf32>, vector<16x288xf32> -> vector<16x288xf32>
    %358 = arith.addf %354, %357 : vector<16x288xf32>
    %c528 = arith.constant 528 : index
    %c0_198 = arith.constant 0 : index
    %359 = vector.load %arg4[%c528, %c0_198] : memref<872x40xf32, #tpu.memory_space<vmem>>, vector<16x8xf32>
    %360 = vector.extract_strided_slice %295 {offsets = [0, 37], sizes = [8, 288], strides = [1, 1]} : vector<8x340xf32> to vector<8x288xf32>
    %cst_199 = arith.constant dense<0.000000e+00> : vector<16x288xf32>
    %361 = tpu.matmul %359, %360, %cst_199 {dimension_numbers = #tpu.dot_dimension_numbers<[1], [0], [0], [1], [0, 0, 1, 1], [], []>} : vector<16x8xf32>, vector<8x288xf32>, vector<16x288xf32> -> vector<16x288xf32>
    %362 = arith.addf %358, %361 : vector<16x288xf32>
    %c544 = arith.constant 544 : index
    %c0_200 = arith.constant 0 : index
    %363 = vector.load %arg4[%c544, %c0_200] : memref<872x40xf32, #tpu.memory_space<vmem>>, vector<16x8xf32>
    %364 = vector.extract_strided_slice %295 {offsets = [0, 38], sizes = [8, 288], strides = [1, 1]} : vector<8x340xf32> to vector<8x288xf32>
    %cst_201 = arith.constant dense<0.000000e+00> : vector<16x288xf32>
    %365 = tpu.matmul %363, %364, %cst_201 {dimension_numbers = #tpu.dot_dimension_numbers<[1], [0], [0], [1], [0, 0, 1, 1], [], []>} : vector<16x8xf32>, vector<8x288xf32>, vector<16x288xf32> -> vector<16x288xf32>
    %366 = arith.addf %362, %365 : vector<16x288xf32>
    %c560 = arith.constant 560 : index
    %c0_202 = arith.constant 0 : index
    %367 = vector.load %arg4[%c560, %c0_202] : memref<872x40xf32, #tpu.memory_space<vmem>>, vector<16x8xf32>
    %368 = vector.extract_strided_slice %295 {offsets = [0, 39], sizes = [8, 288], strides = [1, 1]} : vector<8x340xf32> to vector<8x288xf32>
    %cst_203 = arith.constant dense<0.000000e+00> : vector<16x288xf32>
    %369 = tpu.matmul %367, %368, %cst_203 {dimension_numbers = #tpu.dot_dimension_numbers<[1], [0], [0], [1], [0, 0, 1, 1], [], []>} : vector<16x8xf32>, vector<8x288xf32>, vector<16x288xf32> -> vector<16x288xf32>
    %370 = arith.addf %366, %369 : vector<16x288xf32>
    %c576 = arith.constant 576 : index
    %c0_204 = arith.constant 0 : index
    %371 = vector.load %arg4[%c576, %c0_204] : memref<872x40xf32, #tpu.memory_space<vmem>>, vector<16x8xf32>
    %372 = vector.extract_strided_slice %295 {offsets = [0, 40], sizes = [8, 288], strides = [1, 1]} : vector<8x340xf32> to vector<8x288xf32>
    %cst_205 = arith.constant dense<0.000000e+00> : vector<16x288xf32>
    %373 = tpu.matmul %371, %372, %cst_205 {dimension_numbers = #tpu.dot_dimension_numbers<[1], [0], [0], [1], [0, 0, 1, 1], [], []>} : vector<16x8xf32>, vector<8x288xf32>, vector<16x288xf32> -> vector<16x288xf32>
    %374 = arith.addf %370, %373 : vector<16x288xf32>
    %c592 = arith.constant 592 : index
    %c0_206 = arith.constant 0 : index
    %375 = vector.load %arg4[%c592, %c0_206] : memref<872x40xf32, #tpu.memory_space<vmem>>, vector<16x8xf32>
    %376 = vector.extract_strided_slice %295 {offsets = [0, 48], sizes = [8, 288], strides = [1, 1]} : vector<8x340xf32> to vector<8x288xf32>
    %cst_207 = arith.constant dense<0.000000e+00> : vector<16x288xf32>
    %377 = tpu.matmul %375, %376, %cst_207 {dimension_numbers = #tpu.dot_dimension_numbers<[1], [0], [0], [1], [0, 0, 1, 1], [], []>} : vector<16x8xf32>, vector<8x288xf32>, vector<16x288xf32> -> vector<16x288xf32>
    %378 = arith.addf %374, %377 : vector<16x288xf32>
    %c608 = arith.constant 608 : index
    %c0_208 = arith.constant 0 : index
    %379 = vector.load %arg4[%c608, %c0_208] : memref<872x40xf32, #tpu.memory_space<vmem>>, vector<16x8xf32>
    %380 = vector.extract_strided_slice %295 {offsets = [0, 49], sizes = [8, 288], strides = [1, 1]} : vector<8x340xf32> to vector<8x288xf32>
    %cst_209 = arith.constant dense<0.000000e+00> : vector<16x288xf32>
    %381 = tpu.matmul %379, %380, %cst_209 {dimension_numbers = #tpu.dot_dimension_numbers<[1], [0], [0], [1], [0, 0, 1, 1], [], []>} : vector<16x8xf32>, vector<8x288xf32>, vector<16x288xf32> -> vector<16x288xf32>
    %382 = arith.addf %378, %381 : vector<16x288xf32>
    %c624 = arith.constant 624 : index
    %c0_210 = arith.constant 0 : index
    %383 = vector.load %arg4[%c624, %c0_210] : memref<872x40xf32, #tpu.memory_space<vmem>>, vector<16x8xf32>
    %384 = vector.extract_strided_slice %295 {offsets = [0, 50], sizes = [8, 288], strides = [1, 1]} : vector<8x340xf32> to vector<8x288xf32>
    %cst_211 = arith.constant dense<0.000000e+00> : vector<16x288xf32>
    %385 = tpu.matmul %383, %384, %cst_211 {dimension_numbers = #tpu.dot_dimension_numbers<[1], [0], [0], [1], [0, 0, 1, 1], [], []>} : vector<16x8xf32>, vector<8x288xf32>, vector<16x288xf32> -> vector<16x288xf32>
    %386 = arith.addf %382, %385 : vector<16x288xf32>
    %c640 = arith.constant 640 : index
    %c0_212 = arith.constant 0 : index
    %387 = vector.load %arg4[%c640, %c0_212] : memref<872x40xf32, #tpu.memory_space<vmem>>, vector<16x8xf32>
    %388 = vector.extract_strided_slice %295 {offsets = [0, 51], sizes = [8, 288], strides = [1, 1]} : vector<8x340xf32> to vector<8x288xf32>
    %cst_213 = arith.constant dense<0.000000e+00> : vector<16x288xf32>
    %389 = tpu.matmul %387, %388, %cst_213 {dimension_numbers = #tpu.dot_dimension_numbers<[1], [0], [0], [1], [0, 0, 1, 1], [], []>} : vector<16x8xf32>, vector<8x288xf32>, vector<16x288xf32> -> vector<16x288xf32>
    %390 = arith.addf %386, %389 : vector<16x288xf32>
    %c656 = arith.constant 656 : index
    %c0_214 = arith.constant 0 : index
    %391 = vector.load %arg4[%c656, %c0_214] : memref<872x40xf32, #tpu.memory_space<vmem>>, vector<16x8xf32>
    %392 = vector.extract_strided_slice %295 {offsets = [0, 52], sizes = [8, 288], strides = [1, 1]} : vector<8x340xf32> to vector<8x288xf32>
    %cst_215 = arith.constant dense<0.000000e+00> : vector<16x288xf32>
    %393 = tpu.matmul %391, %392, %cst_215 {dimension_numbers = #tpu.dot_dimension_numbers<[1], [0], [0], [1], [0, 0, 1, 1], [], []>} : vector<16x8xf32>, vector<8x288xf32>, vector<16x288xf32> -> vector<16x288xf32>
    %394 = arith.addf %390, %393 : vector<16x288xf32>
    %c0_216 = arith.constant 0 : index
    %c0_217 = arith.constant 0 : index
    %395 = vector.load %arg9[%c0_216, %c0_217] : memref<288x128xf32, #tpu.memory_space<vmem>>, vector<288x128xf32>
    %cst_218 = arith.constant dense<0.000000e+00> : vector<16x128xf32>
    %396 = tpu.matmul %394, %395, %cst_218 {dimension_numbers = #tpu.dot_dimension_numbers<[1], [0], [0], [1], [0, 0, 1, 1], [], []>} : vector<16x288xf32>, vector<288x128xf32>, vector<16x128xf32> -> vector<16x128xf32>
    %c480_219 = arith.constant 480 : index
    %c0_220 = arith.constant 0 : index
    %397 = vector.load %arg3[%c480_219, %c0_220] : memref<536x1xf32, #tpu.memory_space<vmem>>, vector<16x1xf32>
    %398 = vector.broadcast %397 : vector<16x1xf32> to vector<16x128xf32>
    %399 = arith.addf %396, %398 : vector<16x128xf32>
    %c496_221 = arith.constant 496 : index
    %c0_222 = arith.constant 0 : index
    %400 = vector.load %arg3[%c496_221, %c0_222] : memref<536x1xf32, #tpu.memory_space<vmem>>, vector<16x1xf32>
    %401 = vector.broadcast %400 : vector<16x1xf32> to vector<16x128xf32>
    %402 = arith.mulf %399, %401 : vector<16x128xf32>
    %c512_223 = arith.constant 512 : index
    %c0_224 = arith.constant 0 : index
    %403 = vector.load %arg3[%c512_223, %c0_224] : memref<536x1xf32, #tpu.memory_space<vmem>>, vector<16x1xf32>
    %404 = vector.broadcast %403 : vector<16x1xf32> to vector<16x128xf32>
    %405 = arith.addf %402, %404 : vector<16x128xf32>
    %cst_225 = arith.constant 0.000000e+00 : f32
    %406 = vector.broadcast %cst_225 : f32 to vector<16x128xf32>
    %407 = arith.maximumf %405, %406 : vector<16x128xf32>
    %c0_226 = arith.constant 0 : index
    %c0_227 = arith.constant 0 : index
    %408 = vector.load %arg8[%c0_226, %c0_227] : memref<128x340xf32, #tpu.memory_space<vmem>>, vector<128x340xf32>
    %cst_228 = arith.constant dense<0.000000e+00> : vector<16x340xf32>
    %409 = tpu.matmul %407, %408, %cst_228 {dimension_numbers = #tpu.dot_dimension_numbers<[1], [0], [0], [1], [0, 0, 1, 1], [], []>} : vector<16x128xf32>, vector<128x340xf32>, vector<16x340xf32> -> vector<16x340xf32>
    %c672 = arith.constant 672 : index
    %c0_229 = arith.constant 0 : index
    %410 = vector.load %arg4[%c672, %c0_229] : memref<872x40xf32, #tpu.memory_space<vmem>>, vector<8x16xf32>
    %411 = vector.extract_strided_slice %409 {offsets = [0, 0], sizes = [16, 288], strides = [1, 1]} : vector<16x340xf32> to vector<16x288xf32>
    %cst_230 = arith.constant dense<0.000000e+00> : vector<8x288xf32>
    %412 = tpu.matmul %410, %411, %cst_230 {dimension_numbers = #tpu.dot_dimension_numbers<[1], [0], [0], [1], [0, 0, 1, 1], [], []>} : vector<8x16xf32>, vector<16x288xf32>, vector<8x288xf32> -> vector<8x288xf32>
    %c680 = arith.constant 680 : index
    %c0_231 = arith.constant 0 : index
    %413 = vector.load %arg4[%c680, %c0_231] : memref<872x40xf32, #tpu.memory_space<vmem>>, vector<8x16xf32>
    %414 = vector.extract_strided_slice %409 {offsets = [0, 1], sizes = [16, 288], strides = [1, 1]} : vector<16x340xf32> to vector<16x288xf32>
    %cst_232 = arith.constant dense<0.000000e+00> : vector<8x288xf32>
    %415 = tpu.matmul %413, %414, %cst_232 {dimension_numbers = #tpu.dot_dimension_numbers<[1], [0], [0], [1], [0, 0, 1, 1], [], []>} : vector<8x16xf32>, vector<16x288xf32>, vector<8x288xf32> -> vector<8x288xf32>
    %416 = arith.addf %412, %415 : vector<8x288xf32>
    %c688 = arith.constant 688 : index
    %c0_233 = arith.constant 0 : index
    %417 = vector.load %arg4[%c688, %c0_233] : memref<872x40xf32, #tpu.memory_space<vmem>>, vector<8x16xf32>
    %418 = vector.extract_strided_slice %409 {offsets = [0, 2], sizes = [16, 288], strides = [1, 1]} : vector<16x340xf32> to vector<16x288xf32>
    %cst_234 = arith.constant dense<0.000000e+00> : vector<8x288xf32>
    %419 = tpu.matmul %417, %418, %cst_234 {dimension_numbers = #tpu.dot_dimension_numbers<[1], [0], [0], [1], [0, 0, 1, 1], [], []>} : vector<8x16xf32>, vector<16x288xf32>, vector<8x288xf32> -> vector<8x288xf32>
    %420 = arith.addf %416, %419 : vector<8x288xf32>
    %c696 = arith.constant 696 : index
    %c0_235 = arith.constant 0 : index
    %421 = vector.load %arg4[%c696, %c0_235] : memref<872x40xf32, #tpu.memory_space<vmem>>, vector<8x16xf32>
    %422 = vector.extract_strided_slice %409 {offsets = [0, 3], sizes = [16, 288], strides = [1, 1]} : vector<16x340xf32> to vector<16x288xf32>
    %cst_236 = arith.constant dense<0.000000e+00> : vector<8x288xf32>
    %423 = tpu.matmul %421, %422, %cst_236 {dimension_numbers = #tpu.dot_dimension_numbers<[1], [0], [0], [1], [0, 0, 1, 1], [], []>} : vector<8x16xf32>, vector<16x288xf32>, vector<8x288xf32> -> vector<8x288xf32>
    %424 = arith.addf %420, %423 : vector<8x288xf32>
    %c704 = arith.constant 704 : index
    %c0_237 = arith.constant 0 : index
    %425 = vector.load %arg4[%c704, %c0_237] : memref<872x40xf32, #tpu.memory_space<vmem>>, vector<8x16xf32>
    %426 = vector.extract_strided_slice %409 {offsets = [0, 4], sizes = [16, 288], strides = [1, 1]} : vector<16x340xf32> to vector<16x288xf32>
    %cst_238 = arith.constant dense<0.000000e+00> : vector<8x288xf32>
    %427 = tpu.matmul %425, %426, %cst_238 {dimension_numbers = #tpu.dot_dimension_numbers<[1], [0], [0], [1], [0, 0, 1, 1], [], []>} : vector<8x16xf32>, vector<16x288xf32>, vector<8x288xf32> -> vector<8x288xf32>
    %428 = arith.addf %424, %427 : vector<8x288xf32>
    %c712 = arith.constant 712 : index
    %c0_239 = arith.constant 0 : index
    %429 = vector.load %arg4[%c712, %c0_239] : memref<872x40xf32, #tpu.memory_space<vmem>>, vector<8x16xf32>
    %430 = vector.extract_strided_slice %409 {offsets = [0, 12], sizes = [16, 288], strides = [1, 1]} : vector<16x340xf32> to vector<16x288xf32>
    %cst_240 = arith.constant dense<0.000000e+00> : vector<8x288xf32>
    %431 = tpu.matmul %429, %430, %cst_240 {dimension_numbers = #tpu.dot_dimension_numbers<[1], [0], [0], [1], [0, 0, 1, 1], [], []>} : vector<8x16xf32>, vector<16x288xf32>, vector<8x288xf32> -> vector<8x288xf32>
    %432 = arith.addf %428, %431 : vector<8x288xf32>
    %c720 = arith.constant 720 : index
    %c0_241 = arith.constant 0 : index
    %433 = vector.load %arg4[%c720, %c0_241] : memref<872x40xf32, #tpu.memory_space<vmem>>, vector<8x16xf32>
    %434 = vector.extract_strided_slice %409 {offsets = [0, 13], sizes = [16, 288], strides = [1, 1]} : vector<16x340xf32> to vector<16x288xf32>
    %cst_242 = arith.constant dense<0.000000e+00> : vector<8x288xf32>
    %435 = tpu.matmul %433, %434, %cst_242 {dimension_numbers = #tpu.dot_dimension_numbers<[1], [0], [0], [1], [0, 0, 1, 1], [], []>} : vector<8x16xf32>, vector<16x288xf32>, vector<8x288xf32> -> vector<8x288xf32>
    %436 = arith.addf %432, %435 : vector<8x288xf32>
    %c728 = arith.constant 728 : index
    %c0_243 = arith.constant 0 : index
    %437 = vector.load %arg4[%c728, %c0_243] : memref<872x40xf32, #tpu.memory_space<vmem>>, vector<8x16xf32>
    %438 = vector.extract_strided_slice %409 {offsets = [0, 14], sizes = [16, 288], strides = [1, 1]} : vector<16x340xf32> to vector<16x288xf32>
    %cst_244 = arith.constant dense<0.000000e+00> : vector<8x288xf32>
    %439 = tpu.matmul %437, %438, %cst_244 {dimension_numbers = #tpu.dot_dimension_numbers<[1], [0], [0], [1], [0, 0, 1, 1], [], []>} : vector<8x16xf32>, vector<16x288xf32>, vector<8x288xf32> -> vector<8x288xf32>
    %440 = arith.addf %436, %439 : vector<8x288xf32>
    %c736 = arith.constant 736 : index
    %c0_245 = arith.constant 0 : index
    %441 = vector.load %arg4[%c736, %c0_245] : memref<872x40xf32, #tpu.memory_space<vmem>>, vector<8x16xf32>
    %442 = vector.extract_strided_slice %409 {offsets = [0, 15], sizes = [16, 288], strides = [1, 1]} : vector<16x340xf32> to vector<16x288xf32>
    %cst_246 = arith.constant dense<0.000000e+00> : vector<8x288xf32>
    %443 = tpu.matmul %441, %442, %cst_246 {dimension_numbers = #tpu.dot_dimension_numbers<[1], [0], [0], [1], [0, 0, 1, 1], [], []>} : vector<8x16xf32>, vector<16x288xf32>, vector<8x288xf32> -> vector<8x288xf32>
    %444 = arith.addf %440, %443 : vector<8x288xf32>
    %c744 = arith.constant 744 : index
    %c0_247 = arith.constant 0 : index
    %445 = vector.load %arg4[%c744, %c0_247] : memref<872x40xf32, #tpu.memory_space<vmem>>, vector<8x16xf32>
    %446 = vector.extract_strided_slice %409 {offsets = [0, 16], sizes = [16, 288], strides = [1, 1]} : vector<16x340xf32> to vector<16x288xf32>
    %cst_248 = arith.constant dense<0.000000e+00> : vector<8x288xf32>
    %447 = tpu.matmul %445, %446, %cst_248 {dimension_numbers = #tpu.dot_dimension_numbers<[1], [0], [0], [1], [0, 0, 1, 1], [], []>} : vector<8x16xf32>, vector<16x288xf32>, vector<8x288xf32> -> vector<8x288xf32>
    %448 = arith.addf %444, %447 : vector<8x288xf32>
    %c752 = arith.constant 752 : index
    %c0_249 = arith.constant 0 : index
    %449 = vector.load %arg4[%c752, %c0_249] : memref<872x40xf32, #tpu.memory_space<vmem>>, vector<8x16xf32>
    %450 = vector.extract_strided_slice %409 {offsets = [0, 24], sizes = [16, 288], strides = [1, 1]} : vector<16x340xf32> to vector<16x288xf32>
    %cst_250 = arith.constant dense<0.000000e+00> : vector<8x288xf32>
    %451 = tpu.matmul %449, %450, %cst_250 {dimension_numbers = #tpu.dot_dimension_numbers<[1], [0], [0], [1], [0, 0, 1, 1], [], []>} : vector<8x16xf32>, vector<16x288xf32>, vector<8x288xf32> -> vector<8x288xf32>
    %452 = arith.addf %448, %451 : vector<8x288xf32>
    %c760 = arith.constant 760 : index
    %c0_251 = arith.constant 0 : index
    %453 = vector.load %arg4[%c760, %c0_251] : memref<872x40xf32, #tpu.memory_space<vmem>>, vector<8x16xf32>
    %454 = vector.extract_strided_slice %409 {offsets = [0, 25], sizes = [16, 288], strides = [1, 1]} : vector<16x340xf32> to vector<16x288xf32>
    %cst_252 = arith.constant dense<0.000000e+00> : vector<8x288xf32>
    %455 = tpu.matmul %453, %454, %cst_252 {dimension_numbers = #tpu.dot_dimension_numbers<[1], [0], [0], [1], [0, 0, 1, 1], [], []>} : vector<8x16xf32>, vector<16x288xf32>, vector<8x288xf32> -> vector<8x288xf32>
    %456 = arith.addf %452, %455 : vector<8x288xf32>
    %c768 = arith.constant 768 : index
    %c0_253 = arith.constant 0 : index
    %457 = vector.load %arg4[%c768, %c0_253] : memref<872x40xf32, #tpu.memory_space<vmem>>, vector<8x16xf32>
    %458 = vector.extract_strided_slice %409 {offsets = [0, 26], sizes = [16, 288], strides = [1, 1]} : vector<16x340xf32> to vector<16x288xf32>
    %cst_254 = arith.constant dense<0.000000e+00> : vector<8x288xf32>
    %459 = tpu.matmul %457, %458, %cst_254 {dimension_numbers = #tpu.dot_dimension_numbers<[1], [0], [0], [1], [0, 0, 1, 1], [], []>} : vector<8x16xf32>, vector<16x288xf32>, vector<8x288xf32> -> vector<8x288xf32>
    %460 = arith.addf %456, %459 : vector<8x288xf32>
    %c776 = arith.constant 776 : index
    %c0_255 = arith.constant 0 : index
    %461 = vector.load %arg4[%c776, %c0_255] : memref<872x40xf32, #tpu.memory_space<vmem>>, vector<8x16xf32>
    %462 = vector.extract_strided_slice %409 {offsets = [0, 27], sizes = [16, 288], strides = [1, 1]} : vector<16x340xf32> to vector<16x288xf32>
    %cst_256 = arith.constant dense<0.000000e+00> : vector<8x288xf32>
    %463 = tpu.matmul %461, %462, %cst_256 {dimension_numbers = #tpu.dot_dimension_numbers<[1], [0], [0], [1], [0, 0, 1, 1], [], []>} : vector<8x16xf32>, vector<16x288xf32>, vector<8x288xf32> -> vector<8x288xf32>
    %464 = arith.addf %460, %463 : vector<8x288xf32>
    %c784 = arith.constant 784 : index
    %c0_257 = arith.constant 0 : index
    %465 = vector.load %arg4[%c784, %c0_257] : memref<872x40xf32, #tpu.memory_space<vmem>>, vector<8x16xf32>
    %466 = vector.extract_strided_slice %409 {offsets = [0, 28], sizes = [16, 288], strides = [1, 1]} : vector<16x340xf32> to vector<16x288xf32>
    %cst_258 = arith.constant dense<0.000000e+00> : vector<8x288xf32>
    %467 = tpu.matmul %465, %466, %cst_258 {dimension_numbers = #tpu.dot_dimension_numbers<[1], [0], [0], [1], [0, 0, 1, 1], [], []>} : vector<8x16xf32>, vector<16x288xf32>, vector<8x288xf32> -> vector<8x288xf32>
    %468 = arith.addf %464, %467 : vector<8x288xf32>
    %c792 = arith.constant 792 : index
    %c0_259 = arith.constant 0 : index
    %469 = vector.load %arg4[%c792, %c0_259] : memref<872x40xf32, #tpu.memory_space<vmem>>, vector<8x16xf32>
    %470 = vector.extract_strided_slice %409 {offsets = [0, 36], sizes = [16, 288], strides = [1, 1]} : vector<16x340xf32> to vector<16x288xf32>
    %cst_260 = arith.constant dense<0.000000e+00> : vector<8x288xf32>
    %471 = tpu.matmul %469, %470, %cst_260 {dimension_numbers = #tpu.dot_dimension_numbers<[1], [0], [0], [1], [0, 0, 1, 1], [], []>} : vector<8x16xf32>, vector<16x288xf32>, vector<8x288xf32> -> vector<8x288xf32>
    %472 = arith.addf %468, %471 : vector<8x288xf32>
    %c800 = arith.constant 800 : index
    %c0_261 = arith.constant 0 : index
    %473 = vector.load %arg4[%c800, %c0_261] : memref<872x40xf32, #tpu.memory_space<vmem>>, vector<8x16xf32>
    %474 = vector.extract_strided_slice %409 {offsets = [0, 37], sizes = [16, 288], strides = [1, 1]} : vector<16x340xf32> to vector<16x288xf32>
    %cst_262 = arith.constant dense<0.000000e+00> : vector<8x288xf32>
    %475 = tpu.matmul %473, %474, %cst_262 {dimension_numbers = #tpu.dot_dimension_numbers<[1], [0], [0], [1], [0, 0, 1, 1], [], []>} : vector<8x16xf32>, vector<16x288xf32>, vector<8x288xf32> -> vector<8x288xf32>
    %476 = arith.addf %472, %475 : vector<8x288xf32>
    %c808 = arith.constant 808 : index
    %c0_263 = arith.constant 0 : index
    %477 = vector.load %arg4[%c808, %c0_263] : memref<872x40xf32, #tpu.memory_space<vmem>>, vector<8x16xf32>
    %478 = vector.extract_strided_slice %409 {offsets = [0, 38], sizes = [16, 288], strides = [1, 1]} : vector<16x340xf32> to vector<16x288xf32>
    %cst_264 = arith.constant dense<0.000000e+00> : vector<8x288xf32>
    %479 = tpu.matmul %477, %478, %cst_264 {dimension_numbers = #tpu.dot_dimension_numbers<[1], [0], [0], [1], [0, 0, 1, 1], [], []>} : vector<8x16xf32>, vector<16x288xf32>, vector<8x288xf32> -> vector<8x288xf32>
    %480 = arith.addf %476, %479 : vector<8x288xf32>
    %c816 = arith.constant 816 : index
    %c0_265 = arith.constant 0 : index
    %481 = vector.load %arg4[%c816, %c0_265] : memref<872x40xf32, #tpu.memory_space<vmem>>, vector<8x16xf32>
    %482 = vector.extract_strided_slice %409 {offsets = [0, 39], sizes = [16, 288], strides = [1, 1]} : vector<16x340xf32> to vector<16x288xf32>
    %cst_266 = arith.constant dense<0.000000e+00> : vector<8x288xf32>
    %483 = tpu.matmul %481, %482, %cst_266 {dimension_numbers = #tpu.dot_dimension_numbers<[1], [0], [0], [1], [0, 0, 1, 1], [], []>} : vector<8x16xf32>, vector<16x288xf32>, vector<8x288xf32> -> vector<8x288xf32>
    %484 = arith.addf %480, %483 : vector<8x288xf32>
    %c824 = arith.constant 824 : index
    %c0_267 = arith.constant 0 : index
    %485 = vector.load %arg4[%c824, %c0_267] : memref<872x40xf32, #tpu.memory_space<vmem>>, vector<8x16xf32>
    %486 = vector.extract_strided_slice %409 {offsets = [0, 40], sizes = [16, 288], strides = [1, 1]} : vector<16x340xf32> to vector<16x288xf32>
    %cst_268 = arith.constant dense<0.000000e+00> : vector<8x288xf32>
    %487 = tpu.matmul %485, %486, %cst_268 {dimension_numbers = #tpu.dot_dimension_numbers<[1], [0], [0], [1], [0, 0, 1, 1], [], []>} : vector<8x16xf32>, vector<16x288xf32>, vector<8x288xf32> -> vector<8x288xf32>
    %488 = arith.addf %484, %487 : vector<8x288xf32>
    %c832 = arith.constant 832 : index
    %c0_269 = arith.constant 0 : index
    %489 = vector.load %arg4[%c832, %c0_269] : memref<872x40xf32, #tpu.memory_space<vmem>>, vector<8x16xf32>
    %490 = vector.extract_strided_slice %409 {offsets = [0, 48], sizes = [16, 288], strides = [1, 1]} : vector<16x340xf32> to vector<16x288xf32>
    %cst_270 = arith.constant dense<0.000000e+00> : vector<8x288xf32>
    %491 = tpu.matmul %489, %490, %cst_270 {dimension_numbers = #tpu.dot_dimension_numbers<[1], [0], [0], [1], [0, 0, 1, 1], [], []>} : vector<8x16xf32>, vector<16x288xf32>, vector<8x288xf32> -> vector<8x288xf32>
    %492 = arith.addf %488, %491 : vector<8x288xf32>
    %c840 = arith.constant 840 : index
    %c0_271 = arith.constant 0 : index
    %493 = vector.load %arg4[%c840, %c0_271] : memref<872x40xf32, #tpu.memory_space<vmem>>, vector<8x16xf32>
    %494 = vector.extract_strided_slice %409 {offsets = [0, 49], sizes = [16, 288], strides = [1, 1]} : vector<16x340xf32> to vector<16x288xf32>
    %cst_272 = arith.constant dense<0.000000e+00> : vector<8x288xf32>
    %495 = tpu.matmul %493, %494, %cst_272 {dimension_numbers = #tpu.dot_dimension_numbers<[1], [0], [0], [1], [0, 0, 1, 1], [], []>} : vector<8x16xf32>, vector<16x288xf32>, vector<8x288xf32> -> vector<8x288xf32>
    %496 = arith.addf %492, %495 : vector<8x288xf32>
    %c848 = arith.constant 848 : index
    %c0_273 = arith.constant 0 : index
    %497 = vector.load %arg4[%c848, %c0_273] : memref<872x40xf32, #tpu.memory_space<vmem>>, vector<8x16xf32>
    %498 = vector.extract_strided_slice %409 {offsets = [0, 50], sizes = [16, 288], strides = [1, 1]} : vector<16x340xf32> to vector<16x288xf32>
    %cst_274 = arith.constant dense<0.000000e+00> : vector<8x288xf32>
    %499 = tpu.matmul %497, %498, %cst_274 {dimension_numbers = #tpu.dot_dimension_numbers<[1], [0], [0], [1], [0, 0, 1, 1], [], []>} : vector<8x16xf32>, vector<16x288xf32>, vector<8x288xf32> -> vector<8x288xf32>
    %500 = arith.addf %496, %499 : vector<8x288xf32>
    %c856 = arith.constant 856 : index
    %c0_275 = arith.constant 0 : index
    %501 = vector.load %arg4[%c856, %c0_275] : memref<872x40xf32, #tpu.memory_space<vmem>>, vector<8x16xf32>
    %502 = vector.extract_strided_slice %409 {offsets = [0, 51], sizes = [16, 288], strides = [1, 1]} : vector<16x340xf32> to vector<16x288xf32>
    %cst_276 = arith.constant dense<0.000000e+00> : vector<8x288xf32>
    %503 = tpu.matmul %501, %502, %cst_276 {dimension_numbers = #tpu.dot_dimension_numbers<[1], [0], [0], [1], [0, 0, 1, 1], [], []>} : vector<8x16xf32>, vector<16x288xf32>, vector<8x288xf32> -> vector<8x288xf32>
    %504 = arith.addf %500, %503 : vector<8x288xf32>
    %c864 = arith.constant 864 : index
    %c0_277 = arith.constant 0 : index
    %505 = vector.load %arg4[%c864, %c0_277] : memref<872x40xf32, #tpu.memory_space<vmem>>, vector<8x16xf32>
    %506 = vector.extract_strided_slice %409 {offsets = [0, 52], sizes = [16, 288], strides = [1, 1]} : vector<16x340xf32> to vector<16x288xf32>
    %cst_278 = arith.constant dense<0.000000e+00> : vector<8x288xf32>
    %507 = tpu.matmul %505, %506, %cst_278 {dimension_numbers = #tpu.dot_dimension_numbers<[1], [0], [0], [1], [0, 0, 1, 1], [], []>} : vector<8x16xf32>, vector<16x288xf32>, vector<8x288xf32> -> vector<8x288xf32>
    %508 = arith.addf %504, %507 : vector<8x288xf32>
    %c0_279 = arith.constant 0 : index
    %c0_280 = arith.constant 0 : index
    %509 = vector.load %arg9[%c0_279, %c0_280] : memref<288x128xf32, #tpu.memory_space<vmem>>, vector<288x128xf32>
    %cst_281 = arith.constant dense<0.000000e+00> : vector<8x128xf32>
    %510 = tpu.matmul %508, %509, %cst_281 {dimension_numbers = #tpu.dot_dimension_numbers<[1], [0], [0], [1], [0, 0, 1, 1], [], []>} : vector<8x288xf32>, vector<288x128xf32>, vector<8x128xf32> -> vector<8x128xf32>
    %c528_282 = arith.constant 528 : index
    %c0_283 = arith.constant 0 : index
    %511 = vector.load %arg3[%c528_282, %c0_283] : memref<536x1xf32, #tpu.memory_space<vmem>>, vector<8x1xf32>
    %512 = vector.broadcast %511 : vector<8x1xf32> to vector<8x128xf32>
    %513 = arith.addf %510, %512 : vector<8x128xf32>
    %514 = tpu.concatenate %23, %47, %206, %249, %271, %513 in 0 : vector<8x128xf32>, vector<8x128xf32>, vector<8x128xf32>, vector<8x128xf32>, vector<8x128xf32>, vector<8x128xf32> -> vector<48x128xf32>
    %c0_284 = arith.constant 0 : index
    %c0_285 = arith.constant 0 : index
    %515 = vector.load %arg10[%c0_284, %c0_285] : memref<48x128xf32, #tpu.memory_space<vmem>>, vector<48x128xf32>
    tpu.vector_store %arg10[%c0_284, %c0_285], %514 {strides = array<i32>} : memref<48x128xf32, #tpu.memory_space<vmem>>, vector<48x128xf32>,
    return
  }
  func.func @transform_0(%arg0: i32) -> (i32, i32) {
    %c0_i32 = arith.constant 0 : i32
    %c0_i32_0 = arith.constant 0 : i32
    %c0_i32_1 = arith.constant 0 : i32
    return %c0_i32, %c0_i32_0 : i32, i32
  }
  func.func @transform_1(%arg0: i32) -> (i32, i32) {
    %c0_i32 = arith.constant 0 : i32
    %c0_i32_0 = arith.constant 0 : i32
    %c0_i32_1 = arith.constant 0 : i32
    return %c0_i32, %c0_i32_0 : i32, i32
  }
  func.func @transform_2(%arg0: i32) -> (i32, i32) {
    %c0_i32 = arith.constant 0 : i32
    %c0_i32_0 = arith.constant 0 : i32
    %c0_i32_1 = arith.constant 0 : i32
    return %c0_i32, %c0_i32_0 : i32, i32
  }
  func.func @transform_3(%arg0: i32) -> (i32, i32) {
    %c0_i32 = arith.constant 0 : i32
    %c0_i32_0 = arith.constant 0 : i32
    %c0_i32_1 = arith.constant 0 : i32
    return %c0_i32, %c0_i32_0 : i32, i32
  }
  func.func @transform_4(%arg0: i32) -> (i32, i32) {
    %c0_i32 = arith.constant 0 : i32
    %c0_i32_0 = arith.constant 0 : i32
    %c0_i32_1 = arith.constant 0 : i32
    return %c0_i32, %c0_i32_0 : i32, i32
  }
  func.func @transform_5(%arg0: i32) -> (i32, i32) {
    %c0_i32 = arith.constant 0 : i32
    %c0_i32_0 = arith.constant 0 : i32
    %c0_i32_1 = arith.constant 0 : i32
    return %c0_i32, %c0_i32_0 : i32, i32
  }
  func.func @transform_6(%arg0: i32) -> (i32, i32) {
    %c0_i32 = arith.constant 0 : i32
    %c0_i32_0 = arith.constant 0 : i32
    %c0_i32_1 = arith.constant 0 : i32
    return %c0_i32, %c0_i32_0 : i32, i32
  }
  func.func @transform_7(%arg0: i32) -> (i32, i32) {
    %c0_i32 = arith.constant 0 : i32
    %c0_i32_0 = arith.constant 0 : i32
    %c0_i32_1 = arith.constant 0 : i32
    return %c0_i32, %c0_i32_0 : i32, i32
  }
  func.func @transform_8(%arg0: i32) -> (i32, i32) {
    %c0_i32 = arith.constant 0 : i32
    %c0_i32_0 = arith.constant 0 : i32
    %c0_i32_1 = arith.constant 0 : i32
    return %c0_i32, %c0_i32_0 : i32, i32
  }
  func.func @transform_9(%arg0: i32) -> (i32, i32) {
    %c0_i32 = arith.constant 0 : i32
    %c0_i32_0 = arith.constant 0 : i32
    %c0_i32_1 = arith.constant 0 : i32
    return %c0_i32, %c0_i32_0 : i32, i32
  }
}

</mosaic_0001>

<llo_original>
// kernel: fwd.1
$region0: #{fwd.1}
  #allocation0 [shape = 'u32[]', space=smem, size = 0x4, offset = 0x4, fixed_abs, tag = 'smem constant byte address 0x4 - core index']
  #allocation1 [shape = 'u32[72,128]{1,0:T(1,128)}', space=vmem, size = 0x9000, scoped, tag = 'internal scratch']
  %s0 = inlined_call_operand.vmem [shape: f32[4,512], index: 0, kind: input, shape index: {}]
  %s1 = inlined_call_operand.vmem [shape: f32[4,512], index: 1, kind: input, shape index: {}]
  %s2 = inlined_call_operand.vmem [shape: f32[536,1], index: 2, kind: input, shape index: {}]
  %s3 = inlined_call_operand.vmem [shape: f32[872,40], index: 3, kind: input, shape index: {}]
  %s4 = inlined_call_operand.vmem [shape: f32[512,128], index: 4, kind: input, shape index: {}]
  %s5 = inlined_call_operand.vmem [shape: f32[128,222], index: 5, kind: input, shape index: {}]
  %s6 = inlined_call_operand.vmem [shape: f32[200,128], index: 6, kind: input, shape index: {}]
  %s7 = inlined_call_operand.vmem [shape: f32[128,340], index: 7, kind: input, shape index: {}]
  %s8 = inlined_call_operand.vmem [shape: f32[288,128], index: 8, kind: input, shape index: {}]
  %s9 = inlined_call_operand.vmem [shape: f32[48,128], index: 9, kind: output, shape index: {}]
  %s10 = sld [smem:[#allocation0]]
  $region46: #{fwd.1} parent=0
    _
  %s12 = ssub.s32 1, %s10
  %s13 = scalar_select 0, %s12, %s10
  // Predicated region
  $region2: #{fwd.1} parent=0 // pred_check
    _
  $region3: #{fwd.1} parent=0 // pred_check_branch
    %15 = sbr.rel (0) target = $region5
  $region4: #{fwd.1} parent=0 // pred_region
    _
  $region5: #{fwd.1} parent=0 // pred_fallthru
    _
  // Predicated region
  $region6: #{fwd.1} parent=0 // pred_check
    _
  $region7: #{fwd.1} parent=0 // pred_check_branch
    %17 = sbr.rel (0) target = $region9
  $region8: #{fwd.1} parent=0 // pred_region
    _
  $region9: #{fwd.1} parent=0 // pred_fallthru
    _
  // Predicated region
  $region10: #{fwd.1} parent=0 // pred_check
    _
  $region11: #{fwd.1} parent=0 // pred_check_branch
    %19 = sbr.rel (0) target = $region13
  $region12: #{fwd.1} parent=0 // pred_region
    _
  $region13: #{fwd.1} parent=0 // pred_fallthru
    _
  // Predicated region
  $region14: #{fwd.1} parent=0 // pred_check
    _
  $region15: #{fwd.1} parent=0 // pred_check_branch
    %21 = sbr.rel (0) target = $region17
  $region16: #{fwd.1} parent=0 // pred_region
    _
  $region17: #{fwd.1} parent=0 // pred_fallthru
    _
  // Predicated region
  $region18: #{fwd.1} parent=0 // pred_check
    _
  $region19: #{fwd.1} parent=0 // pred_check_branch
    %23 = sbr.rel (0) target = $region21
  $region20: #{fwd.1} parent=0 // pred_region
    _
  $region21: #{fwd.1} parent=0 // pred_fallthru
    _
  // Predicated region
  $region22: #{fwd.1} parent=0 // pred_check
    _
  $region23: #{fwd.1} parent=0 // pred_check_branch
    %25 = sbr.rel (0) target = $region25
  $region24: #{fwd.1} parent=0 // pred_region
    _
  $region25: #{fwd.1} parent=0 // pred_fallthru
    _
  // Predicated region
  $region26: #{fwd.1} parent=0 // pred_check
    _
  $region27: #{fwd.1} parent=0 // pred_check_branch
    %27 = sbr.rel (0) target = $region29
  $region28: #{fwd.1} parent=0 // pred_region
    _
  $region29: #{fwd.1} parent=0 // pred_fallthru
    _
  // Predicated region
  $region30: #{fwd.1} parent=0 // pred_check
    _
  $region31: #{fwd.1} parent=0 // pred_check_branch
    %29 = sbr.rel (0) target = $region33
  $region32: #{fwd.1} parent=0 // pred_region
    _
  $region33: #{fwd.1} parent=0 // pred_fallthru
    _
  // Predicated region
  $region34: #{fwd.1} parent=0 // pred_check
    _
  $region35: #{fwd.1} parent=0 // pred_check_branch
    %31 = sbr.rel (0) target = $region37
  $region36: #{fwd.1} parent=0 // pred_region
    _
  $region37: #{fwd.1} parent=0 // pred_fallthru
    _
  %v32 = vld [vmem:[%s0] sm:$0xff]
  %v33 = vld [vmem:[%s0 + $0x8] sm:$0xff]
  %v34 = vld [vmem:[%s2] sm:$0xf]
  %36 = vset.pattern.permute.xlu0 0
  %37 = vperm.xlu0 %36, %v34
  %v38 = vpop.permute.xlu0 %37
  %v40 = vunpack.c.l.s4 839922192
  %v41 = vunpack.c.0.s8 %v40
  %v42 = vperm.slane %v38, %v41
  %v44 = vmul.f32 %v32, %v42
  %v45 = vmul.f32 %v33, %v42
  %v46 = vld [vmem:[%s2 + $0x8] sm:$0xf]
  %48 = vset.pattern.permute.xlu0 0
  %49 = vperm.xlu0 %48, %v46
  %v50 = vpop.permute.xlu0 %49
  %v52 = vunpack.c.l.s4 839922192
  %v53 = vunpack.c.0.s8 %v52
  %v54 = vperm.slane %v50, %v53
  %v56 = vadd.f32 %v44, %v54
  %v57 = vadd.f32 %v45, %v54
  %v58 = vmax.f32 %v56, 0.0
  %v59 = vmax.f32 %v57, 0.0
  %v60 = vld [vmem:[%s3] sm:$0xff]
  %v61 = vld [vmem:[%s2 + $0x10] sm:$0xff]
  %63 = vset.pattern.permute.xlu0 0
  %64 = vperm.xlu0 %63, %v61
  %v65 = vpop.permute.xlu0 %64
  %69 = vst [vmem:[#allocation1] ss:$2 sm:$0xff] %v58
  %s70 = scalar_lea.vmem [#allocation1], 16
  %71 = vst [vmem:[%s70] ss:$2 sm:$0xff] %v59
  %v72 = vld.sshfl [vmem:[#allocation1] sm:$0xff pattern:$0x75316420]
  %v73 = vld.sshfl [vmem:[#allocation1 + $0x8] sm:$0xff pattern:$0x75316420]
  %v74 = vld.sshfl [vmem:[#allocation1 + $0x10] sm:$0xff pattern:$0x75316420]
  %v75 = vld.sshfl [vmem:[#allocation1 + $0x18] sm:$0xff pattern:$0x75316420]
  %vm76 = vcmask 31744
  %v78 = vsel %vm76, %v60, 0
  %vm80 = vcmask 1043456
  %v81 = vsel %vm80, %v72, 0
  %v83 = vsel %vm80, %v73, 0
  %v85 = vsel %vm80, %v74, 0
  %v87 = vsel %vm80, %v75, 0
  %89 = vmatpush.msra.mxu0 0.0
  %90 = vmatpush.msra.mxu0 0.0
  %91 = vmatpush.msra.mxu0 0.0
  %92 = vmatpush.msra.mxu0 0.0
  %93 = vmatpush.msra.mxu0 0.0
  %94 = vmatpush.msra.mxu0 0.0
  %95 = vmatpush.msra.mxu0 0.0
  %96 = vmatpush.msra.mxu0 0.0
  %97 = vmatpush.msra.mxu0 0.0
  %98 = vmatpush.msra.mxu0 0.0
  %99 = vmatpush.msra.mxu0 0.0
  %100 = vmatpush.msra.mxu0 0.0
  %101 = vmatpush.msra.mxu0 0.0
  %102 = vmatpush.msra.mxu0 0.0
  %103 = vmatpush.msra.mxu0 0.0
  %104 = vmatpush.msra.mxu0 %v81
  %105 = vmatmul.f32.gmra.mxu0 %v78
  %v106 = vpop.f32.mrf.mxu0
  %v107 = vadd.f32 %v65, %v106
  %108 = vdwg.mxu0
  %109 = vmatpush.msra.mxu0 0.0
  %110 = vmatpush.msra.mxu0 0.0
  %111 = vmatpush.msra.mxu0 0.0
  %112 = vmatpush.msra.mxu0 0.0
  %113 = vmatpush.msra.mxu0 0.0
  %114 = vmatpush.msra.mxu0 0.0
  %115 = vmatpush.msra.mxu0 0.0
  %116 = vmatpush.msra.mxu0 0.0
  %117 = vmatpush.msra.mxu0 0.0
  %118 = vmatpush.msra.mxu0 0.0
  %119 = vmatpush.msra.mxu0 0.0
  %120 = vmatpush.msra.mxu0 0.0
  %121 = vmatpush.msra.mxu0 0.0
  %122 = vmatpush.msra.mxu0 0.0
  %123 = vmatpush.msra.mxu0 0.0
  %124 = vmatpush.msra.mxu0 %v83
  %125 = vmatmul.f32.gmra.mxu0 %v78
  %v126 = vpop.f32.mrf.mxu0
  %v127 = vadd.f32 %v65, %v126
  %128 = vdwg.mxu0
  %129 = vmatpush.msra.mxu0 0.0
  %130 = vmatpush.msra.mxu0 0.0
  %131 = vmatpush.msra.mxu0 0.0
  %132 = vmatpush.msra.mxu0 0.0
  %133 = vmatpush.msra.mxu0 0.0
  %134 = vmatpush.msra.mxu0 0.0
  %135 = vmatpush.msra.mxu0 0.0
  %136 = vmatpush.msra.mxu0 0.0
  %137 = vmatpush.msra.mxu0 0.0
  %138 = vmatpush.msra.mxu0 0.0
  %139 = vmatpush.msra.mxu0 0.0
  %140 = vmatpush.msra.mxu0 0.0
  %141 = vmatpush.msra.mxu0 0.0
  %142 = vmatpush.msra.mxu0 0.0
  %143 = vmatpush.msra.mxu0 0.0
  %144 = vmatpush.msra.mxu0 %v85
  %145 = vmatmul.f32.gmra.mxu0 %v78
  %v146 = vpop.f32.mrf.mxu0
  %v147 = vadd.f32 %v65, %v146
  %148 = vdwg.mxu0
  %149 = vmatpush.msra.mxu0 0.0
  %150 = vmatpush.msra.mxu0 0.0
  %151 = vmatpush.msra.mxu0 0.0
  %152 = vmatpush.msra.mxu0 0.0
  %153 = vmatpush.msra.mxu0 0.0
  %154 = vmatpush.msra.mxu0 0.0
  %155 = vmatpush.msra.mxu0 0.0
  %156 = vmatpush.msra.mxu0 0.0
  %157 = vmatpush.msra.mxu0 0.0
  %158 = vmatpush.msra.mxu0 0.0
  %159 = vmatpush.msra.mxu0 0.0
  %160 = vmatpush.msra.mxu0 0.0
  %161 = vmatpush.msra.mxu0 0.0
  %162 = vmatpush.msra.mxu0 0.0
  %163 = vmatpush.msra.mxu0 0.0
  %164 = vmatpush.msra.mxu0 %v87
  %165 = vmatmul.f32.gmra.mxu0 %v78
  %v166 = vpop.f32.mrf.mxu0
  %v167 = vadd.f32 %v65, %v166
  %168 = vdwg.mxu0
  %v169 = vld [vmem:[%s2 + $0x30] sm:$0xff]
  %171 = vset.pattern.permute.xlu0 0
  %172 = vperm.xlu0 %171, %v169
  %v173 = vpop.permute.xlu0 %172
  %v175 = vmul.f32 %v107, %v173
  %v176 = vmul.f32 %v127, %v173
  %v177 = vmul.f32 %v147, %v173
  %v178 = vmul.f32 %v167, %v173
  %v179 = vld [vmem:[%s2 + $0x38] sm:$0xff]
  %181 = vset.pattern.permute.xlu0 0
  %182 = vperm.xlu0 %181, %v179
  %v183 = vpop.permute.xlu0 %182
  %v185 = vadd.f32 %v175, %v183
  %v186 = vadd.f32 %v176, %v183
  %v187 = vadd.f32 %v177, %v183
  %v188 = vadd.f32 %v178, %v183
  %v189 = vmax.f32 %v185, 0.0
  %v190 = vmax.f32 %v186, 0.0
  %v191 = vmax.f32 %v187, 0.0
  %v192 = vmax.f32 %v188, 0.0
  %v193 = vld [vmem:[%s4] sm:$0xff]
  %v194 = vld [vmem:[%s4 + $0x8] sm:$0xff]
  %v195 = vld [vmem:[%s4 + $0x10] sm:$0xff]
  %v196 = vld [vmem:[%s4 + $0x18] sm:$0xff]
  %v197 = vld [vmem:[%s4 + $0x20] sm:$0xff]
  %v198 = vld [vmem:[%s4 + $0x28] sm:$0xff]
  %v199 = vld [vmem:[%s4 + $0x30] sm:$0xff]
  %v200 = vld [vmem:[%s4 + $0x38] sm:$0xff]
  %v201 = vld [vmem:[%s4 + $0x40] sm:$0xff]
  %v202 = vld [vmem:[%s4 + $0x48] sm:$0xff]
  %v203 = vld [vmem:[%s4 + $0x50] sm:$0xff]
  %v204 = vld [vmem:[%s4 + $0x58] sm:$0xff]
  %v205 = vld [vmem:[%s4 + $0x60] sm:$0xff]
  %v206 = vld [vmem:[%s4 + $0x68] sm:$0xff]
  %v207 = vld [vmem:[%s4 + $0x70] sm:$0xff]
  %v208 = vld [vmem:[%s4 + $0x78] sm:$0xff]
  %v209 = vld [vmem:[%s4 + $0x80] sm:$0xff]
  %v210 = vld [vmem:[%s4 + $0x88] sm:$0xff]
  %v211 = vld [vmem:[%s4 + $0x90] sm:$0xff]
  %v212 = vld [vmem:[%s4 + $0x98] sm:$0xff]
  %v213 = vld [vmem:[%s4 + $0xa0] sm:$0xff]
  %v214 = vld [vmem:[%s4 + $0xa8] sm:$0xff]
  %v215 = vld [vmem:[%s4 + $0xb0] sm:$0xff]
  %v216 = vld [vmem:[%s4 + $0xb8] sm:$0xff]
  %v217 = vld [vmem:[%s4 + $0xc0] sm:$0xff]
  %v218 = vld [vmem:[%s4 + $0xc8] sm:$0xff]
  %v219 = vld [vmem:[%s4 + $0xd0] sm:$0xff]
  %v220 = vld [vmem:[%s4 + $0xd8] sm:$0xff]
  %v221 = vld [vmem:[%s4 + $0xe0] sm:$0xff]
  %v222 = vld [vmem:[%s4 + $0xe8] sm:$0xff]
  %v223 = vld [vmem:[%s4 + $0xf0] sm:$0xff]
  %v224 = vld [vmem:[%s4 + $0xf8] sm:$0xff]
  %v225 = vld [vmem:[%s4 + $0x100] sm:$0xff]
  %v226 = vld [vmem:[%s4 + $0x108] sm:$0xff]
  %v227 = vld [vmem:[%s4 + $0x110] sm:$0xff]
  %v228 = vld [vmem:[%s4 + $0x118] sm:$0xff]
  %v229 = vld [vmem:[%s4 + $0x120] sm:$0xff]
  %v230 = vld [vmem:[%s4 + $0x128] sm:$0xff]
  %v231 = vld [vmem:[%s4 + $0x130] sm:$0xff]
  %v232 = vld [vmem:[%s4 + $0x138] sm:$0xff]
  %v233 = vld [vmem:[%s4 + $0x140] sm:$0xff]
  %v234 = vld [vmem:[%s4 + $0x148] sm:$0xff]
  %v235 = vld [vmem:[%s4 + $0x150] sm:$0xff]
  %v236 = vld [vmem:[%s4 + $0x158] sm:$0xff]
  %v237 = vld [vmem:[%s4 + $0x160] sm:$0xff]
  %v238 = vld [vmem:[%s4 + $0x168] sm:$0xff]
  %v239 = vld [vmem:[%s4 + $0x170] sm:$0xff]
  %v240 = vld [vmem:[%s4 + $0x178] sm:$0xff]
  %v241 = vld [vmem:[%s4 + $0x180] sm:$0xff]
  %v242 = vld [vmem:[%s4 + $0x188] sm:$0xff]
  %v243 = vld [vmem:[%s4 + $0x190] sm:$0xff]
  %v244 = vld [vmem:[%s4 + $0x198] sm:$0xff]
  %v245 = vld [vmem:[%s4 + $0x1a0] sm:$0xff]
  %v246 = vld [vmem:[%s4 + $0x1a8] sm:$0xff]
  %v247 = vld [vmem:[%s4 + $0x1b0] sm:$0xff]
  %v248 = vld [vmem:[%s4 + $0x1b8] sm:$0xff]
  %v249 = vld [vmem:[%s4 + $0x1c0] sm:$0xff]
  %v250 = vld [vmem:[%s4 + $0x1c8] sm:$0xff]
  %v251 = vld [vmem:[%s4 + $0x1d0] sm:$0xff]
  %v252 = vld [vmem:[%s4 + $0x1d8] sm:$0xff]
  %v253 = vld [vmem:[%s4 + $0x1e0] sm:$0xff]
  %v254 = vld [vmem:[%s4 + $0x1e8] sm:$0xff]
  %v255 = vld [vmem:[%s4 + $0x1f0] sm:$0xff]
  %v256 = vld [vmem:[%s4 + $0x1f8] sm:$0xff]
  %257 = vmatpush.msra.mxu0 %v208
  %258 = vmatpush.msra.mxu0 %v207
  %259 = vmatpush.msra.mxu0 %v206
  %260 = vmatpush.msra.mxu0 %v205
  %261 = vmatpush.msra.mxu0 %v204
  %262 = vmatpush.msra.mxu0 %v203
  %263 = vmatpush.msra.mxu0 %v202
  %264 = vmatpush.msra.mxu0 %v201
  %265 = vmatpush.msra.mxu0 %v200
  %266 = vmatpush.msra.mxu0 %v199
  %267 = vmatpush.msra.mxu0 %v198
  %268 = vmatpush.msra.mxu0 %v197
  %269 = vmatpush.msra.mxu0 %v196
  %270 = vmatpush.msra.mxu0 %v195
  %271 = vmatpush.msra.mxu0 %v194
  %272 = vmatpush.msra.mxu0 %v193
  %273 = vmatmul.f32.gmra.mxu0 %v189
  %v274 = vpop.f32.mrf.mxu0
  %v275 = vadd.f32 0.0, %v274
  %276 = vdwg.mxu0
  %277 = vmatpush.msra.mxu0 %v224
  %278 = vmatpush.msra.mxu0 %v223
  %279 = vmatpush.msra.mxu0 %v222
  %280 = vmatpush.msra.mxu0 %v221
  %281 = vmatpush.msra.mxu0 %v220
  %282 = vmatpush.msra.mxu0 %v219
  %283 = vmatpush.msra.mxu0 %v218
  %284 = vmatpush.msra.mxu0 %v217
  %285 = vmatpush.msra.mxu0 %v216
  %286 = vmatpush.msra.mxu0 %v215
  %287 = vmatpush.msra.mxu0 %v214
  %288 = vmatpush.msra.mxu0 %v213
  %289 = vmatpush.msra.mxu0 %v212
  %290 = vmatpush.msra.mxu0 %v211
  %291 = vmatpush.msra.mxu0 %v210
  %292 = vmatpush.msra.mxu0 %v209
  %293 = vmatmul.f32.gmra.mxu0 %v190
  %v294 = vpop.f32.mrf.mxu0
  %v295 = vadd.f32 %v275, %v294
  %296 = vdwg.mxu0
  %297 = vmatpush.msra.mxu0 %v240
  %298 = vmatpush.msra.mxu0 %v239
  %299 = vmatpush.msra.mxu0 %v238
  %300 = vmatpush.msra.mxu0 %v237
  %301 = vmatpush.msra.mxu0 %v236
  %302 = vmatpush.msra.mxu0 %v235
  %303 = vmatpush.msra.mxu0 %v234
  %304 = vmatpush.msra.mxu0 %v233
  %305 = vmatpush.msra.mxu0 %v232
  %306 = vmatpush.msra.mxu0 %v231
  %307 = vmatpush.msra.mxu0 %v230
  %308 = vmatpush.msra.mxu0 %v229
  %309 = vmatpush.msra.mxu0 %v228
  %310 = vmatpush.msra.mxu0 %v227
  %311 = vmatpush.msra.mxu0 %v226
  %312 = vmatpush.msra.mxu0 %v225
  %313 = vmatmul.f32.gmra.mxu0 %v191
  %v314 = vpop.f32.mrf.mxu0
  %v315 = vadd.f32 %v295, %v314
  %316 = vdwg.mxu0
  %317 = vmatpush.msra.mxu0 %v256
  %318 = vmatpush.msra.mxu0 %v255
  %319 = vmatpush.msra.mxu0 %v254
  %320 = vmatpush.msra.mxu0 %v253
  %321 = vmatpush.msra.mxu0 %v252
  %322 = vmatpush.msra.mxu0 %v251
  %323 = vmatpush.msra.mxu0 %v250
  %324 = vmatpush.msra.mxu0 %v249
  %325 = vmatpush.msra.mxu0 %v248
  %326 = vmatpush.msra.mxu0 %v247
  %327 = vmatpush.msra.mxu0 %v246
  %328 = vmatpush.msra.mxu0 %v245
  %329 = vmatpush.msra.mxu0 %v244
  %330 = vmatpush.msra.mxu0 %v243
  %331 = vmatpush.msra.mxu0 %v242
  %332 = vmatpush.msra.mxu0 %v241
  %333 = vmatmul.f32.gmra.mxu0 %v192
  %v334 = vpop.f32.mrf.mxu0
  %v335 = vadd.f32 %v315, %v334
  %336 = vdwg.mxu0
  %v337 = vld [vmem:[%s1] sm:$0xff]
  %v338 = vld [vmem:[%s1 + $0x8] sm:$0xff]
  %v339 = vld [vmem:[%s2 + $0x18] sm:$0xf]
  %341 = vset.pattern.permute.xlu0 0
  %342 = vperm.xlu0 %341, %v339
  %v343 = vpop.permute.xlu0 %342
  %v345 = vunpack.c.l.s4 839922192
  %v346 = vunpack.c.0.s8 %v345
  %v347 = vperm.slane %v343, %v346
  %v349 = vmul.f32 %v337, %v347
  %v350 = vmul.f32 %v338, %v347
  %v351 = vld [vmem:[%s2 + $0x20] sm:$0xf]
  %353 = vset.pattern.permute.xlu0 0
  %354 = vperm.xlu0 %353, %v351
  %v355 = vpop.permute.xlu0 %354
  %v357 = vunpack.c.l.s4 839922192
  %v358 = vunpack.c.0.s8 %v357
  %v359 = vperm.slane %v355, %v358
  %v361 = vadd.f32 %v349, %v359
  %v362 = vadd.f32 %v350, %v359
  %v363 = vmax.f32 %v361, 0.0
  %v364 = vmax.f32 %v362, 0.0
  %v365 = vld [vmem:[%s3 + $0x8] sm:$0xff]
  %v366 = vld [vmem:[%s2 + $0x28] sm:$0xff]
  %368 = vset.pattern.permute.xlu0 0
  %369 = vperm.xlu0 %368, %v366
  %v370 = vpop.permute.xlu0 %369
  %374 = vst [vmem:[#allocation1] ss:$2 sm:$0xff] %v363
  %s375 = scalar_lea.vmem [#allocation1], 16
  %376 = vst [vmem:[%s375] ss:$2 sm:$0xff] %v364
  %v377 = vld.sshfl [vmem:[#allocation1] sm:$0xff pattern:$0x75316420]
  %v378 = vld.sshfl [vmem:[#allocation1 + $0x8] sm:$0xff pattern:$0x75316420]
  %v379 = vld.sshfl [vmem:[#allocation1 + $0x10] sm:$0xff pattern:$0x75316420]
  %v380 = vld.sshfl [vmem:[#allocation1 + $0x18] sm:$0xff pattern:$0x75316420]
  %v382 = vsel %vm76, %v365, 0
  %v384 = vsel %vm80, %v377, 0
  %v386 = vsel %vm80, %v378, 0
  %v388 = vsel %vm80, %v379, 0
  %v390 = vsel %vm80, %v380, 0
  %392 = vmatpush.msra.mxu0 0.0
  %393 = vmatpush.msra.mxu0 0.0
  %394 = vmatpush.msra.mxu0 0.0
  %395 = vmatpush.msra.mxu0 0.0
  %396 = vmatpush.msra.mxu0 0.0
  %397 = vmatpush.msra.mxu0 0.0
  %398 = vmatpush.msra.mxu0 0.0
  %399 = vmatpush.msra.mxu0 0.0
  %400 = vmatpush.msra.mxu0 0.0
  %401 = vmatpush.msra.mxu0 0.0
  %402 = vmatpush.msra.mxu0 0.0
  %403 = vmatpush.msra.mxu0 0.0
  %404 = vmatpush.msra.mxu0 0.0
  %405 = vmatpush.msra.mxu0 0.0
  %406 = vmatpush.msra.mxu0 0.0
  %407 = vmatpush.msra.mxu0 %v384
  %408 = vmatmul.f32.gmra.mxu0 %v382
  %v409 = vpop.f32.mrf.mxu0
  %v410 = vadd.f32 %v370, %v409
  %411 = vdwg.mxu0
  %412 = vmatpush.msra.mxu0 0.0
  %413 = vmatpush.msra.mxu0 0.0
  %414 = vmatpush.msra.mxu0 0.0
  %415 = vmatpush.msra.mxu0 0.0
  %416 = vmatpush.msra.mxu0 0.0
  %417 = vmatpush.msra.mxu0 0.0
  %418 = vmatpush.msra.mxu0 0.0
  %419 = vmatpush.msra.mxu0 0.0
  %420 = vmatpush.msra.mxu0 0.0
  %421 = vmatpush.msra.mxu0 0.0
  %422 = vmatpush.msra.mxu0 0.0
  %423 = vmatpush.msra.mxu0 0.0
  %424 = vmatpush.msra.mxu0 0.0
  %425 = vmatpush.msra.mxu0 0.0
  %426 = vmatpush.msra.mxu0 0.0
  %427 = vmatpush.msra.mxu0 %v386
  %428 = vmatmul.f32.gmra.mxu0 %v382
  %v429 = vpop.f32.mrf.mxu0
  %v430 = vadd.f32 %v370, %v429
  %431 = vdwg.mxu0
  %432 = vmatpush.msra.mxu0 0.0
  %433 = vmatpush.msra.mxu0 0.0
  %434 = vmatpush.msra.mxu0 0.0
  %435 = vmatpush.msra.mxu0 0.0
  %436 = vmatpush.msra.mxu0 0.0
  %437 = vmatpush.msra.mxu0 0.0
  %438 = vmatpush.msra.mxu0 0.0
  %439 = vmatpush.msra.mxu0 0.0
  %440 = vmatpush.msra.mxu0 0.0
  %441 = vmatpush.msra.mxu0 0.0
  %442 = vmatpush.msra.mxu0 0.0
  %443 = vmatpush.msra.mxu0 0.0
  %444 = vmatpush.msra.mxu0 0.0
  %445 = vmatpush.msra.mxu0 0.0
  %446 = vmatpush.msra.mxu0 0.0
  %447 = vmatpush.msra.mxu0 %v388
  %448 = vmatmul.f32.gmra.mxu0 %v382
  %v449 = vpop.f32.mrf.mxu0
  %v450 = vadd.f32 %v370, %v449
  %451 = vdwg.mxu0
  %452 = vmatpush.msra.mxu0 0.0
  %453 = vmatpush.msra.mxu0 0.0
  %454 = vmatpush.msra.mxu0 0.0
  %455 = vmatpush.msra.mxu0 0.0
  %456 = vmatpush.msra.mxu0 0.0
  %457 = vmatpush.msra.mxu0 0.0
  %458 = vmatpush.msra.mxu0 0.0
  %459 = vmatpush.msra.mxu0 0.0
  %460 = vmatpush.msra.mxu0 0.0
  %461 = vmatpush.msra.mxu0 0.0
  %462 = vmatpush.msra.mxu0 0.0
  %463 = vmatpush.msra.mxu0 0.0
  %464 = vmatpush.msra.mxu0 0.0
  %465 = vmatpush.msra.mxu0 0.0
  %466 = vmatpush.msra.mxu0 0.0
  %467 = vmatpush.msra.mxu0 %v390
  %468 = vmatmul.f32.gmra.mxu0 %v382
  %v469 = vpop.f32.mrf.mxu0
  %v470 = vadd.f32 %v370, %v469
  %471 = vdwg.mxu0
  %v472 = vld [vmem:[%s2 + $0x40] sm:$0xff]
  %474 = vset.pattern.permute.xlu0 0
  %475 = vperm.xlu0 %474, %v472
  %v476 = vpop.permute.xlu0 %475
  %v478 = vmul.f32 %v410, %v476
  %v479 = vmul.f32 %v430, %v476
  %v480 = vmul.f32 %v450, %v476
  %v481 = vmul.f32 %v470, %v476
  %v482 = vld [vmem:[%s2 + $0x48] sm:$0xff]
  %484 = vset.pattern.permute.xlu0 0
  %485 = vperm.xlu0 %484, %v482
  %v486 = vpop.permute.xlu0 %485
  %v488 = vadd.f32 %v478, %v486
  %v489 = vadd.f32 %v479, %v486
  %v490 = vadd.f32 %v480, %v486
  %v491 = vadd.f32 %v481, %v486
  %v492 = vmax.f32 %v488, 0.0
  %v493 = vmax.f32 %v489, 0.0
  %v494 = vmax.f32 %v490, 0.0
  %v495 = vmax.f32 %v491, 0.0
  %496 = vmatpush.msra.mxu0 %v208
  %497 = vmatpush.msra.mxu0 %v207
  %498 = vmatpush.msra.mxu0 %v206
  %499 = vmatpush.msra.mxu0 %v205
  %500 = vmatpush.msra.mxu0 %v204
  %501 = vmatpush.msra.mxu0 %v203
  %502 = vmatpush.msra.mxu0 %v202
  %503 = vmatpush.msra.mxu0 %v201
  %504 = vmatpush.msra.mxu0 %v200
  %505 = vmatpush.msra.mxu0 %v199
  %506 = vmatpush.msra.mxu0 %v198
  %507 = vmatpush.msra.mxu0 %v197
  %508 = vmatpush.msra.mxu0 %v196
  %509 = vmatpush.msra.mxu0 %v195
  %510 = vmatpush.msra.mxu0 %v194
  %511 = vmatpush.msra.mxu0 %v193
  %512 = vmatmul.f32.gmra.mxu0 %v492
  %v513 = vpop.f32.mrf.mxu0
  %v514 = vadd.f32 0.0, %v513
  %515 = vdwg.mxu0
  %516 = vmatpush.msra.mxu0 %v224
  %517 = vmatpush.msra.mxu0 %v223
  %518 = vmatpush.msra.mxu0 %v222
  %519 = vmatpush.msra.mxu0 %v221
  %520 = vmatpush.msra.mxu0 %v220
  %521 = vmatpush.msra.mxu0 %v219
  %522 = vmatpush.msra.mxu0 %v218
  %523 = vmatpush.msra.mxu0 %v217
  %524 = vmatpush.msra.mxu0 %v216
  %525 = vmatpush.msra.mxu0 %v215
  %526 = vmatpush.msra.mxu0 %v214
  %527 = vmatpush.msra.mxu0 %v213
  %528 = vmatpush.msra.mxu0 %v212
  %529 = vmatpush.msra.mxu0 %v211
  %530 = vmatpush.msra.mxu0 %v210
  %531 = vmatpush.msra.mxu0 %v209
  %532 = vmatmul.f32.gmra.mxu0 %v493
  %v533 = vpop.f32.mrf.mxu0
  %v534 = vadd.f32 %v514, %v533
  %535 = vdwg.mxu0
  %536 = vmatpush.msra.mxu0 %v240
  %537 = vmatpush.msra.mxu0 %v239
  %538 = vmatpush.msra.mxu0 %v238
  %539 = vmatpush.msra.mxu0 %v237
  %540 = vmatpush.msra.mxu0 %v236
  %541 = vmatpush.msra.mxu0 %v235
  %542 = vmatpush.msra.mxu0 %v234
  %543 = vmatpush.msra.mxu0 %v233
  %544 = vmatpush.msra.mxu0 %v232
  %545 = vmatpush.msra.mxu0 %v231
  %546 = vmatpush.msra.mxu0 %v230
  %547 = vmatpush.msra.mxu0 %v229
  %548 = vmatpush.msra.mxu0 %v228
  %549 = vmatpush.msra.mxu0 %v227
  %550 = vmatpush.msra.mxu0 %v226
  %551 = vmatpush.msra.mxu0 %v225
  %552 = vmatmul.f32.gmra.mxu0 %v494
  %v553 = vpop.f32.mrf.mxu0
  %v554 = vadd.f32 %v534, %v553
  %555 = vdwg.mxu0
  %556 = vmatpush.msra.mxu0 %v256
  %557 = vmatpush.msra.mxu0 %v255
  %558 = vmatpush.msra.mxu0 %v254
  %559 = vmatpush.msra.mxu0 %v253
  %560 = vmatpush.msra.mxu0 %v252
  %561 = vmatpush.msra.mxu0 %v251
  %562 = vmatpush.msra.mxu0 %v250
  %563 = vmatpush.msra.mxu0 %v249
  %564 = vmatpush.msra.mxu0 %v248
  %565 = vmatpush.msra.mxu0 %v247
  %566 = vmatpush.msra.mxu0 %v246
  %567 = vmatpush.msra.mxu0 %v245
  %568 = vmatpush.msra.mxu0 %v244
  %569 = vmatpush.msra.mxu0 %v243
  %570 = vmatpush.msra.mxu0 %v242
  %571 = vmatpush.msra.mxu0 %v241
  %572 = vmatmul.f32.gmra.mxu0 %v495
  %v573 = vpop.f32.mrf.mxu0
  %v574 = vadd.f32 %v554, %v573
  %575 = vdwg.mxu0
  %v576 = vld [vmem:[%s2 + $0x50] sm:$0xff]
  %v577 = vld [vmem:[%s2 + $0x58] sm:$0xff]
  %579 = vset.pattern.permute.xlu0 0
  %580 = vperm.xlu0 %579, %v576
  %v581 = vpop.permute.xlu0 %580
  %584 = vset.pattern.permute.xlu0 0
  %585 = vperm.xlu0 %584, %v577
  %v586 = vpop.permute.xlu0 %585
  %v588 = vmul.f32 %v335, %v581
  %v589 = vmul.f32 %v574, %v586
  %v590 = vld [vmem:[%s2 + $0x60] sm:$0xff]
  %v591 = vld [vmem:[%s2 + $0x68] sm:$0xff]
  %593 = vset.pattern.permute.xlu0 0
  %594 = vperm.xlu0 %593, %v590
  %v595 = vpop.permute.xlu0 %594
  %598 = vset.pattern.permute.xlu0 0
  %599 = vperm.xlu0 %598, %v591
  %v600 = vpop.permute.xlu0 %599
  %v602 = vadd.f32 %v588, %v595
  %v603 = vadd.f32 %v589, %v600
  %v604 = vmax.f32 %v602, 0.0
  %v605 = vmax.f32 %v603, 0.0
  %v606 = vld [vmem:[%s3 + $0x10] sm:$0xff]
  %v607 = vld [vmem:[%s2 + $0x70] sm:$0xff]
  %609 = vset.pattern.permute.xlu0 0
  %610 = vperm.xlu0 %609, %v607
  %v611 = vpop.permute.xlu0 %610
  %vm613 = vcmask 130048
  %v615 = vsel %vm613, %v606, 0
  %617 = vmatpush.msra.mxu0 0.0
  %618 = vmatpush.msra.mxu0 0.0
  %619 = vmatpush.msra.mxu0 0.0
  %620 = vmatpush.msra.mxu0 0.0
  %621 = vmatpush.msra.mxu0 0.0
  %622 = vmatpush.msra.mxu0 0.0
  %623 = vmatpush.msra.mxu0 0.0
  %624 = vmatpush.msra.mxu0 0.0
  %625 = vmatpush.msra.mxu0 0.0
  %626 = vmatpush.msra.mxu0 0.0
  %627 = vmatpush.msra.mxu0 0.0
  %628 = vmatpush.msra.mxu0 0.0
  %629 = vmatpush.msra.mxu0 0.0
  %630 = vmatpush.msra.mxu0 0.0
  %631 = vmatpush.msra.mxu0 %v605
  %632 = vmatpush.msra.mxu0 %v604
  %633 = vmatmul.f32.gmra.mxu0 %v615
  %v634 = vpop.f32.mrf.mxu0
  %v635 = vadd.f32 %v611, %v634
  %636 = vdwg.mxu0
  %v637 = vld [vmem:[%s2 + $0x78] sm:$0xff]
  %639 = vset.pattern.permute.xlu0 0
  %640 = vperm.xlu0 %639, %v637
  %v641 = vpop.permute.xlu0 %640
  %v643 = vmul.f32 %v635, %v641
  %v644 = vld [vmem:[%s2 + $0x80] sm:$0xff]
  %646 = vset.pattern.permute.xlu0 0
  %647 = vperm.xlu0 %646, %v644
  %v648 = vpop.permute.xlu0 %647
  %v650 = vadd.f32 %v643, %v648
  %v651 = vmax.f32 %v650, 0.0
  %v652 = vld [vmem:[%s5] sm:$0xff]
  %v653 = vld [vmem:[%s5 + $0x8] sm:$0xff]
  %v654 = vld [vmem:[%s5 + $0x10] sm:$0xff]
  %v655 = vld [vmem:[%s5 + $0x18] sm:$0xff]
  %v656 = vld [vmem:[%s5 + $0x20] sm:$0xff]
  %v657 = vld [vmem:[%s5 + $0x28] sm:$0xff]
  %v658 = vld [vmem:[%s5 + $0x30] sm:$0xff]
  %v659 = vld [vmem:[%s5 + $0x38] sm:$0xff]
  %v660 = vld [vmem:[%s5 + $0x40] sm:$0xff]
  %v661 = vld [vmem:[%s5 + $0x48] sm:$0xff]
  %v662 = vld [vmem:[%s5 + $0x50] sm:$0xff]
  %v663 = vld [vmem:[%s5 + $0x58] sm:$0xff]
  %v664 = vld [vmem:[%s5 + $0x60] sm:$0xff]
  %v665 = vld [vmem:[%s5 + $0x68] sm:$0xff]
  %v666 = vld [vmem:[%s5 + $0x70] sm:$0xff]
  %v667 = vld [vmem:[%s5 + $0x78] sm:$0xff]
  %v668 = vld [vmem:[%s5 + $0x80] sm:$0xff]
  %v669 = vld [vmem:[%s5 + $0x88] sm:$0xff]
  %v670 = vld [vmem:[%s5 + $0x90] sm:$0xff]
  %v671 = vld [vmem:[%s5 + $0x98] sm:$0xff]
  %v672 = vld [vmem:[%s5 + $0xa0] sm:$0xff]
  %v673 = vld [vmem:[%s5 + $0xa8] sm:$0xff]
  %v674 = vld [vmem:[%s5 + $0xb0] sm:$0xff]
  %v675 = vld [vmem:[%s5 + $0xb8] sm:$0xff]
  %v676 = vld [vmem:[%s5 + $0xc0] sm:$0xff]
  %v677 = vld [vmem:[%s5 + $0xc8] sm:$0xff]
  %v678 = vld [vmem:[%s5 + $0xd0] sm:$0xff]
  %v679 = vld [vmem:[%s5 + $0xd8] sm:$0xff]
  %v680 = vld [vmem:[%s5 + $0xe0] sm:$0xff]
  %v681 = vld [vmem:[%s5 + $0xe8] sm:$0xff]
  %v682 = vld [vmem:[%s5 + $0xf0] sm:$0xff]
  %v683 = vld [vmem:[%s5 + $0xf8] sm:$0xff]
  %684 = vmatpush.msra.mxu0 %v682
  %685 = vmatpush.msra.mxu0 %v680
  %686 = vmatpush.msra.mxu0 %v678
  %687 = vmatpush.msra.mxu0 %v676
  %688 = vmatpush.msra.mxu0 %v674
  %689 = vmatpush.msra.mxu0 %v672
  %690 = vmatpush.msra.mxu0 %v670
  %691 = vmatpush.msra.mxu0 %v668
  %692 = vmatpush.msra.mxu0 %v666
  %693 = vmatpush.msra.mxu0 %v664
  %694 = vmatpush.msra.mxu0 %v662
  %695 = vmatpush.msra.mxu0 %v660
  %696 = vmatpush.msra.mxu0 %v658
  %697 = vmatpush.msra.mxu0 %v656
  %698 = vmatpush.msra.mxu0 %v654
  %699 = vmatpush.msra.mxu0 %v652
  %700 = vmatmul.f32.gmra.mxu0 %v651
  %v701 = vpop.f32.mrf.mxu0
  %v702 = vadd.f32 0.0, %v701
  %703 = vdwg.mxu0
  %704 = vmatpush.msra.mxu0 %v683
  %705 = vmatpush.msra.mxu0 %v681
  %706 = vmatpush.msra.mxu0 %v679
  %707 = vmatpush.msra.mxu0 %v677
  %708 = vmatpush.msra.mxu0 %v675
  %709 = vmatpush.msra.mxu0 %v673
  %710 = vmatpush.msra.mxu0 %v671
  %711 = vmatpush.msra.mxu0 %v669
  %712 = vmatpush.msra.mxu0 %v667
  %713 = vmatpush.msra.mxu0 %v665
  %714 = vmatpush.msra.mxu0 %v663
  %715 = vmatpush.msra.mxu0 %v661
  %716 = vmatpush.msra.mxu0 %v659
  %717 = vmatpush.msra.mxu0 %v657
  %718 = vmatpush.msra.mxu0 %v655
  %719 = vmatpush.msra.mxu0 %v653
  %720 = vmatmul.f32.gmra.mxu0 %v651
  %v721 = vpop.f32.mrf.mxu0
  %v722 = vadd.f32 0.0, %v721
  %723 = vdwg.mxu0
  %v724 = vld [vmem:[%s3 + $0x18] sm:$0xff]
  %v725 = vld [vmem:[%s3 + $0x20] sm:$0xff]
  %v726 = vld [vmem:[%s3 + $0x28] sm:$0xff]
  %v727 = vld [vmem:[%s3 + $0x30] sm:$0xff]
  %730 = vrot.lane.b32.xlu0 %v702, 127
  %v731 = vpop.permute.xlu0 %730
  %732 = vrot.lane.b32.xlu0 %v722, 127
  %v733 = vpop.permute.xlu0 %732
  %vm734 = vcmask 1039360
  %v735 = vsel %vm734, %v731, %v733
  %vm738 = vcmask 64512
  %v740 = vsel %vm738, %v726, 0
  %v743 = vsel %vm738, %v727, 0
  %745 = vmatpush.msra.mxu0 0.0
  %746 = vmatpush.msra.mxu0 0.0
  %747 = vmatpush.msra.mxu0 0.0
  %748 = vmatpush.msra.mxu0 0.0
  %749 = vmatpush.msra.mxu0 0.0
  %750 = vmatpush.msra.mxu0 0.0
  %751 = vmatpush.msra.mxu0 0.0
  %752 = vmatpush.msra.mxu0 0.0
  %753 = vmatpush.msra.mxu0 0.0
  %754 = vmatpush.msra.mxu0 0.0
  %755 = vmatpush.msra.mxu0 0.0
  %756 = vmatpush.msra.mxu0 0.0
  %757 = vmatpush.msra.mxu0 0.0
  %758 = vmatpush.msra.mxu0 0.0
  %759 = vmatpush.msra.mxu0 0.0
  %760 = vmatpush.msra.mxu0 %v735
  %761 = vmatmul.f32.gmra.mxu0 %v740
  %v762 = vpop.f32.mrf.mxu0
  %v763 = vadd.f32 0.0, %v762
  %764 = vmatmul.f32.gmra.mxu0 %v743
  %v765 = vpop.f32.mrf.mxu0
  %v766 = vadd.f32 0.0, %v765
  %767 = vdwg.mxu0
  %768 = vmatpush.msra.mxu0 0.0
  %769 = vmatpush.msra.mxu0 0.0
  %770 = vmatpush.msra.mxu0 0.0
  %771 = vmatpush.msra.mxu0 0.0
  %772 = vmatpush.msra.mxu0 0.0
  %773 = vmatpush.msra.mxu0 0.0
  %774 = vmatpush.msra.mxu0 0.0
  %775 = vmatpush.msra.mxu0 0.0
  %776 = vmatpush.msra.mxu0 0.0
  %777 = vmatpush.msra.mxu0 0.0
  %778 = vmatpush.msra.mxu0 0.0
  %779 = vmatpush.msra.mxu0 0.0
  %780 = vmatpush.msra.mxu0 0.0
  %781 = vmatpush.msra.mxu0 0.0
  %782 = vmatpush.msra.mxu0 0.0
  %783 = vmatpush.msra.mxu0 %v733
  %784 = vmatmul.f32.gmra.mxu0 %v740
  %v785 = vpop.f32.mrf.mxu0
  %v786 = vadd.f32 0.0, %v785
  %787 = vmatmul.f32.gmra.mxu0 %v743
  %v788 = vpop.f32.mrf.mxu0
  %v789 = vadd.f32 0.0, %v788
  %790 = vdwg.mxu0
  %v792 = vsel %vm738, %v724, 0
  %v795 = vsel %vm738, %v725, 0
  %797 = vmatpush.msra.mxu0 0.0
  %798 = vmatpush.msra.mxu0 0.0
  %799 = vmatpush.msra.mxu0 0.0
  %800 = vmatpush.msra.mxu0 0.0
  %801 = vmatpush.msra.mxu0 0.0
  %802 = vmatpush.msra.mxu0 0.0
  %803 = vmatpush.msra.mxu0 0.0
  %804 = vmatpush.msra.mxu0 0.0
  %805 = vmatpush.msra.mxu0 0.0
  %806 = vmatpush.msra.mxu0 0.0
  %807 = vmatpush.msra.mxu0 0.0
  %808 = vmatpush.msra.mxu0 0.0
  %809 = vmatpush.msra.mxu0 0.0
  %810 = vmatpush.msra.mxu0 0.0
  %811 = vmatpush.msra.mxu0 0.0
  %812 = vmatpush.msra.mxu0 %v702
  %813 = vmatmul.f32.gmra.mxu0 %v792
  %v814 = vpop.f32.mrf.mxu0
  %v815 = vadd.f32 %v763, %v814
  %816 = vmatmul.f32.gmra.mxu0 %v795
  %v817 = vpop.f32.mrf.mxu0
  %v818 = vadd.f32 %v766, %v817
  %819 = vdwg.mxu0
  %820 = vmatpush.msra.mxu0 0.0
  %821 = vmatpush.msra.mxu0 0.0
  %822 = vmatpush.msra.mxu0 0.0
  %823 = vmatpush.msra.mxu0 0.0
  %824 = vmatpush.msra.mxu0 0.0
  %825 = vmatpush.msra.mxu0 0.0
  %826 = vmatpush.msra.mxu0 0.0
  %827 = vmatpush.msra.mxu0 0.0
  %828 = vmatpush.msra.mxu0 0.0
  %829 = vmatpush.msra.mxu0 0.0
  %830 = vmatpush.msra.mxu0 0.0
  %831 = vmatpush.msra.mxu0 0.0
  %832 = vmatpush.msra.mxu0 0.0
  %833 = vmatpush.msra.mxu0 0.0
  %834 = vmatpush.msra.mxu0 0.0
  %835 = vmatpush.msra.mxu0 %v722
  %836 = vmatmul.f32.gmra.mxu0 %v792
  %v837 = vpop.f32.mrf.mxu0
  %v838 = vadd.f32 %v786, %v837
  %839 = vmatmul.f32.gmra.mxu0 %v795
  %v840 = vpop.f32.mrf.mxu0
  %v841 = vadd.f32 %v789, %v840
  %842 = vdwg.mxu0
  %v843 = vld [vmem:[%s3 + $0x38] sm:$0xff]
  %v844 = vld [vmem:[%s3 + $0x40] sm:$0xff]
  %845 = vrot.lane.b32.xlu0 %v702, 126
  %v846 = vpop.permute.xlu0 %845
  %847 = vrot.lane.b32.xlu0 %v722, 126
  %v848 = vpop.permute.xlu0 %847
  %vm849 = vcmask 1031168
  %v850 = vsel %vm849, %v846, %v848
  %v854 = vsel %vm738, %v843, 0
  %v857 = vsel %vm738, %v844, 0
  %859 = vmatpush.msra.mxu0 0.0
  %860 = vmatpush.msra.mxu0 0.0
  %861 = vmatpush.msra.mxu0 0.0
  %862 = vmatpush.msra.mxu0 0.0
  %863 = vmatpush.msra.mxu0 0.0
  %864 = vmatpush.msra.mxu0 0.0
  %865 = vmatpush.msra.mxu0 0.0
  %866 = vmatpush.msra.mxu0 0.0
  %867 = vmatpush.msra.mxu0 0.0
  %868 = vmatpush.msra.mxu0 0.0
  %869 = vmatpush.msra.mxu0 0.0
  %870 = vmatpush.msra.mxu0 0.0
  %871 = vmatpush.msra.mxu0 0.0
  %872 = vmatpush.msra.mxu0 0.0
  %873 = vmatpush.msra.mxu0 0.0
  %874 = vmatpush.msra.mxu0 %v850
  %875 = vmatmul.f32.gmra.mxu0 %v854
  %v876 = vpop.f32.mrf.mxu0
  %v877 = vadd.f32 0.0, %v876
  %878 = vmatmul.f32.gmra.mxu0 %v857
  %v879 = vpop.f32.mrf.mxu0
  %v880 = vadd.f32 0.0, %v879
  %881 = vdwg.mxu0
  %882 = vmatpush.msra.mxu0 0.0
  %883 = vmatpush.msra.mxu0 0.0
  %884 = vmatpush.msra.mxu0 0.0
  %885 = vmatpush.msra.mxu0 0.0
  %886 = vmatpush.msra.mxu0 0.0
  %887 = vmatpush.msra.mxu0 0.0
  %888 = vmatpush.msra.mxu0 0.0
  %889 = vmatpush.msra.mxu0 0.0
  %890 = vmatpush.msra.mxu0 0.0
  %891 = vmatpush.msra.mxu0 0.0
  %892 = vmatpush.msra.mxu0 0.0
  %893 = vmatpush.msra.mxu0 0.0
  %894 = vmatpush.msra.mxu0 0.0
  %895 = vmatpush.msra.mxu0 0.0
  %896 = vmatpush.msra.mxu0 0.0
  %897 = vmatpush.msra.mxu0 %v848
  %898 = vmatmul.f32.gmra.mxu0 %v854
  %v899 = vpop.f32.mrf.mxu0
  %v900 = vadd.f32 0.0, %v899
  %901 = vmatmul.f32.gmra.mxu0 %v857
  %v902 = vpop.f32.mrf.mxu0
  %v903 = vadd.f32 0.0, %v902
  %904 = vdwg.mxu0
  %v905 = vadd.f32 %v815, %v877
  %v906 = vadd.f32 %v838, %v900
  %v907 = vadd.f32 %v818, %v880
  %v908 = vadd.f32 %v841, %v903
  %v909 = vld [vmem:[%s3 + $0x48] sm:$0xff]
  %v910 = vld [vmem:[%s3 + $0x50] sm:$0xff]
  %911 = vrot.lane.b32.xlu0 %v702, 118
  %v912 = vpop.permute.xlu0 %911
  %913 = vrot.lane.b32.xlu0 %v722, 118
  %v914 = vpop.permute.xlu0 %913
  %vm915 = vcmask 965632
  %v916 = vsel %vm915, %v912, %v914
  %v920 = vsel %vm738, %v909, 0
  %v923 = vsel %vm738, %v910, 0
  %925 = vmatpush.msra.mxu0 0.0
  %926 = vmatpush.msra.mxu0 0.0
  %927 = vmatpush.msra.mxu0 0.0
  %928 = vmatpush.msra.mxu0 0.0
  %929 = vmatpush.msra.mxu0 0.0
  %930 = vmatpush.msra.mxu0 0.0
  %931 = vmatpush.msra.mxu0 0.0
  %932 = vmatpush.msra.mxu0 0.0
  %933 = vmatpush.msra.mxu0 0.0
  %934 = vmatpush.msra.mxu0 0.0
  %935 = vmatpush.msra.mxu0 0.0
  %936 = vmatpush.msra.mxu0 0.0
  %937 = vmatpush.msra.mxu0 0.0
  %938 = vmatpush.msra.mxu0 0.0
  %939 = vmatpush.msra.mxu0 0.0
  %940 = vmatpush.msra.mxu0 %v916
  %941 = vmatmul.f32.gmra.mxu0 %v920
  %v942 = vpop.f32.mrf.mxu0
  %v943 = vadd.f32 0.0, %v942
  %944 = vmatmul.f32.gmra.mxu0 %v923
  %v945 = vpop.f32.mrf.mxu0
  %v946 = vadd.f32 0.0, %v945
  %947 = vdwg.mxu0
  %948 = vmatpush.msra.mxu0 0.0
  %949 = vmatpush.msra.mxu0 0.0
  %950 = vmatpush.msra.mxu0 0.0
  %951 = vmatpush.msra.mxu0 0.0
  %952 = vmatpush.msra.mxu0 0.0
  %953 = vmatpush.msra.mxu0 0.0
  %954 = vmatpush.msra.mxu0 0.0
  %955 = vmatpush.msra.mxu0 0.0
  %956 = vmatpush.msra.mxu0 0.0
  %957 = vmatpush.msra.mxu0 0.0
  %958 = vmatpush.msra.mxu0 0.0
  %959 = vmatpush.msra.mxu0 0.0
  %960 = vmatpush.msra.mxu0 0.0
  %961 = vmatpush.msra.mxu0 0.0
  %962 = vmatpush.msra.mxu0 0.0
  %963 = vmatpush.msra.mxu0 %v914
  %964 = vmatmul.f32.gmra.mxu0 %v920
  %v965 = vpop.f32.mrf.mxu0
  %v966 = vadd.f32 0.0, %v965
  %967 = vmatmul.f32.gmra.mxu0 %v923
  %v968 = vpop.f32.mrf.mxu0
  %v969 = vadd.f32 0.0, %v968
  %970 = vdwg.mxu0
  %v971 = vadd.f32 %v905, %v943
  %v972 = vadd.f32 %v906, %v966
  %v973 = vadd.f32 %v907, %v946
  %v974 = vadd.f32 %v908, %v969
  %v975 = vld [vmem:[%s3 + $0x58] sm:$0xff]
  %v976 = vld [vmem:[%s3 + $0x60] sm:$0xff]
  %977 = vrot.lane.b32.xlu0 %v702, 117
  %v978 = vpop.permute.xlu0 %977
  %979 = vrot.lane.b32.xlu0 %v722, 117
  %v980 = vpop.permute.xlu0 %979
  %vm981 = vcmask 957440
  %v982 = vsel %vm981, %v978, %v980
  %v986 = vsel %vm738, %v975, 0
  %v989 = vsel %vm738, %v976, 0
  %991 = vmatpush.msra.mxu0 0.0
  %992 = vmatpush.msra.mxu0 0.0
  %993 = vmatpush.msra.mxu0 0.0
  %994 = vmatpush.msra.mxu0 0.0
  %995 = vmatpush.msra.mxu0 0.0
  %996 = vmatpush.msra.mxu0 0.0
  %997 = vmatpush.msra.mxu0 0.0
  %998 = vmatpush.msra.mxu0 0.0
  %999 = vmatpush.msra.mxu0 0.0
  %1000 = vmatpush.msra.mxu0 0.0
  %1001 = vmatpush.msra.mxu0 0.0
  %1002 = vmatpush.msra.mxu0 0.0
  %1003 = vmatpush.msra.mxu0 0.0
  %1004 = vmatpush.msra.mxu0 0.0
  %1005 = vmatpush.msra.mxu0 0.0
  %1006 = vmatpush.msra.mxu0 %v982
  %1007 = vmatmul.f32.gmra.mxu0 %v986
  %v1008 = vpop.f32.mrf.mxu0
  %v1009 = vadd.f32 0.0, %v1008
  %1010 = vmatmul.f32.gmra.mxu0 %v989
  %v1011 = vpop.f32.mrf.mxu0
  %v1012 = vadd.f32 0.0, %v1011
  %1013 = vdwg.mxu0
  %1014 = vmatpush.msra.mxu0 0.0
  %1015 = vmatpush.msra.mxu0 0.0
  %1016 = vmatpush.msra.mxu0 0.0
  %1017 = vmatpush.msra.mxu0 0.0
  %1018 = vmatpush.msra.mxu0 0.0
  %1019 = vmatpush.msra.mxu0 0.0
  %1020 = vmatpush.msra.mxu0 0.0
  %1021 = vmatpush.msra.mxu0 0.0
  %1022 = vmatpush.msra.mxu0 0.0
  %1023 = vmatpush.msra.mxu0 0.0
  %1024 = vmatpush.msra.mxu0 0.0
  %1025 = vmatpush.msra.mxu0 0.0
  %1026 = vmatpush.msra.mxu0 0.0
  %1027 = vmatpush.msra.mxu0 0.0
  %1028 = vmatpush.msra.mxu0 0.0
  %1029 = vmatpush.msra.mxu0 %v980
  %1030 = vmatmul.f32.gmra.mxu0 %v986
  %v1031 = vpop.f32.mrf.mxu0
  %v1032 = vadd.f32 0.0, %v1031
  %1033 = vmatmul.f32.gmra.mxu0 %v989
  %v1034 = vpop.f32.mrf.mxu0
  %v1035 = vadd.f32 0.0, %v1034
  %1036 = vdwg.mxu0
  %v1037 = vadd.f32 %v971, %v1009
  %v1038 = vadd.f32 %v972, %v1032
  %v1039 = vadd.f32 %v973, %v1012
  %v1040 = vadd.f32 %v974, %v1035
  %v1041 = vld [vmem:[%s3 + $0x68] sm:$0xff]
  %v1042 = vld [vmem:[%s3 + $0x70] sm:$0xff]
  %1043 = vrot.lane.b32.xlu0 %v702, 116
  %v1044 = vpop.permute.xlu0 %1043
  %1045 = vrot.lane.b32.xlu0 %v722, 116
  %v1046 = vpop.permute.xlu0 %1045
  %vm1047 = vcmask 949248
  %v1048 = vsel %vm1047, %v1044, %v1046
  %v1052 = vsel %vm738, %v1041, 0
  %v1055 = vsel %vm738, %v1042, 0
  %1057 = vmatpush.msra.mxu0 0.0
  %1058 = vmatpush.msra.mxu0 0.0
  %1059 = vmatpush.msra.mxu0 0.0
  %1060 = vmatpush.msra.mxu0 0.0
  %1061 = vmatpush.msra.mxu0 0.0
  %1062 = vmatpush.msra.mxu0 0.0
  %1063 = vmatpush.msra.mxu0 0.0
  %1064 = vmatpush.msra.mxu0 0.0
  %1065 = vmatpush.msra.mxu0 0.0
  %1066 = vmatpush.msra.mxu0 0.0
  %1067 = vmatpush.msra.mxu0 0.0
  %1068 = vmatpush.msra.mxu0 0.0
  %1069 = vmatpush.msra.mxu0 0.0
  %1070 = vmatpush.msra.mxu0 0.0
  %1071 = vmatpush.msra.mxu0 0.0
  %1072 = vmatpush.msra.mxu0 %v1048
  %1073 = vmatmul.f32.gmra.mxu0 %v1052
  %v1074 = vpop.f32.mrf.mxu0
  %v1075 = vadd.f32 0.0, %v1074
  %1076 = vmatmul.f32.gmra.mxu0 %v1055
  %v1077 = vpop.f32.mrf.mxu0
  %v1078 = vadd.f32 0.0, %v1077
  %1079 = vdwg.mxu0
  %1080 = vmatpush.msra.mxu0 0.0
  %1081 = vmatpush.msra.mxu0 0.0
  %1082 = vmatpush.msra.mxu0 0.0
  %1083 = vmatpush.msra.mxu0 0.0
  %1084 = vmatpush.msra.mxu0 0.0
  %1085 = vmatpush.msra.mxu0 0.0
  %1086 = vmatpush.msra.mxu0 0.0
  %1087 = vmatpush.msra.mxu0 0.0
  %1088 = vmatpush.msra.mxu0 0.0
  %1089 = vmatpush.msra.mxu0 0.0
  %1090 = vmatpush.msra.mxu0 0.0
  %1091 = vmatpush.msra.mxu0 0.0
  %1092 = vmatpush.msra.mxu0 0.0
  %1093 = vmatpush.msra.mxu0 0.0
  %1094 = vmatpush.msra.mxu0 0.0
  %1095 = vmatpush.msra.mxu0 %v1046
  %1096 = vmatmul.f32.gmra.mxu0 %v1052
  %v1097 = vpop.f32.mrf.mxu0
  %v1098 = vadd.f32 0.0, %v1097
  %1099 = vmatmul.f32.gmra.mxu0 %v1055
  %v1100 = vpop.f32.mrf.mxu0
  %v1101 = vadd.f32 0.0, %v1100
  %1102 = vdwg.mxu0
  %v1103 = vadd.f32 %v1037, %v1075
  %v1104 = vadd.f32 %v1038, %v1098
  %v1105 = vadd.f32 %v1039, %v1078
  %v1106 = vadd.f32 %v1040, %v1101
  %v1107 = vld [vmem:[%s3 + $0x78] sm:$0xff]
  %v1108 = vld [vmem:[%s3 + $0x80] sm:$0xff]
  %1109 = vrot.lane.b32.xlu0 %v702, 108
  %v1110 = vpop.permute.xlu0 %1109
  %1111 = vrot.lane.b32.xlu0 %v722, 108
  %v1112 = vpop.permute.xlu0 %1111
  %vm1113 = vcmask 883712
  %v1114 = vsel %vm1113, %v1110, %v1112
  %v1118 = vsel %vm738, %v1107, 0
  %v1121 = vsel %vm738, %v1108, 0
  %1123 = vmatpush.msra.mxu0 0.0
  %1124 = vmatpush.msra.mxu0 0.0
  %1125 = vmatpush.msra.mxu0 0.0
  %1126 = vmatpush.msra.mxu0 0.0
  %1127 = vmatpush.msra.mxu0 0.0
  %1128 = vmatpush.msra.mxu0 0.0
  %1129 = vmatpush.msra.mxu0 0.0
  %1130 = vmatpush.msra.mxu0 0.0
  %1131 = vmatpush.msra.mxu0 0.0
  %1132 = vmatpush.msra.mxu0 0.0
  %1133 = vmatpush.msra.mxu0 0.0
  %1134 = vmatpush.msra.mxu0 0.0
  %1135 = vmatpush.msra.mxu0 0.0
  %1136 = vmatpush.msra.mxu0 0.0
  %1137 = vmatpush.msra.mxu0 0.0
  %1138 = vmatpush.msra.mxu0 %v1114
  %1139 = vmatmul.f32.gmra.mxu0 %v1118
  %v1140 = vpop.f32.mrf.mxu0
  %v1141 = vadd.f32 0.0, %v1140
  %1142 = vmatmul.f32.gmra.mxu0 %v1121
  %v1143 = vpop.f32.mrf.mxu0
  %v1144 = vadd.f32 0.0, %v1143
  %1145 = vdwg.mxu0
  %1146 = vmatpush.msra.mxu0 0.0
  %1147 = vmatpush.msra.mxu0 0.0
  %1148 = vmatpush.msra.mxu0 0.0
  %1149 = vmatpush.msra.mxu0 0.0
  %1150 = vmatpush.msra.mxu0 0.0
  %1151 = vmatpush.msra.mxu0 0.0
  %1152 = vmatpush.msra.mxu0 0.0
  %1153 = vmatpush.msra.mxu0 0.0
  %1154 = vmatpush.msra.mxu0 0.0
  %1155 = vmatpush.msra.mxu0 0.0
  %1156 = vmatpush.msra.mxu0 0.0
  %1157 = vmatpush.msra.mxu0 0.0
  %1158 = vmatpush.msra.mxu0 0.0
  %1159 = vmatpush.msra.mxu0 0.0
  %1160 = vmatpush.msra.mxu0 0.0
  %1161 = vmatpush.msra.mxu0 %v1112
  %1162 = vmatmul.f32.gmra.mxu0 %v1118
  %v1163 = vpop.f32.mrf.mxu0
  %v1164 = vadd.f32 0.0, %v1163
  %1165 = vmatmul.f32.gmra.mxu0 %v1121
  %v1166 = vpop.f32.mrf.mxu0
  %v1167 = vadd.f32 0.0, %v1166
  %1168 = vdwg.mxu0
  %v1169 = vadd.f32 %v1103, %v1141
  %v1170 = vadd.f32 %v1104, %v1164
  %v1171 = vadd.f32 %v1105, %v1144
  %v1172 = vadd.f32 %v1106, %v1167
  %v1173 = vld [vmem:[%s3 + $0x88] sm:$0xff]
  %v1174 = vld [vmem:[%s3 + $0x90] sm:$0xff]
  %1175 = vrot.lane.b32.xlu0 %v702, 107
  %v1176 = vpop.permute.xlu0 %1175
  %1177 = vrot.lane.b32.xlu0 %v722, 107
  %v1178 = vpop.permute.xlu0 %1177
  %vm1179 = vcmask 875520
  %v1180 = vsel %vm1179, %v1176, %v1178
  %v1184 = vsel %vm738, %v1173, 0
  %v1187 = vsel %vm738, %v1174, 0
  %1189 = vmatpush.msra.mxu0 0.0
  %1190 = vmatpush.msra.mxu0 0.0
  %1191 = vmatpush.msra.mxu0 0.0
  %1192 = vmatpush.msra.mxu0 0.0
  %1193 = vmatpush.msra.mxu0 0.0
  %1194 = vmatpush.msra.mxu0 0.0
  %1195 = vmatpush.msra.mxu0 0.0
  %1196 = vmatpush.msra.mxu0 0.0
  %1197 = vmatpush.msra.mxu0 0.0
  %1198 = vmatpush.msra.mxu0 0.0
  %1199 = vmatpush.msra.mxu0 0.0
  %1200 = vmatpush.msra.mxu0 0.0
  %1201 = vmatpush.msra.mxu0 0.0
  %1202 = vmatpush.msra.mxu0 0.0
  %1203 = vmatpush.msra.mxu0 0.0
  %1204 = vmatpush.msra.mxu0 %v1180
  %1205 = vmatmul.f32.gmra.mxu0 %v1184
  %v1206 = vpop.f32.mrf.mxu0
  %v1207 = vadd.f32 0.0, %v1206
  %1208 = vmatmul.f32.gmra.mxu0 %v1187
  %v1209 = vpop.f32.mrf.mxu0
  %v1210 = vadd.f32 0.0, %v1209
  %1211 = vdwg.mxu0
  %1212 = vmatpush.msra.mxu0 0.0
  %1213 = vmatpush.msra.mxu0 0.0
  %1214 = vmatpush.msra.mxu0 0.0
  %1215 = vmatpush.msra.mxu0 0.0
  %1216 = vmatpush.msra.mxu0 0.0
  %1217 = vmatpush.msra.mxu0 0.0
  %1218 = vmatpush.msra.mxu0 0.0
  %1219 = vmatpush.msra.mxu0 0.0
  %1220 = vmatpush.msra.mxu0 0.0
  %1221 = vmatpush.msra.mxu0 0.0
  %1222 = vmatpush.msra.mxu0 0.0
  %1223 = vmatpush.msra.mxu0 0.0
  %1224 = vmatpush.msra.mxu0 0.0
  %1225 = vmatpush.msra.mxu0 0.0
  %1226 = vmatpush.msra.mxu0 0.0
  %1227 = vmatpush.msra.mxu0 %v1178
  %1228 = vmatmul.f32.gmra.mxu0 %v1184
  %v1229 = vpop.f32.mrf.mxu0
  %v1230 = vadd.f32 0.0, %v1229
  %1231 = vmatmul.f32.gmra.mxu0 %v1187
  %v1232 = vpop.f32.mrf.mxu0
  %v1233 = vadd.f32 0.0, %v1232
  %1234 = vdwg.mxu0
  %v1235 = vadd.f32 %v1169, %v1207
  %v1236 = vadd.f32 %v1170, %v1230
  %v1237 = vadd.f32 %v1171, %v1210
  %v1238 = vadd.f32 %v1172, %v1233
  %v1239 = vld [vmem:[%s3 + $0x98] sm:$0xff]
  %v1240 = vld [vmem:[%s3 + $0xa0] sm:$0xff]
  %1241 = vrot.lane.b32.xlu0 %v702, 106
  %v1242 = vpop.permute.xlu0 %1241
  %1243 = vrot.lane.b32.xlu0 %v722, 106
  %v1244 = vpop.permute.xlu0 %1243
  %vm1245 = vcmask 867328
  %v1246 = vsel %vm1245, %v1242, %v1244
  %v1250 = vsel %vm738, %v1239, 0
  %v1253 = vsel %vm738, %v1240, 0
  %1255 = vmatpush.msra.mxu0 0.0
  %1256 = vmatpush.msra.mxu0 0.0
  %1257 = vmatpush.msra.mxu0 0.0
  %1258 = vmatpush.msra.mxu0 0.0
  %1259 = vmatpush.msra.mxu0 0.0
  %1260 = vmatpush.msra.mxu0 0.0
  %1261 = vmatpush.msra.mxu0 0.0
  %1262 = vmatpush.msra.mxu0 0.0
  %1263 = vmatpush.msra.mxu0 0.0
  %1264 = vmatpush.msra.mxu0 0.0
  %1265 = vmatpush.msra.mxu0 0.0
  %1266 = vmatpush.msra.mxu0 0.0
  %1267 = vmatpush.msra.mxu0 0.0
  %1268 = vmatpush.msra.mxu0 0.0
  %1269 = vmatpush.msra.mxu0 0.0
  %1270 = vmatpush.msra.mxu0 %v1246
  %1271 = vmatmul.f32.gmra.mxu0 %v1250
  %v1272 = vpop.f32.mrf.mxu0
  %v1273 = vadd.f32 0.0, %v1272
  %1274 = vmatmul.f32.gmra.mxu0 %v1253
  %v1275 = vpop.f32.mrf.mxu0
  %v1276 = vadd.f32 0.0, %v1275
  %1277 = vdwg.mxu0
  %1278 = vmatpush.msra.mxu0 0.0
  %1279 = vmatpush.msra.mxu0 0.0
  %1280 = vmatpush.msra.mxu0 0.0
  %1281 = vmatpush.msra.mxu0 0.0
  %1282 = vmatpush.msra.mxu0 0.0
  %1283 = vmatpush.msra.mxu0 0.0
  %1284 = vmatpush.msra.mxu0 0.0
  %1285 = vmatpush.msra.mxu0 0.0
  %1286 = vmatpush.msra.mxu0 0.0
  %1287 = vmatpush.msra.mxu0 0.0
  %1288 = vmatpush.msra.mxu0 0.0
  %1289 = vmatpush.msra.mxu0 0.0
  %1290 = vmatpush.msra.mxu0 0.0
  %1291 = vmatpush.msra.mxu0 0.0
  %1292 = vmatpush.msra.mxu0 0.0
  %1293 = vmatpush.msra.mxu0 %v1244
  %1294 = vmatmul.f32.gmra.mxu0 %v1250
  %v1295 = vpop.f32.mrf.mxu0
  %v1296 = vadd.f32 0.0, %v1295
  %1297 = vmatmul.f32.gmra.mxu0 %v1253
  %v1298 = vpop.f32.mrf.mxu0
  %v1299 = vadd.f32 0.0, %v1298
  %1300 = vdwg.mxu0
  %v1301 = vadd.f32 %v1235, %v1273
  %v1302 = vadd.f32 %v1236, %v1296
  %v1303 = vadd.f32 %v1237, %v1276
  %v1304 = vadd.f32 %v1238, %v1299
  %v1305 = vld [vmem:[%s6] sm:$0xff]
  %v1306 = vld [vmem:[%s6 + $0x8] sm:$0xff]
  %v1307 = vld [vmem:[%s6 + $0x10] sm:$0xff]
  %v1308 = vld [vmem:[%s6 + $0x18] sm:$0xff]
  %v1309 = vld [vmem:[%s6 + $0x20] sm:$0xff]
  %v1310 = vld [vmem:[%s6 + $0x28] sm:$0xff]
  %v1311 = vld [vmem:[%s6 + $0x30] sm:$0xff]
  %v1312 = vld [vmem:[%s6 + $0x38] sm:$0xff]
  %v1313 = vld [vmem:[%s6 + $0x40] sm:$0xff]
  %v1314 = vld [vmem:[%s6 + $0x48] sm:$0xff]
  %v1315 = vld [vmem:[%s6 + $0x50] sm:$0xff]
  %v1316 = vld [vmem:[%s6 + $0x58] sm:$0xff]
  %v1317 = vld [vmem:[%s6 + $0x60] sm:$0xff]
  %v1318 = vld [vmem:[%s6 + $0x68] sm:$0xff]
  %v1319 = vld [vmem:[%s6 + $0x70] sm:$0xff]
  %v1320 = vld [vmem:[%s6 + $0x78] sm:$0xff]
  %v1321 = vld [vmem:[%s6 + $0x80] sm:$0xff]
  %v1322 = vld [vmem:[%s6 + $0x88] sm:$0xff]
  %v1323 = vld [vmem:[%s6 + $0x90] sm:$0xff]
  %v1324 = vld [vmem:[%s6 + $0x98] sm:$0xff]
  %v1325 = vld [vmem:[%s6 + $0xa0] sm:$0xff]
  %v1326 = vld [vmem:[%s6 + $0xa8] sm:$0xff]
  %v1327 = vld [vmem:[%s6 + $0xb0] sm:$0xff]
  %v1328 = vld [vmem:[%s6 + $0xb8] sm:$0xff]
  %v1329 = vld [vmem:[%s6 + $0xc0] sm:$0xff]
  %v1330 = vld [vmem:[%s2 + $0x88] sm:$0xff]
  %v1331 = vld [vmem:[%s2 + $0x90] sm:$0xff]
  %1333 = vset.pattern.permute.xlu0 0
  %1334 = vperm.xlu0 %1333, %v1330
  %v1335 = vpop.permute.xlu0 %1334
  %1338 = vset.pattern.permute.xlu0 0
  %1339 = vperm.xlu0 %1338, %v1331
  %v1340 = vpop.permute.xlu0 %1339
  %vm1342 = vcmask 588800
  %v1344 = vsel %vm1342, %v1302, 0
  %v1347 = vsel %vm1342, %v1304, 0
  %1349 = vmatpush.msra.mxu0 %v1320
  %1350 = vmatpush.msra.mxu0 %v1319
  %1351 = vmatpush.msra.mxu0 %v1318
  %1352 = vmatpush.msra.mxu0 %v1317
  %1353 = vmatpush.msra.mxu0 %v1316
  %1354 = vmatpush.msra.mxu0 %v1315
  %1355 = vmatpush.msra.mxu0 %v1314
  %1356 = vmatpush.msra.mxu0 %v1313
  %1357 = vmatpush.msra.mxu0 %v1312
  %1358 = vmatpush.msra.mxu0 %v1311
  %1359 = vmatpush.msra.mxu0 %v1310
  %1360 = vmatpush.msra.mxu0 %v1309
  %1361 = vmatpush.msra.mxu0 %v1308
  %1362 = vmatpush.msra.mxu0 %v1307
  %1363 = vmatpush.msra.mxu0 %v1306
  %1364 = vmatpush.msra.mxu0 %v1305
  %1365 = vmatmul.f32.gmra.mxu0 %v1301
  %v1366 = vpop.f32.mrf.mxu0
  %v1367 = vadd.f32 %v1335, %v1366
  %1368 = vmatmul.f32.gmra.mxu0 %v1303
  %v1369 = vpop.f32.mrf.mxu0
  %v1370 = vadd.f32 %v1340, %v1369
  %1371 = vdwg.mxu0
  %1372 = vmatpush.msra.mxu0 0.0
  %1373 = vmatpush.msra.mxu0 0.0
  %1374 = vmatpush.msra.mxu0 0.0
  %1375 = vmatpush.msra.mxu0 0.0
  %1376 = vmatpush.msra.mxu0 0.0
  %1377 = vmatpush.msra.mxu0 0.0
  %1378 = vmatpush.msra.mxu0 0.0
  %1379 = vmatpush.msra.mxu0 %v1329
  %1380 = vmatpush.msra.mxu0 %v1328
  %1381 = vmatpush.msra.mxu0 %v1327
  %1382 = vmatpush.msra.mxu0 %v1326
  %1383 = vmatpush.msra.mxu0 %v1325
  %1384 = vmatpush.msra.mxu0 %v1324
  %1385 = vmatpush.msra.mxu0 %v1323
  %1386 = vmatpush.msra.mxu0 %v1322
  %1387 = vmatpush.msra.mxu0 %v1321
  %1388 = vmatmul.f32.gmra.mxu0 %v1344
  %v1389 = vpop.f32.mrf.mxu0
  %v1390 = vadd.f32 %v1367, %v1389
  %1391 = vmatmul.f32.gmra.mxu0 %v1347
  %v1392 = vpop.f32.mrf.mxu0
  %v1393 = vadd.f32 %v1370, %v1392
  %1394 = vdwg.mxu0
  %v1395 = vld [vmem:[%s2 + $0x98] sm:$0xff]
  %v1396 = vld [vmem:[%s2 + $0xa0] sm:$0xff]
  %1398 = vset.pattern.permute.xlu0 0
  %1399 = vperm.xlu0 %1398, %v1395
  %v1400 = vpop.permute.xlu0 %1399
  %1403 = vset.pattern.permute.xlu0 0
  %1404 = vperm.xlu0 %1403, %v1396
  %v1405 = vpop.permute.xlu0 %1404
  %v1407 = vmul.f32 %v1390, %v1400
  %v1408 = vmul.f32 %v1393, %v1405
  %v1409 = vld [vmem:[%s2 + $0xa8] sm:$0xff]
  %v1410 = vld [vmem:[%s2 + $0xb0] sm:$0xff]
  %1412 = vset.pattern.permute.xlu0 0
  %1413 = vperm.xlu0 %1412, %v1409
  %v1414 = vpop.permute.xlu0 %1413
  %1417 = vset.pattern.permute.xlu0 0
  %1418 = vperm.xlu0 %1417, %v1410
  %v1419 = vpop.permute.xlu0 %1418
  %v1421 = vadd.f32 %v1407, %v1414
  %v1422 = vadd.f32 %v1408, %v1419
  %v1423 = vmax.f32 %v1421, 0.0
  %v1424 = vmax.f32 %v1422, 0.0
  %1425 = vmatpush.msra.mxu0 %v682
  %1426 = vmatpush.msra.mxu0 %v680
  %1427 = vmatpush.msra.mxu0 %v678
  %1428 = vmatpush.msra.mxu0 %v676
  %1429 = vmatpush.msra.mxu0 %v674
  %1430 = vmatpush.msra.mxu0 %v672
  %1431 = vmatpush.msra.mxu0 %v670
  %1432 = vmatpush.msra.mxu0 %v668
  %1433 = vmatpush.msra.mxu0 %v666
  %1434 = vmatpush.msra.mxu0 %v664
  %1435 = vmatpush.msra.mxu0 %v662
  %1436 = vmatpush.msra.mxu0 %v660
  %1437 = vmatpush.msra.mxu0 %v658
  %1438 = vmatpush.msra.mxu0 %v656
  %1439 = vmatpush.msra.mxu0 %v654
  %1440 = vmatpush.msra.mxu0 %v652
  %1441 = vmatmul.f32.gmra.mxu0 %v1423
  %v1442 = vpop.f32.mrf.mxu0
  %v1443 = vadd.f32 0.0, %v1442
  %1444 = vmatmul.f32.gmra.mxu0 %v1424
  %v1445 = vpop.f32.mrf.mxu0
  %v1446 = vadd.f32 0.0, %v1445
  %1447 = vdwg.mxu0
  %1448 = vmatpush.msra.mxu0 %v683
  %1449 = vmatpush.msra.mxu0 %v681
  %1450 = vmatpush.msra.mxu0 %v679
  %1451 = vmatpush.msra.mxu0 %v677
  %1452 = vmatpush.msra.mxu0 %v675
  %1453 = vmatpush.msra.mxu0 %v673
  %1454 = vmatpush.msra.mxu0 %v671
  %1455 = vmatpush.msra.mxu0 %v669
  %1456 = vmatpush.msra.mxu0 %v667
  %1457 = vmatpush.msra.mxu0 %v665
  %1458 = vmatpush.msra.mxu0 %v663
  %1459 = vmatpush.msra.mxu0 %v661
  %1460 = vmatpush.msra.mxu0 %v659
  %1461 = vmatpush.msra.mxu0 %v657
  %1462 = vmatpush.msra.mxu0 %v655
  %1463 = vmatpush.msra.mxu0 %v653
  %1464 = vmatmul.f32.gmra.mxu0 %v1423
  %v1465 = vpop.f32.mrf.mxu0
  %v1466 = vadd.f32 0.0, %v1465
  %1467 = vmatmul.f32.gmra.mxu0 %v1424
  %v1468 = vpop.f32.mrf.mxu0
  %v1469 = vadd.f32 0.0, %v1468
  %1470 = vdwg.mxu0
  %v1471 = vld [vmem:[%s3 + $0xa8] sm:$0xff]
  %v1472 = vld [vmem:[%s3 + $0xb0] sm:$0xff]
  %1477 = vrot.lane.b32.xlu0 %v1443, 127
  %v1478 = vpop.permute.xlu0 %1477
  %1479 = vrot.lane.b32.xlu0 %v1466, 127
  %v1480 = vpop.permute.xlu0 %1479
  %1481 = vrot.lane.b32.xlu0 %v1446, 127
  %v1482 = vpop.permute.xlu0 %1481
  %1483 = vrot.lane.b32.xlu0 %v1469, 127
  %v1484 = vpop.permute.xlu0 %1483
  %v1485 = vsel %vm734, %v1478, %v1480
  %v1486 = vsel %vm734, %v1482, %v1484
  %v1492 = vsel %vm613, %v1472, 0
  %1494 = vmatpush.msra.mxu0 0.0
  %1495 = vmatpush.msra.mxu0 0.0
  %1496 = vmatpush.msra.mxu0 0.0
  %1497 = vmatpush.msra.mxu0 0.0
  %1498 = vmatpush.msra.mxu0 0.0
  %1499 = vmatpush.msra.mxu0 0.0
  %1500 = vmatpush.msra.mxu0 0.0
  %1501 = vmatpush.msra.mxu0 0.0
  %1502 = vmatpush.msra.mxu0 0.0
  %1503 = vmatpush.msra.mxu0 0.0
  %1504 = vmatpush.msra.mxu0 0.0
  %1505 = vmatpush.msra.mxu0 0.0
  %1506 = vmatpush.msra.mxu0 0.0
  %1507 = vmatpush.msra.mxu0 0.0
  %1508 = vmatpush.msra.mxu0 %v1486
  %1509 = vmatpush.msra.mxu0 %v1485
  %1510 = vmatmul.f32.gmra.mxu0 %v1492
  %v1511 = vpop.f32.mrf.mxu0
  %v1512 = vadd.f32 0.0, %v1511
  %1513 = vdwg.mxu0
  %1514 = vmatpush.msra.mxu0 0.0
  %1515 = vmatpush.msra.mxu0 0.0
  %1516 = vmatpush.msra.mxu0 0.0
  %1517 = vmatpush.msra.mxu0 0.0
  %1518 = vmatpush.msra.mxu0 0.0
  %1519 = vmatpush.msra.mxu0 0.0
  %1520 = vmatpush.msra.mxu0 0.0
  %1521 = vmatpush.msra.mxu0 0.0
  %1522 = vmatpush.msra.mxu0 0.0
  %1523 = vmatpush.msra.mxu0 0.0
  %1524 = vmatpush.msra.mxu0 0.0
  %1525 = vmatpush.msra.mxu0 0.0
  %1526 = vmatpush.msra.mxu0 0.0
  %1527 = vmatpush.msra.mxu0 0.0
  %1528 = vmatpush.msra.mxu0 %v1484
  %1529 = vmatpush.msra.mxu0 %v1480
  %1530 = vmatmul.f32.gmra.mxu0 %v1492
  %v1531 = vpop.f32.mrf.mxu0
  %v1532 = vadd.f32 0.0, %v1531
  %1533 = vdwg.mxu0
  %v1535 = vsel %vm613, %v1471, 0
  %1537 = vmatpush.msra.mxu0 0.0
  %1538 = vmatpush.msra.mxu0 0.0
  %1539 = vmatpush.msra.mxu0 0.0
  %1540 = vmatpush.msra.mxu0 0.0
  %1541 = vmatpush.msra.mxu0 0.0
  %1542 = vmatpush.msra.mxu0 0.0
  %1543 = vmatpush.msra.mxu0 0.0
  %1544 = vmatpush.msra.mxu0 0.0
  %1545 = vmatpush.msra.mxu0 0.0
  %1546 = vmatpush.msra.mxu0 0.0
  %1547 = vmatpush.msra.mxu0 0.0
  %1548 = vmatpush.msra.mxu0 0.0
  %1549 = vmatpush.msra.mxu0 0.0
  %1550 = vmatpush.msra.mxu0 0.0
  %1551 = vmatpush.msra.mxu0 %v1446
  %1552 = vmatpush.msra.mxu0 %v1443
  %1553 = vmatmul.f32.gmra.mxu0 %v1535
  %v1554 = vpop.f32.mrf.mxu0
  %v1555 = vadd.f32 %v1512, %v1554
  %1556 = vdwg.mxu0
  %1557 = vmatpush.msra.mxu0 0.0
  %1558 = vmatpush.msra.mxu0 0.0
  %1559 = vmatpush.msra.mxu0 0.0
  %1560 = vmatpush.msra.mxu0 0.0
  %1561 = vmatpush.msra.mxu0 0.0
  %1562 = vmatpush.msra.mxu0 0.0
  %1563 = vmatpush.msra.mxu0 0.0
  %1564 = vmatpush.msra.mxu0 0.0
  %1565 = vmatpush.msra.mxu0 0.0
  %1566 = vmatpush.msra.mxu0 0.0
  %1567 = vmatpush.msra.mxu0 0.0
  %1568 = vmatpush.msra.mxu0 0.0
  %1569 = vmatpush.msra.mxu0 0.0
  %1570 = vmatpush.msra.mxu0 0.0
  %1571 = vmatpush.msra.mxu0 %v1469
  %1572 = vmatpush.msra.mxu0 %v1466
  %1573 = vmatmul.f32.gmra.mxu0 %v1535
  %v1574 = vpop.f32.mrf.mxu0
  %v1575 = vadd.f32 %v1532, %v1574
  %1576 = vdwg.mxu0
  %v1577 = vld [vmem:[%s3 + $0xb8] sm:$0xff]
  %1578 = vrot.lane.b32.xlu0 %v1443, 126
  %v1579 = vpop.permute.xlu0 %1578
  %1580 = vrot.lane.b32.xlu0 %v1466, 126
  %v1581 = vpop.permute.xlu0 %1580
  %1582 = vrot.lane.b32.xlu0 %v1446, 126
  %v1583 = vpop.permute.xlu0 %1582
  %1584 = vrot.lane.b32.xlu0 %v1469, 126
  %v1585 = vpop.permute.xlu0 %1584
  %v1586 = vsel %vm849, %v1579, %v1581
  %v1587 = vsel %vm849, %v1583, %v1585
  %v1593 = vsel %vm613, %v1577, 0
  %1595 = vmatpush.msra.mxu0 0.0
  %1596 = vmatpush.msra.mxu0 0.0
  %1597 = vmatpush.msra.mxu0 0.0
  %1598 = vmatpush.msra.mxu0 0.0
  %1599 = vmatpush.msra.mxu0 0.0
  %1600 = vmatpush.msra.mxu0 0.0
  %1601 = vmatpush.msra.mxu0 0.0
  %1602 = vmatpush.msra.mxu0 0.0
  %1603 = vmatpush.msra.mxu0 0.0
  %1604 = vmatpush.msra.mxu0 0.0
  %1605 = vmatpush.msra.mxu0 0.0
  %1606 = vmatpush.msra.mxu0 0.0
  %1607 = vmatpush.msra.mxu0 0.0
  %1608 = vmatpush.msra.mxu0 0.0
  %1609 = vmatpush.msra.mxu0 %v1587
  %1610 = vmatpush.msra.mxu0 %v1586
  %1611 = vmatmul.f32.gmra.mxu0 %v1593
  %v1612 = vpop.f32.mrf.mxu0
  %v1613 = vadd.f32 0.0, %v1612
  %1614 = vdwg.mxu0
  %1615 = vmatpush.msra.mxu0 0.0
  %1616 = vmatpush.msra.mxu0 0.0
  %1617 = vmatpush.msra.mxu0 0.0
  %1618 = vmatpush.msra.mxu0 0.0
  %1619 = vmatpush.msra.mxu0 0.0
  %1620 = vmatpush.msra.mxu0 0.0
  %1621 = vmatpush.msra.mxu0 0.0
  %1622 = vmatpush.msra.mxu0 0.0
  %1623 = vmatpush.msra.mxu0 0.0
  %1624 = vmatpush.msra.mxu0 0.0
  %1625 = vmatpush.msra.mxu0 0.0
  %1626 = vmatpush.msra.mxu0 0.0
  %1627 = vmatpush.msra.mxu0 0.0
  %1628 = vmatpush.msra.mxu0 0.0
  %1629 = vmatpush.msra.mxu0 %v1585
  %1630 = vmatpush.msra.mxu0 %v1581
  %1631 = vmatmul.f32.gmra.mxu0 %v1593
  %v1632 = vpop.f32.mrf.mxu0
  %v1633 = vadd.f32 0.0, %v1632
  %1634 = vdwg.mxu0
  %v1635 = vadd.f32 %v1555, %v1613
  %v1636 = vadd.f32 %v1575, %v1633
  %v1637 = vld [vmem:[%s3 + $0xc0] sm:$0xff]
  %1638 = vrot.lane.b32.xlu0 %v1443, 118
  %v1639 = vpop.permute.xlu0 %1638
  %1640 = vrot.lane.b32.xlu0 %v1466, 118
  %v1641 = vpop.permute.xlu0 %1640
  %1642 = vrot.lane.b32.xlu0 %v1446, 118
  %v1643 = vpop.permute.xlu0 %1642
  %1644 = vrot.lane.b32.xlu0 %v1469, 118
  %v1645 = vpop.permute.xlu0 %1644
  %v1646 = vsel %vm915, %v1639, %v1641
  %v1647 = vsel %vm915, %v1643, %v1645
  %v1653 = vsel %vm613, %v1637, 0
  %1655 = vmatpush.msra.mxu0 0.0
  %1656 = vmatpush.msra.mxu0 0.0
  %1657 = vmatpush.msra.mxu0 0.0
  %1658 = vmatpush.msra.mxu0 0.0
  %1659 = vmatpush.msra.mxu0 0.0
  %1660 = vmatpush.msra.mxu0 0.0
  %1661 = vmatpush.msra.mxu0 0.0
  %1662 = vmatpush.msra.mxu0 0.0
  %1663 = vmatpush.msra.mxu0 0.0
  %1664 = vmatpush.msra.mxu0 0.0
  %1665 = vmatpush.msra.mxu0 0.0
  %1666 = vmatpush.msra.mxu0 0.0
  %1667 = vmatpush.msra.mxu0 0.0
  %1668 = vmatpush.msra.mxu0 0.0
  %1669 = vmatpush.msra.mxu0 %v1647
  %1670 = vmatpush.msra.mxu0 %v1646
  %1671 = vmatmul.f32.gmra.mxu0 %v1653
  %v1672 = vpop.f32.mrf.mxu0
  %v1673 = vadd.f32 0.0, %v1672
  %1674 = vdwg.mxu0
  %1675 = vmatpush.msra.mxu0 0.0
  %1676 = vmatpush.msra.mxu0 0.0
  %1677 = vmatpush.msra.mxu0 0.0
  %1678 = vmatpush.msra.mxu0 0.0
  %1679 = vmatpush.msra.mxu0 0.0
  %1680 = vmatpush.msra.mxu0 0.0
  %1681 = vmatpush.msra.mxu0 0.0
  %1682 = vmatpush.msra.mxu0 0.0
  %1683 = vmatpush.msra.mxu0 0.0
  %1684 = vmatpush.msra.mxu0 0.0
  %1685 = vmatpush.msra.mxu0 0.0
  %1686 = vmatpush.msra.mxu0 0.0
  %1687 = vmatpush.msra.mxu0 0.0
  %1688 = vmatpush.msra.mxu0 0.0
  %1689 = vmatpush.msra.mxu0 %v1645
  %1690 = vmatpush.msra.mxu0 %v1641
  %1691 = vmatmul.f32.gmra.mxu0 %v1653
  %v1692 = vpop.f32.mrf.mxu0
  %v1693 = vadd.f32 0.0, %v1692
  %1694 = vdwg.mxu0
  %v1695 = vadd.f32 %v1635, %v1673
  %v1696 = vadd.f32 %v1636, %v1693
  %v1697 = vld [vmem:[%s3 + $0xc8] sm:$0xff]
  %1698 = vrot.lane.b32.xlu0 %v1443, 117
  %v1699 = vpop.permute.xlu0 %1698
  %1700 = vrot.lane.b32.xlu0 %v1466, 117
  %v1701 = vpop.permute.xlu0 %1700
  %1702 = vrot.lane.b32.xlu0 %v1446, 117
  %v1703 = vpop.permute.xlu0 %1702
  %1704 = vrot.lane.b32.xlu0 %v1469, 117
  %v1705 = vpop.permute.xlu0 %1704
  %v1706 = vsel %vm981, %v1699, %v1701
  %v1707 = vsel %vm981, %v1703, %v1705
  %v1713 = vsel %vm613, %v1697, 0
  %1715 = vmatpush.msra.mxu0 0.0
  %1716 = vmatpush.msra.mxu0 0.0
  %1717 = vmatpush.msra.mxu0 0.0
  %1718 = vmatpush.msra.mxu0 0.0
  %1719 = vmatpush.msra.mxu0 0.0
  %1720 = vmatpush.msra.mxu0 0.0
  %1721 = vmatpush.msra.mxu0 0.0
  %1722 = vmatpush.msra.mxu0 0.0
  %1723 = vmatpush.msra.mxu0 0.0
  %1724 = vmatpush.msra.mxu0 0.0
  %1725 = vmatpush.msra.mxu0 0.0
  %1726 = vmatpush.msra.mxu0 0.0
  %1727 = vmatpush.msra.mxu0 0.0
  %1728 = vmatpush.msra.mxu0 0.0
  %1729 = vmatpush.msra.mxu0 %v1707
  %1730 = vmatpush.msra.mxu0 %v1706
  %1731 = vmatmul.f32.gmra.mxu0 %v1713
  %v1732 = vpop.f32.mrf.mxu0
  %v1733 = vadd.f32 0.0, %v1732
  %1734 = vdwg.mxu0
  %1735 = vmatpush.msra.mxu0 0.0
  %1736 = vmatpush.msra.mxu0 0.0
  %1737 = vmatpush.msra.mxu0 0.0
  %1738 = vmatpush.msra.mxu0 0.0
  %1739 = vmatpush.msra.mxu0 0.0
  %1740 = vmatpush.msra.mxu0 0.0
  %1741 = vmatpush.msra.mxu0 0.0
  %1742 = vmatpush.msra.mxu0 0.0
  %1743 = vmatpush.msra.mxu0 0.0
  %1744 = vmatpush.msra.mxu0 0.0
  %1745 = vmatpush.msra.mxu0 0.0
  %1746 = vmatpush.msra.mxu0 0.0
  %1747 = vmatpush.msra.mxu0 0.0
  %1748 = vmatpush.msra.mxu0 0.0
  %1749 = vmatpush.msra.mxu0 %v1705
  %1750 = vmatpush.msra.mxu0 %v1701
  %1751 = vmatmul.f32.gmra.mxu0 %v1713
  %v1752 = vpop.f32.mrf.mxu0
  %v1753 = vadd.f32 0.0, %v1752
  %1754 = vdwg.mxu0
  %v1755 = vadd.f32 %v1695, %v1733
  %v1756 = vadd.f32 %v1696, %v1753
  %v1757 = vld [vmem:[%s3 + $0xd0] sm:$0xff]
  %1758 = vrot.lane.b32.xlu0 %v1443, 116
  %v1759 = vpop.permute.xlu0 %1758
  %1760 = vrot.lane.b32.xlu0 %v1466, 116
  %v1761 = vpop.permute.xlu0 %1760
  %1762 = vrot.lane.b32.xlu0 %v1446, 116
  %v1763 = vpop.permute.xlu0 %1762
  %1764 = vrot.lane.b32.xlu0 %v1469, 116
  %v1765 = vpop.permute.xlu0 %1764
  %v1766 = vsel %vm1047, %v1759, %v1761
  %v1767 = vsel %vm1047, %v1763, %v1765
  %v1773 = vsel %vm613, %v1757, 0
  %1775 = vmatpush.msra.mxu0 0.0
  %1776 = vmatpush.msra.mxu0 0.0
  %1777 = vmatpush.msra.mxu0 0.0
  %1778 = vmatpush.msra.mxu0 0.0
  %1779 = vmatpush.msra.mxu0 0.0
  %1780 = vmatpush.msra.mxu0 0.0
  %1781 = vmatpush.msra.mxu0 0.0
  %1782 = vmatpush.msra.mxu0 0.0
  %1783 = vmatpush.msra.mxu0 0.0
  %1784 = vmatpush.msra.mxu0 0.0
  %1785 = vmatpush.msra.mxu0 0.0
  %1786 = vmatpush.msra.mxu0 0.0
  %1787 = vmatpush.msra.mxu0 0.0
  %1788 = vmatpush.msra.mxu0 0.0
  %1789 = vmatpush.msra.mxu0 %v1767
  %1790 = vmatpush.msra.mxu0 %v1766
  %1791 = vmatmul.f32.gmra.mxu0 %v1773
  %v1792 = vpop.f32.mrf.mxu0
  %v1793 = vadd.f32 0.0, %v1792
  %1794 = vdwg.mxu0
  %1795 = vmatpush.msra.mxu0 0.0
  %1796 = vmatpush.msra.mxu0 0.0
  %1797 = vmatpush.msra.mxu0 0.0
  %1798 = vmatpush.msra.mxu0 0.0
  %1799 = vmatpush.msra.mxu0 0.0
  %1800 = vmatpush.msra.mxu0 0.0
  %1801 = vmatpush.msra.mxu0 0.0
  %1802 = vmatpush.msra.mxu0 0.0
  %1803 = vmatpush.msra.mxu0 0.0
  %1804 = vmatpush.msra.mxu0 0.0
  %1805 = vmatpush.msra.mxu0 0.0
  %1806 = vmatpush.msra.mxu0 0.0
  %1807 = vmatpush.msra.mxu0 0.0
  %1808 = vmatpush.msra.mxu0 0.0
  %1809 = vmatpush.msra.mxu0 %v1765
  %1810 = vmatpush.msra.mxu0 %v1761
  %1811 = vmatmul.f32.gmra.mxu0 %v1773
  %v1812 = vpop.f32.mrf.mxu0
  %v1813 = vadd.f32 0.0, %v1812
  %1814 = vdwg.mxu0
  %v1815 = vadd.f32 %v1755, %v1793
  %v1816 = vadd.f32 %v1756, %v1813
  %v1817 = vld [vmem:[%s3 + $0xd8] sm:$0xff]
  %1818 = vrot.lane.b32.xlu0 %v1443, 108
  %v1819 = vpop.permute.xlu0 %1818
  %1820 = vrot.lane.b32.xlu0 %v1466, 108
  %v1821 = vpop.permute.xlu0 %1820
  %1822 = vrot.lane.b32.xlu0 %v1446, 108
  %v1823 = vpop.permute.xlu0 %1822
  %1824 = vrot.lane.b32.xlu0 %v1469, 108
  %v1825 = vpop.permute.xlu0 %1824
  %v1826 = vsel %vm1113, %v1819, %v1821
  %v1827 = vsel %vm1113, %v1823, %v1825
  %v1833 = vsel %vm613, %v1817, 0
  %1835 = vmatpush.msra.mxu0 0.0
  %1836 = vmatpush.msra.mxu0 0.0
  %1837 = vmatpush.msra.mxu0 0.0
  %1838 = vmatpush.msra.mxu0 0.0
  %1839 = vmatpush.msra.mxu0 0.0
  %1840 = vmatpush.msra.mxu0 0.0
  %1841 = vmatpush.msra.mxu0 0.0
  %1842 = vmatpush.msra.mxu0 0.0
  %1843 = vmatpush.msra.mxu0 0.0
  %1844 = vmatpush.msra.mxu0 0.0
  %1845 = vmatpush.msra.mxu0 0.0
  %1846 = vmatpush.msra.mxu0 0.0
  %1847 = vmatpush.msra.mxu0 0.0
  %1848 = vmatpush.msra.mxu0 0.0
  %1849 = vmatpush.msra.mxu0 %v1827
  %1850 = vmatpush.msra.mxu0 %v1826
  %1851 = vmatmul.f32.gmra.mxu0 %v1833
  %v1852 = vpop.f32.mrf.mxu0
  %v1853 = vadd.f32 0.0, %v1852
  %1854 = vdwg.mxu0
  %1855 = vmatpush.msra.mxu0 0.0
  %1856 = vmatpush.msra.mxu0 0.0
  %1857 = vmatpush.msra.mxu0 0.0
  %1858 = vmatpush.msra.mxu0 0.0
  %1859 = vmatpush.msra.mxu0 0.0
  %1860 = vmatpush.msra.mxu0 0.0
  %1861 = vmatpush.msra.mxu0 0.0
  %1862 = vmatpush.msra.mxu0 0.0
  %1863 = vmatpush.msra.mxu0 0.0
  %1864 = vmatpush.msra.mxu0 0.0
  %1865 = vmatpush.msra.mxu0 0.0
  %1866 = vmatpush.msra.mxu0 0.0
  %1867 = vmatpush.msra.mxu0 0.0
  %1868 = vmatpush.msra.mxu0 0.0
  %1869 = vmatpush.msra.mxu0 %v1825
  %1870 = vmatpush.msra.mxu0 %v1821
  %1871 = vmatmul.f32.gmra.mxu0 %v1833
  %v1872 = vpop.f32.mrf.mxu0
  %v1873 = vadd.f32 0.0, %v1872
  %1874 = vdwg.mxu0
  %v1875 = vadd.f32 %v1815, %v1853
  %v1876 = vadd.f32 %v1816, %v1873
  %v1877 = vld [vmem:[%s3 + $0xe0] sm:$0xff]
  %1878 = vrot.lane.b32.xlu0 %v1443, 107
  %v1879 = vpop.permute.xlu0 %1878
  %1880 = vrot.lane.b32.xlu0 %v1466, 107
  %v1881 = vpop.permute.xlu0 %1880
  %1882 = vrot.lane.b32.xlu0 %v1446, 107
  %v1883 = vpop.permute.xlu0 %1882
  %1884 = vrot.lane.b32.xlu0 %v1469, 107
  %v1885 = vpop.permute.xlu0 %1884
  %v1886 = vsel %vm1179, %v1879, %v1881
  %v1887 = vsel %vm1179, %v1883, %v1885
  %v1893 = vsel %vm613, %v1877, 0
  %1895 = vmatpush.msra.mxu0 0.0
  %1896 = vmatpush.msra.mxu0 0.0
  %1897 = vmatpush.msra.mxu0 0.0
  %1898 = vmatpush.msra.mxu0 0.0
  %1899 = vmatpush.msra.mxu0 0.0
  %1900 = vmatpush.msra.mxu0 0.0
  %1901 = vmatpush.msra.mxu0 0.0
  %1902 = vmatpush.msra.mxu0 0.0
  %1903 = vmatpush.msra.mxu0 0.0
  %1904 = vmatpush.msra.mxu0 0.0
  %1905 = vmatpush.msra.mxu0 0.0
  %1906 = vmatpush.msra.mxu0 0.0
  %1907 = vmatpush.msra.mxu0 0.0
  %1908 = vmatpush.msra.mxu0 0.0
  %1909 = vmatpush.msra.mxu0 %v1887
  %1910 = vmatpush.msra.mxu0 %v1886
  %1911 = vmatmul.f32.gmra.mxu0 %v1893
  %v1912 = vpop.f32.mrf.mxu0
  %v1913 = vadd.f32 0.0, %v1912
  %1914 = vdwg.mxu0
  %1915 = vmatpush.msra.mxu0 0.0
  %1916 = vmatpush.msra.mxu0 0.0
  %1917 = vmatpush.msra.mxu0 0.0
  %1918 = vmatpush.msra.mxu0 0.0
  %1919 = vmatpush.msra.mxu0 0.0
  %1920 = vmatpush.msra.mxu0 0.0
  %1921 = vmatpush.msra.mxu0 0.0
  %1922 = vmatpush.msra.mxu0 0.0
  %1923 = vmatpush.msra.mxu0 0.0
  %1924 = vmatpush.msra.mxu0 0.0
  %1925 = vmatpush.msra.mxu0 0.0
  %1926 = vmatpush.msra.mxu0 0.0
  %1927 = vmatpush.msra.mxu0 0.0
  %1928 = vmatpush.msra.mxu0 0.0
  %1929 = vmatpush.msra.mxu0 %v1885
  %1930 = vmatpush.msra.mxu0 %v1881
  %1931 = vmatmul.f32.gmra.mxu0 %v1893
  %v1932 = vpop.f32.mrf.mxu0
  %v1933 = vadd.f32 0.0, %v1932
  %1934 = vdwg.mxu0
  %v1935 = vadd.f32 %v1875, %v1913
  %v1936 = vadd.f32 %v1876, %v1933
  %v1937 = vld [vmem:[%s3 + $0xe8] sm:$0xff]
  %1938 = vrot.lane.b32.xlu0 %v1443, 106
  %v1939 = vpop.permute.xlu0 %1938
  %1940 = vrot.lane.b32.xlu0 %v1466, 106
  %v1941 = vpop.permute.xlu0 %1940
  %1942 = vrot.lane.b32.xlu0 %v1446, 106
  %v1943 = vpop.permute.xlu0 %1942
  %1944 = vrot.lane.b32.xlu0 %v1469, 106
  %v1945 = vpop.permute.xlu0 %1944
  %v1946 = vsel %vm1245, %v1939, %v1941
  %v1947 = vsel %vm1245, %v1943, %v1945
  %v1953 = vsel %vm613, %v1937, 0
  %1955 = vmatpush.msra.mxu0 0.0
  %1956 = vmatpush.msra.mxu0 0.0
  %1957 = vmatpush.msra.mxu0 0.0
  %1958 = vmatpush.msra.mxu0 0.0
  %1959 = vmatpush.msra.mxu0 0.0
  %1960 = vmatpush.msra.mxu0 0.0
  %1961 = vmatpush.msra.mxu0 0.0
  %1962 = vmatpush.msra.mxu0 0.0
  %1963 = vmatpush.msra.mxu0 0.0
  %1964 = vmatpush.msra.mxu0 0.0
  %1965 = vmatpush.msra.mxu0 0.0
  %1966 = vmatpush.msra.mxu0 0.0
  %1967 = vmatpush.msra.mxu0 0.0
  %1968 = vmatpush.msra.mxu0 0.0
  %1969 = vmatpush.msra.mxu0 %v1947
  %1970 = vmatpush.msra.mxu0 %v1946
  %1971 = vmatmul.f32.gmra.mxu0 %v1953
  %v1972 = vpop.f32.mrf.mxu0
  %v1973 = vadd.f32 0.0, %v1972
  %1974 = vdwg.mxu0
  %1975 = vmatpush.msra.mxu0 0.0
  %1976 = vmatpush.msra.mxu0 0.0
  %1977 = vmatpush.msra.mxu0 0.0
  %1978 = vmatpush.msra.mxu0 0.0
  %1979 = vmatpush.msra.mxu0 0.0
  %1980 = vmatpush.msra.mxu0 0.0
  %1981 = vmatpush.msra.mxu0 0.0
  %1982 = vmatpush.msra.mxu0 0.0
  %1983 = vmatpush.msra.mxu0 0.0
  %1984 = vmatpush.msra.mxu0 0.0
  %1985 = vmatpush.msra.mxu0 0.0
  %1986 = vmatpush.msra.mxu0 0.0
  %1987 = vmatpush.msra.mxu0 0.0
  %1988 = vmatpush.msra.mxu0 0.0
  %1989 = vmatpush.msra.mxu0 %v1945
  %1990 = vmatpush.msra.mxu0 %v1941
  %1991 = vmatmul.f32.gmra.mxu0 %v1953
  %v1992 = vpop.f32.mrf.mxu0
  %v1993 = vadd.f32 0.0, %v1992
  %1994 = vdwg.mxu0
  %v1995 = vadd.f32 %v1935, %v1973
  %v1996 = vadd.f32 %v1936, %v1993
  %v1997 = vld [vmem:[%s2 + $0xb8] sm:$0xff]
  %1999 = vset.pattern.permute.xlu0 0
  %2000 = vperm.xlu0 %1999, %v1997
  %v2001 = vpop.permute.xlu0 %2000
  %v2004 = vsel %vm1342, %v1996, 0
  %2006 = vmatpush.msra.mxu0 %v1320
  %2007 = vmatpush.msra.mxu0 %v1319
  %2008 = vmatpush.msra.mxu0 %v1318
  %2009 = vmatpush.msra.mxu0 %v1317
  %2010 = vmatpush.msra.mxu0 %v1316
  %2011 = vmatpush.msra.mxu0 %v1315
  %2012 = vmatpush.msra.mxu0 %v1314
  %2013 = vmatpush.msra.mxu0 %v1313
  %2014 = vmatpush.msra.mxu0 %v1312
  %2015 = vmatpush.msra.mxu0 %v1311
  %2016 = vmatpush.msra.mxu0 %v1310
  %2017 = vmatpush.msra.mxu0 %v1309
  %2018 = vmatpush.msra.mxu0 %v1308
  %2019 = vmatpush.msra.mxu0 %v1307
  %2020 = vmatpush.msra.mxu0 %v1306
  %2021 = vmatpush.msra.mxu0 %v1305
  %2022 = vmatmul.f32.gmra.mxu0 %v1995
  %v2023 = vpop.f32.mrf.mxu0
  %v2024 = vadd.f32 %v2001, %v2023
  %2025 = vdwg.mxu0
  %2026 = vmatpush.msra.mxu0 0.0
  %2027 = vmatpush.msra.mxu0 0.0
  %2028 = vmatpush.msra.mxu0 0.0
  %2029 = vmatpush.msra.mxu0 0.0
  %2030 = vmatpush.msra.mxu0 0.0
  %2031 = vmatpush.msra.mxu0 0.0
  %2032 = vmatpush.msra.mxu0 0.0
  %2033 = vmatpush.msra.mxu0 %v1329
  %2034 = vmatpush.msra.mxu0 %v1328
  %2035 = vmatpush.msra.mxu0 %v1327
  %2036 = vmatpush.msra.mxu0 %v1326
  %2037 = vmatpush.msra.mxu0 %v1325
  %2038 = vmatpush.msra.mxu0 %v1324
  %2039 = vmatpush.msra.mxu0 %v1323
  %2040 = vmatpush.msra.mxu0 %v1322
  %2041 = vmatpush.msra.mxu0 %v1321
  %2042 = vmatmul.f32.gmra.mxu0 %v2004
  %v2043 = vpop.f32.mrf.mxu0
  %v2044 = vadd.f32 %v2024, %v2043
  %2045 = vdwg.mxu0
  %v2046 = vld [vmem:[%s2 + $0xc0] sm:$0xff]
  %v2047 = vld [vmem:[%s2 + $0xc8] sm:$0xff]
  %2049 = vset.pattern.permute.xlu0 0
  %2050 = vperm.xlu0 %2049, %v2046
  %v2051 = vpop.permute.xlu0 %2050
  %2054 = vset.pattern.permute.xlu0 0
  %2055 = vperm.xlu0 %2054, %v2047
  %v2056 = vpop.permute.xlu0 %2055
  %v2058 = vmul.f32 %v335, %v2051
  %v2059 = vmul.f32 %v574, %v2056
  %v2060 = vld [vmem:[%s2 + $0xd0] sm:$0xff]
  %v2061 = vld [vmem:[%s2 + $0xd8] sm:$0xff]
  %2063 = vset.pattern.permute.xlu0 0
  %2064 = vperm.xlu0 %2063, %v2060
  %v2065 = vpop.permute.xlu0 %2064
  %2068 = vset.pattern.permute.xlu0 0
  %2069 = vperm.xlu0 %2068, %v2061
  %v2070 = vpop.permute.xlu0 %2069
  %v2072 = vadd.f32 %v2058, %v2065
  %v2073 = vadd.f32 %v2059, %v2070
  %v2074 = vmax.f32 %v2072, 0.0
  %v2075 = vmax.f32 %v2073, 0.0
  %v2076 = vld [vmem:[%s3 + $0xf0] sm:$0xff]
  %v2077 = vld [vmem:[%s2 + $0xe0] sm:$0xff]
  %2079 = vset.pattern.permute.xlu0 0
  %2080 = vperm.xlu0 %2079, %v2077
  %v2081 = vpop.permute.xlu0 %2080
  %v2084 = vsel %vm613, %v2076, 0
  %2086 = vmatpush.msra.mxu0 0.0
  %2087 = vmatpush.msra.mxu0 0.0
  %2088 = vmatpush.msra.mxu0 0.0
  %2089 = vmatpush.msra.mxu0 0.0
  %2090 = vmatpush.msra.mxu0 0.0
  %2091 = vmatpush.msra.mxu0 0.0
  %2092 = vmatpush.msra.mxu0 0.0
  %2093 = vmatpush.msra.mxu0 0.0
  %2094 = vmatpush.msra.mxu0 0.0
  %2095 = vmatpush.msra.mxu0 0.0
  %2096 = vmatpush.msra.mxu0 0.0
  %2097 = vmatpush.msra.mxu0 0.0
  %2098 = vmatpush.msra.mxu0 0.0
  %2099 = vmatpush.msra.mxu0 0.0
  %2100 = vmatpush.msra.mxu0 %v2075
  %2101 = vmatpush.msra.mxu0 %v2074
  %2102 = vmatmul.f32.gmra.mxu0 %v2084
  %v2103 = vpop.f32.mrf.mxu0
  %v2104 = vadd.f32 %v2081, %v2103
  %2105 = vdwg.mxu0
  %v2106 = vld [vmem:[%s2 + $0xe8] sm:$0xff]
  %2108 = vset.pattern.permute.xlu0 0
  %2109 = vperm.xlu0 %2108, %v2106
  %v2110 = vpop.permute.xlu0 %2109
  %v2112 = vmul.f32 %v2104, %v2110
  %v2113 = vld [vmem:[%s2 + $0xf0] sm:$0xff]
  %2115 = vset.pattern.permute.xlu0 0
  %2116 = vperm.xlu0 %2115, %v2113
  %v2117 = vpop.permute.xlu0 %2116
  %v2119 = vadd.f32 %v2112, %v2117
  %v2120 = vmax.f32 %v2119, 0.0
  %2121 = vmatpush.msra.mxu0 %v682
  %2122 = vmatpush.msra.mxu0 %v680
  %2123 = vmatpush.msra.mxu0 %v678
  %2124 = vmatpush.msra.mxu0 %v676
  %2125 = vmatpush.msra.mxu0 %v674
  %2126 = vmatpush.msra.mxu0 %v672
  %2127 = vmatpush.msra.mxu0 %v670
  %2128 = vmatpush.msra.mxu0 %v668
  %2129 = vmatpush.msra.mxu0 %v666
  %2130 = vmatpush.msra.mxu0 %v664
  %2131 = vmatpush.msra.mxu0 %v662
  %2132 = vmatpush.msra.mxu0 %v660
  %2133 = vmatpush.msra.mxu0 %v658
  %2134 = vmatpush.msra.mxu0 %v656
  %2135 = vmatpush.msra.mxu0 %v654
  %2136 = vmatpush.msra.mxu0 %v652
  %2137 = vmatmul.f32.gmra.mxu0 %v2120
  %v2138 = vpop.f32.mrf.mxu0
  %v2139 = vadd.f32 0.0, %v2138
  %2140 = vdwg.mxu0
  %2141 = vmatpush.msra.mxu0 %v683
  %2142 = vmatpush.msra.mxu0 %v681
  %2143 = vmatpush.msra.mxu0 %v679
  %2144 = vmatpush.msra.mxu0 %v677
  %2145 = vmatpush.msra.mxu0 %v675
  %2146 = vmatpush.msra.mxu0 %v673
  %2147 = vmatpush.msra.mxu0 %v671
  %2148 = vmatpush.msra.mxu0 %v669
  %2149 = vmatpush.msra.mxu0 %v667
  %2150 = vmatpush.msra.mxu0 %v665
  %2151 = vmatpush.msra.mxu0 %v663
  %2152 = vmatpush.msra.mxu0 %v661
  %2153 = vmatpush.msra.mxu0 %v659
  %2154 = vmatpush.msra.mxu0 %v657
  %2155 = vmatpush.msra.mxu0 %v655
  %2156 = vmatpush.msra.mxu0 %v653
  %2157 = vmatmul.f32.gmra.mxu0 %v2120
  %v2158 = vpop.f32.mrf.mxu0
  %v2159 = vadd.f32 0.0, %v2158
  %2160 = vdwg.mxu0
  %2163 = vrot.lane.b32.xlu0 %v2139, 127
  %v2164 = vpop.permute.xlu0 %2163
  %2165 = vrot.lane.b32.xlu0 %v2159, 127
  %v2166 = vpop.permute.xlu0 %2165
  %v2167 = vsel %vm734, %v2164, %v2166
  %v2170 = vadd.f32 %v2139, %v2167
  %v2171 = vadd.f32 %v2159, %v2166
  %2172 = vrot.lane.b32.xlu0 %v2139, 126
  %v2173 = vpop.permute.xlu0 %2172
  %2174 = vrot.lane.b32.xlu0 %v2159, 126
  %v2175 = vpop.permute.xlu0 %2174
  %v2176 = vsel %vm849, %v2173, %v2175
  %v2179 = vadd.f32 %v2170, %v2176
  %v2180 = vadd.f32 %v2171, %v2175
  %2181 = vrot.lane.b32.xlu0 %v2139, 118
  %v2182 = vpop.permute.xlu0 %2181
  %2183 = vrot.lane.b32.xlu0 %v2159, 118
  %v2184 = vpop.permute.xlu0 %2183
  %v2185 = vsel %vm915, %v2182, %v2184
  %v2188 = vadd.f32 %v2179, %v2185
  %v2189 = vadd.f32 %v2180, %v2184
  %2190 = vrot.lane.b32.xlu0 %v2139, 117
  %v2191 = vpop.permute.xlu0 %2190
  %2192 = vrot.lane.b32.xlu0 %v2159, 117
  %v2193 = vpop.permute.xlu0 %2192
  %v2194 = vsel %vm981, %v2191, %v2193
  %v2197 = vadd.f32 %v2188, %v2194
  %v2198 = vadd.f32 %v2189, %v2193
  %2199 = vrot.lane.b32.xlu0 %v2139, 116
  %v2200 = vpop.permute.xlu0 %2199
  %2201 = vrot.lane.b32.xlu0 %v2159, 116
  %v2202 = vpop.permute.xlu0 %2201
  %v2203 = vsel %vm1047, %v2200, %v2202
  %v2206 = vadd.f32 %v2197, %v2203
  %v2207 = vadd.f32 %v2198, %v2202
  %2208 = vrot.lane.b32.xlu0 %v2139, 108
  %v2209 = vpop.permute.xlu0 %2208
  %2210 = vrot.lane.b32.xlu0 %v2159, 108
  %v2211 = vpop.permute.xlu0 %2210
  %v2212 = vsel %vm1113, %v2209, %v2211
  %v2215 = vadd.f32 %v2206, %v2212
  %v2216 = vadd.f32 %v2207, %v2211
  %2217 = vrot.lane.b32.xlu0 %v2139, 107
  %v2218 = vpop.permute.xlu0 %2217
  %2219 = vrot.lane.b32.xlu0 %v2159, 107
  %v2220 = vpop.permute.xlu0 %2219
  %v2221 = vsel %vm1179, %v2218, %v2220
  %v2224 = vadd.f32 %v2215, %v2221
  %v2225 = vadd.f32 %v2216, %v2220
  %2226 = vrot.lane.b32.xlu0 %v2139, 106
  %v2227 = vpop.permute.xlu0 %2226
  %2228 = vrot.lane.b32.xlu0 %v2159, 106
  %v2229 = vpop.permute.xlu0 %2228
  %v2230 = vsel %vm1245, %v2227, %v2229
  %v2233 = vadd.f32 %v2224, %v2230
  %v2234 = vadd.f32 %v2225, %v2229
  %v2235 = vmul.f32 %v2233, 0.11111111
  %v2236 = vmul.f32 %v2234, 0.11111111
  %v2238 = vsel %vm1342, %v2236, 0
  %2240 = vmatpush.msra.mxu0 %v1320
  %2241 = vmatpush.msra.mxu0 %v1319
  %2242 = vmatpush.msra.mxu0 %v1318
  %2243 = vmatpush.msra.mxu0 %v1317
  %2244 = vmatpush.msra.mxu0 %v1316
  %2245 = vmatpush.msra.mxu0 %v1315
  %2246 = vmatpush.msra.mxu0 %v1314
  %2247 = vmatpush.msra.mxu0 %v1313
  %2248 = vmatpush.msra.mxu0 %v1312
  %2249 = vmatpush.msra.mxu0 %v1311
  %2250 = vmatpush.msra.mxu0 %v1310
  %2251 = vmatpush.msra.mxu0 %v1309
  %2252 = vmatpush.msra.mxu0 %v1308
  %2253 = vmatpush.msra.mxu0 %v1307
  %2254 = vmatpush.msra.mxu0 %v1306
  %2255 = vmatpush.msra.mxu0 %v1305
  %2256 = vmatmul.f32.gmra.mxu0 %v2235
  %v2257 = vpop.f32.mrf.mxu0
  %v2258 = vadd.f32 0.0, %v2257
  %2259 = vdwg.mxu0
  %2260 = vmatpush.msra.mxu0 0.0
  %2261 = vmatpush.msra.mxu0 0.0
  %2262 = vmatpush.msra.mxu0 0.0
  %2263 = vmatpush.msra.mxu0 0.0
  %2264 = vmatpush.msra.mxu0 0.0
  %2265 = vmatpush.msra.mxu0 0.0
  %2266 = vmatpush.msra.mxu0 0.0
  %2267 = vmatpush.msra.mxu0 %v1329
  %2268 = vmatpush.msra.mxu0 %v1328
  %2269 = vmatpush.msra.mxu0 %v1327
  %2270 = vmatpush.msra.mxu0 %v1326
  %2271 = vmatpush.msra.mxu0 %v1325
  %2272 = vmatpush.msra.mxu0 %v1324
  %2273 = vmatpush.msra.mxu0 %v1323
  %2274 = vmatpush.msra.mxu0 %v1322
  %2275 = vmatpush.msra.mxu0 %v1321
  %2276 = vmatmul.f32.gmra.mxu0 %v2238
  %v2277 = vpop.f32.mrf.mxu0
  %v2278 = vadd.f32 %v2258, %v2277
  %2279 = vdwg.mxu0
  %v2280 = vadd.f32 %v2044, %v2278
  %v2281 = vld [vmem:[%s2 + $0xf8] sm:$0xff]
  %v2282 = vld [vmem:[%s2 + $0x100] sm:$0xff]
  %2284 = vset.pattern.permute.xlu0 0
  %2285 = vperm.xlu0 %2284, %v2281
  %v2286 = vpop.permute.xlu0 %2285
  %2289 = vset.pattern.permute.xlu0 0
  %2290 = vperm.xlu0 %2289, %v2282
  %v2291 = vpop.permute.xlu0 %2290
  %v2293 = vmul.f32 %v335, %v2286
  %v2294 = vmul.f32 %v2280, %v2291
  %v2295 = vld [vmem:[%s2 + $0x108] sm:$0xff]
  %v2296 = vld [vmem:[%s2 + $0x110] sm:$0xff]
  %2298 = vset.pattern.permute.xlu0 0
  %2299 = vperm.xlu0 %2298, %v2295
  %v2300 = vpop.permute.xlu0 %2299
  %2303 = vset.pattern.permute.xlu0 0
  %2304 = vperm.xlu0 %2303, %v2296
  %v2305 = vpop.permute.xlu0 %2304
  %v2307 = vadd.f32 %v2293, %v2300
  %v2308 = vadd.f32 %v2294, %v2305
  %v2309 = vmax.f32 %v2307, 0.0
  %v2310 = vmax.f32 %v2308, 0.0
  %v2311 = vld [vmem:[%s3 + $0xf8] sm:$0xff]
  %v2312 = vld [vmem:[%s2 + $0x118] sm:$0xff]
  %2314 = vset.pattern.permute.xlu0 0
  %2315 = vperm.xlu0 %2314, %v2312
  %v2316 = vpop.permute.xlu0 %2315
  %v2319 = vsel %vm613, %v2311, 0
  %2321 = vmatpush.msra.mxu0 0.0
  %2322 = vmatpush.msra.mxu0 0.0
  %2323 = vmatpush.msra.mxu0 0.0
  %2324 = vmatpush.msra.mxu0 0.0
  %2325 = vmatpush.msra.mxu0 0.0
  %2326 = vmatpush.msra.mxu0 0.0
  %2327 = vmatpush.msra.mxu0 0.0
  %2328 = vmatpush.msra.mxu0 0.0
  %2329 = vmatpush.msra.mxu0 0.0
  %2330 = vmatpush.msra.mxu0 0.0
  %2331 = vmatpush.msra.mxu0 0.0
  %2332 = vmatpush.msra.mxu0 0.0
  %2333 = vmatpush.msra.mxu0 0.0
  %2334 = vmatpush.msra.mxu0 0.0
  %2335 = vmatpush.msra.mxu0 %v2310
  %2336 = vmatpush.msra.mxu0 %v2309
  %2337 = vmatmul.f32.gmra.mxu0 %v2319
  %v2338 = vpop.f32.mrf.mxu0
  %v2339 = vadd.f32 %v2316, %v2338
  %2340 = vdwg.mxu0
  %v2341 = vld [vmem:[%s2 + $0x120] sm:$0xff]
  %2343 = vset.pattern.permute.xlu0 0
  %2344 = vperm.xlu0 %2343, %v2341
  %v2345 = vpop.permute.xlu0 %2344
  %v2347 = vmul.f32 %v2339, %v2345
  %v2348 = vld [vmem:[%s2 + $0x128] sm:$0xff]
  %2350 = vset.pattern.permute.xlu0 0
  %2351 = vperm.xlu0 %2350, %v2348
  %v2352 = vpop.permute.xlu0 %2351
  %v2354 = vadd.f32 %v2347, %v2352
  %v2355 = vmax.f32 %v2354, 0.0
  %2356 = vmatpush.msra.mxu0 %v682
  %2357 = vmatpush.msra.mxu0 %v680
  %2358 = vmatpush.msra.mxu0 %v678
  %2359 = vmatpush.msra.mxu0 %v676
  %2360 = vmatpush.msra.mxu0 %v674
  %2361 = vmatpush.msra.mxu0 %v672
  %2362 = vmatpush.msra.mxu0 %v670
  %2363 = vmatpush.msra.mxu0 %v668
  %2364 = vmatpush.msra.mxu0 %v666
  %2365 = vmatpush.msra.mxu0 %v664
  %2366 = vmatpush.msra.mxu0 %v662
  %2367 = vmatpush.msra.mxu0 %v660
  %2368 = vmatpush.msra.mxu0 %v658
  %2369 = vmatpush.msra.mxu0 %v656
  %2370 = vmatpush.msra.mxu0 %v654
  %2371 = vmatpush.msra.mxu0 %v652
  %2372 = vmatmul.f32.gmra.mxu0 %v2355
  %v2373 = vpop.f32.mrf.mxu0
  %v2374 = vadd.f32 0.0, %v2373
  %2375 = vdwg.mxu0
  %2376 = vmatpush.msra.mxu0 %v683
  %2377 = vmatpush.msra.mxu0 %v681
  %2378 = vmatpush.msra.mxu0 %v679
  %2379 = vmatpush.msra.mxu0 %v677
  %2380 = vmatpush.msra.mxu0 %v675
  %2381 = vmatpush.msra.mxu0 %v673
  %2382 = vmatpush.msra.mxu0 %v671
  %2383 = vmatpush.msra.mxu0 %v669
  %2384 = vmatpush.msra.mxu0 %v667
  %2385 = vmatpush.msra.mxu0 %v665
  %2386 = vmatpush.msra.mxu0 %v663
  %2387 = vmatpush.msra.mxu0 %v661
  %2388 = vmatpush.msra.mxu0 %v659
  %2389 = vmatpush.msra.mxu0 %v657
  %2390 = vmatpush.msra.mxu0 %v655
  %2391 = vmatpush.msra.mxu0 %v653
  %2392 = vmatmul.f32.gmra.mxu0 %v2355
  %v2393 = vpop.f32.mrf.mxu0
  %v2394 = vadd.f32 0.0, %v2393
  %2395 = vdwg.mxu0
  %2398 = vrot.lane.b32.xlu0 %v2374, 127
  %v2399 = vpop.permute.xlu0 %2398
  %2400 = vrot.lane.b32.xlu0 %v2394, 127
  %v2401 = vpop.permute.xlu0 %2400
  %v2402 = vsel %vm734, %v2399, %v2401
  %v2405 = vmax.f32 %v2374, %v2402
  %v2406 = vmax.f32 %v2394, %v2401
  %2407 = vrot.lane.b32.xlu0 %v2374, 126
  %v2408 = vpop.permute.xlu0 %2407
  %2409 = vrot.lane.b32.xlu0 %v2394, 126
  %v2410 = vpop.permute.xlu0 %2409
  %v2411 = vsel %vm849, %v2408, %v2410
  %v2414 = vmax.f32 %v2405, %v2411
  %v2415 = vmax.f32 %v2406, %v2410
  %2416 = vrot.lane.b32.xlu0 %v2374, 118
  %v2417 = vpop.permute.xlu0 %2416
  %2418 = vrot.lane.b32.xlu0 %v2394, 118
  %v2419 = vpop.permute.xlu0 %2418
  %v2420 = vsel %vm915, %v2417, %v2419
  %v2423 = vmax.f32 %v2414, %v2420
  %v2424 = vmax.f32 %v2415, %v2419
  %2425 = vrot.lane.b32.xlu0 %v2374, 117
  %v2426 = vpop.permute.xlu0 %2425
  %2427 = vrot.lane.b32.xlu0 %v2394, 117
  %v2428 = vpop.permute.xlu0 %2427
  %v2429 = vsel %vm981, %v2426, %v2428
  %v2432 = vmax.f32 %v2423, %v2429
  %v2433 = vmax.f32 %v2424, %v2428
  %2434 = vrot.lane.b32.xlu0 %v2374, 116
  %v2435 = vpop.permute.xlu0 %2434
  %2436 = vrot.lane.b32.xlu0 %v2394, 116
  %v2437 = vpop.permute.xlu0 %2436
  %v2438 = vsel %vm1047, %v2435, %v2437
  %v2441 = vmax.f32 %v2432, %v2438
  %v2442 = vmax.f32 %v2433, %v2437
  %2443 = vrot.lane.b32.xlu0 %v2374, 108
  %v2444 = vpop.permute.xlu0 %2443
  %2445 = vrot.lane.b32.xlu0 %v2394, 108
  %v2446 = vpop.permute.xlu0 %2445
  %v2447 = vsel %vm1113, %v2444, %v2446
  %v2450 = vmax.f32 %v2441, %v2447
  %v2451 = vmax.f32 %v2442, %v2446
  %2452 = vrot.lane.b32.xlu0 %v2374, 107
  %v2453 = vpop.permute.xlu0 %2452
  %2454 = vrot.lane.b32.xlu0 %v2394, 107
  %v2455 = vpop.permute.xlu0 %2454
  %v2456 = vsel %vm1179, %v2453, %v2455
  %v2459 = vmax.f32 %v2450, %v2456
  %v2460 = vmax.f32 %v2451, %v2455
  %2461 = vrot.lane.b32.xlu0 %v2374, 106
  %v2462 = vpop.permute.xlu0 %2461
  %2463 = vrot.lane.b32.xlu0 %v2394, 106
  %v2464 = vpop.permute.xlu0 %2463
  %v2465 = vsel %vm1245, %v2462, %v2464
  %v2468 = vmax.f32 %v2459, %v2465
  %v2469 = vmax.f32 %v2460, %v2464
  %v2471 = vsel %vm1342, %v2469, 0
  %2473 = vmatpush.msra.mxu0 %v1320
  %2474 = vmatpush.msra.mxu0 %v1319
  %2475 = vmatpush.msra.mxu0 %v1318
  %2476 = vmatpush.msra.mxu0 %v1317
  %2477 = vmatpush.msra.mxu0 %v1316
  %2478 = vmatpush.msra.mxu0 %v1315
  %2479 = vmatpush.msra.mxu0 %v1314
  %2480 = vmatpush.msra.mxu0 %v1313
  %2481 = vmatpush.msra.mxu0 %v1312
  %2482 = vmatpush.msra.mxu0 %v1311
  %2483 = vmatpush.msra.mxu0 %v1310
  %2484 = vmatpush.msra.mxu0 %v1309
  %2485 = vmatpush.msra.mxu0 %v1308
  %2486 = vmatpush.msra.mxu0 %v1307
  %2487 = vmatpush.msra.mxu0 %v1306
  %2488 = vmatpush.msra.mxu0 %v1305
  %2489 = vmatmul.f32.gmra.mxu0 %v2468
  %v2490 = vpop.f32.mrf.mxu0
  %v2491 = vadd.f32 0.0, %v2490
  %2492 = vdwg.mxu0
  %2493 = vmatpush.msra.mxu0 0.0
  %2494 = vmatpush.msra.mxu0 0.0
  %2495 = vmatpush.msra.mxu0 0.0
  %2496 = vmatpush.msra.mxu0 0.0
  %2497 = vmatpush.msra.mxu0 0.0
  %2498 = vmatpush.msra.mxu0 0.0
  %2499 = vmatpush.msra.mxu0 0.0
  %2500 = vmatpush.msra.mxu0 %v1329
  %2501 = vmatpush.msra.mxu0 %v1328
  %2502 = vmatpush.msra.mxu0 %v1327
  %2503 = vmatpush.msra.mxu0 %v1326
  %2504 = vmatpush.msra.mxu0 %v1325
  %2505 = vmatpush.msra.mxu0 %v1324
  %2506 = vmatpush.msra.mxu0 %v1323
  %2507 = vmatpush.msra.mxu0 %v1322
  %2508 = vmatpush.msra.mxu0 %v1321
  %2509 = vmatmul.f32.gmra.mxu0 %v2471
  %v2510 = vpop.f32.mrf.mxu0
  %v2511 = vadd.f32 %v2491, %v2510
  %2512 = vdwg.mxu0
  %v2513 = vld [vmem:[%s2 + $0x130] sm:$0xff]
  %v2514 = vld [vmem:[%s2 + $0x138] sm:$0xff]
  %v2515 = vld [vmem:[%s2 + $0x140] sm:$0xff]
  %2517 = vset.pattern.permute.xlu0 0
  %2518 = vperm.xlu0 %2517, %v2513
  %v2519 = vpop.permute.xlu0 %2518
  %2522 = vset.pattern.permute.xlu0 0
  %2523 = vperm.xlu0 %2522, %v2514
  %v2524 = vpop.permute.xlu0 %2523
  %2527 = vset.pattern.permute.xlu0 0
  %2528 = vperm.xlu0 %2527, %v2515
  %v2529 = vpop.permute.xlu0 %2528
  %v2531 = vmul.f32 %v574, %v2519
  %v2532 = vmul.f32 %v2280, %v2524
  %v2533 = vmul.f32 %v2511, %v2529
  %v2534 = vld [vmem:[%s2 + $0x148] sm:$0xff]
  %v2535 = vld [vmem:[%s2 + $0x150] sm:$0xff]
  %v2536 = vld [vmem:[%s2 + $0x158] sm:$0xff]
  %2538 = vset.pattern.permute.xlu0 0
  %2539 = vperm.xlu0 %2538, %v2534
  %v2540 = vpop.permute.xlu0 %2539
  %2543 = vset.pattern.permute.xlu0 0
  %2544 = vperm.xlu0 %2543, %v2535
  %v2545 = vpop.permute.xlu0 %2544
  %2548 = vset.pattern.permute.xlu0 0
  %2549 = vperm.xlu0 %2548, %v2536
  %v2550 = vpop.permute.xlu0 %2549
  %v2552 = vadd.f32 %v2531, %v2540
  %v2553 = vadd.f32 %v2532, %v2545
  %v2554 = vadd.f32 %v2533, %v2550
  %v2555 = vmax.f32 %v2552, 0.0
  %v2556 = vmax.f32 %v2553, 0.0
  %v2557 = vmax.f32 %v2554, 0.0
  %v2558 = vld [vmem:[%s3 + $0x100] sm:$0xff]
  %v2559 = vld [vmem:[%s2 + $0x160] sm:$0xff]
  %2561 = vset.pattern.permute.xlu0 0
  %2562 = vperm.xlu0 %2561, %v2559
  %v2563 = vpop.permute.xlu0 %2562
  %vm2565 = vcmask 195584
  %v2567 = vsel %vm2565, %v2558, 0
  %2569 = vmatpush.msra.mxu0 0.0
  %2570 = vmatpush.msra.mxu0 0.0
  %2571 = vmatpush.msra.mxu0 0.0
  %2572 = vmatpush.msra.mxu0 0.0
  %2573 = vmatpush.msra.mxu0 0.0
  %2574 = vmatpush.msra.mxu0 0.0
  %2575 = vmatpush.msra.mxu0 0.0
  %2576 = vmatpush.msra.mxu0 0.0
  %2577 = vmatpush.msra.mxu0 0.0
  %2578 = vmatpush.msra.mxu0 0.0
  %2579 = vmatpush.msra.mxu0 0.0
  %2580 = vmatpush.msra.mxu0 0.0
  %2581 = vmatpush.msra.mxu0 0.0
  %2582 = vmatpush.msra.mxu0 %v2557
  %2583 = vmatpush.msra.mxu0 %v2556
  %2584 = vmatpush.msra.mxu0 %v2555
  %2585 = vmatmul.f32.gmra.mxu0 %v2567
  %v2586 = vpop.f32.mrf.mxu0
  %v2587 = vadd.f32 %v2563, %v2586
  %2588 = vdwg.mxu0
  %v2589 = vld [vmem:[%s2 + $0x168] sm:$0xff]
  %2591 = vset.pattern.permute.xlu0 0
  %2592 = vperm.xlu0 %2591, %v2589
  %v2593 = vpop.permute.xlu0 %2592
  %v2595 = vmul.f32 %v2587, %v2593
  %v2596 = vld [vmem:[%s2 + $0x170] sm:$0xff]
  %2598 = vset.pattern.permute.xlu0 0
  %2599 = vperm.xlu0 %2598, %v2596
  %v2600 = vpop.permute.xlu0 %2599
  %v2602 = vadd.f32 %v2595, %v2600
  %v2603 = vmax.f32 %v2602, 0.0
  %v2604 = vld [vmem:[%s2 + $0x178] sm:$0xff]
  %v2605 = vld [vmem:[%s2 + $0x180] sm:$0xff]
  %v2606 = vld [vmem:[%s2 + $0x188] sm:$0xff]
  %v2607 = vld [vmem:[%s2 + $0x190] sm:$0xff]
  %v2608 = vld [vmem:[%s2 + $0x198] sm:$0xff]
  %2610 = vset.pattern.permute.xlu0 0
  %2611 = vperm.xlu0 %2610, %v2604
  %v2612 = vpop.permute.xlu0 %2611
  %2615 = vset.pattern.permute.xlu0 0
  %2616 = vperm.xlu0 %2615, %v2605
  %v2617 = vpop.permute.xlu0 %2616
  %2620 = vset.pattern.permute.xlu0 0
  %2621 = vperm.xlu0 %2620, %v2606
  %v2622 = vpop.permute.xlu0 %2621
  %2625 = vset.pattern.permute.xlu0 0
  %2626 = vperm.xlu0 %2625, %v2607
  %v2627 = vpop.permute.xlu0 %2626
  %2630 = vset.pattern.permute.xlu0 0
  %2631 = vperm.xlu0 %2630, %v2608
  %v2632 = vpop.permute.xlu0 %2631
  %v2634 = vmul.f32 %v335, %v2612
  %v2635 = vmul.f32 %v574, %v2617
  %v2636 = vmul.f32 %v2280, %v2622
  %v2637 = vmul.f32 %v2511, %v2627
  %v2638 = vmul.f32 %v2603, %v2632
  %v2639 = vld [vmem:[%s2 + $0x1a0] sm:$0xff]
  %v2640 = vld [vmem:[%s2 + $0x1a8] sm:$0xff]
  %v2641 = vld [vmem:[%s2 + $0x1b0] sm:$0xff]
  %v2642 = vld [vmem:[%s2 + $0x1b8] sm:$0xff]
  %v2643 = vld [vmem:[%s2 + $0x1c0] sm:$0xff]
  %2645 = vset.pattern.permute.xlu0 0
  %2646 = vperm.xlu0 %2645, %v2639
  %v2647 = vpop.permute.xlu0 %2646
  %2650 = vset.pattern.permute.xlu0 0
  %2651 = vperm.xlu0 %2650, %v2640
  %v2652 = vpop.permute.xlu0 %2651
  %2655 = vset.pattern.permute.xlu0 0
  %2656 = vperm.xlu0 %2655, %v2641
  %v2657 = vpop.permute.xlu0 %2656
  %2660 = vset.pattern.permute.xlu0 0
  %2661 = vperm.xlu0 %2660, %v2642
  %v2662 = vpop.permute.xlu0 %2661
  %2665 = vset.pattern.permute.xlu0 0
  %2666 = vperm.xlu0 %2665, %v2643
  %v2667 = vpop.permute.xlu0 %2666
  %v2669 = vadd.f32 %v2634, %v2647
  %v2670 = vadd.f32 %v2635, %v2652
  %v2671 = vadd.f32 %v2636, %v2657
  %v2672 = vadd.f32 %v2637, %v2662
  %v2673 = vadd.f32 %v2638, %v2667
  %v2674 = vmax.f32 %v2669, 0.0
  %v2675 = vmax.f32 %v2670, 0.0
  %v2676 = vmax.f32 %v2671, 0.0
  %v2677 = vmax.f32 %v2672, 0.0
  %v2678 = vmax.f32 %v2673, 0.0
  %v2679 = vld [vmem:[%s3 + $0x108] sm:$0xff]
  %v2680 = vld [vmem:[%s2 + $0x1c8] sm:$0xff]
  %2682 = vset.pattern.permute.xlu0 0
  %2683 = vperm.xlu0 %2682, %v2680
  %v2684 = vpop.permute.xlu0 %2683
  %vm2686 = vcmask 326656
  %v2688 = vsel %vm2686, %v2679, 0
  %2690 = vmatpush.msra.mxu0 0.0
  %2691 = vmatpush.msra.mxu0 0.0
  %2692 = vmatpush.msra.mxu0 0.0
  %2693 = vmatpush.msra.mxu0 0.0
  %2694 = vmatpush.msra.mxu0 0.0
  %2695 = vmatpush.msra.mxu0 0.0
  %2696 = vmatpush.msra.mxu0 0.0
  %2697 = vmatpush.msra.mxu0 0.0
  %2698 = vmatpush.msra.mxu0 0.0
  %2699 = vmatpush.msra.mxu0 0.0
  %2700 = vmatpush.msra.mxu0 0.0
  %2701 = vmatpush.msra.mxu0 %v2678
  %2702 = vmatpush.msra.mxu0 %v2677
  %2703 = vmatpush.msra.mxu0 %v2676
  %2704 = vmatpush.msra.mxu0 %v2675
  %2705 = vmatpush.msra.mxu0 %v2674
  %2706 = vmatmul.f32.gmra.mxu0 %v2688
  %v2707 = vpop.f32.mrf.mxu0
  %v2708 = vadd.f32 %v2684, %v2707
  %2709 = vdwg.mxu0
  %v2710 = vld [vmem:[%s2 + $0x1d0] sm:$0xff]
  %2712 = vset.pattern.permute.xlu0 0
  %2713 = vperm.xlu0 %2712, %v2710
  %v2714 = vpop.permute.xlu0 %2713
  %v2716 = vmul.f32 %v2708, %v2714
  %v2717 = vld [vmem:[%s2 + $0x1d8] sm:$0xff]
  %2719 = vset.pattern.permute.xlu0 0
  %2720 = vperm.xlu0 %2719, %v2717
  %v2721 = vpop.permute.xlu0 %2720
  %v2723 = vadd.f32 %v2716, %v2721
  %v2724 = vmax.f32 %v2723, 0.0
  %v2725 = vld [vmem:[%s7] sm:$0xff]
  %v2726 = vld [vmem:[%s7 + $0x8] sm:$0xff]
  %v2727 = vld [vmem:[%s7 + $0x10] sm:$0xff]
  %v2728 = vld [vmem:[%s7 + $0x18] sm:$0xff]
  %v2729 = vld [vmem:[%s7 + $0x20] sm:$0xff]
  %v2730 = vld [vmem:[%s7 + $0x28] sm:$0xff]
  %v2731 = vld [vmem:[%s7 + $0x30] sm:$0xff]
  %v2732 = vld [vmem:[%s7 + $0x38] sm:$0xff]
  %v2733 = vld [vmem:[%s7 + $0x40] sm:$0xff]
  %v2734 = vld [vmem:[%s7 + $0x48] sm:$0xff]
  %v2735 = vld [vmem:[%s7 + $0x50] sm:$0xff]
  %v2736 = vld [vmem:[%s7 + $0x58] sm:$0xff]
  %v2737 = vld [vmem:[%s7 + $0x60] sm:$0xff]
  %v2738 = vld [vmem:[%s7 + $0x68] sm:$0xff]
  %v2739 = vld [vmem:[%s7 + $0x70] sm:$0xff]
  %v2740 = vld [vmem:[%s7 + $0x78] sm:$0xff]
  %v2741 = vld [vmem:[%s7 + $0x80] sm:$0xff]
  %v2742 = vld [vmem:[%s7 + $0x88] sm:$0xff]
  %v2743 = vld [vmem:[%s7 + $0x90] sm:$0xff]
  %v2744 = vld [vmem:[%s7 + $0x98] sm:$0xff]
  %v2745 = vld [vmem:[%s7 + $0xa0] sm:$0xff]
  %v2746 = vld [vmem:[%s7 + $0xa8] sm:$0xff]
  %v2747 = vld [vmem:[%s7 + $0xb0] sm:$0xff]
  %v2748 = vld [vmem:[%s7 + $0xb8] sm:$0xff]
  %v2749 = vld [vmem:[%s7 + $0xc0] sm:$0xff]
  %v2750 = vld [vmem:[%s7 + $0xc8] sm:$0xff]
  %v2751 = vld [vmem:[%s7 + $0xd0] sm:$0xff]
  %v2752 = vld [vmem:[%s7 + $0xd8] sm:$0xff]
  %v2753 = vld [vmem:[%s7 + $0xe0] sm:$0xff]
  %v2754 = vld [vmem:[%s7 + $0xe8] sm:$0xff]
  %v2755 = vld [vmem:[%s7 + $0xf0] sm:$0xff]
  %v2756 = vld [vmem:[%s7 + $0xf8] sm:$0xff]
  %v2757 = vld [vmem:[%s7 + $0x100] sm:$0xff]
  %v2758 = vld [vmem:[%s7 + $0x108] sm:$0xff]
  %v2759 = vld [vmem:[%s7 + $0x110] sm:$0xff]
  %v2760 = vld [vmem:[%s7 + $0x118] sm:$0xff]
  %v2761 = vld [vmem:[%s7 + $0x120] sm:$0xff]
  %v2762 = vld [vmem:[%s7 + $0x128] sm:$0xff]
  %v2763 = vld [vmem:[%s7 + $0x130] sm:$0xff]
  %v2764 = vld [vmem:[%s7 + $0x138] sm:$0xff]
  %v2765 = vld [vmem:[%s7 + $0x140] sm:$0xff]
  %v2766 = vld [vmem:[%s7 + $0x148] sm:$0xff]
  %v2767 = vld [vmem:[%s7 + $0x150] sm:$0xff]
  %v2768 = vld [vmem:[%s7 + $0x158] sm:$0xff]
  %v2769 = vld [vmem:[%s7 + $0x160] sm:$0xff]
  %v2770 = vld [vmem:[%s7 + $0x168] sm:$0xff]
  %v2771 = vld [vmem:[%s7 + $0x170] sm:$0xff]
  %v2772 = vld [vmem:[%s7 + $0x178] sm:$0xff]
  %2773 = vmatpush.msra.mxu0 %v2770
  %2774 = vmatpush.msra.mxu0 %v2767
  %2775 = vmatpush.msra.mxu0 %v2764
  %2776 = vmatpush.msra.mxu0 %v2761
  %2777 = vmatpush.msra.mxu0 %v2758
  %2778 = vmatpush.msra.mxu0 %v2755
  %2779 = vmatpush.msra.mxu0 %v2752
  %2780 = vmatpush.msra.mxu0 %v2749
  %2781 = vmatpush.msra.mxu0 %v2746
  %2782 = vmatpush.msra.mxu0 %v2743
  %2783 = vmatpush.msra.mxu0 %v2740
  %2784 = vmatpush.msra.mxu0 %v2737
  %2785 = vmatpush.msra.mxu0 %v2734
  %2786 = vmatpush.msra.mxu0 %v2731
  %2787 = vmatpush.msra.mxu0 %v2728
  %2788 = vmatpush.msra.mxu0 %v2725
  %2789 = vmatmul.f32.gmra.mxu0 %v2724
  %v2790 = vpop.f32.mrf.mxu0
  %v2791 = vadd.f32 0.0, %v2790
  %2792 = vdwg.mxu0
  %2793 = vmatpush.msra.mxu0 %v2771
  %2794 = vmatpush.msra.mxu0 %v2768
  %2795 = vmatpush.msra.mxu0 %v2765
  %2796 = vmatpush.msra.mxu0 %v2762
  %2797 = vmatpush.msra.mxu0 %v2759
  %2798 = vmatpush.msra.mxu0 %v2756
  %2799 = vmatpush.msra.mxu0 %v2753
  %2800 = vmatpush.msra.mxu0 %v2750
  %2801 = vmatpush.msra.mxu0 %v2747
  %2802 = vmatpush.msra.mxu0 %v2744
  %2803 = vmatpush.msra.mxu0 %v2741
  %2804 = vmatpush.msra.mxu0 %v2738
  %2805 = vmatpush.msra.mxu0 %v2735
  %2806 = vmatpush.msra.mxu0 %v2732
  %2807 = vmatpush.msra.mxu0 %v2729
  %2808 = vmatpush.msra.mxu0 %v2726
  %2809 = vmatmul.f32.gmra.mxu0 %v2724
  %v2810 = vpop.f32.mrf.mxu0
  %v2811 = vadd.f32 0.0, %v2810
  %2812 = vdwg.mxu0
  %2813 = vmatpush.msra.mxu0 %v2772
  %2814 = vmatpush.msra.mxu0 %v2769
  %2815 = vmatpush.msra.mxu0 %v2766
  %2816 = vmatpush.msra.mxu0 %v2763
  %2817 = vmatpush.msra.mxu0 %v2760
  %2818 = vmatpush.msra.mxu0 %v2757
  %2819 = vmatpush.msra.mxu0 %v2754
  %2820 = vmatpush.msra.mxu0 %v2751
  %2821 = vmatpush.msra.mxu0 %v2748
  %2822 = vmatpush.msra.mxu0 %v2745
  %2823 = vmatpush.msra.mxu0 %v2742
  %2824 = vmatpush.msra.mxu0 %v2739
  %2825 = vmatpush.msra.mxu0 %v2736
  %2826 = vmatpush.msra.mxu0 %v2733
  %2827 = vmatpush.msra.mxu0 %v2730
  %2828 = vmatpush.msra.mxu0 %v2727
  %2829 = vmatmul.f32.gmra.mxu0 %v2724
  %v2830 = vpop.f32.mrf.mxu0
  %v2831 = vadd.f32 0.0, %v2830
  %2832 = vdwg.mxu0
  %v2833 = vld [vmem:[%s3 + $0x110] sm:$0xff]
  %v2834 = vld [vmem:[%s3 + $0x118] sm:$0xff]
  %v2835 = vld [vmem:[%s3 + $0x120] sm:$0xff]
  %v2836 = vld [vmem:[%s3 + $0x128] sm:$0xff]
  %2840 = vrot.lane.b32.xlu0 %v2791, 127
  %v2841 = vpop.permute.xlu0 %2840
  %2842 = vrot.lane.b32.xlu0 %v2811, 127
  %v2843 = vpop.permute.xlu0 %2842
  %2844 = vrot.lane.b32.xlu0 %v2831, 127
  %v2845 = vpop.permute.xlu0 %2844
  %v2846 = vsel %vm734, %v2841, %v2843
  %v2847 = vsel %vm734, %v2843, %v2845
  %v2852 = vsel %vm738, %v2835, 0
  %v2855 = vsel %vm738, %v2836, 0
  %2857 = vmatpush.msra.mxu0 0.0
  %2858 = vmatpush.msra.mxu0 0.0
  %2859 = vmatpush.msra.mxu0 0.0
  %2860 = vmatpush.msra.mxu0 0.0
  %2861 = vmatpush.msra.mxu0 0.0
  %2862 = vmatpush.msra.mxu0 0.0
  %2863 = vmatpush.msra.mxu0 0.0
  %2864 = vmatpush.msra.mxu0 0.0
  %2865 = vmatpush.msra.mxu0 0.0
  %2866 = vmatpush.msra.mxu0 0.0
  %2867 = vmatpush.msra.mxu0 0.0
  %2868 = vmatpush.msra.mxu0 0.0
  %2869 = vmatpush.msra.mxu0 0.0
  %2870 = vmatpush.msra.mxu0 0.0
  %2871 = vmatpush.msra.mxu0 0.0
  %2872 = vmatpush.msra.mxu0 %v2846
  %2873 = vmatmul.f32.gmra.mxu0 %v2852
  %v2874 = vpop.f32.mrf.mxu0
  %v2875 = vadd.f32 0.0, %v2874
  %2876 = vmatmul.f32.gmra.mxu0 %v2855
  %v2877 = vpop.f32.mrf.mxu0
  %v2878 = vadd.f32 0.0, %v2877
  %2879 = vdwg.mxu0
  %2880 = vmatpush.msra.mxu0 0.0
  %2881 = vmatpush.msra.mxu0 0.0
  %2882 = vmatpush.msra.mxu0 0.0
  %2883 = vmatpush.msra.mxu0 0.0
  %2884 = vmatpush.msra.mxu0 0.0
  %2885 = vmatpush.msra.mxu0 0.0
  %2886 = vmatpush.msra.mxu0 0.0
  %2887 = vmatpush.msra.mxu0 0.0
  %2888 = vmatpush.msra.mxu0 0.0
  %2889 = vmatpush.msra.mxu0 0.0
  %2890 = vmatpush.msra.mxu0 0.0
  %2891 = vmatpush.msra.mxu0 0.0
  %2892 = vmatpush.msra.mxu0 0.0
  %2893 = vmatpush.msra.mxu0 0.0
  %2894 = vmatpush.msra.mxu0 0.0
  %2895 = vmatpush.msra.mxu0 %v2847
  %2896 = vmatmul.f32.gmra.mxu0 %v2852
  %v2897 = vpop.f32.mrf.mxu0
  %v2898 = vadd.f32 0.0, %v2897
  %2899 = vmatmul.f32.gmra.mxu0 %v2855
  %v2900 = vpop.f32.mrf.mxu0
  %v2901 = vadd.f32 0.0, %v2900
  %2902 = vdwg.mxu0
  %2903 = vmatpush.msra.mxu0 0.0
  %2904 = vmatpush.msra.mxu0 0.0
  %2905 = vmatpush.msra.mxu0 0.0
  %2906 = vmatpush.msra.mxu0 0.0
  %2907 = vmatpush.msra.mxu0 0.0
  %2908 = vmatpush.msra.mxu0 0.0
  %2909 = vmatpush.msra.mxu0 0.0
  %2910 = vmatpush.msra.mxu0 0.0
  %2911 = vmatpush.msra.mxu0 0.0
  %2912 = vmatpush.msra.mxu0 0.0
  %2913 = vmatpush.msra.mxu0 0.0
  %2914 = vmatpush.msra.mxu0 0.0
  %2915 = vmatpush.msra.mxu0 0.0
  %2916 = vmatpush.msra.mxu0 0.0
  %2917 = vmatpush.msra.mxu0 0.0
  %2918 = vmatpush.msra.mxu0 %v2845
  %2919 = vmatmul.f32.gmra.mxu0 %v2852
  %v2920 = vpop.f32.mrf.mxu0
  %v2921 = vadd.f32 0.0, %v2920
  %2922 = vmatmul.f32.gmra.mxu0 %v2855
  %v2923 = vpop.f32.mrf.mxu0
  %v2924 = vadd.f32 0.0, %v2923
  %2925 = vdwg.mxu0
  %v2927 = vsel %vm738, %v2833, 0
  %v2930 = vsel %vm738, %v2834, 0
  %2932 = vmatpush.msra.mxu0 0.0
  %2933 = vmatpush.msra.mxu0 0.0
  %2934 = vmatpush.msra.mxu0 0.0
  %2935 = vmatpush.msra.mxu0 0.0
  %2936 = vmatpush.msra.mxu0 0.0
  %2937 = vmatpush.msra.mxu0 0.0
  %2938 = vmatpush.msra.mxu0 0.0
  %2939 = vmatpush.msra.mxu0 0.0
  %2940 = vmatpush.msra.mxu0 0.0
  %2941 = vmatpush.msra.mxu0 0.0
  %2942 = vmatpush.msra.mxu0 0.0
  %2943 = vmatpush.msra.mxu0 0.0
  %2944 = vmatpush.msra.mxu0 0.0
  %2945 = vmatpush.msra.mxu0 0.0
  %2946 = vmatpush.msra.mxu0 0.0
  %2947 = vmatpush.msra.mxu0 %v2791
  %2948 = vmatmul.f32.gmra.mxu0 %v2927
  %v2949 = vpop.f32.mrf.mxu0
  %v2950 = vadd.f32 %v2875, %v2949
  %2951 = vmatmul.f32.gmra.mxu0 %v2930
  %v2952 = vpop.f32.mrf.mxu0
  %v2953 = vadd.f32 %v2878, %v2952
  %2954 = vdwg.mxu0
  %2955 = vmatpush.msra.mxu0 0.0
  %2956 = vmatpush.msra.mxu0 0.0
  %2957 = vmatpush.msra.mxu0 0.0
  %2958 = vmatpush.msra.mxu0 0.0
  %2959 = vmatpush.msra.mxu0 0.0
  %2960 = vmatpush.msra.mxu0 0.0
  %2961 = vmatpush.msra.mxu0 0.0
  %2962 = vmatpush.msra.mxu0 0.0
  %2963 = vmatpush.msra.mxu0 0.0
  %2964 = vmatpush.msra.mxu0 0.0
  %2965 = vmatpush.msra.mxu0 0.0
  %2966 = vmatpush.msra.mxu0 0.0
  %2967 = vmatpush.msra.mxu0 0.0
  %2968 = vmatpush.msra.mxu0 0.0
  %2969 = vmatpush.msra.mxu0 0.0
  %2970 = vmatpush.msra.mxu0 %v2811
  %2971 = vmatmul.f32.gmra.mxu0 %v2927
  %v2972 = vpop.f32.mrf.mxu0
  %v2973 = vadd.f32 %v2898, %v2972
  %2974 = vmatmul.f32.gmra.mxu0 %v2930
  %v2975 = vpop.f32.mrf.mxu0
  %v2976 = vadd.f32 %v2901, %v2975
  %2977 = vdwg.mxu0
  %2978 = vmatpush.msra.mxu0 0.0
  %2979 = vmatpush.msra.mxu0 0.0
  %2980 = vmatpush.msra.mxu0 0.0
  %2981 = vmatpush.msra.mxu0 0.0
  %2982 = vmatpush.msra.mxu0 0.0
  %2983 = vmatpush.msra.mxu0 0.0
  %2984 = vmatpush.msra.mxu0 0.0
  %2985 = vmatpush.msra.mxu0 0.0
  %2986 = vmatpush.msra.mxu0 0.0
  %2987 = vmatpush.msra.mxu0 0.0
  %2988 = vmatpush.msra.mxu0 0.0
  %2989 = vmatpush.msra.mxu0 0.0
  %2990 = vmatpush.msra.mxu0 0.0
  %2991 = vmatpush.msra.mxu0 0.0
  %2992 = vmatpush.msra.mxu0 0.0
  %2993 = vmatpush.msra.mxu0 %v2831
  %2994 = vmatmul.f32.gmra.mxu0 %v2927
  %v2995 = vpop.f32.mrf.mxu0
  %v2996 = vadd.f32 %v2921, %v2995
  %2997 = vmatmul.f32.gmra.mxu0 %v2930
  %v2998 = vpop.f32.mrf.mxu0
  %v2999 = vadd.f32 %v2924, %v2998
  %3000 = vdwg.mxu0
  %v3001 = vld [vmem:[%s3 + $0x130] sm:$0xff]
  %v3002 = vld [vmem:[%s3 + $0x138] sm:$0xff]
  %3003 = vrot.lane.b32.xlu0 %v2791, 126
  %v3004 = vpop.permute.xlu0 %3003
  %3005 = vrot.lane.b32.xlu0 %v2811, 126
  %v3006 = vpop.permute.xlu0 %3005
  %3007 = vrot.lane.b32.xlu0 %v2831, 126
  %v3008 = vpop.permute.xlu0 %3007
  %v3009 = vsel %vm849, %v3004, %v3006
  %v3010 = vsel %vm849, %v3006, %v3008
  %v3015 = vsel %vm738, %v3001, 0
  %v3018 = vsel %vm738, %v3002, 0
  %3020 = vmatpush.msra.mxu0 0.0
  %3021 = vmatpush.msra.mxu0 0.0
  %3022 = vmatpush.msra.mxu0 0.0
  %3023 = vmatpush.msra.mxu0 0.0
  %3024 = vmatpush.msra.mxu0 0.0
  %3025 = vmatpush.msra.mxu0 0.0
  %3026 = vmatpush.msra.mxu0 0.0
  %3027 = vmatpush.msra.mxu0 0.0
  %3028 = vmatpush.msra.mxu0 0.0
  %3029 = vmatpush.msra.mxu0 0.0
  %3030 = vmatpush.msra.mxu0 0.0
  %3031 = vmatpush.msra.mxu0 0.0
  %3032 = vmatpush.msra.mxu0 0.0
  %3033 = vmatpush.msra.mxu0 0.0
  %3034 = vmatpush.msra.mxu0 0.0
  %3035 = vmatpush.msra.mxu0 %v3009
  %3036 = vmatmul.f32.gmra.mxu0 %v3015
  %v3037 = vpop.f32.mrf.mxu0
  %v3038 = vadd.f32 0.0, %v3037
  %3039 = vmatmul.f32.gmra.mxu0 %v3018
  %v3040 = vpop.f32.mrf.mxu0
  %v3041 = vadd.f32 0.0, %v3040
  %3042 = vdwg.mxu0
  %3043 = vmatpush.msra.mxu0 0.0
  %3044 = vmatpush.msra.mxu0 0.0
  %3045 = vmatpush.msra.mxu0 0.0
  %3046 = vmatpush.msra.mxu0 0.0
  %3047 = vmatpush.msra.mxu0 0.0
  %3048 = vmatpush.msra.mxu0 0.0
  %3049 = vmatpush.msra.mxu0 0.0
  %3050 = vmatpush.msra.mxu0 0.0
  %3051 = vmatpush.msra.mxu0 0.0
  %3052 = vmatpush.msra.mxu0 0.0
  %3053 = vmatpush.msra.mxu0 0.0
  %3054 = vmatpush.msra.mxu0 0.0
  %3055 = vmatpush.msra.mxu0 0.0
  %3056 = vmatpush.msra.mxu0 0.0
  %3057 = vmatpush.msra.mxu0 0.0
  %3058 = vmatpush.msra.mxu0 %v3010
  %3059 = vmatmul.f32.gmra.mxu0 %v3015
  %v3060 = vpop.f32.mrf.mxu0
  %v3061 = vadd.f32 0.0, %v3060
  %3062 = vmatmul.f32.gmra.mxu0 %v3018
  %v3063 = vpop.f32.mrf.mxu0
  %v3064 = vadd.f32 0.0, %v3063
  %3065 = vdwg.mxu0
  %3066 = vmatpush.msra.mxu0 0.0
  %3067 = vmatpush.msra.mxu0 0.0
  %3068 = vmatpush.msra.mxu0 0.0
  %3069 = vmatpush.msra.mxu0 0.0
  %3070 = vmatpush.msra.mxu0 0.0
  %3071 = vmatpush.msra.mxu0 0.0
  %3072 = vmatpush.msra.mxu0 0.0
  %3073 = vmatpush.msra.mxu0 0.0
  %3074 = vmatpush.msra.mxu0 0.0
  %3075 = vmatpush.msra.mxu0 0.0
  %3076 = vmatpush.msra.mxu0 0.0
  %3077 = vmatpush.msra.mxu0 0.0
  %3078 = vmatpush.msra.mxu0 0.0
  %3079 = vmatpush.msra.mxu0 0.0
  %3080 = vmatpush.msra.mxu0 0.0
  %3081 = vmatpush.msra.mxu0 %v3008
  %3082 = vmatmul.f32.gmra.mxu0 %v3015
  %v3083 = vpop.f32.mrf.mxu0
  %v3084 = vadd.f32 0.0, %v3083
  %3085 = vmatmul.f32.gmra.mxu0 %v3018
  %v3086 = vpop.f32.mrf.mxu0
  %v3087 = vadd.f32 0.0, %v3086
  %3088 = vdwg.mxu0
  %v3089 = vadd.f32 %v2950, %v3038
  %v3090 = vadd.f32 %v2973, %v3061
  %v3091 = vadd.f32 %v2996, %v3084
  %v3092 = vadd.f32 %v2953, %v3041
  %v3093 = vadd.f32 %v2976, %v3064
  %v3094 = vadd.f32 %v2999, %v3087
  %v3095 = vld [vmem:[%s3 + $0x140] sm:$0xff]
  %v3096 = vld [vmem:[%s3 + $0x148] sm:$0xff]
  %3097 = vrot.lane.b32.xlu0 %v2791, 125
  %v3098 = vpop.permute.xlu0 %3097
  %3099 = vrot.lane.b32.xlu0 %v2811, 125
  %v3100 = vpop.permute.xlu0 %3099
  %3101 = vrot.lane.b32.xlu0 %v2831, 125
  %v3102 = vpop.permute.xlu0 %3101
  %vm3103 = vcmask 1022976
  %v3104 = vsel %vm3103, %v3098, %v3100
  %v3105 = vsel %vm3103, %v3100, %v3102
  %v3110 = vsel %vm738, %v3095, 0
  %v3113 = vsel %vm738, %v3096, 0
  %3115 = vmatpush.msra.mxu0 0.0
  %3116 = vmatpush.msra.mxu0 0.0
  %3117 = vmatpush.msra.mxu0 0.0
  %3118 = vmatpush.msra.mxu0 0.0
  %3119 = vmatpush.msra.mxu0 0.0
  %3120 = vmatpush.msra.mxu0 0.0
  %3121 = vmatpush.msra.mxu0 0.0
  %3122 = vmatpush.msra.mxu0 0.0
  %3123 = vmatpush.msra.mxu0 0.0
  %3124 = vmatpush.msra.mxu0 0.0
  %3125 = vmatpush.msra.mxu0 0.0
  %3126 = vmatpush.msra.mxu0 0.0
  %3127 = vmatpush.msra.mxu0 0.0
  %3128 = vmatpush.msra.mxu0 0.0
  %3129 = vmatpush.msra.mxu0 0.0
  %3130 = vmatpush.msra.mxu0 %v3104
  %3131 = vmatmul.f32.gmra.mxu0 %v3110
  %v3132 = vpop.f32.mrf.mxu0
  %v3133 = vadd.f32 0.0, %v3132
  %3134 = vmatmul.f32.gmra.mxu0 %v3113
  %v3135 = vpop.f32.mrf.mxu0
  %v3136 = vadd.f32 0.0, %v3135
  %3137 = vdwg.mxu0
  %3138 = vmatpush.msra.mxu0 0.0
  %3139 = vmatpush.msra.mxu0 0.0
  %3140 = vmatpush.msra.mxu0 0.0
  %3141 = vmatpush.msra.mxu0 0.0
  %3142 = vmatpush.msra.mxu0 0.0
  %3143 = vmatpush.msra.mxu0 0.0
  %3144 = vmatpush.msra.mxu0 0.0
  %3145 = vmatpush.msra.mxu0 0.0
  %3146 = vmatpush.msra.mxu0 0.0
  %3147 = vmatpush.msra.mxu0 0.0
  %3148 = vmatpush.msra.mxu0 0.0
  %3149 = vmatpush.msra.mxu0 0.0
  %3150 = vmatpush.msra.mxu0 0.0
  %3151 = vmatpush.msra.mxu0 0.0
  %3152 = vmatpush.msra.mxu0 0.0
  %3153 = vmatpush.msra.mxu0 %v3105
  %3154 = vmatmul.f32.gmra.mxu0 %v3110
  %v3155 = vpop.f32.mrf.mxu0
  %v3156 = vadd.f32 0.0, %v3155
  %3157 = vmatmul.f32.gmra.mxu0 %v3113
  %v3158 = vpop.f32.mrf.mxu0
  %v3159 = vadd.f32 0.0, %v3158
  %3160 = vdwg.mxu0
  %3161 = vmatpush.msra.mxu0 0.0
  %3162 = vmatpush.msra.mxu0 0.0
  %3163 = vmatpush.msra.mxu0 0.0
  %3164 = vmatpush.msra.mxu0 0.0
  %3165 = vmatpush.msra.mxu0 0.0
  %3166 = vmatpush.msra.mxu0 0.0
  %3167 = vmatpush.msra.mxu0 0.0
  %3168 = vmatpush.msra.mxu0 0.0
  %3169 = vmatpush.msra.mxu0 0.0
  %3170 = vmatpush.msra.mxu0 0.0
  %3171 = vmatpush.msra.mxu0 0.0
  %3172 = vmatpush.msra.mxu0 0.0
  %3173 = vmatpush.msra.mxu0 0.0
  %3174 = vmatpush.msra.mxu0 0.0
  %3175 = vmatpush.msra.mxu0 0.0
  %3176 = vmatpush.msra.mxu0 %v3102
  %3177 = vmatmul.f32.gmra.mxu0 %v3110
  %v3178 = vpop.f32.mrf.mxu0
  %v3179 = vadd.f32 0.0, %v3178
  %3180 = vmatmul.f32.gmra.mxu0 %v3113
  %v3181 = vpop.f32.mrf.mxu0
  %v3182 = vadd.f32 0.0, %v3181
  %3183 = vdwg.mxu0
  %v3184 = vadd.f32 %v3089, %v3133
  %v3185 = vadd.f32 %v3090, %v3156
  %v3186 = vadd.f32 %v3091, %v3179
  %v3187 = vadd.f32 %v3092, %v3136
  %v3188 = vadd.f32 %v3093, %v3159
  %v3189 = vadd.f32 %v3094, %v3182
  %v3190 = vld [vmem:[%s3 + $0x150] sm:$0xff]
  %v3191 = vld [vmem:[%s3 + $0x158] sm:$0xff]
  %3192 = vrot.lane.b32.xlu0 %v2791, 124
  %v3193 = vpop.permute.xlu0 %3192
  %3194 = vrot.lane.b32.xlu0 %v2811, 124
  %v3195 = vpop.permute.xlu0 %3194
  %3196 = vrot.lane.b32.xlu0 %v2831, 124
  %v3197 = vpop.permute.xlu0 %3196
  %vm3198 = vcmask 1014784
  %v3199 = vsel %vm3198, %v3193, %v3195
  %v3200 = vsel %vm3198, %v3195, %v3197
  %v3205 = vsel %vm738, %v3190, 0
  %v3208 = vsel %vm738, %v3191, 0
  %3210 = vmatpush.msra.mxu0 0.0
  %3211 = vmatpush.msra.mxu0 0.0
  %3212 = vmatpush.msra.mxu0 0.0
  %3213 = vmatpush.msra.mxu0 0.0
  %3214 = vmatpush.msra.mxu0 0.0
  %3215 = vmatpush.msra.mxu0 0.0
  %3216 = vmatpush.msra.mxu0 0.0
  %3217 = vmatpush.msra.mxu0 0.0
  %3218 = vmatpush.msra.mxu0 0.0
  %3219 = vmatpush.msra.mxu0 0.0
  %3220 = vmatpush.msra.mxu0 0.0
  %3221 = vmatpush.msra.mxu0 0.0
  %3222 = vmatpush.msra.mxu0 0.0
  %3223 = vmatpush.msra.mxu0 0.0
  %3224 = vmatpush.msra.mxu0 0.0
  %3225 = vmatpush.msra.mxu0 %v3199
  %3226 = vmatmul.f32.gmra.mxu0 %v3205
  %v3227 = vpop.f32.mrf.mxu0
  %v3228 = vadd.f32 0.0, %v3227
  %3229 = vmatmul.f32.gmra.mxu0 %v3208
  %v3230 = vpop.f32.mrf.mxu0
  %v3231 = vadd.f32 0.0, %v3230
  %3232 = vdwg.mxu0
  %3233 = vmatpush.msra.mxu0 0.0
  %3234 = vmatpush.msra.mxu0 0.0
  %3235 = vmatpush.msra.mxu0 0.0
  %3236 = vmatpush.msra.mxu0 0.0
  %3237 = vmatpush.msra.mxu0 0.0
  %3238 = vmatpush.msra.mxu0 0.0
  %3239 = vmatpush.msra.mxu0 0.0
  %3240 = vmatpush.msra.mxu0 0.0
  %3241 = vmatpush.msra.mxu0 0.0
  %3242 = vmatpush.msra.mxu0 0.0
  %3243 = vmatpush.msra.mxu0 0.0
  %3244 = vmatpush.msra.mxu0 0.0
  %3245 = vmatpush.msra.mxu0 0.0
  %3246 = vmatpush.msra.mxu0 0.0
  %3247 = vmatpush.msra.mxu0 0.0
  %3248 = vmatpush.msra.mxu0 %v3200
  %3249 = vmatmul.f32.gmra.mxu0 %v3205
  %v3250 = vpop.f32.mrf.mxu0
  %v3251 = vadd.f32 0.0, %v3250
  %3252 = vmatmul.f32.gmra.mxu0 %v3208
  %v3253 = vpop.f32.mrf.mxu0
  %v3254 = vadd.f32 0.0, %v3253
  %3255 = vdwg.mxu0
  %3256 = vmatpush.msra.mxu0 0.0
  %3257 = vmatpush.msra.mxu0 0.0
  %3258 = vmatpush.msra.mxu0 0.0
  %3259 = vmatpush.msra.mxu0 0.0
  %3260 = vmatpush.msra.mxu0 0.0
  %3261 = vmatpush.msra.mxu0 0.0
  %3262 = vmatpush.msra.mxu0 0.0
  %3263 = vmatpush.msra.mxu0 0.0
  %3264 = vmatpush.msra.mxu0 0.0
  %3265 = vmatpush.msra.mxu0 0.0
  %3266 = vmatpush.msra.mxu0 0.0
  %3267 = vmatpush.msra.mxu0 0.0
  %3268 = vmatpush.msra.mxu0 0.0
  %3269 = vmatpush.msra.mxu0 0.0
  %3270 = vmatpush.msra.mxu0 0.0
  %3271 = vmatpush.msra.mxu0 %v3197
  %3272 = vmatmul.f32.gmra.mxu0 %v3205
  %v3273 = vpop.f32.mrf.mxu0
  %v3274 = vadd.f32 0.0, %v3273
  %3275 = vmatmul.f32.gmra.mxu0 %v3208
  %v3276 = vpop.f32.mrf.mxu0
  %v3277 = vadd.f32 0.0, %v3276
  %3278 = vdwg.mxu0
  %v3279 = vadd.f32 %v3184, %v3228
  %v3280 = vadd.f32 %v3185, %v3251
  %v3281 = vadd.f32 %v3186, %v3274
  %v3282 = vadd.f32 %v3187, %v3231
  %v3283 = vadd.f32 %v3188, %v3254
  %v3284 = vadd.f32 %v3189, %v3277
  %v3285 = vld [vmem:[%s3 + $0x160] sm:$0xff]
  %v3286 = vld [vmem:[%s3 + $0x168] sm:$0xff]
  %3287 = vrot.lane.b32.xlu0 %v2791, 116
  %v3288 = vpop.permute.xlu0 %3287
  %3289 = vrot.lane.b32.xlu0 %v2811, 116
  %v3290 = vpop.permute.xlu0 %3289
  %3291 = vrot.lane.b32.xlu0 %v2831, 116
  %v3292 = vpop.permute.xlu0 %3291
  %v3293 = vsel %vm1047, %v3288, %v3290
  %v3294 = vsel %vm1047, %v3290, %v3292
  %v3299 = vsel %vm738, %v3285, 0
  %v3302 = vsel %vm738, %v3286, 0
  %3304 = vmatpush.msra.mxu0 0.0
  %3305 = vmatpush.msra.mxu0 0.0
  %3306 = vmatpush.msra.mxu0 0.0
  %3307 = vmatpush.msra.mxu0 0.0
  %3308 = vmatpush.msra.mxu0 0.0
  %3309 = vmatpush.msra.mxu0 0.0
  %3310 = vmatpush.msra.mxu0 0.0
  %3311 = vmatpush.msra.mxu0 0.0
  %3312 = vmatpush.msra.mxu0 0.0
  %3313 = vmatpush.msra.mxu0 0.0
  %3314 = vmatpush.msra.mxu0 0.0
  %3315 = vmatpush.msra.mxu0 0.0
  %3316 = vmatpush.msra.mxu0 0.0
  %3317 = vmatpush.msra.mxu0 0.0
  %3318 = vmatpush.msra.mxu0 0.0
  %3319 = vmatpush.msra.mxu0 %v3293
  %3320 = vmatmul.f32.gmra.mxu0 %v3299
  %v3321 = vpop.f32.mrf.mxu0
  %v3322 = vadd.f32 0.0, %v3321
  %3323 = vmatmul.f32.gmra.mxu0 %v3302
  %v3324 = vpop.f32.mrf.mxu0
  %v3325 = vadd.f32 0.0, %v3324
  %3326 = vdwg.mxu0
  %3327 = vmatpush.msra.mxu0 0.0
  %3328 = vmatpush.msra.mxu0 0.0
  %3329 = vmatpush.msra.mxu0 0.0
  %3330 = vmatpush.msra.mxu0 0.0
  %3331 = vmatpush.msra.mxu0 0.0
  %3332 = vmatpush.msra.mxu0 0.0
  %3333 = vmatpush.msra.mxu0 0.0
  %3334 = vmatpush.msra.mxu0 0.0
  %3335 = vmatpush.msra.mxu0 0.0
  %3336 = vmatpush.msra.mxu0 0.0
  %3337 = vmatpush.msra.mxu0 0.0
  %3338 = vmatpush.msra.mxu0 0.0
  %3339 = vmatpush.msra.mxu0 0.0
  %3340 = vmatpush.msra.mxu0 0.0
  %3341 = vmatpush.msra.mxu0 0.0
  %3342 = vmatpush.msra.mxu0 %v3294
  %3343 = vmatmul.f32.gmra.mxu0 %v3299
  %v3344 = vpop.f32.mrf.mxu0
  %v3345 = vadd.f32 0.0, %v3344
  %3346 = vmatmul.f32.gmra.mxu0 %v3302
  %v3347 = vpop.f32.mrf.mxu0
  %v3348 = vadd.f32 0.0, %v3347
  %3349 = vdwg.mxu0
  %3350 = vmatpush.msra.mxu0 0.0
  %3351 = vmatpush.msra.mxu0 0.0
  %3352 = vmatpush.msra.mxu0 0.0
  %3353 = vmatpush.msra.mxu0 0.0
  %3354 = vmatpush.msra.mxu0 0.0
  %3355 = vmatpush.msra.mxu0 0.0
  %3356 = vmatpush.msra.mxu0 0.0
  %3357 = vmatpush.msra.mxu0 0.0
  %3358 = vmatpush.msra.mxu0 0.0
  %3359 = vmatpush.msra.mxu0 0.0
  %3360 = vmatpush.msra.mxu0 0.0
  %3361 = vmatpush.msra.mxu0 0.0
  %3362 = vmatpush.msra.mxu0 0.0
  %3363 = vmatpush.msra.mxu0 0.0
  %3364 = vmatpush.msra.mxu0 0.0
  %3365 = vmatpush.msra.mxu0 %v3292
  %3366 = vmatmul.f32.gmra.mxu0 %v3299
  %v3367 = vpop.f32.mrf.mxu0
  %v3368 = vadd.f32 0.0, %v3367
  %3369 = vmatmul.f32.gmra.mxu0 %v3302
  %v3370 = vpop.f32.mrf.mxu0
  %v3371 = vadd.f32 0.0, %v3370
  %3372 = vdwg.mxu0
  %v3373 = vadd.f32 %v3279, %v3322
  %v3374 = vadd.f32 %v3280, %v3345
  %v3375 = vadd.f32 %v3281, %v3368
  %v3376 = vadd.f32 %v3282, %v3325
  %v3377 = vadd.f32 %v3283, %v3348
  %v3378 = vadd.f32 %v3284, %v3371
  %v3379 = vld [vmem:[%s3 + $0x170] sm:$0xff]
  %v3380 = vld [vmem:[%s3 + $0x178] sm:$0xff]
  %3381 = vrot.lane.b32.xlu0 %v2791, 115
  %v3382 = vpop.permute.xlu0 %3381
  %3383 = vrot.lane.b32.xlu0 %v2811, 115
  %v3384 = vpop.permute.xlu0 %3383
  %3385 = vrot.lane.b32.xlu0 %v2831, 115
  %v3386 = vpop.permute.xlu0 %3385
  %vm3387 = vcmask 941056
  %v3388 = vsel %vm3387, %v3382, %v3384
  %v3389 = vsel %vm3387, %v3384, %v3386
  %v3394 = vsel %vm738, %v3379, 0
  %v3397 = vsel %vm738, %v3380, 0
  %3399 = vmatpush.msra.mxu0 0.0
  %3400 = vmatpush.msra.mxu0 0.0
  %3401 = vmatpush.msra.mxu0 0.0
  %3402 = vmatpush.msra.mxu0 0.0
  %3403 = vmatpush.msra.mxu0 0.0
  %3404 = vmatpush.msra.mxu0 0.0
  %3405 = vmatpush.msra.mxu0 0.0
  %3406 = vmatpush.msra.mxu0 0.0
  %3407 = vmatpush.msra.mxu0 0.0
  %3408 = vmatpush.msra.mxu0 0.0
  %3409 = vmatpush.msra.mxu0 0.0
  %3410 = vmatpush.msra.mxu0 0.0
  %3411 = vmatpush.msra.mxu0 0.0
  %3412 = vmatpush.msra.mxu0 0.0
  %3413 = vmatpush.msra.mxu0 0.0
  %3414 = vmatpush.msra.mxu0 %v3388
  %3415 = vmatmul.f32.gmra.mxu0 %v3394
  %v3416 = vpop.f32.mrf.mxu0
  %v3417 = vadd.f32 0.0, %v3416
  %3418 = vmatmul.f32.gmra.mxu0 %v3397
  %v3419 = vpop.f32.mrf.mxu0
  %v3420 = vadd.f32 0.0, %v3419
  %3421 = vdwg.mxu0
  %3422 = vmatpush.msra.mxu0 0.0
  %3423 = vmatpush.msra.mxu0 0.0
  %3424 = vmatpush.msra.mxu0 0.0
  %3425 = vmatpush.msra.mxu0 0.0
  %3426 = vmatpush.msra.mxu0 0.0
  %3427 = vmatpush.msra.mxu0 0.0
  %3428 = vmatpush.msra.mxu0 0.0
  %3429 = vmatpush.msra.mxu0 0.0
  %3430 = vmatpush.msra.mxu0 0.0
  %3431 = vmatpush.msra.mxu0 0.0
  %3432 = vmatpush.msra.mxu0 0.0
  %3433 = vmatpush.msra.mxu0 0.0
  %3434 = vmatpush.msra.mxu0 0.0
  %3435 = vmatpush.msra.mxu0 0.0
  %3436 = vmatpush.msra.mxu0 0.0
  %3437 = vmatpush.msra.mxu0 %v3389
  %3438 = vmatmul.f32.gmra.mxu0 %v3394
  %v3439 = vpop.f32.mrf.mxu0
  %v3440 = vadd.f32 0.0, %v3439
  %3441 = vmatmul.f32.gmra.mxu0 %v3397
  %v3442 = vpop.f32.mrf.mxu0
  %v3443 = vadd.f32 0.0, %v3442
  %3444 = vdwg.mxu0
  %3445 = vmatpush.msra.mxu0 0.0
  %3446 = vmatpush.msra.mxu0 0.0
  %3447 = vmatpush.msra.mxu0 0.0
  %3448 = vmatpush.msra.mxu0 0.0
  %3449 = vmatpush.msra.mxu0 0.0
  %3450 = vmatpush.msra.mxu0 0.0
  %3451 = vmatpush.msra.mxu0 0.0
  %3452 = vmatpush.msra.mxu0 0.0
  %3453 = vmatpush.msra.mxu0 0.0
  %3454 = vmatpush.msra.mxu0 0.0
  %3455 = vmatpush.msra.mxu0 0.0
  %3456 = vmatpush.msra.mxu0 0.0
  %3457 = vmatpush.msra.mxu0 0.0
  %3458 = vmatpush.msra.mxu0 0.0
  %3459 = vmatpush.msra.mxu0 0.0
  %3460 = vmatpush.msra.mxu0 %v3386
  %3461 = vmatmul.f32.gmra.mxu0 %v3394
  %v3462 = vpop.f32.mrf.mxu0
  %v3463 = vadd.f32 0.0, %v3462
  %3464 = vmatmul.f32.gmra.mxu0 %v3397
  %v3465 = vpop.f32.mrf.mxu0
  %v3466 = vadd.f32 0.0, %v3465
  %3467 = vdwg.mxu0
  %v3468 = vadd.f32 %v3373, %v3417
  %v3469 = vadd.f32 %v3374, %v3440
  %v3470 = vadd.f32 %v3375, %v3463
  %v3471 = vadd.f32 %v3376, %v3420
  %v3472 = vadd.f32 %v3377, %v3443
  %v3473 = vadd.f32 %v3378, %v3466
  %v3474 = vld [vmem:[%s3 + $0x180] sm:$0xff]
  %v3475 = vld [vmem:[%s3 + $0x188] sm:$0xff]
  %3476 = vrot.lane.b32.xlu0 %v2791, 114
  %v3477 = vpop.permute.xlu0 %3476
  %3478 = vrot.lane.b32.xlu0 %v2811, 114
  %v3479 = vpop.permute.xlu0 %3478
  %3480 = vrot.lane.b32.xlu0 %v2831, 114
  %v3481 = vpop.permute.xlu0 %3480
  %vm3482 = vcmask 932864
  %v3483 = vsel %vm3482, %v3477, %v3479
  %v3484 = vsel %vm3482, %v3479, %v3481
  %v3489 = vsel %vm738, %v3474, 0
  %v3492 = vsel %vm738, %v3475, 0
  %3494 = vmatpush.msra.mxu0 0.0
  %3495 = vmatpush.msra.mxu0 0.0
  %3496 = vmatpush.msra.mxu0 0.0
  %3497 = vmatpush.msra.mxu0 0.0
  %3498 = vmatpush.msra.mxu0 0.0
  %3499 = vmatpush.msra.mxu0 0.0
  %3500 = vmatpush.msra.mxu0 0.0
  %3501 = vmatpush.msra.mxu0 0.0
  %3502 = vmatpush.msra.mxu0 0.0
  %3503 = vmatpush.msra.mxu0 0.0
  %3504 = vmatpush.msra.mxu0 0.0
  %3505 = vmatpush.msra.mxu0 0.0
  %3506 = vmatpush.msra.mxu0 0.0
  %3507 = vmatpush.msra.mxu0 0.0
  %3508 = vmatpush.msra.mxu0 0.0
  %3509 = vmatpush.msra.mxu0 %v3483
  %3510 = vmatmul.f32.gmra.mxu0 %v3489
  %v3511 = vpop.f32.mrf.mxu0
  %v3512 = vadd.f32 0.0, %v3511
  %3513 = vmatmul.f32.gmra.mxu0 %v3492
  %v3514 = vpop.f32.mrf.mxu0
  %v3515 = vadd.f32 0.0, %v3514
  %3516 = vdwg.mxu0
  %3517 = vmatpush.msra.mxu0 0.0
  %3518 = vmatpush.msra.mxu0 0.0
  %3519 = vmatpush.msra.mxu0 0.0
  %3520 = vmatpush.msra.mxu0 0.0
  %3521 = vmatpush.msra.mxu0 0.0
  %3522 = vmatpush.msra.mxu0 0.0
  %3523 = vmatpush.msra.mxu0 0.0
  %3524 = vmatpush.msra.mxu0 0.0
  %3525 = vmatpush.msra.mxu0 0.0
  %3526 = vmatpush.msra.mxu0 0.0
  %3527 = vmatpush.msra.mxu0 0.0
  %3528 = vmatpush.msra.mxu0 0.0
  %3529 = vmatpush.msra.mxu0 0.0
  %3530 = vmatpush.msra.mxu0 0.0
  %3531 = vmatpush.msra.mxu0 0.0
  %3532 = vmatpush.msra.mxu0 %v3484
  %3533 = vmatmul.f32.gmra.mxu0 %v3489
  %v3534 = vpop.f32.mrf.mxu0
  %v3535 = vadd.f32 0.0, %v3534
  %3536 = vmatmul.f32.gmra.mxu0 %v3492
  %v3537 = vpop.f32.mrf.mxu0
  %v3538 = vadd.f32 0.0, %v3537
  %3539 = vdwg.mxu0
  %3540 = vmatpush.msra.mxu0 0.0
  %3541 = vmatpush.msra.mxu0 0.0
  %3542 = vmatpush.msra.mxu0 0.0
  %3543 = vmatpush.msra.mxu0 0.0
  %3544 = vmatpush.msra.mxu0 0.0
  %3545 = vmatpush.msra.mxu0 0.0
  %3546 = vmatpush.msra.mxu0 0.0
  %3547 = vmatpush.msra.mxu0 0.0
  %3548 = vmatpush.msra.mxu0 0.0
  %3549 = vmatpush.msra.mxu0 0.0
  %3550 = vmatpush.msra.mxu0 0.0
  %3551 = vmatpush.msra.mxu0 0.0
  %3552 = vmatpush.msra.mxu0 0.0
  %3553 = vmatpush.msra.mxu0 0.0
  %3554 = vmatpush.msra.mxu0 0.0
  %3555 = vmatpush.msra.mxu0 %v3481
  %3556 = vmatmul.f32.gmra.mxu0 %v3489
  %v3557 = vpop.f32.mrf.mxu0
  %v3558 = vadd.f32 0.0, %v3557
  %3559 = vmatmul.f32.gmra.mxu0 %v3492
  %v3560 = vpop.f32.mrf.mxu0
  %v3561 = vadd.f32 0.0, %v3560
  %3562 = vdwg.mxu0
  %v3563 = vadd.f32 %v3468, %v3512
  %v3564 = vadd.f32 %v3469, %v3535
  %v3565 = vadd.f32 %v3470, %v3558
  %v3566 = vadd.f32 %v3471, %v3515
  %v3567 = vadd.f32 %v3472, %v3538
  %v3568 = vadd.f32 %v3473, %v3561
  %v3569 = vld [vmem:[%s3 + $0x190] sm:$0xff]
  %v3570 = vld [vmem:[%s3 + $0x198] sm:$0xff]
  %3571 = vrot.lane.b32.xlu0 %v2791, 113
  %v3572 = vpop.permute.xlu0 %3571
  %3573 = vrot.lane.b32.xlu0 %v2811, 113
  %v3574 = vpop.permute.xlu0 %3573
  %3575 = vrot.lane.b32.xlu0 %v2831, 113
  %v3576 = vpop.permute.xlu0 %3575
  %vm3577 = vcmask 924672
  %v3578 = vsel %vm3577, %v3572, %v3574
  %v3579 = vsel %vm3577, %v3574, %v3576
  %v3584 = vsel %vm738, %v3569, 0
  %v3587 = vsel %vm738, %v3570, 0
  %3589 = vmatpush.msra.mxu0 0.0
  %3590 = vmatpush.msra.mxu0 0.0
  %3591 = vmatpush.msra.mxu0 0.0
  %3592 = vmatpush.msra.mxu0 0.0
  %3593 = vmatpush.msra.mxu0 0.0
  %3594 = vmatpush.msra.mxu0 0.0
  %3595 = vmatpush.msra.mxu0 0.0
  %3596 = vmatpush.msra.mxu0 0.0
  %3597 = vmatpush.msra.mxu0 0.0
  %3598 = vmatpush.msra.mxu0 0.0
  %3599 = vmatpush.msra.mxu0 0.0
  %3600 = vmatpush.msra.mxu0 0.0
  %3601 = vmatpush.msra.mxu0 0.0
  %3602 = vmatpush.msra.mxu0 0.0
  %3603 = vmatpush.msra.mxu0 0.0
  %3604 = vmatpush.msra.mxu0 %v3578
  %3605 = vmatmul.f32.gmra.mxu0 %v3584
  %v3606 = vpop.f32.mrf.mxu0
  %v3607 = vadd.f32 0.0, %v3606
  %3608 = vmatmul.f32.gmra.mxu0 %v3587
  %v3609 = vpop.f32.mrf.mxu0
  %v3610 = vadd.f32 0.0, %v3609
  %3611 = vdwg.mxu0
  %3612 = vmatpush.msra.mxu0 0.0
  %3613 = vmatpush.msra.mxu0 0.0
  %3614 = vmatpush.msra.mxu0 0.0
  %3615 = vmatpush.msra.mxu0 0.0
  %3616 = vmatpush.msra.mxu0 0.0
  %3617 = vmatpush.msra.mxu0 0.0
  %3618 = vmatpush.msra.mxu0 0.0
  %3619 = vmatpush.msra.mxu0 0.0
  %3620 = vmatpush.msra.mxu0 0.0
  %3621 = vmatpush.msra.mxu0 0.0
  %3622 = vmatpush.msra.mxu0 0.0
  %3623 = vmatpush.msra.mxu0 0.0
  %3624 = vmatpush.msra.mxu0 0.0
  %3625 = vmatpush.msra.mxu0 0.0
  %3626 = vmatpush.msra.mxu0 0.0
  %3627 = vmatpush.msra.mxu0 %v3579
  %3628 = vmatmul.f32.gmra.mxu0 %v3584
  %v3629 = vpop.f32.mrf.mxu0
  %v3630 = vadd.f32 0.0, %v3629
  %3631 = vmatmul.f32.gmra.mxu0 %v3587
  %v3632 = vpop.f32.mrf.mxu0
  %v3633 = vadd.f32 0.0, %v3632
  %3634 = vdwg.mxu0
  %3635 = vmatpush.msra.mxu0 0.0
  %3636 = vmatpush.msra.mxu0 0.0
  %3637 = vmatpush.msra.mxu0 0.0
  %3638 = vmatpush.msra.mxu0 0.0
  %3639 = vmatpush.msra.mxu0 0.0
  %3640 = vmatpush.msra.mxu0 0.0
  %3641 = vmatpush.msra.mxu0 0.0
  %3642 = vmatpush.msra.mxu0 0.0
  %3643 = vmatpush.msra.mxu0 0.0
  %3644 = vmatpush.msra.mxu0 0.0
  %3645 = vmatpush.msra.mxu0 0.0
  %3646 = vmatpush.msra.mxu0 0.0
  %3647 = vmatpush.msra.mxu0 0.0
  %3648 = vmatpush.msra.mxu0 0.0
  %3649 = vmatpush.msra.mxu0 0.0
  %3650 = vmatpush.msra.mxu0 %v3576
  %3651 = vmatmul.f32.gmra.mxu0 %v3584
  %v3652 = vpop.f32.mrf.mxu0
  %v3653 = vadd.f32 0.0, %v3652
  %3654 = vmatmul.f32.gmra.mxu0 %v3587
  %v3655 = vpop.f32.mrf.mxu0
  %v3656 = vadd.f32 0.0, %v3655
  %3657 = vdwg.mxu0
  %v3658 = vadd.f32 %v3563, %v3607
  %v3659 = vadd.f32 %v3564, %v3630
  %v3660 = vadd.f32 %v3565, %v3653
  %v3661 = vadd.f32 %v3566, %v3610
  %v3662 = vadd.f32 %v3567, %v3633
  %v3663 = vadd.f32 %v3568, %v3656
  %v3664 = vld [vmem:[%s3 + $0x1a0] sm:$0xff]
  %v3665 = vld [vmem:[%s3 + $0x1a8] sm:$0xff]
  %3666 = vrot.lane.b32.xlu0 %v2791, 112
  %v3667 = vpop.permute.xlu0 %3666
  %3668 = vrot.lane.b32.xlu0 %v2811, 112
  %v3669 = vpop.permute.xlu0 %3668
  %3670 = vrot.lane.b32.xlu0 %v2831, 112
  %v3671 = vpop.permute.xlu0 %3670
  %vm3672 = vcmask 916480
  %v3673 = vsel %vm3672, %v3667, %v3669
  %v3674 = vsel %vm3672, %v3669, %v3671
  %v3679 = vsel %vm738, %v3664, 0
  %v3682 = vsel %vm738, %v3665, 0
  %3684 = vmatpush.msra.mxu0 0.0
  %3685 = vmatpush.msra.mxu0 0.0
  %3686 = vmatpush.msra.mxu0 0.0
  %3687 = vmatpush.msra.mxu0 0.0
  %3688 = vmatpush.msra.mxu0 0.0
  %3689 = vmatpush.msra.mxu0 0.0
  %3690 = vmatpush.msra.mxu0 0.0
  %3691 = vmatpush.msra.mxu0 0.0
  %3692 = vmatpush.msra.mxu0 0.0
  %3693 = vmatpush.msra.mxu0 0.0
  %3694 = vmatpush.msra.mxu0 0.0
  %3695 = vmatpush.msra.mxu0 0.0
  %3696 = vmatpush.msra.mxu0 0.0
  %3697 = vmatpush.msra.mxu0 0.0
  %3698 = vmatpush.msra.mxu0 0.0
  %3699 = vmatpush.msra.mxu0 %v3673
  %3700 = vmatmul.f32.gmra.mxu0 %v3679
  %v3701 = vpop.f32.mrf.mxu0
  %v3702 = vadd.f32 0.0, %v3701
  %3703 = vmatmul.f32.gmra.mxu0 %v3682
  %v3704 = vpop.f32.mrf.mxu0
  %v3705 = vadd.f32 0.0, %v3704
  %3706 = vdwg.mxu0
  %3707 = vmatpush.msra.mxu0 0.0
  %3708 = vmatpush.msra.mxu0 0.0
  %3709 = vmatpush.msra.mxu0 0.0
  %3710 = vmatpush.msra.mxu0 0.0
  %3711 = vmatpush.msra.mxu0 0.0
  %3712 = vmatpush.msra.mxu0 0.0
  %3713 = vmatpush.msra.mxu0 0.0
  %3714 = vmatpush.msra.mxu0 0.0
  %3715 = vmatpush.msra.mxu0 0.0
  %3716 = vmatpush.msra.mxu0 0.0
  %3717 = vmatpush.msra.mxu0 0.0
  %3718 = vmatpush.msra.mxu0 0.0
  %3719 = vmatpush.msra.mxu0 0.0
  %3720 = vmatpush.msra.mxu0 0.0
  %3721 = vmatpush.msra.mxu0 0.0
  %3722 = vmatpush.msra.mxu0 %v3674
  %3723 = vmatmul.f32.gmra.mxu0 %v3679
  %v3724 = vpop.f32.mrf.mxu0
  %v3725 = vadd.f32 0.0, %v3724
  %3726 = vmatmul.f32.gmra.mxu0 %v3682
  %v3727 = vpop.f32.mrf.mxu0
  %v3728 = vadd.f32 0.0, %v3727
  %3729 = vdwg.mxu0
  %3730 = vmatpush.msra.mxu0 0.0
  %3731 = vmatpush.msra.mxu0 0.0
  %3732 = vmatpush.msra.mxu0 0.0
  %3733 = vmatpush.msra.mxu0 0.0
  %3734 = vmatpush.msra.mxu0 0.0
  %3735 = vmatpush.msra.mxu0 0.0
  %3736 = vmatpush.msra.mxu0 0.0
  %3737 = vmatpush.msra.mxu0 0.0
  %3738 = vmatpush.msra.mxu0 0.0
  %3739 = vmatpush.msra.mxu0 0.0
  %3740 = vmatpush.msra.mxu0 0.0
  %3741 = vmatpush.msra.mxu0 0.0
  %3742 = vmatpush.msra.mxu0 0.0
  %3743 = vmatpush.msra.mxu0 0.0
  %3744 = vmatpush.msra.mxu0 0.0
  %3745 = vmatpush.msra.mxu0 %v3671
  %3746 = vmatmul.f32.gmra.mxu0 %v3679
  %v3747 = vpop.f32.mrf.mxu0
  %v3748 = vadd.f32 0.0, %v3747
  %3749 = vmatmul.f32.gmra.mxu0 %v3682
  %v3750 = vpop.f32.mrf.mxu0
  %v3751 = vadd.f32 0.0, %v3750
  %3752 = vdwg.mxu0
  %v3753 = vadd.f32 %v3658, %v3702
  %v3754 = vadd.f32 %v3659, %v3725
  %v3755 = vadd.f32 %v3660, %v3748
  %v3756 = vadd.f32 %v3661, %v3705
  %v3757 = vadd.f32 %v3662, %v3728
  %v3758 = vadd.f32 %v3663, %v3751
  %v3759 = vld [vmem:[%s3 + $0x1b0] sm:$0xff]
  %v3760 = vld [vmem:[%s3 + $0x1b8] sm:$0xff]
  %3761 = vrot.lane.b32.xlu0 %v2791, 104
  %v3762 = vpop.permute.xlu0 %3761
  %3763 = vrot.lane.b32.xlu0 %v2811, 104
  %v3764 = vpop.permute.xlu0 %3763
  %3765 = vrot.lane.b32.xlu0 %v2831, 104
  %v3766 = vpop.permute.xlu0 %3765
  %vm3767 = vcmask 850944
  %v3768 = vsel %vm3767, %v3762, %v3764
  %v3769 = vsel %vm3767, %v3764, %v3766
  %v3774 = vsel %vm738, %v3759, 0
  %v3777 = vsel %vm738, %v3760, 0
  %3779 = vmatpush.msra.mxu0 0.0
  %3780 = vmatpush.msra.mxu0 0.0
  %3781 = vmatpush.msra.mxu0 0.0
  %3782 = vmatpush.msra.mxu0 0.0
  %3783 = vmatpush.msra.mxu0 0.0
  %3784 = vmatpush.msra.mxu0 0.0
  %3785 = vmatpush.msra.mxu0 0.0
  %3786 = vmatpush.msra.mxu0 0.0
  %3787 = vmatpush.msra.mxu0 0.0
  %3788 = vmatpush.msra.mxu0 0.0
  %3789 = vmatpush.msra.mxu0 0.0
  %3790 = vmatpush.msra.mxu0 0.0
  %3791 = vmatpush.msra.mxu0 0.0
  %3792 = vmatpush.msra.mxu0 0.0
  %3793 = vmatpush.msra.mxu0 0.0
  %3794 = vmatpush.msra.mxu0 %v3768
  %3795 = vmatmul.f32.gmra.mxu0 %v3774
  %v3796 = vpop.f32.mrf.mxu0
  %v3797 = vadd.f32 0.0, %v3796
  %3798 = vmatmul.f32.gmra.mxu0 %v3777
  %v3799 = vpop.f32.mrf.mxu0
  %v3800 = vadd.f32 0.0, %v3799
  %3801 = vdwg.mxu0
  %3802 = vmatpush.msra.mxu0 0.0
  %3803 = vmatpush.msra.mxu0 0.0
  %3804 = vmatpush.msra.mxu0 0.0
  %3805 = vmatpush.msra.mxu0 0.0
  %3806 = vmatpush.msra.mxu0 0.0
  %3807 = vmatpush.msra.mxu0 0.0
  %3808 = vmatpush.msra.mxu0 0.0
  %3809 = vmatpush.msra.mxu0 0.0
  %3810 = vmatpush.msra.mxu0 0.0
  %3811 = vmatpush.msra.mxu0 0.0
  %3812 = vmatpush.msra.mxu0 0.0
  %3813 = vmatpush.msra.mxu0 0.0
  %3814 = vmatpush.msra.mxu0 0.0
  %3815 = vmatpush.msra.mxu0 0.0
  %3816 = vmatpush.msra.mxu0 0.0
  %3817 = vmatpush.msra.mxu0 %v3769
  %3818 = vmatmul.f32.gmra.mxu0 %v3774
  %v3819 = vpop.f32.mrf.mxu0
  %v3820 = vadd.f32 0.0, %v3819
  %3821 = vmatmul.f32.gmra.mxu0 %v3777
  %v3822 = vpop.f32.mrf.mxu0
  %v3823 = vadd.f32 0.0, %v3822
  %3824 = vdwg.mxu0
  %3825 = vmatpush.msra.mxu0 0.0
  %3826 = vmatpush.msra.mxu0 0.0
  %3827 = vmatpush.msra.mxu0 0.0
  %3828 = vmatpush.msra.mxu0 0.0
  %3829 = vmatpush.msra.mxu0 0.0
  %3830 = vmatpush.msra.mxu0 0.0
  %3831 = vmatpush.msra.mxu0 0.0
  %3832 = vmatpush.msra.mxu0 0.0
  %3833 = vmatpush.msra.mxu0 0.0
  %3834 = vmatpush.msra.mxu0 0.0
  %3835 = vmatpush.msra.mxu0 0.0
  %3836 = vmatpush.msra.mxu0 0.0
  %3837 = vmatpush.msra.mxu0 0.0
  %3838 = vmatpush.msra.mxu0 0.0
  %3839 = vmatpush.msra.mxu0 0.0
  %3840 = vmatpush.msra.mxu0 %v3766
  %3841 = vmatmul.f32.gmra.mxu0 %v3774
  %v3842 = vpop.f32.mrf.mxu0
  %v3843 = vadd.f32 0.0, %v3842
  %3844 = vmatmul.f32.gmra.mxu0 %v3777
  %v3845 = vpop.f32.mrf.mxu0
  %v3846 = vadd.f32 0.0, %v3845
  %3847 = vdwg.mxu0
  %v3848 = vadd.f32 %v3753, %v3797
  %v3849 = vadd.f32 %v3754, %v3820
  %v3850 = vadd.f32 %v3755, %v3843
  %v3851 = vadd.f32 %v3756, %v3800
  %v3852 = vadd.f32 %v3757, %v3823
  %v3853 = vadd.f32 %v3758, %v3846
  %v3854 = vld [vmem:[%s3 + $0x1c0] sm:$0xff]
  %v3855 = vld [vmem:[%s3 + $0x1c8] sm:$0xff]
  %3856 = vrot.lane.b32.xlu0 %v2791, 103
  %v3857 = vpop.permute.xlu0 %3856
  %3858 = vrot.lane.b32.xlu0 %v2811, 103
  %v3859 = vpop.permute.xlu0 %3858
  %3860 = vrot.lane.b32.xlu0 %v2831, 103
  %v3861 = vpop.permute.xlu0 %3860
  %vm3862 = vcmask 842752
  %v3863 = vsel %vm3862, %v3857, %v3859
  %v3864 = vsel %vm3862, %v3859, %v3861
  %v3869 = vsel %vm738, %v3854, 0
  %v3872 = vsel %vm738, %v3855, 0
  %3874 = vmatpush.msra.mxu0 0.0
  %3875 = vmatpush.msra.mxu0 0.0
  %3876 = vmatpush.msra.mxu0 0.0
  %3877 = vmatpush.msra.mxu0 0.0
  %3878 = vmatpush.msra.mxu0 0.0
  %3879 = vmatpush.msra.mxu0 0.0
  %3880 = vmatpush.msra.mxu0 0.0
  %3881 = vmatpush.msra.mxu0 0.0
  %3882 = vmatpush.msra.mxu0 0.0
  %3883 = vmatpush.msra.mxu0 0.0
  %3884 = vmatpush.msra.mxu0 0.0
  %3885 = vmatpush.msra.mxu0 0.0
  %3886 = vmatpush.msra.mxu0 0.0
  %3887 = vmatpush.msra.mxu0 0.0
  %3888 = vmatpush.msra.mxu0 0.0
  %3889 = vmatpush.msra.mxu0 %v3863
  %3890 = vmatmul.f32.gmra.mxu0 %v3869
  %v3891 = vpop.f32.mrf.mxu0
  %v3892 = vadd.f32 0.0, %v3891
  %3893 = vmatmul.f32.gmra.mxu0 %v3872
  %v3894 = vpop.f32.mrf.mxu0
  %v3895 = vadd.f32 0.0, %v3894
  %3896 = vdwg.mxu0
  %3897 = vmatpush.msra.mxu0 0.0
  %3898 = vmatpush.msra.mxu0 0.0
  %3899 = vmatpush.msra.mxu0 0.0
  %3900 = vmatpush.msra.mxu0 0.0
  %3901 = vmatpush.msra.mxu0 0.0
  %3902 = vmatpush.msra.mxu0 0.0
  %3903 = vmatpush.msra.mxu0 0.0
  %3904 = vmatpush.msra.mxu0 0.0
  %3905 = vmatpush.msra.mxu0 0.0
  %3906 = vmatpush.msra.mxu0 0.0
  %3907 = vmatpush.msra.mxu0 0.0
  %3908 = vmatpush.msra.mxu0 0.0
  %3909 = vmatpush.msra.mxu0 0.0
  %3910 = vmatpush.msra.mxu0 0.0
  %3911 = vmatpush.msra.mxu0 0.0
  %3912 = vmatpush.msra.mxu0 %v3864
  %3913 = vmatmul.f32.gmra.mxu0 %v3869
  %v3914 = vpop.f32.mrf.mxu0
  %v3915 = vadd.f32 0.0, %v3914
  %3916 = vmatmul.f32.gmra.mxu0 %v3872
  %v3917 = vpop.f32.mrf.mxu0
  %v3918 = vadd.f32 0.0, %v3917
  %3919 = vdwg.mxu0
  %3920 = vmatpush.msra.mxu0 0.0
  %3921 = vmatpush.msra.mxu0 0.0
  %3922 = vmatpush.msra.mxu0 0.0
  %3923 = vmatpush.msra.mxu0 0.0
  %3924 = vmatpush.msra.mxu0 0.0
  %3925 = vmatpush.msra.mxu0 0.0
  %3926 = vmatpush.msra.mxu0 0.0
  %3927 = vmatpush.msra.mxu0 0.0
  %3928 = vmatpush.msra.mxu0 0.0
  %3929 = vmatpush.msra.mxu0 0.0
  %3930 = vmatpush.msra.mxu0 0.0
  %3931 = vmatpush.msra.mxu0 0.0
  %3932 = vmatpush.msra.mxu0 0.0
  %3933 = vmatpush.msra.mxu0 0.0
  %3934 = vmatpush.msra.mxu0 0.0
  %3935 = vmatpush.msra.mxu0 %v3861
  %3936 = vmatmul.f32.gmra.mxu0 %v3869
  %v3937 = vpop.f32.mrf.mxu0
  %v3938 = vadd.f32 0.0, %v3937
  %3939 = vmatmul.f32.gmra.mxu0 %v3872
  %v3940 = vpop.f32.mrf.mxu0
  %v3941 = vadd.f32 0.0, %v3940
  %3942 = vdwg.mxu0
  %v3943 = vadd.f32 %v3848, %v3892
  %v3944 = vadd.f32 %v3849, %v3915
  %v3945 = vadd.f32 %v3850, %v3938
  %v3946 = vadd.f32 %v3851, %v3895
  %v3947 = vadd.f32 %v3852, %v3918
  %v3948 = vadd.f32 %v3853, %v3941
  %v3949 = vld [vmem:[%s3 + $0x1d0] sm:$0xff]
  %v3950 = vld [vmem:[%s3 + $0x1d8] sm:$0xff]
  %3951 = vrot.lane.b32.xlu0 %v2791, 102
  %v3952 = vpop.permute.xlu0 %3951
  %3953 = vrot.lane.b32.xlu0 %v2811, 102
  %v3954 = vpop.permute.xlu0 %3953
  %3955 = vrot.lane.b32.xlu0 %v2831, 102
  %v3956 = vpop.permute.xlu0 %3955
  %vm3957 = vcmask 834560
  %v3958 = vsel %vm3957, %v3952, %v3954
  %v3959 = vsel %vm3957, %v3954, %v3956
  %v3964 = vsel %vm738, %v3949, 0
  %v3967 = vsel %vm738, %v3950, 0
  %3969 = vmatpush.msra.mxu0 0.0
  %3970 = vmatpush.msra.mxu0 0.0
  %3971 = vmatpush.msra.mxu0 0.0
  %3972 = vmatpush.msra.mxu0 0.0
  %3973 = vmatpush.msra.mxu0 0.0
  %3974 = vmatpush.msra.mxu0 0.0
  %3975 = vmatpush.msra.mxu0 0.0
  %3976 = vmatpush.msra.mxu0 0.0
  %3977 = vmatpush.msra.mxu0 0.0
  %3978 = vmatpush.msra.mxu0 0.0
  %3979 = vmatpush.msra.mxu0 0.0
  %3980 = vmatpush.msra.mxu0 0.0
  %3981 = vmatpush.msra.mxu0 0.0
  %3982 = vmatpush.msra.mxu0 0.0
  %3983 = vmatpush.msra.mxu0 0.0
  %3984 = vmatpush.msra.mxu0 %v3958
  %3985 = vmatmul.f32.gmra.mxu0 %v3964
  %v3986 = vpop.f32.mrf.mxu0
  %v3987 = vadd.f32 0.0, %v3986
  %3988 = vmatmul.f32.gmra.mxu0 %v3967
  %v3989 = vpop.f32.mrf.mxu0
  %v3990 = vadd.f32 0.0, %v3989
  %3991 = vdwg.mxu0
  %3992 = vmatpush.msra.mxu0 0.0
  %3993 = vmatpush.msra.mxu0 0.0
  %3994 = vmatpush.msra.mxu0 0.0
  %3995 = vmatpush.msra.mxu0 0.0
  %3996 = vmatpush.msra.mxu0 0.0
  %3997 = vmatpush.msra.mxu0 0.0
  %3998 = vmatpush.msra.mxu0 0.0
  %3999 = vmatpush.msra.mxu0 0.0
  %4000 = vmatpush.msra.mxu0 0.0
  %4001 = vmatpush.msra.mxu0 0.0
  %4002 = vmatpush.msra.mxu0 0.0
  %4003 = vmatpush.msra.mxu0 0.0
  %4004 = vmatpush.msra.mxu0 0.0
  %4005 = vmatpush.msra.mxu0 0.0
  %4006 = vmatpush.msra.mxu0 0.0
  %4007 = vmatpush.msra.mxu0 %v3959
  %4008 = vmatmul.f32.gmra.mxu0 %v3964
  %v4009 = vpop.f32.mrf.mxu0
  %v4010 = vadd.f32 0.0, %v4009
  %4011 = vmatmul.f32.gmra.mxu0 %v3967
  %v4012 = vpop.f32.mrf.mxu0
  %v4013 = vadd.f32 0.0, %v4012
  %4014 = vdwg.mxu0
  %4015 = vmatpush.msra.mxu0 0.0
  %4016 = vmatpush.msra.mxu0 0.0
  %4017 = vmatpush.msra.mxu0 0.0
  %4018 = vmatpush.msra.mxu0 0.0
  %4019 = vmatpush.msra.mxu0 0.0
  %4020 = vmatpush.msra.mxu0 0.0
  %4021 = vmatpush.msra.mxu0 0.0
  %4022 = vmatpush.msra.mxu0 0.0
  %4023 = vmatpush.msra.mxu0 0.0
  %4024 = vmatpush.msra.mxu0 0.0
  %4025 = vmatpush.msra.mxu0 0.0
  %4026 = vmatpush.msra.mxu0 0.0
  %4027 = vmatpush.msra.mxu0 0.0
  %4028 = vmatpush.msra.mxu0 0.0
  %4029 = vmatpush.msra.mxu0 0.0
  %4030 = vmatpush.msra.mxu0 %v3956
  %4031 = vmatmul.f32.gmra.mxu0 %v3964
  %v4032 = vpop.f32.mrf.mxu0
  %v4033 = vadd.f32 0.0, %v4032
  %4034 = vmatmul.f32.gmra.mxu0 %v3967
  %v4035 = vpop.f32.mrf.mxu0
  %v4036 = vadd.f32 0.0, %v4035
  %4037 = vdwg.mxu0
  %v4038 = vadd.f32 %v3943, %v3987
  %v4039 = vadd.f32 %v3944, %v4010
  %v4040 = vadd.f32 %v3945, %v4033
  %v4041 = vadd.f32 %v3946, %v3990
  %v4042 = vadd.f32 %v3947, %v4013
  %v4043 = vadd.f32 %v3948, %v4036
  %v4044 = vld [vmem:[%s3 + $0x1e0] sm:$0xff]
  %v4045 = vld [vmem:[%s3 + $0x1e8] sm:$0xff]
  %4046 = vrot.lane.b32.xlu0 %v2791, 101
  %v4047 = vpop.permute.xlu0 %4046
  %4048 = vrot.lane.b32.xlu0 %v2811, 101
  %v4049 = vpop.permute.xlu0 %4048
  %4050 = vrot.lane.b32.xlu0 %v2831, 101
  %v4051 = vpop.permute.xlu0 %4050
  %vm4052 = vcmask 826368
  %v4053 = vsel %vm4052, %v4047, %v4049
  %v4054 = vsel %vm4052, %v4049, %v4051
  %v4059 = vsel %vm738, %v4044, 0
  %v4062 = vsel %vm738, %v4045, 0
  %4064 = vmatpush.msra.mxu0 0.0
  %4065 = vmatpush.msra.mxu0 0.0
  %4066 = vmatpush.msra.mxu0 0.0
  %4067 = vmatpush.msra.mxu0 0.0
  %4068 = vmatpush.msra.mxu0 0.0
  %4069 = vmatpush.msra.mxu0 0.0
  %4070 = vmatpush.msra.mxu0 0.0
  %4071 = vmatpush.msra.mxu0 0.0
  %4072 = vmatpush.msra.mxu0 0.0
  %4073 = vmatpush.msra.mxu0 0.0
  %4074 = vmatpush.msra.mxu0 0.0
  %4075 = vmatpush.msra.mxu0 0.0
  %4076 = vmatpush.msra.mxu0 0.0
  %4077 = vmatpush.msra.mxu0 0.0
  %4078 = vmatpush.msra.mxu0 0.0
  %4079 = vmatpush.msra.mxu0 %v4053
  %4080 = vmatmul.f32.gmra.mxu0 %v4059
  %v4081 = vpop.f32.mrf.mxu0
  %v4082 = vadd.f32 0.0, %v4081
  %4083 = vmatmul.f32.gmra.mxu0 %v4062
  %v4084 = vpop.f32.mrf.mxu0
  %v4085 = vadd.f32 0.0, %v4084
  %4086 = vdwg.mxu0
  %4087 = vmatpush.msra.mxu0 0.0
  %4088 = vmatpush.msra.mxu0 0.0
  %4089 = vmatpush.msra.mxu0 0.0
  %4090 = vmatpush.msra.mxu0 0.0
  %4091 = vmatpush.msra.mxu0 0.0
  %4092 = vmatpush.msra.mxu0 0.0
  %4093 = vmatpush.msra.mxu0 0.0
  %4094 = vmatpush.msra.mxu0 0.0
  %4095 = vmatpush.msra.mxu0 0.0
  %4096 = vmatpush.msra.mxu0 0.0
  %4097 = vmatpush.msra.mxu0 0.0
  %4098 = vmatpush.msra.mxu0 0.0
  %4099 = vmatpush.msra.mxu0 0.0
  %4100 = vmatpush.msra.mxu0 0.0
  %4101 = vmatpush.msra.mxu0 0.0
  %4102 = vmatpush.msra.mxu0 %v4054
  %4103 = vmatmul.f32.gmra.mxu0 %v4059
  %v4104 = vpop.f32.mrf.mxu0
  %v4105 = vadd.f32 0.0, %v4104
  %4106 = vmatmul.f32.gmra.mxu0 %v4062
  %v4107 = vpop.f32.mrf.mxu0
  %v4108 = vadd.f32 0.0, %v4107
  %4109 = vdwg.mxu0
  %4110 = vmatpush.msra.mxu0 0.0
  %4111 = vmatpush.msra.mxu0 0.0
  %4112 = vmatpush.msra.mxu0 0.0
  %4113 = vmatpush.msra.mxu0 0.0
  %4114 = vmatpush.msra.mxu0 0.0
  %4115 = vmatpush.msra.mxu0 0.0
  %4116 = vmatpush.msra.mxu0 0.0
  %4117 = vmatpush.msra.mxu0 0.0
  %4118 = vmatpush.msra.mxu0 0.0
  %4119 = vmatpush.msra.mxu0 0.0
  %4120 = vmatpush.msra.mxu0 0.0
  %4121 = vmatpush.msra.mxu0 0.0
  %4122 = vmatpush.msra.mxu0 0.0
  %4123 = vmatpush.msra.mxu0 0.0
  %4124 = vmatpush.msra.mxu0 0.0
  %4125 = vmatpush.msra.mxu0 %v4051
  %4126 = vmatmul.f32.gmra.mxu0 %v4059
  %v4127 = vpop.f32.mrf.mxu0
  %v4128 = vadd.f32 0.0, %v4127
  %4129 = vmatmul.f32.gmra.mxu0 %v4062
  %v4130 = vpop.f32.mrf.mxu0
  %v4131 = vadd.f32 0.0, %v4130
  %4132 = vdwg.mxu0
  %v4133 = vadd.f32 %v4038, %v4082
  %v4134 = vadd.f32 %v4039, %v4105
  %v4135 = vadd.f32 %v4040, %v4128
  %v4136 = vadd.f32 %v4041, %v4085
  %v4137 = vadd.f32 %v4042, %v4108
  %v4138 = vadd.f32 %v4043, %v4131
  %v4139 = vld [vmem:[%s3 + $0x1f0] sm:$0xff]
  %v4140 = vld [vmem:[%s3 + $0x1f8] sm:$0xff]
  %4141 = vrot.lane.b32.xlu0 %v2791, 100
  %v4142 = vpop.permute.xlu0 %4141
  %4143 = vrot.lane.b32.xlu0 %v2811, 100
  %v4144 = vpop.permute.xlu0 %4143
  %4145 = vrot.lane.b32.xlu0 %v2831, 100
  %v4146 = vpop.permute.xlu0 %4145
  %vm4147 = vcmask 818176
  %v4148 = vsel %vm4147, %v4142, %v4144
  %v4149 = vsel %vm4147, %v4144, %v4146
  %v4154 = vsel %vm738, %v4139, 0
  %v4157 = vsel %vm738, %v4140, 0
  %4159 = vmatpush.msra.mxu0 0.0
  %4160 = vmatpush.msra.mxu0 0.0
  %4161 = vmatpush.msra.mxu0 0.0
  %4162 = vmatpush.msra.mxu0 0.0
  %4163 = vmatpush.msra.mxu0 0.0
  %4164 = vmatpush.msra.mxu0 0.0
  %4165 = vmatpush.msra.mxu0 0.0
  %4166 = vmatpush.msra.mxu0 0.0
  %4167 = vmatpush.msra.mxu0 0.0
  %4168 = vmatpush.msra.mxu0 0.0
  %4169 = vmatpush.msra.mxu0 0.0
  %4170 = vmatpush.msra.mxu0 0.0
  %4171 = vmatpush.msra.mxu0 0.0
  %4172 = vmatpush.msra.mxu0 0.0
  %4173 = vmatpush.msra.mxu0 0.0
  %4174 = vmatpush.msra.mxu0 %v4148
  %4175 = vmatmul.f32.gmra.mxu0 %v4154
  %v4176 = vpop.f32.mrf.mxu0
  %v4177 = vadd.f32 0.0, %v4176
  %4178 = vmatmul.f32.gmra.mxu0 %v4157
  %v4179 = vpop.f32.mrf.mxu0
  %v4180 = vadd.f32 0.0, %v4179
  %4181 = vdwg.mxu0
  %4182 = vmatpush.msra.mxu0 0.0
  %4183 = vmatpush.msra.mxu0 0.0
  %4184 = vmatpush.msra.mxu0 0.0
  %4185 = vmatpush.msra.mxu0 0.0
  %4186 = vmatpush.msra.mxu0 0.0
  %4187 = vmatpush.msra.mxu0 0.0
  %4188 = vmatpush.msra.mxu0 0.0
  %4189 = vmatpush.msra.mxu0 0.0
  %4190 = vmatpush.msra.mxu0 0.0
  %4191 = vmatpush.msra.mxu0 0.0
  %4192 = vmatpush.msra.mxu0 0.0
  %4193 = vmatpush.msra.mxu0 0.0
  %4194 = vmatpush.msra.mxu0 0.0
  %4195 = vmatpush.msra.mxu0 0.0
  %4196 = vmatpush.msra.mxu0 0.0
  %4197 = vmatpush.msra.mxu0 %v4149
  %4198 = vmatmul.f32.gmra.mxu0 %v4154
  %v4199 = vpop.f32.mrf.mxu0
  %v4200 = vadd.f32 0.0, %v4199
  %4201 = vmatmul.f32.gmra.mxu0 %v4157
  %v4202 = vpop.f32.mrf.mxu0
  %v4203 = vadd.f32 0.0, %v4202
  %4204 = vdwg.mxu0
  %4205 = vmatpush.msra.mxu0 0.0
  %4206 = vmatpush.msra.mxu0 0.0
  %4207 = vmatpush.msra.mxu0 0.0
  %4208 = vmatpush.msra.mxu0 0.0
  %4209 = vmatpush.msra.mxu0 0.0
  %4210 = vmatpush.msra.mxu0 0.0
  %4211 = vmatpush.msra.mxu0 0.0
  %4212 = vmatpush.msra.mxu0 0.0
  %4213 = vmatpush.msra.mxu0 0.0
  %4214 = vmatpush.msra.mxu0 0.0
  %4215 = vmatpush.msra.mxu0 0.0
  %4216 = vmatpush.msra.mxu0 0.0
  %4217 = vmatpush.msra.mxu0 0.0
  %4218 = vmatpush.msra.mxu0 0.0
  %4219 = vmatpush.msra.mxu0 0.0
  %4220 = vmatpush.msra.mxu0 %v4146
  %4221 = vmatmul.f32.gmra.mxu0 %v4154
  %v4222 = vpop.f32.mrf.mxu0
  %v4223 = vadd.f32 0.0, %v4222
  %4224 = vmatmul.f32.gmra.mxu0 %v4157
  %v4225 = vpop.f32.mrf.mxu0
  %v4226 = vadd.f32 0.0, %v4225
  %4227 = vdwg.mxu0
  %v4228 = vadd.f32 %v4133, %v4177
  %v4229 = vadd.f32 %v4134, %v4200
  %v4230 = vadd.f32 %v4135, %v4223
  %v4231 = vadd.f32 %v4136, %v4180
  %v4232 = vadd.f32 %v4137, %v4203
  %v4233 = vadd.f32 %v4138, %v4226
  %v4234 = vld [vmem:[%s3 + $0x200] sm:$0xff]
  %v4235 = vld [vmem:[%s3 + $0x208] sm:$0xff]
  %4236 = vrot.lane.b32.xlu0 %v2791, 92
  %v4237 = vpop.permute.xlu0 %4236
  %4238 = vrot.lane.b32.xlu0 %v2811, 92
  %v4239 = vpop.permute.xlu0 %4238
  %4240 = vrot.lane.b32.xlu0 %v2831, 92
  %v4241 = vpop.permute.xlu0 %4240
  %vm4242 = vcmask 752640
  %v4243 = vsel %vm4242, %v4237, %v4239
  %v4244 = vsel %vm4242, %v4239, %v4241
  %v4249 = vsel %vm738, %v4234, 0
  %v4252 = vsel %vm738, %v4235, 0
  %4254 = vmatpush.msra.mxu0 0.0
  %4255 = vmatpush.msra.mxu0 0.0
  %4256 = vmatpush.msra.mxu0 0.0
  %4257 = vmatpush.msra.mxu0 0.0
  %4258 = vmatpush.msra.mxu0 0.0
  %4259 = vmatpush.msra.mxu0 0.0
  %4260 = vmatpush.msra.mxu0 0.0
  %4261 = vmatpush.msra.mxu0 0.0
  %4262 = vmatpush.msra.mxu0 0.0
  %4263 = vmatpush.msra.mxu0 0.0
  %4264 = vmatpush.msra.mxu0 0.0
  %4265 = vmatpush.msra.mxu0 0.0
  %4266 = vmatpush.msra.mxu0 0.0
  %4267 = vmatpush.msra.mxu0 0.0
  %4268 = vmatpush.msra.mxu0 0.0
  %4269 = vmatpush.msra.mxu0 %v4243
  %4270 = vmatmul.f32.gmra.mxu0 %v4249
  %v4271 = vpop.f32.mrf.mxu0
  %v4272 = vadd.f32 0.0, %v4271
  %4273 = vmatmul.f32.gmra.mxu0 %v4252
  %v4274 = vpop.f32.mrf.mxu0
  %v4275 = vadd.f32 0.0, %v4274
  %4276 = vdwg.mxu0
  %4277 = vmatpush.msra.mxu0 0.0
  %4278 = vmatpush.msra.mxu0 0.0
  %4279 = vmatpush.msra.mxu0 0.0
  %4280 = vmatpush.msra.mxu0 0.0
  %4281 = vmatpush.msra.mxu0 0.0
  %4282 = vmatpush.msra.mxu0 0.0
  %4283 = vmatpush.msra.mxu0 0.0
  %4284 = vmatpush.msra.mxu0 0.0
  %4285 = vmatpush.msra.mxu0 0.0
  %4286 = vmatpush.msra.mxu0 0.0
  %4287 = vmatpush.msra.mxu0 0.0
  %4288 = vmatpush.msra.mxu0 0.0
  %4289 = vmatpush.msra.mxu0 0.0
  %4290 = vmatpush.msra.mxu0 0.0
  %4291 = vmatpush.msra.mxu0 0.0
  %4292 = vmatpush.msra.mxu0 %v4244
  %4293 = vmatmul.f32.gmra.mxu0 %v4249
  %v4294 = vpop.f32.mrf.mxu0
  %v4295 = vadd.f32 0.0, %v4294
  %4296 = vmatmul.f32.gmra.mxu0 %v4252
  %v4297 = vpop.f32.mrf.mxu0
  %v4298 = vadd.f32 0.0, %v4297
  %4299 = vdwg.mxu0
  %4300 = vmatpush.msra.mxu0 0.0
  %4301 = vmatpush.msra.mxu0 0.0
  %4302 = vmatpush.msra.mxu0 0.0
  %4303 = vmatpush.msra.mxu0 0.0
  %4304 = vmatpush.msra.mxu0 0.0
  %4305 = vmatpush.msra.mxu0 0.0
  %4306 = vmatpush.msra.mxu0 0.0
  %4307 = vmatpush.msra.mxu0 0.0
  %4308 = vmatpush.msra.mxu0 0.0
  %4309 = vmatpush.msra.mxu0 0.0
  %4310 = vmatpush.msra.mxu0 0.0
  %4311 = vmatpush.msra.mxu0 0.0
  %4312 = vmatpush.msra.mxu0 0.0
  %4313 = vmatpush.msra.mxu0 0.0
  %4314 = vmatpush.msra.mxu0 0.0
  %4315 = vmatpush.msra.mxu0 %v4241
  %4316 = vmatmul.f32.gmra.mxu0 %v4249
  %v4317 = vpop.f32.mrf.mxu0
  %v4318 = vadd.f32 0.0, %v4317
  %4319 = vmatmul.f32.gmra.mxu0 %v4252
  %v4320 = vpop.f32.mrf.mxu0
  %v4321 = vadd.f32 0.0, %v4320
  %4322 = vdwg.mxu0
  %v4323 = vadd.f32 %v4228, %v4272
  %v4324 = vadd.f32 %v4229, %v4295
  %v4325 = vadd.f32 %v4230, %v4318
  %v4326 = vadd.f32 %v4231, %v4275
  %v4327 = vadd.f32 %v4232, %v4298
  %v4328 = vadd.f32 %v4233, %v4321
  %v4329 = vld [vmem:[%s3 + $0x210] sm:$0xff]
  %v4330 = vld [vmem:[%s3 + $0x218] sm:$0xff]
  %4331 = vrot.lane.b32.xlu0 %v2791, 91
  %v4332 = vpop.permute.xlu0 %4331
  %4333 = vrot.lane.b32.xlu0 %v2811, 91
  %v4334 = vpop.permute.xlu0 %4333
  %4335 = vrot.lane.b32.xlu0 %v2831, 91
  %v4336 = vpop.permute.xlu0 %4335
  %vm4337 = vcmask 744448
  %v4338 = vsel %vm4337, %v4332, %v4334
  %v4339 = vsel %vm4337, %v4334, %v4336
  %v4344 = vsel %vm738, %v4329, 0
  %v4347 = vsel %vm738, %v4330, 0
  %4349 = vmatpush.msra.mxu0 0.0
  %4350 = vmatpush.msra.mxu0 0.0
  %4351 = vmatpush.msra.mxu0 0.0
  %4352 = vmatpush.msra.mxu0 0.0
  %4353 = vmatpush.msra.mxu0 0.0
  %4354 = vmatpush.msra.mxu0 0.0
  %4355 = vmatpush.msra.mxu0 0.0
  %4356 = vmatpush.msra.mxu0 0.0
  %4357 = vmatpush.msra.mxu0 0.0
  %4358 = vmatpush.msra.mxu0 0.0
  %4359 = vmatpush.msra.mxu0 0.0
  %4360 = vmatpush.msra.mxu0 0.0
  %4361 = vmatpush.msra.mxu0 0.0
  %4362 = vmatpush.msra.mxu0 0.0
  %4363 = vmatpush.msra.mxu0 0.0
  %4364 = vmatpush.msra.mxu0 %v4338
  %4365 = vmatmul.f32.gmra.mxu0 %v4344
  %v4366 = vpop.f32.mrf.mxu0
  %v4367 = vadd.f32 0.0, %v4366
  %4368 = vmatmul.f32.gmra.mxu0 %v4347
  %v4369 = vpop.f32.mrf.mxu0
  %v4370 = vadd.f32 0.0, %v4369
  %4371 = vdwg.mxu0
  %4372 = vmatpush.msra.mxu0 0.0
  %4373 = vmatpush.msra.mxu0 0.0
  %4374 = vmatpush.msra.mxu0 0.0
  %4375 = vmatpush.msra.mxu0 0.0
  %4376 = vmatpush.msra.mxu0 0.0
  %4377 = vmatpush.msra.mxu0 0.0
  %4378 = vmatpush.msra.mxu0 0.0
  %4379 = vmatpush.msra.mxu0 0.0
  %4380 = vmatpush.msra.mxu0 0.0
  %4381 = vmatpush.msra.mxu0 0.0
  %4382 = vmatpush.msra.mxu0 0.0
  %4383 = vmatpush.msra.mxu0 0.0
  %4384 = vmatpush.msra.mxu0 0.0
  %4385 = vmatpush.msra.mxu0 0.0
  %4386 = vmatpush.msra.mxu0 0.0
  %4387 = vmatpush.msra.mxu0 %v4339
  %4388 = vmatmul.f32.gmra.mxu0 %v4344
  %v4389 = vpop.f32.mrf.mxu0
  %v4390 = vadd.f32 0.0, %v4389
  %4391 = vmatmul.f32.gmra.mxu0 %v4347
  %v4392 = vpop.f32.mrf.mxu0
  %v4393 = vadd.f32 0.0, %v4392
  %4394 = vdwg.mxu0
  %4395 = vmatpush.msra.mxu0 0.0
  %4396 = vmatpush.msra.mxu0 0.0
  %4397 = vmatpush.msra.mxu0 0.0
  %4398 = vmatpush.msra.mxu0 0.0
  %4399 = vmatpush.msra.mxu0 0.0
  %4400 = vmatpush.msra.mxu0 0.0
  %4401 = vmatpush.msra.mxu0 0.0
  %4402 = vmatpush.msra.mxu0 0.0
  %4403 = vmatpush.msra.mxu0 0.0
  %4404 = vmatpush.msra.mxu0 0.0
  %4405 = vmatpush.msra.mxu0 0.0
  %4406 = vmatpush.msra.mxu0 0.0
  %4407 = vmatpush.msra.mxu0 0.0
  %4408 = vmatpush.msra.mxu0 0.0
  %4409 = vmatpush.msra.mxu0 0.0
  %4410 = vmatpush.msra.mxu0 %v4336
  %4411 = vmatmul.f32.gmra.mxu0 %v4344
  %v4412 = vpop.f32.mrf.mxu0
  %v4413 = vadd.f32 0.0, %v4412
  %4414 = vmatmul.f32.gmra.mxu0 %v4347
  %v4415 = vpop.f32.mrf.mxu0
  %v4416 = vadd.f32 0.0, %v4415
  %4417 = vdwg.mxu0
  %v4418 = vadd.f32 %v4323, %v4367
  %v4419 = vadd.f32 %v4324, %v4390
  %v4420 = vadd.f32 %v4325, %v4413
  %v4421 = vadd.f32 %v4326, %v4370
  %v4422 = vadd.f32 %v4327, %v4393
  %v4423 = vadd.f32 %v4328, %v4416
  %v4424 = vld [vmem:[%s3 + $0x220] sm:$0xff]
  %v4425 = vld [vmem:[%s3 + $0x228] sm:$0xff]
  %4426 = vrot.lane.b32.xlu0 %v2791, 90
  %v4427 = vpop.permute.xlu0 %4426
  %4428 = vrot.lane.b32.xlu0 %v2811, 90
  %v4429 = vpop.permute.xlu0 %4428
  %4430 = vrot.lane.b32.xlu0 %v2831, 90
  %v4431 = vpop.permute.xlu0 %4430
  %vm4432 = vcmask 736256
  %v4433 = vsel %vm4432, %v4427, %v4429
  %v4434 = vsel %vm4432, %v4429, %v4431
  %v4439 = vsel %vm738, %v4424, 0
  %v4442 = vsel %vm738, %v4425, 0
  %4444 = vmatpush.msra.mxu0 0.0
  %4445 = vmatpush.msra.mxu0 0.0
  %4446 = vmatpush.msra.mxu0 0.0
  %4447 = vmatpush.msra.mxu0 0.0
  %4448 = vmatpush.msra.mxu0 0.0
  %4449 = vmatpush.msra.mxu0 0.0
  %4450 = vmatpush.msra.mxu0 0.0
  %4451 = vmatpush.msra.mxu0 0.0
  %4452 = vmatpush.msra.mxu0 0.0
  %4453 = vmatpush.msra.mxu0 0.0
  %4454 = vmatpush.msra.mxu0 0.0
  %4455 = vmatpush.msra.mxu0 0.0
  %4456 = vmatpush.msra.mxu0 0.0
  %4457 = vmatpush.msra.mxu0 0.0
  %4458 = vmatpush.msra.mxu0 0.0
  %4459 = vmatpush.msra.mxu0 %v4433
  %4460 = vmatmul.f32.gmra.mxu0 %v4439
  %v4461 = vpop.f32.mrf.mxu0
  %v4462 = vadd.f32 0.0, %v4461
  %4463 = vmatmul.f32.gmra.mxu0 %v4442
  %v4464 = vpop.f32.mrf.mxu0
  %v4465 = vadd.f32 0.0, %v4464
  %4466 = vdwg.mxu0
  %4467 = vmatpush.msra.mxu0 0.0
  %4468 = vmatpush.msra.mxu0 0.0
  %4469 = vmatpush.msra.mxu0 0.0
  %4470 = vmatpush.msra.mxu0 0.0
  %4471 = vmatpush.msra.mxu0 0.0
  %4472 = vmatpush.msra.mxu0 0.0
  %4473 = vmatpush.msra.mxu0 0.0
  %4474 = vmatpush.msra.mxu0 0.0
  %4475 = vmatpush.msra.mxu0 0.0
  %4476 = vmatpush.msra.mxu0 0.0
  %4477 = vmatpush.msra.mxu0 0.0
  %4478 = vmatpush.msra.mxu0 0.0
  %4479 = vmatpush.msra.mxu0 0.0
  %4480 = vmatpush.msra.mxu0 0.0
  %4481 = vmatpush.msra.mxu0 0.0
  %4482 = vmatpush.msra.mxu0 %v4434
  %4483 = vmatmul.f32.gmra.mxu0 %v4439
  %v4484 = vpop.f32.mrf.mxu0
  %v4485 = vadd.f32 0.0, %v4484
  %4486 = vmatmul.f32.gmra.mxu0 %v4442
  %v4487 = vpop.f32.mrf.mxu0
  %v4488 = vadd.f32 0.0, %v4487
  %4489 = vdwg.mxu0
  %4490 = vmatpush.msra.mxu0 0.0
  %4491 = vmatpush.msra.mxu0 0.0
  %4492 = vmatpush.msra.mxu0 0.0
  %4493 = vmatpush.msra.mxu0 0.0
  %4494 = vmatpush.msra.mxu0 0.0
  %4495 = vmatpush.msra.mxu0 0.0
  %4496 = vmatpush.msra.mxu0 0.0
  %4497 = vmatpush.msra.mxu0 0.0
  %4498 = vmatpush.msra.mxu0 0.0
  %4499 = vmatpush.msra.mxu0 0.0
  %4500 = vmatpush.msra.mxu0 0.0
  %4501 = vmatpush.msra.mxu0 0.0
  %4502 = vmatpush.msra.mxu0 0.0
  %4503 = vmatpush.msra.mxu0 0.0
  %4504 = vmatpush.msra.mxu0 0.0
  %4505 = vmatpush.msra.mxu0 %v4431
  %4506 = vmatmul.f32.gmra.mxu0 %v4439
  %v4507 = vpop.f32.mrf.mxu0
  %v4508 = vadd.f32 0.0, %v4507
  %4509 = vmatmul.f32.gmra.mxu0 %v4442
  %v4510 = vpop.f32.mrf.mxu0
  %v4511 = vadd.f32 0.0, %v4510
  %4512 = vdwg.mxu0
  %v4513 = vadd.f32 %v4418, %v4462
  %v4514 = vadd.f32 %v4419, %v4485
  %v4515 = vadd.f32 %v4420, %v4508
  %v4516 = vadd.f32 %v4421, %v4465
  %v4517 = vadd.f32 %v4422, %v4488
  %v4518 = vadd.f32 %v4423, %v4511
  %v4519 = vld [vmem:[%s3 + $0x230] sm:$0xff]
  %v4520 = vld [vmem:[%s3 + $0x238] sm:$0xff]
  %4521 = vrot.lane.b32.xlu0 %v2791, 89
  %v4522 = vpop.permute.xlu0 %4521
  %4523 = vrot.lane.b32.xlu0 %v2811, 89
  %v4524 = vpop.permute.xlu0 %4523
  %4525 = vrot.lane.b32.xlu0 %v2831, 89
  %v4526 = vpop.permute.xlu0 %4525
  %vm4527 = vcmask 728064
  %v4528 = vsel %vm4527, %v4522, %v4524
  %v4529 = vsel %vm4527, %v4524, %v4526
  %v4534 = vsel %vm738, %v4519, 0
  %v4537 = vsel %vm738, %v4520, 0
  %4539 = vmatpush.msra.mxu0 0.0
  %4540 = vmatpush.msra.mxu0 0.0
  %4541 = vmatpush.msra.mxu0 0.0
  %4542 = vmatpush.msra.mxu0 0.0
  %4543 = vmatpush.msra.mxu0 0.0
  %4544 = vmatpush.msra.mxu0 0.0
  %4545 = vmatpush.msra.mxu0 0.0
  %4546 = vmatpush.msra.mxu0 0.0
  %4547 = vmatpush.msra.mxu0 0.0
  %4548 = vmatpush.msra.mxu0 0.0
  %4549 = vmatpush.msra.mxu0 0.0
  %4550 = vmatpush.msra.mxu0 0.0
  %4551 = vmatpush.msra.mxu0 0.0
  %4552 = vmatpush.msra.mxu0 0.0
  %4553 = vmatpush.msra.mxu0 0.0
  %4554 = vmatpush.msra.mxu0 %v4528
  %4555 = vmatmul.f32.gmra.mxu0 %v4534
  %v4556 = vpop.f32.mrf.mxu0
  %v4557 = vadd.f32 0.0, %v4556
  %4558 = vmatmul.f32.gmra.mxu0 %v4537
  %v4559 = vpop.f32.mrf.mxu0
  %v4560 = vadd.f32 0.0, %v4559
  %4561 = vdwg.mxu0
  %4562 = vmatpush.msra.mxu0 0.0
  %4563 = vmatpush.msra.mxu0 0.0
  %4564 = vmatpush.msra.mxu0 0.0
  %4565 = vmatpush.msra.mxu0 0.0
  %4566 = vmatpush.msra.mxu0 0.0
  %4567 = vmatpush.msra.mxu0 0.0
  %4568 = vmatpush.msra.mxu0 0.0
  %4569 = vmatpush.msra.mxu0 0.0
  %4570 = vmatpush.msra.mxu0 0.0
  %4571 = vmatpush.msra.mxu0 0.0
  %4572 = vmatpush.msra.mxu0 0.0
  %4573 = vmatpush.msra.mxu0 0.0
  %4574 = vmatpush.msra.mxu0 0.0
  %4575 = vmatpush.msra.mxu0 0.0
  %4576 = vmatpush.msra.mxu0 0.0
  %4577 = vmatpush.msra.mxu0 %v4529
  %4578 = vmatmul.f32.gmra.mxu0 %v4534
  %v4579 = vpop.f32.mrf.mxu0
  %v4580 = vadd.f32 0.0, %v4579
  %4581 = vmatmul.f32.gmra.mxu0 %v4537
  %v4582 = vpop.f32.mrf.mxu0
  %v4583 = vadd.f32 0.0, %v4582
  %4584 = vdwg.mxu0
  %4585 = vmatpush.msra.mxu0 0.0
  %4586 = vmatpush.msra.mxu0 0.0
  %4587 = vmatpush.msra.mxu0 0.0
  %4588 = vmatpush.msra.mxu0 0.0
  %4589 = vmatpush.msra.mxu0 0.0
  %4590 = vmatpush.msra.mxu0 0.0
  %4591 = vmatpush.msra.mxu0 0.0
  %4592 = vmatpush.msra.mxu0 0.0
  %4593 = vmatpush.msra.mxu0 0.0
  %4594 = vmatpush.msra.mxu0 0.0
  %4595 = vmatpush.msra.mxu0 0.0
  %4596 = vmatpush.msra.mxu0 0.0
  %4597 = vmatpush.msra.mxu0 0.0
  %4598 = vmatpush.msra.mxu0 0.0
  %4599 = vmatpush.msra.mxu0 0.0
  %4600 = vmatpush.msra.mxu0 %v4526
  %4601 = vmatmul.f32.gmra.mxu0 %v4534
  %v4602 = vpop.f32.mrf.mxu0
  %v4603 = vadd.f32 0.0, %v4602
  %4604 = vmatmul.f32.gmra.mxu0 %v4537
  %v4605 = vpop.f32.mrf.mxu0
  %v4606 = vadd.f32 0.0, %v4605
  %4607 = vdwg.mxu0
  %v4608 = vadd.f32 %v4513, %v4557
  %v4609 = vadd.f32 %v4514, %v4580
  %v4610 = vadd.f32 %v4515, %v4603
  %v4611 = vadd.f32 %v4516, %v4560
  %v4612 = vadd.f32 %v4517, %v4583
  %v4613 = vadd.f32 %v4518, %v4606
  %v4614 = vld [vmem:[%s3 + $0x240] sm:$0xff]
  %v4615 = vld [vmem:[%s3 + $0x248] sm:$0xff]
  %4616 = vrot.lane.b32.xlu0 %v2791, 88
  %v4617 = vpop.permute.xlu0 %4616
  %4618 = vrot.lane.b32.xlu0 %v2811, 88
  %v4619 = vpop.permute.xlu0 %4618
  %4620 = vrot.lane.b32.xlu0 %v2831, 88
  %v4621 = vpop.permute.xlu0 %4620
  %vm4622 = vcmask 719872
  %v4623 = vsel %vm4622, %v4617, %v4619
  %v4624 = vsel %vm4622, %v4619, %v4621
  %v4629 = vsel %vm738, %v4614, 0
  %v4632 = vsel %vm738, %v4615, 0
  %4634 = vmatpush.msra.mxu0 0.0
  %4635 = vmatpush.msra.mxu0 0.0
  %4636 = vmatpush.msra.mxu0 0.0
  %4637 = vmatpush.msra.mxu0 0.0
  %4638 = vmatpush.msra.mxu0 0.0
  %4639 = vmatpush.msra.mxu0 0.0
  %4640 = vmatpush.msra.mxu0 0.0
  %4641 = vmatpush.msra.mxu0 0.0
  %4642 = vmatpush.msra.mxu0 0.0
  %4643 = vmatpush.msra.mxu0 0.0
  %4644 = vmatpush.msra.mxu0 0.0
  %4645 = vmatpush.msra.mxu0 0.0
  %4646 = vmatpush.msra.mxu0 0.0
  %4647 = vmatpush.msra.mxu0 0.0
  %4648 = vmatpush.msra.mxu0 0.0
  %4649 = vmatpush.msra.mxu0 %v4623
  %4650 = vmatmul.f32.gmra.mxu0 %v4629
  %v4651 = vpop.f32.mrf.mxu0
  %v4652 = vadd.f32 0.0, %v4651
  %4653 = vmatmul.f32.gmra.mxu0 %v4632
  %v4654 = vpop.f32.mrf.mxu0
  %v4655 = vadd.f32 0.0, %v4654
  %4656 = vdwg.mxu0
  %4657 = vmatpush.msra.mxu0 0.0
  %4658 = vmatpush.msra.mxu0 0.0
  %4659 = vmatpush.msra.mxu0 0.0
  %4660 = vmatpush.msra.mxu0 0.0
  %4661 = vmatpush.msra.mxu0 0.0
  %4662 = vmatpush.msra.mxu0 0.0
  %4663 = vmatpush.msra.mxu0 0.0
  %4664 = vmatpush.msra.mxu0 0.0
  %4665 = vmatpush.msra.mxu0 0.0
  %4666 = vmatpush.msra.mxu0 0.0
  %4667 = vmatpush.msra.mxu0 0.0
  %4668 = vmatpush.msra.mxu0 0.0
  %4669 = vmatpush.msra.mxu0 0.0
  %4670 = vmatpush.msra.mxu0 0.0
  %4671 = vmatpush.msra.mxu0 0.0
  %4672 = vmatpush.msra.mxu0 %v4624
  %4673 = vmatmul.f32.gmra.mxu0 %v4629
  %v4674 = vpop.f32.mrf.mxu0
  %v4675 = vadd.f32 0.0, %v4674
  %4676 = vmatmul.f32.gmra.mxu0 %v4632
  %v4677 = vpop.f32.mrf.mxu0
  %v4678 = vadd.f32 0.0, %v4677
  %4679 = vdwg.mxu0
  %4680 = vmatpush.msra.mxu0 0.0
  %4681 = vmatpush.msra.mxu0 0.0
  %4682 = vmatpush.msra.mxu0 0.0
  %4683 = vmatpush.msra.mxu0 0.0
  %4684 = vmatpush.msra.mxu0 0.0
  %4685 = vmatpush.msra.mxu0 0.0
  %4686 = vmatpush.msra.mxu0 0.0
  %4687 = vmatpush.msra.mxu0 0.0
  %4688 = vmatpush.msra.mxu0 0.0
  %4689 = vmatpush.msra.mxu0 0.0
  %4690 = vmatpush.msra.mxu0 0.0
  %4691 = vmatpush.msra.mxu0 0.0
  %4692 = vmatpush.msra.mxu0 0.0
  %4693 = vmatpush.msra.mxu0 0.0
  %4694 = vmatpush.msra.mxu0 0.0
  %4695 = vmatpush.msra.mxu0 %v4621
  %4696 = vmatmul.f32.gmra.mxu0 %v4629
  %v4697 = vpop.f32.mrf.mxu0
  %v4698 = vadd.f32 0.0, %v4697
  %4699 = vmatmul.f32.gmra.mxu0 %v4632
  %v4700 = vpop.f32.mrf.mxu0
  %v4701 = vadd.f32 0.0, %v4700
  %4702 = vdwg.mxu0
  %v4703 = vadd.f32 %v4608, %v4652
  %v4704 = vadd.f32 %v4609, %v4675
  %v4705 = vadd.f32 %v4610, %v4698
  %v4706 = vadd.f32 %v4611, %v4655
  %v4707 = vadd.f32 %v4612, %v4678
  %v4708 = vadd.f32 %v4613, %v4701
  %v4709 = vld [vmem:[%s3 + $0x250] sm:$0xff]
  %v4710 = vld [vmem:[%s3 + $0x258] sm:$0xff]
  %4711 = vrot.lane.b32.xlu0 %v2791, 80
  %v4712 = vpop.permute.xlu0 %4711
  %4713 = vrot.lane.b32.xlu0 %v2811, 80
  %v4714 = vpop.permute.xlu0 %4713
  %4715 = vrot.lane.b32.xlu0 %v2831, 80
  %v4716 = vpop.permute.xlu0 %4715
  %vm4717 = vcmask 654336
  %v4718 = vsel %vm4717, %v4712, %v4714
  %v4719 = vsel %vm4717, %v4714, %v4716
  %v4724 = vsel %vm738, %v4709, 0
  %v4727 = vsel %vm738, %v4710, 0
  %4729 = vmatpush.msra.mxu0 0.0
  %4730 = vmatpush.msra.mxu0 0.0
  %4731 = vmatpush.msra.mxu0 0.0
  %4732 = vmatpush.msra.mxu0 0.0
  %4733 = vmatpush.msra.mxu0 0.0
  %4734 = vmatpush.msra.mxu0 0.0
  %4735 = vmatpush.msra.mxu0 0.0
  %4736 = vmatpush.msra.mxu0 0.0
  %4737 = vmatpush.msra.mxu0 0.0
  %4738 = vmatpush.msra.mxu0 0.0
  %4739 = vmatpush.msra.mxu0 0.0
  %4740 = vmatpush.msra.mxu0 0.0
  %4741 = vmatpush.msra.mxu0 0.0
  %4742 = vmatpush.msra.mxu0 0.0
  %4743 = vmatpush.msra.mxu0 0.0
  %4744 = vmatpush.msra.mxu0 %v4718
  %4745 = vmatmul.f32.gmra.mxu0 %v4724
  %v4746 = vpop.f32.mrf.mxu0
  %v4747 = vadd.f32 0.0, %v4746
  %4748 = vmatmul.f32.gmra.mxu0 %v4727
  %v4749 = vpop.f32.mrf.mxu0
  %v4750 = vadd.f32 0.0, %v4749
  %4751 = vdwg.mxu0
  %4752 = vmatpush.msra.mxu0 0.0
  %4753 = vmatpush.msra.mxu0 0.0
  %4754 = vmatpush.msra.mxu0 0.0
  %4755 = vmatpush.msra.mxu0 0.0
  %4756 = vmatpush.msra.mxu0 0.0
  %4757 = vmatpush.msra.mxu0 0.0
  %4758 = vmatpush.msra.mxu0 0.0
  %4759 = vmatpush.msra.mxu0 0.0
  %4760 = vmatpush.msra.mxu0 0.0
  %4761 = vmatpush.msra.mxu0 0.0
  %4762 = vmatpush.msra.mxu0 0.0
  %4763 = vmatpush.msra.mxu0 0.0
  %4764 = vmatpush.msra.mxu0 0.0
  %4765 = vmatpush.msra.mxu0 0.0
  %4766 = vmatpush.msra.mxu0 0.0
  %4767 = vmatpush.msra.mxu0 %v4719
  %4768 = vmatmul.f32.gmra.mxu0 %v4724
  %v4769 = vpop.f32.mrf.mxu0
  %v4770 = vadd.f32 0.0, %v4769
  %4771 = vmatmul.f32.gmra.mxu0 %v4727
  %v4772 = vpop.f32.mrf.mxu0
  %v4773 = vadd.f32 0.0, %v4772
  %4774 = vdwg.mxu0
  %4775 = vmatpush.msra.mxu0 0.0
  %4776 = vmatpush.msra.mxu0 0.0
  %4777 = vmatpush.msra.mxu0 0.0
  %4778 = vmatpush.msra.mxu0 0.0
  %4779 = vmatpush.msra.mxu0 0.0
  %4780 = vmatpush.msra.mxu0 0.0
  %4781 = vmatpush.msra.mxu0 0.0
  %4782 = vmatpush.msra.mxu0 0.0
  %4783 = vmatpush.msra.mxu0 0.0
  %4784 = vmatpush.msra.mxu0 0.0
  %4785 = vmatpush.msra.mxu0 0.0
  %4786 = vmatpush.msra.mxu0 0.0
  %4787 = vmatpush.msra.mxu0 0.0
  %4788 = vmatpush.msra.mxu0 0.0
  %4789 = vmatpush.msra.mxu0 0.0
  %4790 = vmatpush.msra.mxu0 %v4716
  %4791 = vmatmul.f32.gmra.mxu0 %v4724
  %v4792 = vpop.f32.mrf.mxu0
  %v4793 = vadd.f32 0.0, %v4792
  %4794 = vmatmul.f32.gmra.mxu0 %v4727
  %v4795 = vpop.f32.mrf.mxu0
  %v4796 = vadd.f32 0.0, %v4795
  %4797 = vdwg.mxu0
  %v4798 = vadd.f32 %v4703, %v4747
  %v4799 = vadd.f32 %v4704, %v4770
  %v4800 = vadd.f32 %v4705, %v4793
  %v4801 = vadd.f32 %v4706, %v4750
  %v4802 = vadd.f32 %v4707, %v4773
  %v4803 = vadd.f32 %v4708, %v4796
  %v4804 = vld [vmem:[%s3 + $0x260] sm:$0xff]
  %v4805 = vld [vmem:[%s3 + $0x268] sm:$0xff]
  %4806 = vrot.lane.b32.xlu0 %v2791, 79
  %v4807 = vpop.permute.xlu0 %4806
  %4808 = vrot.lane.b32.xlu0 %v2811, 79
  %v4809 = vpop.permute.xlu0 %4808
  %4810 = vrot.lane.b32.xlu0 %v2831, 79
  %v4811 = vpop.permute.xlu0 %4810
  %vm4812 = vcmask 646144
  %v4813 = vsel %vm4812, %v4807, %v4809
  %v4814 = vsel %vm4812, %v4809, %v4811
  %v4819 = vsel %vm738, %v4804, 0
  %v4822 = vsel %vm738, %v4805, 0
  %4824 = vmatpush.msra.mxu0 0.0
  %4825 = vmatpush.msra.mxu0 0.0
  %4826 = vmatpush.msra.mxu0 0.0
  %4827 = vmatpush.msra.mxu0 0.0
  %4828 = vmatpush.msra.mxu0 0.0
  %4829 = vmatpush.msra.mxu0 0.0
  %4830 = vmatpush.msra.mxu0 0.0
  %4831 = vmatpush.msra.mxu0 0.0
  %4832 = vmatpush.msra.mxu0 0.0
  %4833 = vmatpush.msra.mxu0 0.0
  %4834 = vmatpush.msra.mxu0 0.0
  %4835 = vmatpush.msra.mxu0 0.0
  %4836 = vmatpush.msra.mxu0 0.0
  %4837 = vmatpush.msra.mxu0 0.0
  %4838 = vmatpush.msra.mxu0 0.0
  %4839 = vmatpush.msra.mxu0 %v4813
  %4840 = vmatmul.f32.gmra.mxu0 %v4819
  %v4841 = vpop.f32.mrf.mxu0
  %v4842 = vadd.f32 0.0, %v4841
  %4843 = vmatmul.f32.gmra.mxu0 %v4822
  %v4844 = vpop.f32.mrf.mxu0
  %v4845 = vadd.f32 0.0, %v4844
  %4846 = vdwg.mxu0
  %4847 = vmatpush.msra.mxu0 0.0
  %4848 = vmatpush.msra.mxu0 0.0
  %4849 = vmatpush.msra.mxu0 0.0
  %4850 = vmatpush.msra.mxu0 0.0
  %4851 = vmatpush.msra.mxu0 0.0
  %4852 = vmatpush.msra.mxu0 0.0
  %4853 = vmatpush.msra.mxu0 0.0
  %4854 = vmatpush.msra.mxu0 0.0
  %4855 = vmatpush.msra.mxu0 0.0
  %4856 = vmatpush.msra.mxu0 0.0
  %4857 = vmatpush.msra.mxu0 0.0
  %4858 = vmatpush.msra.mxu0 0.0
  %4859 = vmatpush.msra.mxu0 0.0
  %4860 = vmatpush.msra.mxu0 0.0
  %4861 = vmatpush.msra.mxu0 0.0
  %4862 = vmatpush.msra.mxu0 %v4814
  %4863 = vmatmul.f32.gmra.mxu0 %v4819
  %v4864 = vpop.f32.mrf.mxu0
  %v4865 = vadd.f32 0.0, %v4864
  %4866 = vmatmul.f32.gmra.mxu0 %v4822
  %v4867 = vpop.f32.mrf.mxu0
  %v4868 = vadd.f32 0.0, %v4867
  %4869 = vdwg.mxu0
  %4870 = vmatpush.msra.mxu0 0.0
  %4871 = vmatpush.msra.mxu0 0.0
  %4872 = vmatpush.msra.mxu0 0.0
  %4873 = vmatpush.msra.mxu0 0.0
  %4874 = vmatpush.msra.mxu0 0.0
  %4875 = vmatpush.msra.mxu0 0.0
  %4876 = vmatpush.msra.mxu0 0.0
  %4877 = vmatpush.msra.mxu0 0.0
  %4878 = vmatpush.msra.mxu0 0.0
  %4879 = vmatpush.msra.mxu0 0.0
  %4880 = vmatpush.msra.mxu0 0.0
  %4881 = vmatpush.msra.mxu0 0.0
  %4882 = vmatpush.msra.mxu0 0.0
  %4883 = vmatpush.msra.mxu0 0.0
  %4884 = vmatpush.msra.mxu0 0.0
  %4885 = vmatpush.msra.mxu0 %v4811
  %4886 = vmatmul.f32.gmra.mxu0 %v4819
  %v4887 = vpop.f32.mrf.mxu0
  %v4888 = vadd.f32 0.0, %v4887
  %4889 = vmatmul.f32.gmra.mxu0 %v4822
  %v4890 = vpop.f32.mrf.mxu0
  %v4891 = vadd.f32 0.0, %v4890
  %4892 = vdwg.mxu0
  %v4893 = vadd.f32 %v4798, %v4842
  %v4894 = vadd.f32 %v4799, %v4865
  %v4895 = vadd.f32 %v4800, %v4888
  %v4896 = vadd.f32 %v4801, %v4845
  %v4897 = vadd.f32 %v4802, %v4868
  %v4898 = vadd.f32 %v4803, %v4891
  %v4899 = vld [vmem:[%s3 + $0x270] sm:$0xff]
  %v4900 = vld [vmem:[%s3 + $0x278] sm:$0xff]
  %4901 = vrot.lane.b32.xlu0 %v2791, 78
  %v4902 = vpop.permute.xlu0 %4901
  %4903 = vrot.lane.b32.xlu0 %v2811, 78
  %v4904 = vpop.permute.xlu0 %4903
  %4905 = vrot.lane.b32.xlu0 %v2831, 78
  %v4906 = vpop.permute.xlu0 %4905
  %vm4907 = vcmask 637952
  %v4908 = vsel %vm4907, %v4902, %v4904
  %v4909 = vsel %vm4907, %v4904, %v4906
  %v4914 = vsel %vm738, %v4899, 0
  %v4917 = vsel %vm738, %v4900, 0
  %4919 = vmatpush.msra.mxu0 0.0
  %4920 = vmatpush.msra.mxu0 0.0
  %4921 = vmatpush.msra.mxu0 0.0
  %4922 = vmatpush.msra.mxu0 0.0
  %4923 = vmatpush.msra.mxu0 0.0
  %4924 = vmatpush.msra.mxu0 0.0
  %4925 = vmatpush.msra.mxu0 0.0
  %4926 = vmatpush.msra.mxu0 0.0
  %4927 = vmatpush.msra.mxu0 0.0
  %4928 = vmatpush.msra.mxu0 0.0
  %4929 = vmatpush.msra.mxu0 0.0
  %4930 = vmatpush.msra.mxu0 0.0
  %4931 = vmatpush.msra.mxu0 0.0
  %4932 = vmatpush.msra.mxu0 0.0
  %4933 = vmatpush.msra.mxu0 0.0
  %4934 = vmatpush.msra.mxu0 %v4908
  %4935 = vmatmul.f32.gmra.mxu0 %v4914
  %v4936 = vpop.f32.mrf.mxu0
  %v4937 = vadd.f32 0.0, %v4936
  %4938 = vmatmul.f32.gmra.mxu0 %v4917
  %v4939 = vpop.f32.mrf.mxu0
  %v4940 = vadd.f32 0.0, %v4939
  %4941 = vdwg.mxu0
  %4942 = vmatpush.msra.mxu0 0.0
  %4943 = vmatpush.msra.mxu0 0.0
  %4944 = vmatpush.msra.mxu0 0.0
  %4945 = vmatpush.msra.mxu0 0.0
  %4946 = vmatpush.msra.mxu0 0.0
  %4947 = vmatpush.msra.mxu0 0.0
  %4948 = vmatpush.msra.mxu0 0.0
  %4949 = vmatpush.msra.mxu0 0.0
  %4950 = vmatpush.msra.mxu0 0.0
  %4951 = vmatpush.msra.mxu0 0.0
  %4952 = vmatpush.msra.mxu0 0.0
  %4953 = vmatpush.msra.mxu0 0.0
  %4954 = vmatpush.msra.mxu0 0.0
  %4955 = vmatpush.msra.mxu0 0.0
  %4956 = vmatpush.msra.mxu0 0.0
  %4957 = vmatpush.msra.mxu0 %v4909
  %4958 = vmatmul.f32.gmra.mxu0 %v4914
  %v4959 = vpop.f32.mrf.mxu0
  %v4960 = vadd.f32 0.0, %v4959
  %4961 = vmatmul.f32.gmra.mxu0 %v4917
  %v4962 = vpop.f32.mrf.mxu0
  %v4963 = vadd.f32 0.0, %v4962
  %4964 = vdwg.mxu0
  %4965 = vmatpush.msra.mxu0 0.0
  %4966 = vmatpush.msra.mxu0 0.0
  %4967 = vmatpush.msra.mxu0 0.0
  %4968 = vmatpush.msra.mxu0 0.0
  %4969 = vmatpush.msra.mxu0 0.0
  %4970 = vmatpush.msra.mxu0 0.0
  %4971 = vmatpush.msra.mxu0 0.0
  %4972 = vmatpush.msra.mxu0 0.0
  %4973 = vmatpush.msra.mxu0 0.0
  %4974 = vmatpush.msra.mxu0 0.0
  %4975 = vmatpush.msra.mxu0 0.0
  %4976 = vmatpush.msra.mxu0 0.0
  %4977 = vmatpush.msra.mxu0 0.0
  %4978 = vmatpush.msra.mxu0 0.0
  %4979 = vmatpush.msra.mxu0 0.0
  %4980 = vmatpush.msra.mxu0 %v4906
  %4981 = vmatmul.f32.gmra.mxu0 %v4914
  %v4982 = vpop.f32.mrf.mxu0
  %v4983 = vadd.f32 0.0, %v4982
  %4984 = vmatmul.f32.gmra.mxu0 %v4917
  %v4985 = vpop.f32.mrf.mxu0
  %v4986 = vadd.f32 0.0, %v4985
  %4987 = vdwg.mxu0
  %v4988 = vadd.f32 %v4893, %v4937
  %v4989 = vadd.f32 %v4894, %v4960
  %v4990 = vadd.f32 %v4895, %v4983
  %v4991 = vadd.f32 %v4896, %v4940
  %v4992 = vadd.f32 %v4897, %v4963
  %v4993 = vadd.f32 %v4898, %v4986
  %v4994 = vld [vmem:[%s3 + $0x280] sm:$0xff]
  %v4995 = vld [vmem:[%s3 + $0x288] sm:$0xff]
  %4996 = vrot.lane.b32.xlu0 %v2791, 77
  %v4997 = vpop.permute.xlu0 %4996
  %4998 = vrot.lane.b32.xlu0 %v2811, 77
  %v4999 = vpop.permute.xlu0 %4998
  %5000 = vrot.lane.b32.xlu0 %v2831, 77
  %v5001 = vpop.permute.xlu0 %5000
  %vm5002 = vcmask 629760
  %v5003 = vsel %vm5002, %v4997, %v4999
  %v5004 = vsel %vm5002, %v4999, %v5001
  %v5009 = vsel %vm738, %v4994, 0
  %v5012 = vsel %vm738, %v4995, 0
  %5014 = vmatpush.msra.mxu0 0.0
  %5015 = vmatpush.msra.mxu0 0.0
  %5016 = vmatpush.msra.mxu0 0.0
  %5017 = vmatpush.msra.mxu0 0.0
  %5018 = vmatpush.msra.mxu0 0.0
  %5019 = vmatpush.msra.mxu0 0.0
  %5020 = vmatpush.msra.mxu0 0.0
  %5021 = vmatpush.msra.mxu0 0.0
  %5022 = vmatpush.msra.mxu0 0.0
  %5023 = vmatpush.msra.mxu0 0.0
  %5024 = vmatpush.msra.mxu0 0.0
  %5025 = vmatpush.msra.mxu0 0.0
  %5026 = vmatpush.msra.mxu0 0.0
  %5027 = vmatpush.msra.mxu0 0.0
  %5028 = vmatpush.msra.mxu0 0.0
  %5029 = vmatpush.msra.mxu0 %v5003
  %5030 = vmatmul.f32.gmra.mxu0 %v5009
  %v5031 = vpop.f32.mrf.mxu0
  %v5032 = vadd.f32 0.0, %v5031
  %5033 = vmatmul.f32.gmra.mxu0 %v5012
  %v5034 = vpop.f32.mrf.mxu0
  %v5035 = vadd.f32 0.0, %v5034
  %5036 = vdwg.mxu0
  %5037 = vmatpush.msra.mxu0 0.0
  %5038 = vmatpush.msra.mxu0 0.0
  %5039 = vmatpush.msra.mxu0 0.0
  %5040 = vmatpush.msra.mxu0 0.0
  %5041 = vmatpush.msra.mxu0 0.0
  %5042 = vmatpush.msra.mxu0 0.0
  %5043 = vmatpush.msra.mxu0 0.0
  %5044 = vmatpush.msra.mxu0 0.0
  %5045 = vmatpush.msra.mxu0 0.0
  %5046 = vmatpush.msra.mxu0 0.0
  %5047 = vmatpush.msra.mxu0 0.0
  %5048 = vmatpush.msra.mxu0 0.0
  %5049 = vmatpush.msra.mxu0 0.0
  %5050 = vmatpush.msra.mxu0 0.0
  %5051 = vmatpush.msra.mxu0 0.0
  %5052 = vmatpush.msra.mxu0 %v5004
  %5053 = vmatmul.f32.gmra.mxu0 %v5009
  %v5054 = vpop.f32.mrf.mxu0
  %v5055 = vadd.f32 0.0, %v5054
  %5056 = vmatmul.f32.gmra.mxu0 %v5012
  %v5057 = vpop.f32.mrf.mxu0
  %v5058 = vadd.f32 0.0, %v5057
  %5059 = vdwg.mxu0
  %5060 = vmatpush.msra.mxu0 0.0
  %5061 = vmatpush.msra.mxu0 0.0
  %5062 = vmatpush.msra.mxu0 0.0
  %5063 = vmatpush.msra.mxu0 0.0
  %5064 = vmatpush.msra.mxu0 0.0
  %5065 = vmatpush.msra.mxu0 0.0
  %5066 = vmatpush.msra.mxu0 0.0
  %5067 = vmatpush.msra.mxu0 0.0
  %5068 = vmatpush.msra.mxu0 0.0
  %5069 = vmatpush.msra.mxu0 0.0
  %5070 = vmatpush.msra.mxu0 0.0
  %5071 = vmatpush.msra.mxu0 0.0
  %5072 = vmatpush.msra.mxu0 0.0
  %5073 = vmatpush.msra.mxu0 0.0
  %5074 = vmatpush.msra.mxu0 0.0
  %5075 = vmatpush.msra.mxu0 %v5001
  %5076 = vmatmul.f32.gmra.mxu0 %v5009
  %v5077 = vpop.f32.mrf.mxu0
  %v5078 = vadd.f32 0.0, %v5077
  %5079 = vmatmul.f32.gmra.mxu0 %v5012
  %v5080 = vpop.f32.mrf.mxu0
  %v5081 = vadd.f32 0.0, %v5080
  %5082 = vdwg.mxu0
  %v5083 = vadd.f32 %v4988, %v5032
  %v5084 = vadd.f32 %v4989, %v5055
  %v5085 = vadd.f32 %v4990, %v5078
  %v5086 = vadd.f32 %v4991, %v5035
  %v5087 = vadd.f32 %v4992, %v5058
  %v5088 = vadd.f32 %v4993, %v5081
  %v5089 = vld [vmem:[%s3 + $0x290] sm:$0xff]
  %v5090 = vld [vmem:[%s3 + $0x298] sm:$0xff]
  %5091 = vrot.lane.b32.xlu0 %v2791, 76
  %v5092 = vpop.permute.xlu0 %5091
  %5093 = vrot.lane.b32.xlu0 %v2811, 76
  %v5094 = vpop.permute.xlu0 %5093
  %5095 = vrot.lane.b32.xlu0 %v2831, 76
  %v5096 = vpop.permute.xlu0 %5095
  %vm5097 = vcmask 621568
  %v5098 = vsel %vm5097, %v5092, %v5094
  %v5099 = vsel %vm5097, %v5094, %v5096
  %v5104 = vsel %vm738, %v5089, 0
  %v5107 = vsel %vm738, %v5090, 0
  %5109 = vmatpush.msra.mxu0 0.0
  %5110 = vmatpush.msra.mxu0 0.0
  %5111 = vmatpush.msra.mxu0 0.0
  %5112 = vmatpush.msra.mxu0 0.0
  %5113 = vmatpush.msra.mxu0 0.0
  %5114 = vmatpush.msra.mxu0 0.0
  %5115 = vmatpush.msra.mxu0 0.0
  %5116 = vmatpush.msra.mxu0 0.0
  %5117 = vmatpush.msra.mxu0 0.0
  %5118 = vmatpush.msra.mxu0 0.0
  %5119 = vmatpush.msra.mxu0 0.0
  %5120 = vmatpush.msra.mxu0 0.0
  %5121 = vmatpush.msra.mxu0 0.0
  %5122 = vmatpush.msra.mxu0 0.0
  %5123 = vmatpush.msra.mxu0 0.0
  %5124 = vmatpush.msra.mxu0 %v5098
  %5125 = vmatmul.f32.gmra.mxu0 %v5104
  %v5126 = vpop.f32.mrf.mxu0
  %v5127 = vadd.f32 0.0, %v5126
  %5128 = vmatmul.f32.gmra.mxu0 %v5107
  %v5129 = vpop.f32.mrf.mxu0
  %v5130 = vadd.f32 0.0, %v5129
  %5131 = vdwg.mxu0
  %5132 = vmatpush.msra.mxu0 0.0
  %5133 = vmatpush.msra.mxu0 0.0
  %5134 = vmatpush.msra.mxu0 0.0
  %5135 = vmatpush.msra.mxu0 0.0
  %5136 = vmatpush.msra.mxu0 0.0
  %5137 = vmatpush.msra.mxu0 0.0
  %5138 = vmatpush.msra.mxu0 0.0
  %5139 = vmatpush.msra.mxu0 0.0
  %5140 = vmatpush.msra.mxu0 0.0
  %5141 = vmatpush.msra.mxu0 0.0
  %5142 = vmatpush.msra.mxu0 0.0
  %5143 = vmatpush.msra.mxu0 0.0
  %5144 = vmatpush.msra.mxu0 0.0
  %5145 = vmatpush.msra.mxu0 0.0
  %5146 = vmatpush.msra.mxu0 0.0
  %5147 = vmatpush.msra.mxu0 %v5099
  %5148 = vmatmul.f32.gmra.mxu0 %v5104
  %v5149 = vpop.f32.mrf.mxu0
  %v5150 = vadd.f32 0.0, %v5149
  %5151 = vmatmul.f32.gmra.mxu0 %v5107
  %v5152 = vpop.f32.mrf.mxu0
  %v5153 = vadd.f32 0.0, %v5152
  %5154 = vdwg.mxu0
  %5155 = vmatpush.msra.mxu0 0.0
  %5156 = vmatpush.msra.mxu0 0.0
  %5157 = vmatpush.msra.mxu0 0.0
  %5158 = vmatpush.msra.mxu0 0.0
  %5159 = vmatpush.msra.mxu0 0.0
  %5160 = vmatpush.msra.mxu0 0.0
  %5161 = vmatpush.msra.mxu0 0.0
  %5162 = vmatpush.msra.mxu0 0.0
  %5163 = vmatpush.msra.mxu0 0.0
  %5164 = vmatpush.msra.mxu0 0.0
  %5165 = vmatpush.msra.mxu0 0.0
  %5166 = vmatpush.msra.mxu0 0.0
  %5167 = vmatpush.msra.mxu0 0.0
  %5168 = vmatpush.msra.mxu0 0.0
  %5169 = vmatpush.msra.mxu0 0.0
  %5170 = vmatpush.msra.mxu0 %v5096
  %5171 = vmatmul.f32.gmra.mxu0 %v5104
  %v5172 = vpop.f32.mrf.mxu0
  %v5173 = vadd.f32 0.0, %v5172
  %5174 = vmatmul.f32.gmra.mxu0 %v5107
  %v5175 = vpop.f32.mrf.mxu0
  %v5176 = vadd.f32 0.0, %v5175
  %5177 = vdwg.mxu0
  %v5178 = vadd.f32 %v5083, %v5127
  %v5179 = vadd.f32 %v5084, %v5150
  %v5180 = vadd.f32 %v5085, %v5173
  %v5181 = vadd.f32 %v5086, %v5130
  %v5182 = vadd.f32 %v5087, %v5153
  %v5183 = vadd.f32 %v5088, %v5176
  %v5184 = vld [vmem:[%s8] sm:$0xff]
  %v5185 = vld [vmem:[%s8 + $0x8] sm:$0xff]
  %v5186 = vld [vmem:[%s8 + $0x10] sm:$0xff]
  %v5187 = vld [vmem:[%s8 + $0x18] sm:$0xff]
  %v5188 = vld [vmem:[%s8 + $0x20] sm:$0xff]
  %v5189 = vld [vmem:[%s8 + $0x28] sm:$0xff]
  %v5190 = vld [vmem:[%s8 + $0x30] sm:$0xff]
  %v5191 = vld [vmem:[%s8 + $0x38] sm:$0xff]
  %v5192 = vld [vmem:[%s8 + $0x40] sm:$0xff]
  %v5193 = vld [vmem:[%s8 + $0x48] sm:$0xff]
  %v5194 = vld [vmem:[%s8 + $0x50] sm:$0xff]
  %v5195 = vld [vmem:[%s8 + $0x58] sm:$0xff]
  %v5196 = vld [vmem:[%s8 + $0x60] sm:$0xff]
  %v5197 = vld [vmem:[%s8 + $0x68] sm:$0xff]
  %v5198 = vld [vmem:[%s8 + $0x70] sm:$0xff]
  %v5199 = vld [vmem:[%s8 + $0x78] sm:$0xff]
  %v5200 = vld [vmem:[%s8 + $0x80] sm:$0xff]
  %v5201 = vld [vmem:[%s8 + $0x88] sm:$0xff]
  %v5202 = vld [vmem:[%s8 + $0x90] sm:$0xff]
  %v5203 = vld [vmem:[%s8 + $0x98] sm:$0xff]
  %v5204 = vld [vmem:[%s8 + $0xa0] sm:$0xff]
  %v5205 = vld [vmem:[%s8 + $0xa8] sm:$0xff]
  %v5206 = vld [vmem:[%s8 + $0xb0] sm:$0xff]
  %v5207 = vld [vmem:[%s8 + $0xb8] sm:$0xff]
  %v5208 = vld [vmem:[%s8 + $0xc0] sm:$0xff]
  %v5209 = vld [vmem:[%s8 + $0xc8] sm:$0xff]
  %v5210 = vld [vmem:[%s8 + $0xd0] sm:$0xff]
  %v5211 = vld [vmem:[%s8 + $0xd8] sm:$0xff]
  %v5212 = vld [vmem:[%s8 + $0xe0] sm:$0xff]
  %v5213 = vld [vmem:[%s8 + $0xe8] sm:$0xff]
  %v5214 = vld [vmem:[%s8 + $0xf0] sm:$0xff]
  %v5215 = vld [vmem:[%s8 + $0xf8] sm:$0xff]
  %v5216 = vld [vmem:[%s8 + $0x100] sm:$0xff]
  %v5217 = vld [vmem:[%s8 + $0x108] sm:$0xff]
  %v5218 = vld [vmem:[%s8 + $0x110] sm:$0xff]
  %v5219 = vld [vmem:[%s8 + $0x118] sm:$0xff]
  %v5220 = vld [vmem:[%s2 + $0x1e0] sm:$0xff]
  %v5221 = vld [vmem:[%s2 + $0x1e8] sm:$0xff]
  %5223 = vset.pattern.permute.xlu0 0
  %5224 = vperm.xlu0 %5223, %v5220
  %v5225 = vpop.permute.xlu0 %5224
  %5228 = vset.pattern.permute.xlu0 0
  %5229 = vperm.xlu0 %5228, %v5221
  %v5230 = vpop.permute.xlu0 %5229
  %vm5232 = vcmask 261120
  %v5234 = vsel %vm5232, %v5180, 0
  %v5237 = vsel %vm5232, %v5183, 0
  %5239 = vmatpush.msra.mxu0 %v5199
  %5240 = vmatpush.msra.mxu0 %v5198
  %5241 = vmatpush.msra.mxu0 %v5197
  %5242 = vmatpush.msra.mxu0 %v5196
  %5243 = vmatpush.msra.mxu0 %v5195
  %5244 = vmatpush.msra.mxu0 %v5194
  %5245 = vmatpush.msra.mxu0 %v5193
  %5246 = vmatpush.msra.mxu0 %v5192
  %5247 = vmatpush.msra.mxu0 %v5191
  %5248 = vmatpush.msra.mxu0 %v5190
  %5249 = vmatpush.msra.mxu0 %v5189
  %5250 = vmatpush.msra.mxu0 %v5188
  %5251 = vmatpush.msra.mxu0 %v5187
  %5252 = vmatpush.msra.mxu0 %v5186
  %5253 = vmatpush.msra.mxu0 %v5185
  %5254 = vmatpush.msra.mxu0 %v5184
  %5255 = vmatmul.f32.gmra.mxu0 %v5178
  %v5256 = vpop.f32.mrf.mxu0
  %v5257 = vadd.f32 %v5225, %v5256
  %5258 = vmatmul.f32.gmra.mxu0 %v5181
  %v5259 = vpop.f32.mrf.mxu0
  %v5260 = vadd.f32 %v5230, %v5259
  %5261 = vdwg.mxu0
  %5262 = vmatpush.msra.mxu0 %v5215
  %5263 = vmatpush.msra.mxu0 %v5214
  %5264 = vmatpush.msra.mxu0 %v5213
  %5265 = vmatpush.msra.mxu0 %v5212
  %5266 = vmatpush.msra.mxu0 %v5211
  %5267 = vmatpush.msra.mxu0 %v5210
  %5268 = vmatpush.msra.mxu0 %v5209
  %5269 = vmatpush.msra.mxu0 %v5208
  %5270 = vmatpush.msra.mxu0 %v5207
  %5271 = vmatpush.msra.mxu0 %v5206
  %5272 = vmatpush.msra.mxu0 %v5205
  %5273 = vmatpush.msra.mxu0 %v5204
  %5274 = vmatpush.msra.mxu0 %v5203
  %5275 = vmatpush.msra.mxu0 %v5202
  %5276 = vmatpush.msra.mxu0 %v5201
  %5277 = vmatpush.msra.mxu0 %v5200
  %5278 = vmatmul.f32.gmra.mxu0 %v5179
  %v5279 = vpop.f32.mrf.mxu0
  %v5280 = vadd.f32 %v5257, %v5279
  %5281 = vmatmul.f32.gmra.mxu0 %v5182
  %v5282 = vpop.f32.mrf.mxu0
  %v5283 = vadd.f32 %v5260, %v5282
  %5284 = vdwg.mxu0
  %5285 = vmatpush.msra.mxu0 0.0
  %5286 = vmatpush.msra.mxu0 0.0
  %5287 = vmatpush.msra.mxu0 0.0
  %5288 = vmatpush.msra.mxu0 0.0
  %5289 = vmatpush.msra.mxu0 0.0
  %5290 = vmatpush.msra.mxu0 0.0
  %5291 = vmatpush.msra.mxu0 0.0
  %5292 = vmatpush.msra.mxu0 0.0
  %5293 = vmatpush.msra.mxu0 0.0
  %5294 = vmatpush.msra.mxu0 0.0
  %5295 = vmatpush.msra.mxu0 0.0
  %5296 = vmatpush.msra.mxu0 0.0
  %5297 = vmatpush.msra.mxu0 %v5219
  %5298 = vmatpush.msra.mxu0 %v5218
  %5299 = vmatpush.msra.mxu0 %v5217
  %5300 = vmatpush.msra.mxu0 %v5216
  %5301 = vmatmul.f32.gmra.mxu0 %v5234
  %v5302 = vpop.f32.mrf.mxu0
  %v5303 = vadd.f32 %v5280, %v5302
  %5304 = vmatmul.f32.gmra.mxu0 %v5237
  %v5305 = vpop.f32.mrf.mxu0
  %v5306 = vadd.f32 %v5283, %v5305
  %5307 = vdwg.mxu0
  %v5308 = vld [vmem:[%s2 + $0x1f0] sm:$0xff]
  %v5309 = vld [vmem:[%s2 + $0x1f8] sm:$0xff]
  %5311 = vset.pattern.permute.xlu0 0
  %5312 = vperm.xlu0 %5311, %v5308
  %v5313 = vpop.permute.xlu0 %5312
  %5316 = vset.pattern.permute.xlu0 0
  %5317 = vperm.xlu0 %5316, %v5309
  %v5318 = vpop.permute.xlu0 %5317
  %v5320 = vmul.f32 %v5303, %v5313
  %v5321 = vmul.f32 %v5306, %v5318
  %v5322 = vld [vmem:[%s2 + $0x200] sm:$0xff]
  %v5323 = vld [vmem:[%s2 + $0x208] sm:$0xff]
  %5325 = vset.pattern.permute.xlu0 0
  %5326 = vperm.xlu0 %5325, %v5322
  %v5327 = vpop.permute.xlu0 %5326
  %5330 = vset.pattern.permute.xlu0 0
  %5331 = vperm.xlu0 %5330, %v5323
  %v5332 = vpop.permute.xlu0 %5331
  %v5334 = vadd.f32 %v5320, %v5327
  %v5335 = vadd.f32 %v5321, %v5332
  %v5336 = vmax.f32 %v5334, 0.0
  %v5337 = vmax.f32 %v5335, 0.0
  %5338 = vmatpush.msra.mxu0 %v2770
  %5339 = vmatpush.msra.mxu0 %v2767
  %5340 = vmatpush.msra.mxu0 %v2764
  %5341 = vmatpush.msra.mxu0 %v2761
  %5342 = vmatpush.msra.mxu0 %v2758
  %5343 = vmatpush.msra.mxu0 %v2755
  %5344 = vmatpush.msra.mxu0 %v2752
  %5345 = vmatpush.msra.mxu0 %v2749
  %5346 = vmatpush.msra.mxu0 %v2746
  %5347 = vmatpush.msra.mxu0 %v2743
  %5348 = vmatpush.msra.mxu0 %v2740
  %5349 = vmatpush.msra.mxu0 %v2737
  %5350 = vmatpush.msra.mxu0 %v2734
  %5351 = vmatpush.msra.mxu0 %v2731
  %5352 = vmatpush.msra.mxu0 %v2728
  %5353 = vmatpush.msra.mxu0 %v2725
  %5354 = vmatmul.f32.gmra.mxu0 %v5336
  %v5355 = vpop.f32.mrf.mxu0
  %v5356 = vadd.f32 0.0, %v5355
  %5357 = vmatmul.f32.gmra.mxu0 %v5337
  %v5358 = vpop.f32.mrf.mxu0
  %v5359 = vadd.f32 0.0, %v5358
  %5360 = vdwg.mxu0
  %5361 = vmatpush.msra.mxu0 %v2771
  %5362 = vmatpush.msra.mxu0 %v2768
  %5363 = vmatpush.msra.mxu0 %v2765
  %5364 = vmatpush.msra.mxu0 %v2762
  %5365 = vmatpush.msra.mxu0 %v2759
  %5366 = vmatpush.msra.mxu0 %v2756
  %5367 = vmatpush.msra.mxu0 %v2753
  %5368 = vmatpush.msra.mxu0 %v2750
  %5369 = vmatpush.msra.mxu0 %v2747
  %5370 = vmatpush.msra.mxu0 %v2744
  %5371 = vmatpush.msra.mxu0 %v2741
  %5372 = vmatpush.msra.mxu0 %v2738
  %5373 = vmatpush.msra.mxu0 %v2735
  %5374 = vmatpush.msra.mxu0 %v2732
  %5375 = vmatpush.msra.mxu0 %v2729
  %5376 = vmatpush.msra.mxu0 %v2726
  %5377 = vmatmul.f32.gmra.mxu0 %v5336
  %v5378 = vpop.f32.mrf.mxu0
  %v5379 = vadd.f32 0.0, %v5378
  %5380 = vmatmul.f32.gmra.mxu0 %v5337
  %v5381 = vpop.f32.mrf.mxu0
  %v5382 = vadd.f32 0.0, %v5381
  %5383 = vdwg.mxu0
  %5384 = vmatpush.msra.mxu0 %v2772
  %5385 = vmatpush.msra.mxu0 %v2769
  %5386 = vmatpush.msra.mxu0 %v2766
  %5387 = vmatpush.msra.mxu0 %v2763
  %5388 = vmatpush.msra.mxu0 %v2760
  %5389 = vmatpush.msra.mxu0 %v2757
  %5390 = vmatpush.msra.mxu0 %v2754
  %5391 = vmatpush.msra.mxu0 %v2751
  %5392 = vmatpush.msra.mxu0 %v2748
  %5393 = vmatpush.msra.mxu0 %v2745
  %5394 = vmatpush.msra.mxu0 %v2742
  %5395 = vmatpush.msra.mxu0 %v2739
  %5396 = vmatpush.msra.mxu0 %v2736
  %5397 = vmatpush.msra.mxu0 %v2733
  %5398 = vmatpush.msra.mxu0 %v2730
  %5399 = vmatpush.msra.mxu0 %v2727
  %5400 = vmatmul.f32.gmra.mxu0 %v5336
  %v5401 = vpop.f32.mrf.mxu0
  %v5402 = vadd.f32 0.0, %v5401
  %5403 = vmatmul.f32.gmra.mxu0 %v5337
  %v5404 = vpop.f32.mrf.mxu0
  %v5405 = vadd.f32 0.0, %v5404
  %5406 = vdwg.mxu0
  %v5407 = vld [vmem:[%s3 + $0x2a0] sm:$0xff]
  %v5408 = vld [vmem:[%s3 + $0x2a8] sm:$0xff]
  %5415 = vrot.lane.b32.xlu0 %v5356, 127
  %v5416 = vpop.permute.xlu0 %5415
  %5417 = vrot.lane.b32.xlu0 %v5379, 127
  %v5418 = vpop.permute.xlu0 %5417
  %5419 = vrot.lane.b32.xlu0 %v5402, 127
  %v5420 = vpop.permute.xlu0 %5419
  %5421 = vrot.lane.b32.xlu0 %v5359, 127
  %v5422 = vpop.permute.xlu0 %5421
  %5423 = vrot.lane.b32.xlu0 %v5382, 127
  %v5424 = vpop.permute.xlu0 %5423
  %5425 = vrot.lane.b32.xlu0 %v5405, 127
  %v5426 = vpop.permute.xlu0 %5425
  %v5427 = vsel %vm734, %v5416, %v5418
  %v5428 = vsel %vm734, %v5418, %v5420
  %v5429 = vsel %vm734, %v5422, %v5424
  %v5430 = vsel %vm734, %v5424, %v5426
  %v5438 = vsel %vm613, %v5408, 0
  %5440 = vmatpush.msra.mxu0 0.0
  %5441 = vmatpush.msra.mxu0 0.0
  %5442 = vmatpush.msra.mxu0 0.0
  %5443 = vmatpush.msra.mxu0 0.0
  %5444 = vmatpush.msra.mxu0 0.0
  %5445 = vmatpush.msra.mxu0 0.0
  %5446 = vmatpush.msra.mxu0 0.0
  %5447 = vmatpush.msra.mxu0 0.0
  %5448 = vmatpush.msra.mxu0 0.0
  %5449 = vmatpush.msra.mxu0 0.0
  %5450 = vmatpush.msra.mxu0 0.0
  %5451 = vmatpush.msra.mxu0 0.0
  %5452 = vmatpush.msra.mxu0 0.0
  %5453 = vmatpush.msra.mxu0 0.0
  %5454 = vmatpush.msra.mxu0 %v5429
  %5455 = vmatpush.msra.mxu0 %v5427
  %5456 = vmatmul.f32.gmra.mxu0 %v5438
  %v5457 = vpop.f32.mrf.mxu0
  %v5458 = vadd.f32 0.0, %v5457
  %5459 = vdwg.mxu0
  %5460 = vmatpush.msra.mxu0 0.0
  %5461 = vmatpush.msra.mxu0 0.0
  %5462 = vmatpush.msra.mxu0 0.0
  %5463 = vmatpush.msra.mxu0 0.0
  %5464 = vmatpush.msra.mxu0 0.0
  %5465 = vmatpush.msra.mxu0 0.0
  %5466 = vmatpush.msra.mxu0 0.0
  %5467 = vmatpush.msra.mxu0 0.0
  %5468 = vmatpush.msra.mxu0 0.0
  %5469 = vmatpush.msra.mxu0 0.0
  %5470 = vmatpush.msra.mxu0 0.0
  %5471 = vmatpush.msra.mxu0 0.0
  %5472 = vmatpush.msra.mxu0 0.0
  %5473 = vmatpush.msra.mxu0 0.0
  %5474 = vmatpush.msra.mxu0 %v5430
  %5475 = vmatpush.msra.mxu0 %v5428
  %5476 = vmatmul.f32.gmra.mxu0 %v5438
  %v5477 = vpop.f32.mrf.mxu0
  %v5478 = vadd.f32 0.0, %v5477
  %5479 = vdwg.mxu0
  %5480 = vmatpush.msra.mxu0 0.0
  %5481 = vmatpush.msra.mxu0 0.0
  %5482 = vmatpush.msra.mxu0 0.0
  %5483 = vmatpush.msra.mxu0 0.0
  %5484 = vmatpush.msra.mxu0 0.0
  %5485 = vmatpush.msra.mxu0 0.0
  %5486 = vmatpush.msra.mxu0 0.0
  %5487 = vmatpush.msra.mxu0 0.0
  %5488 = vmatpush.msra.mxu0 0.0
  %5489 = vmatpush.msra.mxu0 0.0
  %5490 = vmatpush.msra.mxu0 0.0
  %5491 = vmatpush.msra.mxu0 0.0
  %5492 = vmatpush.msra.mxu0 0.0
  %5493 = vmatpush.msra.mxu0 0.0
  %5494 = vmatpush.msra.mxu0 %v5426
  %5495 = vmatpush.msra.mxu0 %v5420
  %5496 = vmatmul.f32.gmra.mxu0 %v5438
  %v5497 = vpop.f32.mrf.mxu0
  %v5498 = vadd.f32 0.0, %v5497
  %5499 = vdwg.mxu0
  %v5501 = vsel %vm613, %v5407, 0
  %5503 = vmatpush.msra.mxu0 0.0
  %5504 = vmatpush.msra.mxu0 0.0
  %5505 = vmatpush.msra.mxu0 0.0
  %5506 = vmatpush.msra.mxu0 0.0
  %5507 = vmatpush.msra.mxu0 0.0
  %5508 = vmatpush.msra.mxu0 0.0
  %5509 = vmatpush.msra.mxu0 0.0
  %5510 = vmatpush.msra.mxu0 0.0
  %5511 = vmatpush.msra.mxu0 0.0
  %5512 = vmatpush.msra.mxu0 0.0
  %5513 = vmatpush.msra.mxu0 0.0
  %5514 = vmatpush.msra.mxu0 0.0
  %5515 = vmatpush.msra.mxu0 0.0
  %5516 = vmatpush.msra.mxu0 0.0
  %5517 = vmatpush.msra.mxu0 %v5359
  %5518 = vmatpush.msra.mxu0 %v5356
  %5519 = vmatmul.f32.gmra.mxu0 %v5501
  %v5520 = vpop.f32.mrf.mxu0
  %v5521 = vadd.f32 %v5458, %v5520
  %5522 = vdwg.mxu0
  %5523 = vmatpush.msra.mxu0 0.0
  %5524 = vmatpush.msra.mxu0 0.0
  %5525 = vmatpush.msra.mxu0 0.0
  %5526 = vmatpush.msra.mxu0 0.0
  %5527 = vmatpush.msra.mxu0 0.0
  %5528 = vmatpush.msra.mxu0 0.0
  %5529 = vmatpush.msra.mxu0 0.0
  %5530 = vmatpush.msra.mxu0 0.0
  %5531 = vmatpush.msra.mxu0 0.0
  %5532 = vmatpush.msra.mxu0 0.0
  %5533 = vmatpush.msra.mxu0 0.0
  %5534 = vmatpush.msra.mxu0 0.0
  %5535 = vmatpush.msra.mxu0 0.0
  %5536 = vmatpush.msra.mxu0 0.0
  %5537 = vmatpush.msra.mxu0 %v5382
  %5538 = vmatpush.msra.mxu0 %v5379
  %5539 = vmatmul.f32.gmra.mxu0 %v5501
  %v5540 = vpop.f32.mrf.mxu0
  %v5541 = vadd.f32 %v5478, %v5540
  %5542 = vdwg.mxu0
  %5543 = vmatpush.msra.mxu0 0.0
  %5544 = vmatpush.msra.mxu0 0.0
  %5545 = vmatpush.msra.mxu0 0.0
  %5546 = vmatpush.msra.mxu0 0.0
  %5547 = vmatpush.msra.mxu0 0.0
  %5548 = vmatpush.msra.mxu0 0.0
  %5549 = vmatpush.msra.mxu0 0.0
  %5550 = vmatpush.msra.mxu0 0.0
  %5551 = vmatpush.msra.mxu0 0.0
  %5552 = vmatpush.msra.mxu0 0.0
  %5553 = vmatpush.msra.mxu0 0.0
  %5554 = vmatpush.msra.mxu0 0.0
  %5555 = vmatpush.msra.mxu0 0.0
  %5556 = vmatpush.msra.mxu0 0.0
  %5557 = vmatpush.msra.mxu0 %v5405
  %5558 = vmatpush.msra.mxu0 %v5402
  %5559 = vmatmul.f32.gmra.mxu0 %v5501
  %v5560 = vpop.f32.mrf.mxu0
  %v5561 = vadd.f32 %v5498, %v5560
  %5562 = vdwg.mxu0
  %v5563 = vld [vmem:[%s3 + $0x2b0] sm:$0xff]
  %5564 = vrot.lane.b32.xlu0 %v5356, 126
  %v5565 = vpop.permute.xlu0 %5564
  %5566 = vrot.lane.b32.xlu0 %v5379, 126
  %v5567 = vpop.permute.xlu0 %5566
  %5568 = vrot.lane.b32.xlu0 %v5402, 126
  %v5569 = vpop.permute.xlu0 %5568
  %5570 = vrot.lane.b32.xlu0 %v5359, 126
  %v5571 = vpop.permute.xlu0 %5570
  %5572 = vrot.lane.b32.xlu0 %v5382, 126
  %v5573 = vpop.permute.xlu0 %5572
  %5574 = vrot.lane.b32.xlu0 %v5405, 126
  %v5575 = vpop.permute.xlu0 %5574
  %v5576 = vsel %vm849, %v5565, %v5567
  %v5577 = vsel %vm849, %v5567, %v5569
  %v5578 = vsel %vm849, %v5571, %v5573
  %v5579 = vsel %vm849, %v5573, %v5575
  %v5587 = vsel %vm613, %v5563, 0
  %5589 = vmatpush.msra.mxu0 0.0
  %5590 = vmatpush.msra.mxu0 0.0
  %5591 = vmatpush.msra.mxu0 0.0
  %5592 = vmatpush.msra.mxu0 0.0
  %5593 = vmatpush.msra.mxu0 0.0
  %5594 = vmatpush.msra.mxu0 0.0
  %5595 = vmatpush.msra.mxu0 0.0
  %5596 = vmatpush.msra.mxu0 0.0
  %5597 = vmatpush.msra.mxu0 0.0
  %5598 = vmatpush.msra.mxu0 0.0
  %5599 = vmatpush.msra.mxu0 0.0
  %5600 = vmatpush.msra.mxu0 0.0
  %5601 = vmatpush.msra.mxu0 0.0
  %5602 = vmatpush.msra.mxu0 0.0
  %5603 = vmatpush.msra.mxu0 %v5578
  %5604 = vmatpush.msra.mxu0 %v5576
  %5605 = vmatmul.f32.gmra.mxu0 %v5587
  %v5606 = vpop.f32.mrf.mxu0
  %v5607 = vadd.f32 0.0, %v5606
  %5608 = vdwg.mxu0
  %5609 = vmatpush.msra.mxu0 0.0
  %5610 = vmatpush.msra.mxu0 0.0
  %5611 = vmatpush.msra.mxu0 0.0
  %5612 = vmatpush.msra.mxu0 0.0
  %5613 = vmatpush.msra.mxu0 0.0
  %5614 = vmatpush.msra.mxu0 0.0
  %5615 = vmatpush.msra.mxu0 0.0
  %5616 = vmatpush.msra.mxu0 0.0
  %5617 = vmatpush.msra.mxu0 0.0
  %5618 = vmatpush.msra.mxu0 0.0
  %5619 = vmatpush.msra.mxu0 0.0
  %5620 = vmatpush.msra.mxu0 0.0
  %5621 = vmatpush.msra.mxu0 0.0
  %5622 = vmatpush.msra.mxu0 0.0
  %5623 = vmatpush.msra.mxu0 %v5579
  %5624 = vmatpush.msra.mxu0 %v5577
  %5625 = vmatmul.f32.gmra.mxu0 %v5587
  %v5626 = vpop.f32.mrf.mxu0
  %v5627 = vadd.f32 0.0, %v5626
  %5628 = vdwg.mxu0
  %5629 = vmatpush.msra.mxu0 0.0
  %5630 = vmatpush.msra.mxu0 0.0
  %5631 = vmatpush.msra.mxu0 0.0
  %5632 = vmatpush.msra.mxu0 0.0
  %5633 = vmatpush.msra.mxu0 0.0
  %5634 = vmatpush.msra.mxu0 0.0
  %5635 = vmatpush.msra.mxu0 0.0
  %5636 = vmatpush.msra.mxu0 0.0
  %5637 = vmatpush.msra.mxu0 0.0
  %5638 = vmatpush.msra.mxu0 0.0
  %5639 = vmatpush.msra.mxu0 0.0
  %5640 = vmatpush.msra.mxu0 0.0
  %5641 = vmatpush.msra.mxu0 0.0
  %5642 = vmatpush.msra.mxu0 0.0
  %5643 = vmatpush.msra.mxu0 %v5575
  %5644 = vmatpush.msra.mxu0 %v5569
  %5645 = vmatmul.f32.gmra.mxu0 %v5587
  %v5646 = vpop.f32.mrf.mxu0
  %v5647 = vadd.f32 0.0, %v5646
  %5648 = vdwg.mxu0
  %v5649 = vadd.f32 %v5521, %v5607
  %v5650 = vadd.f32 %v5541, %v5627
  %v5651 = vadd.f32 %v5561, %v5647
  %v5652 = vld [vmem:[%s3 + $0x2b8] sm:$0xff]
  %5653 = vrot.lane.b32.xlu0 %v5356, 125
  %v5654 = vpop.permute.xlu0 %5653
  %5655 = vrot.lane.b32.xlu0 %v5379, 125
  %v5656 = vpop.permute.xlu0 %5655
  %5657 = vrot.lane.b32.xlu0 %v5402, 125
  %v5658 = vpop.permute.xlu0 %5657
  %5659 = vrot.lane.b32.xlu0 %v5359, 125
  %v5660 = vpop.permute.xlu0 %5659
  %5661 = vrot.lane.b32.xlu0 %v5382, 125
  %v5662 = vpop.permute.xlu0 %5661
  %5663 = vrot.lane.b32.xlu0 %v5405, 125
  %v5664 = vpop.permute.xlu0 %5663
  %v5665 = vsel %vm3103, %v5654, %v5656
  %v5666 = vsel %vm3103, %v5656, %v5658
  %v5667 = vsel %vm3103, %v5660, %v5662
  %v5668 = vsel %vm3103, %v5662, %v5664
  %v5676 = vsel %vm613, %v5652, 0
  %5678 = vmatpush.msra.mxu0 0.0
  %5679 = vmatpush.msra.mxu0 0.0
  %5680 = vmatpush.msra.mxu0 0.0
  %5681 = vmatpush.msra.mxu0 0.0
  %5682 = vmatpush.msra.mxu0 0.0
  %5683 = vmatpush.msra.mxu0 0.0
  %5684 = vmatpush.msra.mxu0 0.0
  %5685 = vmatpush.msra.mxu0 0.0
  %5686 = vmatpush.msra.mxu0 0.0
  %5687 = vmatpush.msra.mxu0 0.0
  %5688 = vmatpush.msra.mxu0 0.0
  %5689 = vmatpush.msra.mxu0 0.0
  %5690 = vmatpush.msra.mxu0 0.0
  %5691 = vmatpush.msra.mxu0 0.0
  %5692 = vmatpush.msra.mxu0 %v5667
  %5693 = vmatpush.msra.mxu0 %v5665
  %5694 = vmatmul.f32.gmra.mxu0 %v5676
  %v5695 = vpop.f32.mrf.mxu0
  %v5696 = vadd.f32 0.0, %v5695
  %5697 = vdwg.mxu0
  %5698 = vmatpush.msra.mxu0 0.0
  %5699 = vmatpush.msra.mxu0 0.0
  %5700 = vmatpush.msra.mxu0 0.0
  %5701 = vmatpush.msra.mxu0 0.0
  %5702 = vmatpush.msra.mxu0 0.0
  %5703 = vmatpush.msra.mxu0 0.0
  %5704 = vmatpush.msra.mxu0 0.0
  %5705 = vmatpush.msra.mxu0 0.0
  %5706 = vmatpush.msra.mxu0 0.0
  %5707 = vmatpush.msra.mxu0 0.0
  %5708 = vmatpush.msra.mxu0 0.0
  %5709 = vmatpush.msra.mxu0 0.0
  %5710 = vmatpush.msra.mxu0 0.0
  %5711 = vmatpush.msra.mxu0 0.0
  %5712 = vmatpush.msra.mxu0 %v5668
  %5713 = vmatpush.msra.mxu0 %v5666
  %5714 = vmatmul.f32.gmra.mxu0 %v5676
  %v5715 = vpop.f32.mrf.mxu0
  %v5716 = vadd.f32 0.0, %v5715
  %5717 = vdwg.mxu0
  %5718 = vmatpush.msra.mxu0 0.0
  %5719 = vmatpush.msra.mxu0 0.0
  %5720 = vmatpush.msra.mxu0 0.0
  %5721 = vmatpush.msra.mxu0 0.0
  %5722 = vmatpush.msra.mxu0 0.0
  %5723 = vmatpush.msra.mxu0 0.0
  %5724 = vmatpush.msra.mxu0 0.0
  %5725 = vmatpush.msra.mxu0 0.0
  %5726 = vmatpush.msra.mxu0 0.0
  %5727 = vmatpush.msra.mxu0 0.0
  %5728 = vmatpush.msra.mxu0 0.0
  %5729 = vmatpush.msra.mxu0 0.0
  %5730 = vmatpush.msra.mxu0 0.0
  %5731 = vmatpush.msra.mxu0 0.0
  %5732 = vmatpush.msra.mxu0 %v5664
  %5733 = vmatpush.msra.mxu0 %v5658
  %5734 = vmatmul.f32.gmra.mxu0 %v5676
  %v5735 = vpop.f32.mrf.mxu0
  %v5736 = vadd.f32 0.0, %v5735
  %5737 = vdwg.mxu0
  %v5738 = vadd.f32 %v5649, %v5696
  %v5739 = vadd.f32 %v5650, %v5716
  %v5740 = vadd.f32 %v5651, %v5736
  %v5741 = vld [vmem:[%s3 + $0x2c0] sm:$0xff]
  %5742 = vrot.lane.b32.xlu0 %v5356, 124
  %v5743 = vpop.permute.xlu0 %5742
  %5744 = vrot.lane.b32.xlu0 %v5379, 124
  %v5745 = vpop.permute.xlu0 %5744
  %5746 = vrot.lane.b32.xlu0 %v5402, 124
  %v5747 = vpop.permute.xlu0 %5746
  %5748 = vrot.lane.b32.xlu0 %v5359, 124
  %v5749 = vpop.permute.xlu0 %5748
  %5750 = vrot.lane.b32.xlu0 %v5382, 124
  %v5751 = vpop.permute.xlu0 %5750
  %5752 = vrot.lane.b32.xlu0 %v5405, 124
  %v5753 = vpop.permute.xlu0 %5752
  %v5754 = vsel %vm3198, %v5743, %v5745
  %v5755 = vsel %vm3198, %v5745, %v5747
  %v5756 = vsel %vm3198, %v5749, %v5751
  %v5757 = vsel %vm3198, %v5751, %v5753
  %v5765 = vsel %vm613, %v5741, 0
  %5767 = vmatpush.msra.mxu0 0.0
  %5768 = vmatpush.msra.mxu0 0.0
  %5769 = vmatpush.msra.mxu0 0.0
  %5770 = vmatpush.msra.mxu0 0.0
  %5771 = vmatpush.msra.mxu0 0.0
  %5772 = vmatpush.msra.mxu0 0.0
  %5773 = vmatpush.msra.mxu0 0.0
  %5774 = vmatpush.msra.mxu0 0.0
  %5775 = vmatpush.msra.mxu0 0.0
  %5776 = vmatpush.msra.mxu0 0.0
  %5777 = vmatpush.msra.mxu0 0.0
  %5778 = vmatpush.msra.mxu0 0.0
  %5779 = vmatpush.msra.mxu0 0.0
  %5780 = vmatpush.msra.mxu0 0.0
  %5781 = vmatpush.msra.mxu0 %v5756
  %5782 = vmatpush.msra.mxu0 %v5754
  %5783 = vmatmul.f32.gmra.mxu0 %v5765
  %v5784 = vpop.f32.mrf.mxu0
  %v5785 = vadd.f32 0.0, %v5784
  %5786 = vdwg.mxu0
  %5787 = vmatpush.msra.mxu0 0.0
  %5788 = vmatpush.msra.mxu0 0.0
  %5789 = vmatpush.msra.mxu0 0.0
  %5790 = vmatpush.msra.mxu0 0.0
  %5791 = vmatpush.msra.mxu0 0.0
  %5792 = vmatpush.msra.mxu0 0.0
  %5793 = vmatpush.msra.mxu0 0.0
  %5794 = vmatpush.msra.mxu0 0.0
  %5795 = vmatpush.msra.mxu0 0.0
  %5796 = vmatpush.msra.mxu0 0.0
  %5797 = vmatpush.msra.mxu0 0.0
  %5798 = vmatpush.msra.mxu0 0.0
  %5799 = vmatpush.msra.mxu0 0.0
  %5800 = vmatpush.msra.mxu0 0.0
  %5801 = vmatpush.msra.mxu0 %v5757
  %5802 = vmatpush.msra.mxu0 %v5755
  %5803 = vmatmul.f32.gmra.mxu0 %v5765
  %v5804 = vpop.f32.mrf.mxu0
  %v5805 = vadd.f32 0.0, %v5804
  %5806 = vdwg.mxu0
  %5807 = vmatpush.msra.mxu0 0.0
  %5808 = vmatpush.msra.mxu0 0.0
  %5809 = vmatpush.msra.mxu0 0.0
  %5810 = vmatpush.msra.mxu0 0.0
  %5811 = vmatpush.msra.mxu0 0.0
  %5812 = vmatpush.msra.mxu0 0.0
  %5813 = vmatpush.msra.mxu0 0.0
  %5814 = vmatpush.msra.mxu0 0.0
  %5815 = vmatpush.msra.mxu0 0.0
  %5816 = vmatpush.msra.mxu0 0.0
  %5817 = vmatpush.msra.mxu0 0.0
  %5818 = vmatpush.msra.mxu0 0.0
  %5819 = vmatpush.msra.mxu0 0.0
  %5820 = vmatpush.msra.mxu0 0.0
  %5821 = vmatpush.msra.mxu0 %v5753
  %5822 = vmatpush.msra.mxu0 %v5747
  %5823 = vmatmul.f32.gmra.mxu0 %v5765
  %v5824 = vpop.f32.mrf.mxu0
  %v5825 = vadd.f32 0.0, %v5824
  %5826 = vdwg.mxu0
  %v5827 = vadd.f32 %v5738, %v5785
  %v5828 = vadd.f32 %v5739, %v5805
  %v5829 = vadd.f32 %v5740, %v5825
  %v5830 = vld [vmem:[%s3 + $0x2c8] sm:$0xff]
  %5831 = vrot.lane.b32.xlu0 %v5356, 116
  %v5832 = vpop.permute.xlu0 %5831
  %5833 = vrot.lane.b32.xlu0 %v5379, 116
  %v5834 = vpop.permute.xlu0 %5833
  %5835 = vrot.lane.b32.xlu0 %v5402, 116
  %v5836 = vpop.permute.xlu0 %5835
  %5837 = vrot.lane.b32.xlu0 %v5359, 116
  %v5838 = vpop.permute.xlu0 %5837
  %5839 = vrot.lane.b32.xlu0 %v5382, 116
  %v5840 = vpop.permute.xlu0 %5839
  %5841 = vrot.lane.b32.xlu0 %v5405, 116
  %v5842 = vpop.permute.xlu0 %5841
  %v5843 = vsel %vm1047, %v5832, %v5834
  %v5844 = vsel %vm1047, %v5834, %v5836
  %v5845 = vsel %vm1047, %v5838, %v5840
  %v5846 = vsel %vm1047, %v5840, %v5842
  %v5854 = vsel %vm613, %v5830, 0
  %5856 = vmatpush.msra.mxu0 0.0
  %5857 = vmatpush.msra.mxu0 0.0
  %5858 = vmatpush.msra.mxu0 0.0
  %5859 = vmatpush.msra.mxu0 0.0
  %5860 = vmatpush.msra.mxu0 0.0
  %5861 = vmatpush.msra.mxu0 0.0
  %5862 = vmatpush.msra.mxu0 0.0
  %5863 = vmatpush.msra.mxu0 0.0
  %5864 = vmatpush.msra.mxu0 0.0
  %5865 = vmatpush.msra.mxu0 0.0
  %5866 = vmatpush.msra.mxu0 0.0
  %5867 = vmatpush.msra.mxu0 0.0
  %5868 = vmatpush.msra.mxu0 0.0
  %5869 = vmatpush.msra.mxu0 0.0
  %5870 = vmatpush.msra.mxu0 %v5845
  %5871 = vmatpush.msra.mxu0 %v5843
  %5872 = vmatmul.f32.gmra.mxu0 %v5854
  %v5873 = vpop.f32.mrf.mxu0
  %v5874 = vadd.f32 0.0, %v5873
  %5875 = vdwg.mxu0
  %5876 = vmatpush.msra.mxu0 0.0
  %5877 = vmatpush.msra.mxu0 0.0
  %5878 = vmatpush.msra.mxu0 0.0
  %5879 = vmatpush.msra.mxu0 0.0
  %5880 = vmatpush.msra.mxu0 0.0
  %5881 = vmatpush.msra.mxu0 0.0
  %5882 = vmatpush.msra.mxu0 0.0
  %5883 = vmatpush.msra.mxu0 0.0
  %5884 = vmatpush.msra.mxu0 0.0
  %5885 = vmatpush.msra.mxu0 0.0
  %5886 = vmatpush.msra.mxu0 0.0
  %5887 = vmatpush.msra.mxu0 0.0
  %5888 = vmatpush.msra.mxu0 0.0
  %5889 = vmatpush.msra.mxu0 0.0
  %5890 = vmatpush.msra.mxu0 %v5846
  %5891 = vmatpush.msra.mxu0 %v5844
  %5892 = vmatmul.f32.gmra.mxu0 %v5854
  %v5893 = vpop.f32.mrf.mxu0
  %v5894 = vadd.f32 0.0, %v5893
  %5895 = vdwg.mxu0
  %5896 = vmatpush.msra.mxu0 0.0
  %5897 = vmatpush.msra.mxu0 0.0
  %5898 = vmatpush.msra.mxu0 0.0
  %5899 = vmatpush.msra.mxu0 0.0
  %5900 = vmatpush.msra.mxu0 0.0
  %5901 = vmatpush.msra.mxu0 0.0
  %5902 = vmatpush.msra.mxu0 0.0
  %5903 = vmatpush.msra.mxu0 0.0
  %5904 = vmatpush.msra.mxu0 0.0
  %5905 = vmatpush.msra.mxu0 0.0
  %5906 = vmatpush.msra.mxu0 0.0
  %5907 = vmatpush.msra.mxu0 0.0
  %5908 = vmatpush.msra.mxu0 0.0
  %5909 = vmatpush.msra.mxu0 0.0
  %5910 = vmatpush.msra.mxu0 %v5842
  %5911 = vmatpush.msra.mxu0 %v5836
  %5912 = vmatmul.f32.gmra.mxu0 %v5854
  %v5913 = vpop.f32.mrf.mxu0
  %v5914 = vadd.f32 0.0, %v5913
  %5915 = vdwg.mxu0
  %v5916 = vadd.f32 %v5827, %v5874
  %v5917 = vadd.f32 %v5828, %v5894
  %v5918 = vadd.f32 %v5829, %v5914
  %v5919 = vld [vmem:[%s3 + $0x2d0] sm:$0xff]
  %5920 = vrot.lane.b32.xlu0 %v5356, 115
  %v5921 = vpop.permute.xlu0 %5920
  %5922 = vrot.lane.b32.xlu0 %v5379, 115
  %v5923 = vpop.permute.xlu0 %5922
  %5924 = vrot.lane.b32.xlu0 %v5402, 115
  %v5925 = vpop.permute.xlu0 %5924
  %5926 = vrot.lane.b32.xlu0 %v5359, 115
  %v5927 = vpop.permute.xlu0 %5926
  %5928 = vrot.lane.b32.xlu0 %v5382, 115
  %v5929 = vpop.permute.xlu0 %5928
  %5930 = vrot.lane.b32.xlu0 %v5405, 115
  %v5931 = vpop.permute.xlu0 %5930
  %v5932 = vsel %vm3387, %v5921, %v5923
  %v5933 = vsel %vm3387, %v5923, %v5925
  %v5934 = vsel %vm3387, %v5927, %v5929
  %v5935 = vsel %vm3387, %v5929, %v5931
  %v5943 = vsel %vm613, %v5919, 0
  %5945 = vmatpush.msra.mxu0 0.0
  %5946 = vmatpush.msra.mxu0 0.0
  %5947 = vmatpush.msra.mxu0 0.0
  %5948 = vmatpush.msra.mxu0 0.0
  %5949 = vmatpush.msra.mxu0 0.0
  %5950 = vmatpush.msra.mxu0 0.0
  %5951 = vmatpush.msra.mxu0 0.0
  %5952 = vmatpush.msra.mxu0 0.0
  %5953 = vmatpush.msra.mxu0 0.0
  %5954 = vmatpush.msra.mxu0 0.0
  %5955 = vmatpush.msra.mxu0 0.0
  %5956 = vmatpush.msra.mxu0 0.0
  %5957 = vmatpush.msra.mxu0 0.0
  %5958 = vmatpush.msra.mxu0 0.0
  %5959 = vmatpush.msra.mxu0 %v5934
  %5960 = vmatpush.msra.mxu0 %v5932
  %5961 = vmatmul.f32.gmra.mxu0 %v5943
  %v5962 = vpop.f32.mrf.mxu0
  %v5963 = vadd.f32 0.0, %v5962
  %5964 = vdwg.mxu0
  %5965 = vmatpush.msra.mxu0 0.0
  %5966 = vmatpush.msra.mxu0 0.0
  %5967 = vmatpush.msra.mxu0 0.0
  %5968 = vmatpush.msra.mxu0 0.0
  %5969 = vmatpush.msra.mxu0 0.0
  %5970 = vmatpush.msra.mxu0 0.0
  %5971 = vmatpush.msra.mxu0 0.0
  %5972 = vmatpush.msra.mxu0 0.0
  %5973 = vmatpush.msra.mxu0 0.0
  %5974 = vmatpush.msra.mxu0 0.0
  %5975 = vmatpush.msra.mxu0 0.0
  %5976 = vmatpush.msra.mxu0 0.0
  %5977 = vmatpush.msra.mxu0 0.0
  %5978 = vmatpush.msra.mxu0 0.0
  %5979 = vmatpush.msra.mxu0 %v5935
  %5980 = vmatpush.msra.mxu0 %v5933
  %5981 = vmatmul.f32.gmra.mxu0 %v5943
  %v5982 = vpop.f32.mrf.mxu0
  %v5983 = vadd.f32 0.0, %v5982
  %5984 = vdwg.mxu0
  %5985 = vmatpush.msra.mxu0 0.0
  %5986 = vmatpush.msra.mxu0 0.0
  %5987 = vmatpush.msra.mxu0 0.0
  %5988 = vmatpush.msra.mxu0 0.0
  %5989 = vmatpush.msra.mxu0 0.0
  %5990 = vmatpush.msra.mxu0 0.0
  %5991 = vmatpush.msra.mxu0 0.0
  %5992 = vmatpush.msra.mxu0 0.0
  %5993 = vmatpush.msra.mxu0 0.0
  %5994 = vmatpush.msra.mxu0 0.0
  %5995 = vmatpush.msra.mxu0 0.0
  %5996 = vmatpush.msra.mxu0 0.0
  %5997 = vmatpush.msra.mxu0 0.0
  %5998 = vmatpush.msra.mxu0 0.0
  %5999 = vmatpush.msra.mxu0 %v5931
  %6000 = vmatpush.msra.mxu0 %v5925
  %6001 = vmatmul.f32.gmra.mxu0 %v5943
  %v6002 = vpop.f32.mrf.mxu0
  %v6003 = vadd.f32 0.0, %v6002
  %6004 = vdwg.mxu0
  %v6005 = vadd.f32 %v5916, %v5963
  %v6006 = vadd.f32 %v5917, %v5983
  %v6007 = vadd.f32 %v5918, %v6003
  %v6008 = vld [vmem:[%s3 + $0x2d8] sm:$0xff]
  %6009 = vrot.lane.b32.xlu0 %v5356, 114
  %v6010 = vpop.permute.xlu0 %6009
  %6011 = vrot.lane.b32.xlu0 %v5379, 114
  %v6012 = vpop.permute.xlu0 %6011
  %6013 = vrot.lane.b32.xlu0 %v5402, 114
  %v6014 = vpop.permute.xlu0 %6013
  %6015 = vrot.lane.b32.xlu0 %v5359, 114
  %v6016 = vpop.permute.xlu0 %6015
  %6017 = vrot.lane.b32.xlu0 %v5382, 114
  %v6018 = vpop.permute.xlu0 %6017
  %6019 = vrot.lane.b32.xlu0 %v5405, 114
  %v6020 = vpop.permute.xlu0 %6019
  %v6021 = vsel %vm3482, %v6010, %v6012
  %v6022 = vsel %vm3482, %v6012, %v6014
  %v6023 = vsel %vm3482, %v6016, %v6018
  %v6024 = vsel %vm3482, %v6018, %v6020
  %v6032 = vsel %vm613, %v6008, 0
  %6034 = vmatpush.msra.mxu0 0.0
  %6035 = vmatpush.msra.mxu0 0.0
  %6036 = vmatpush.msra.mxu0 0.0
  %6037 = vmatpush.msra.mxu0 0.0
  %6038 = vmatpush.msra.mxu0 0.0
  %6039 = vmatpush.msra.mxu0 0.0
  %6040 = vmatpush.msra.mxu0 0.0
  %6041 = vmatpush.msra.mxu0 0.0
  %6042 = vmatpush.msra.mxu0 0.0
  %6043 = vmatpush.msra.mxu0 0.0
  %6044 = vmatpush.msra.mxu0 0.0
  %6045 = vmatpush.msra.mxu0 0.0
  %6046 = vmatpush.msra.mxu0 0.0
  %6047 = vmatpush.msra.mxu0 0.0
  %6048 = vmatpush.msra.mxu0 %v6023
  %6049 = vmatpush.msra.mxu0 %v6021
  %6050 = vmatmul.f32.gmra.mxu0 %v6032
  %v6051 = vpop.f32.mrf.mxu0
  %v6052 = vadd.f32 0.0, %v6051
  %6053 = vdwg.mxu0
  %6054 = vmatpush.msra.mxu0 0.0
  %6055 = vmatpush.msra.mxu0 0.0
  %6056 = vmatpush.msra.mxu0 0.0
  %6057 = vmatpush.msra.mxu0 0.0
  %6058 = vmatpush.msra.mxu0 0.0
  %6059 = vmatpush.msra.mxu0 0.0
  %6060 = vmatpush.msra.mxu0 0.0
  %6061 = vmatpush.msra.mxu0 0.0
  %6062 = vmatpush.msra.mxu0 0.0
  %6063 = vmatpush.msra.mxu0 0.0
  %6064 = vmatpush.msra.mxu0 0.0
  %6065 = vmatpush.msra.mxu0 0.0
  %6066 = vmatpush.msra.mxu0 0.0
  %6067 = vmatpush.msra.mxu0 0.0
  %6068 = vmatpush.msra.mxu0 %v6024
  %6069 = vmatpush.msra.mxu0 %v6022
  %6070 = vmatmul.f32.gmra.mxu0 %v6032
  %v6071 = vpop.f32.mrf.mxu0
  %v6072 = vadd.f32 0.0, %v6071
  %6073 = vdwg.mxu0
  %6074 = vmatpush.msra.mxu0 0.0
  %6075 = vmatpush.msra.mxu0 0.0
  %6076 = vmatpush.msra.mxu0 0.0
  %6077 = vmatpush.msra.mxu0 0.0
  %6078 = vmatpush.msra.mxu0 0.0
  %6079 = vmatpush.msra.mxu0 0.0
  %6080 = vmatpush.msra.mxu0 0.0
  %6081 = vmatpush.msra.mxu0 0.0
  %6082 = vmatpush.msra.mxu0 0.0
  %6083 = vmatpush.msra.mxu0 0.0
  %6084 = vmatpush.msra.mxu0 0.0
  %6085 = vmatpush.msra.mxu0 0.0
  %6086 = vmatpush.msra.mxu0 0.0
  %6087 = vmatpush.msra.mxu0 0.0
  %6088 = vmatpush.msra.mxu0 %v6020
  %6089 = vmatpush.msra.mxu0 %v6014
  %6090 = vmatmul.f32.gmra.mxu0 %v6032
  %v6091 = vpop.f32.mrf.mxu0
  %v6092 = vadd.f32 0.0, %v6091
  %6093 = vdwg.mxu0
  %v6094 = vadd.f32 %v6005, %v6052
  %v6095 = vadd.f32 %v6006, %v6072
  %v6096 = vadd.f32 %v6007, %v6092
  %v6097 = vld [vmem:[%s3 + $0x2e0] sm:$0xff]
  %6098 = vrot.lane.b32.xlu0 %v5356, 113
  %v6099 = vpop.permute.xlu0 %6098
  %6100 = vrot.lane.b32.xlu0 %v5379, 113
  %v6101 = vpop.permute.xlu0 %6100
  %6102 = vrot.lane.b32.xlu0 %v5402, 113
  %v6103 = vpop.permute.xlu0 %6102
  %6104 = vrot.lane.b32.xlu0 %v5359, 113
  %v6105 = vpop.permute.xlu0 %6104
  %6106 = vrot.lane.b32.xlu0 %v5382, 113
  %v6107 = vpop.permute.xlu0 %6106
  %6108 = vrot.lane.b32.xlu0 %v5405, 113
  %v6109 = vpop.permute.xlu0 %6108
  %v6110 = vsel %vm3577, %v6099, %v6101
  %v6111 = vsel %vm3577, %v6101, %v6103
  %v6112 = vsel %vm3577, %v6105, %v6107
  %v6113 = vsel %vm3577, %v6107, %v6109
  %v6121 = vsel %vm613, %v6097, 0
  %6123 = vmatpush.msra.mxu0 0.0
  %6124 = vmatpush.msra.mxu0 0.0
  %6125 = vmatpush.msra.mxu0 0.0
  %6126 = vmatpush.msra.mxu0 0.0
  %6127 = vmatpush.msra.mxu0 0.0
  %6128 = vmatpush.msra.mxu0 0.0
  %6129 = vmatpush.msra.mxu0 0.0
  %6130 = vmatpush.msra.mxu0 0.0
  %6131 = vmatpush.msra.mxu0 0.0
  %6132 = vmatpush.msra.mxu0 0.0
  %6133 = vmatpush.msra.mxu0 0.0
  %6134 = vmatpush.msra.mxu0 0.0
  %6135 = vmatpush.msra.mxu0 0.0
  %6136 = vmatpush.msra.mxu0 0.0
  %6137 = vmatpush.msra.mxu0 %v6112
  %6138 = vmatpush.msra.mxu0 %v6110
  %6139 = vmatmul.f32.gmra.mxu0 %v6121
  %v6140 = vpop.f32.mrf.mxu0
  %v6141 = vadd.f32 0.0, %v6140
  %6142 = vdwg.mxu0
  %6143 = vmatpush.msra.mxu0 0.0
  %6144 = vmatpush.msra.mxu0 0.0
  %6145 = vmatpush.msra.mxu0 0.0
  %6146 = vmatpush.msra.mxu0 0.0
  %6147 = vmatpush.msra.mxu0 0.0
  %6148 = vmatpush.msra.mxu0 0.0
  %6149 = vmatpush.msra.mxu0 0.0
  %6150 = vmatpush.msra.mxu0 0.0
  %6151 = vmatpush.msra.mxu0 0.0
  %6152 = vmatpush.msra.mxu0 0.0
  %6153 = vmatpush.msra.mxu0 0.0
  %6154 = vmatpush.msra.mxu0 0.0
  %6155 = vmatpush.msra.mxu0 0.0
  %6156 = vmatpush.msra.mxu0 0.0
  %6157 = vmatpush.msra.mxu0 %v6113
  %6158 = vmatpush.msra.mxu0 %v6111
  %6159 = vmatmul.f32.gmra.mxu0 %v6121
  %v6160 = vpop.f32.mrf.mxu0
  %v6161 = vadd.f32 0.0, %v6160
  %6162 = vdwg.mxu0
  %6163 = vmatpush.msra.mxu0 0.0
  %6164 = vmatpush.msra.mxu0 0.0
  %6165 = vmatpush.msra.mxu0 0.0
  %6166 = vmatpush.msra.mxu0 0.0
  %6167 = vmatpush.msra.mxu0 0.0
  %6168 = vmatpush.msra.mxu0 0.0
  %6169 = vmatpush.msra.mxu0 0.0
  %6170 = vmatpush.msra.mxu0 0.0
  %6171 = vmatpush.msra.mxu0 0.0
  %6172 = vmatpush.msra.mxu0 0.0
  %6173 = vmatpush.msra.mxu0 0.0
  %6174 = vmatpush.msra.mxu0 0.0
  %6175 = vmatpush.msra.mxu0 0.0
  %6176 = vmatpush.msra.mxu0 0.0
  %6177 = vmatpush.msra.mxu0 %v6109
  %6178 = vmatpush.msra.mxu0 %v6103
  %6179 = vmatmul.f32.gmra.mxu0 %v6121
  %v6180 = vpop.f32.mrf.mxu0
  %v6181 = vadd.f32 0.0, %v6180
  %6182 = vdwg.mxu0
  %v6183 = vadd.f32 %v6094, %v6141
  %v6184 = vadd.f32 %v6095, %v6161
  %v6185 = vadd.f32 %v6096, %v6181
  %v6186 = vld [vmem:[%s3 + $0x2e8] sm:$0xff]
  %6187 = vrot.lane.b32.xlu0 %v5356, 112
  %v6188 = vpop.permute.xlu0 %6187
  %6189 = vrot.lane.b32.xlu0 %v5379, 112
  %v6190 = vpop.permute.xlu0 %6189
  %6191 = vrot.lane.b32.xlu0 %v5402, 112
  %v6192 = vpop.permute.xlu0 %6191
  %6193 = vrot.lane.b32.xlu0 %v5359, 112
  %v6194 = vpop.permute.xlu0 %6193
  %6195 = vrot.lane.b32.xlu0 %v5382, 112
  %v6196 = vpop.permute.xlu0 %6195
  %6197 = vrot.lane.b32.xlu0 %v5405, 112
  %v6198 = vpop.permute.xlu0 %6197
  %v6199 = vsel %vm3672, %v6188, %v6190
  %v6200 = vsel %vm3672, %v6190, %v6192
  %v6201 = vsel %vm3672, %v6194, %v6196
  %v6202 = vsel %vm3672, %v6196, %v6198
  %v6210 = vsel %vm613, %v6186, 0
  %6212 = vmatpush.msra.mxu0 0.0
  %6213 = vmatpush.msra.mxu0 0.0
  %6214 = vmatpush.msra.mxu0 0.0
  %6215 = vmatpush.msra.mxu0 0.0
  %6216 = vmatpush.msra.mxu0 0.0
  %6217 = vmatpush.msra.mxu0 0.0
  %6218 = vmatpush.msra.mxu0 0.0
  %6219 = vmatpush.msra.mxu0 0.0
  %6220 = vmatpush.msra.mxu0 0.0
  %6221 = vmatpush.msra.mxu0 0.0
  %6222 = vmatpush.msra.mxu0 0.0
  %6223 = vmatpush.msra.mxu0 0.0
  %6224 = vmatpush.msra.mxu0 0.0
  %6225 = vmatpush.msra.mxu0 0.0
  %6226 = vmatpush.msra.mxu0 %v6201
  %6227 = vmatpush.msra.mxu0 %v6199
  %6228 = vmatmul.f32.gmra.mxu0 %v6210
  %v6229 = vpop.f32.mrf.mxu0
  %v6230 = vadd.f32 0.0, %v6229
  %6231 = vdwg.mxu0
  %6232 = vmatpush.msra.mxu0 0.0
  %6233 = vmatpush.msra.mxu0 0.0
  %6234 = vmatpush.msra.mxu0 0.0
  %6235 = vmatpush.msra.mxu0 0.0
  %6236 = vmatpush.msra.mxu0 0.0
  %6237 = vmatpush.msra.mxu0 0.0
  %6238 = vmatpush.msra.mxu0 0.0
  %6239 = vmatpush.msra.mxu0 0.0
  %6240 = vmatpush.msra.mxu0 0.0
  %6241 = vmatpush.msra.mxu0 0.0
  %6242 = vmatpush.msra.mxu0 0.0
  %6243 = vmatpush.msra.mxu0 0.0
  %6244 = vmatpush.msra.mxu0 0.0
  %6245 = vmatpush.msra.mxu0 0.0
  %6246 = vmatpush.msra.mxu0 %v6202
  %6247 = vmatpush.msra.mxu0 %v6200
  %6248 = vmatmul.f32.gmra.mxu0 %v6210
  %v6249 = vpop.f32.mrf.mxu0
  %v6250 = vadd.f32 0.0, %v6249
  %6251 = vdwg.mxu0
  %6252 = vmatpush.msra.mxu0 0.0
  %6253 = vmatpush.msra.mxu0 0.0
  %6254 = vmatpush.msra.mxu0 0.0
  %6255 = vmatpush.msra.mxu0 0.0
  %6256 = vmatpush.msra.mxu0 0.0
  %6257 = vmatpush.msra.mxu0 0.0
  %6258 = vmatpush.msra.mxu0 0.0
  %6259 = vmatpush.msra.mxu0 0.0
  %6260 = vmatpush.msra.mxu0 0.0
  %6261 = vmatpush.msra.mxu0 0.0
  %6262 = vmatpush.msra.mxu0 0.0
  %6263 = vmatpush.msra.mxu0 0.0
  %6264 = vmatpush.msra.mxu0 0.0
  %6265 = vmatpush.msra.mxu0 0.0
  %6266 = vmatpush.msra.mxu0 %v6198
  %6267 = vmatpush.msra.mxu0 %v6192
  %6268 = vmatmul.f32.gmra.mxu0 %v6210
  %v6269 = vpop.f32.mrf.mxu0
  %v6270 = vadd.f32 0.0, %v6269
  %6271 = vdwg.mxu0
  %v6272 = vadd.f32 %v6183, %v6230
  %v6273 = vadd.f32 %v6184, %v6250
  %v6274 = vadd.f32 %v6185, %v6270
  %v6275 = vld [vmem:[%s3 + $0x2f0] sm:$0xff]
  %6276 = vrot.lane.b32.xlu0 %v5356, 104
  %v6277 = vpop.permute.xlu0 %6276
  %6278 = vrot.lane.b32.xlu0 %v5379, 104
  %v6279 = vpop.permute.xlu0 %6278
  %6280 = vrot.lane.b32.xlu0 %v5402, 104
  %v6281 = vpop.permute.xlu0 %6280
  %6282 = vrot.lane.b32.xlu0 %v5359, 104
  %v6283 = vpop.permute.xlu0 %6282
  %6284 = vrot.lane.b32.xlu0 %v5382, 104
  %v6285 = vpop.permute.xlu0 %6284
  %6286 = vrot.lane.b32.xlu0 %v5405, 104
  %v6287 = vpop.permute.xlu0 %6286
  %v6288 = vsel %vm3767, %v6277, %v6279
  %v6289 = vsel %vm3767, %v6279, %v6281
  %v6290 = vsel %vm3767, %v6283, %v6285
  %v6291 = vsel %vm3767, %v6285, %v6287
  %v6299 = vsel %vm613, %v6275, 0
  %6301 = vmatpush.msra.mxu0 0.0
  %6302 = vmatpush.msra.mxu0 0.0
  %6303 = vmatpush.msra.mxu0 0.0
  %6304 = vmatpush.msra.mxu0 0.0
  %6305 = vmatpush.msra.mxu0 0.0
  %6306 = vmatpush.msra.mxu0 0.0
  %6307 = vmatpush.msra.mxu0 0.0
  %6308 = vmatpush.msra.mxu0 0.0
  %6309 = vmatpush.msra.mxu0 0.0
  %6310 = vmatpush.msra.mxu0 0.0
  %6311 = vmatpush.msra.mxu0 0.0
  %6312 = vmatpush.msra.mxu0 0.0
  %6313 = vmatpush.msra.mxu0 0.0
  %6314 = vmatpush.msra.mxu0 0.0
  %6315 = vmatpush.msra.mxu0 %v6290
  %6316 = vmatpush.msra.mxu0 %v6288
  %6317 = vmatmul.f32.gmra.mxu0 %v6299
  %v6318 = vpop.f32.mrf.mxu0
  %v6319 = vadd.f32 0.0, %v6318
  %6320 = vdwg.mxu0
  %6321 = vmatpush.msra.mxu0 0.0
  %6322 = vmatpush.msra.mxu0 0.0
  %6323 = vmatpush.msra.mxu0 0.0
  %6324 = vmatpush.msra.mxu0 0.0
  %6325 = vmatpush.msra.mxu0 0.0
  %6326 = vmatpush.msra.mxu0 0.0
  %6327 = vmatpush.msra.mxu0 0.0
  %6328 = vmatpush.msra.mxu0 0.0
  %6329 = vmatpush.msra.mxu0 0.0
  %6330 = vmatpush.msra.mxu0 0.0
  %6331 = vmatpush.msra.mxu0 0.0
  %6332 = vmatpush.msra.mxu0 0.0
  %6333 = vmatpush.msra.mxu0 0.0
  %6334 = vmatpush.msra.mxu0 0.0
  %6335 = vmatpush.msra.mxu0 %v6291
  %6336 = vmatpush.msra.mxu0 %v6289
  %6337 = vmatmul.f32.gmra.mxu0 %v6299
  %v6338 = vpop.f32.mrf.mxu0
  %v6339 = vadd.f32 0.0, %v6338
  %6340 = vdwg.mxu0
  %6341 = vmatpush.msra.mxu0 0.0
  %6342 = vmatpush.msra.mxu0 0.0
  %6343 = vmatpush.msra.mxu0 0.0
  %6344 = vmatpush.msra.mxu0 0.0
  %6345 = vmatpush.msra.mxu0 0.0
  %6346 = vmatpush.msra.mxu0 0.0
  %6347 = vmatpush.msra.mxu0 0.0
  %6348 = vmatpush.msra.mxu0 0.0
  %6349 = vmatpush.msra.mxu0 0.0
  %6350 = vmatpush.msra.mxu0 0.0
  %6351 = vmatpush.msra.mxu0 0.0
  %6352 = vmatpush.msra.mxu0 0.0
  %6353 = vmatpush.msra.mxu0 0.0
  %6354 = vmatpush.msra.mxu0 0.0
  %6355 = vmatpush.msra.mxu0 %v6287
  %6356 = vmatpush.msra.mxu0 %v6281
  %6357 = vmatmul.f32.gmra.mxu0 %v6299
  %v6358 = vpop.f32.mrf.mxu0
  %v6359 = vadd.f32 0.0, %v6358
  %6360 = vdwg.mxu0
  %v6361 = vadd.f32 %v6272, %v6319
  %v6362 = vadd.f32 %v6273, %v6339
  %v6363 = vadd.f32 %v6274, %v6359
  %v6364 = vld [vmem:[%s3 + $0x2f8] sm:$0xff]
  %6365 = vrot.lane.b32.xlu0 %v5356, 103
  %v6366 = vpop.permute.xlu0 %6365
  %6367 = vrot.lane.b32.xlu0 %v5379, 103
  %v6368 = vpop.permute.xlu0 %6367
  %6369 = vrot.lane.b32.xlu0 %v5402, 103
  %v6370 = vpop.permute.xlu0 %6369
  %6371 = vrot.lane.b32.xlu0 %v5359, 103
  %v6372 = vpop.permute.xlu0 %6371
  %6373 = vrot.lane.b32.xlu0 %v5382, 103
  %v6374 = vpop.permute.xlu0 %6373
  %6375 = vrot.lane.b32.xlu0 %v5405, 103
  %v6376 = vpop.permute.xlu0 %6375
  %v6377 = vsel %vm3862, %v6366, %v6368
  %v6378 = vsel %vm3862, %v6368, %v6370
  %v6379 = vsel %vm3862, %v6372, %v6374
  %v6380 = vsel %vm3862, %v6374, %v6376
  %v6388 = vsel %vm613, %v6364, 0
  %6390 = vmatpush.msra.mxu0 0.0
  %6391 = vmatpush.msra.mxu0 0.0
  %6392 = vmatpush.msra.mxu0 0.0
  %6393 = vmatpush.msra.mxu0 0.0
  %6394 = vmatpush.msra.mxu0 0.0
  %6395 = vmatpush.msra.mxu0 0.0
  %6396 = vmatpush.msra.mxu0 0.0
  %6397 = vmatpush.msra.mxu0 0.0
  %6398 = vmatpush.msra.mxu0 0.0
  %6399 = vmatpush.msra.mxu0 0.0
  %6400 = vmatpush.msra.mxu0 0.0
  %6401 = vmatpush.msra.mxu0 0.0
  %6402 = vmatpush.msra.mxu0 0.0
  %6403 = vmatpush.msra.mxu0 0.0
  %6404 = vmatpush.msra.mxu0 %v6379
  %6405 = vmatpush.msra.mxu0 %v6377
  %6406 = vmatmul.f32.gmra.mxu0 %v6388
  %v6407 = vpop.f32.mrf.mxu0
  %v6408 = vadd.f32 0.0, %v6407
  %6409 = vdwg.mxu0
  %6410 = vmatpush.msra.mxu0 0.0
  %6411 = vmatpush.msra.mxu0 0.0
  %6412 = vmatpush.msra.mxu0 0.0
  %6413 = vmatpush.msra.mxu0 0.0
  %6414 = vmatpush.msra.mxu0 0.0
  %6415 = vmatpush.msra.mxu0 0.0
  %6416 = vmatpush.msra.mxu0 0.0
  %6417 = vmatpush.msra.mxu0 0.0
  %6418 = vmatpush.msra.mxu0 0.0
  %6419 = vmatpush.msra.mxu0 0.0
  %6420 = vmatpush.msra.mxu0 0.0
  %6421 = vmatpush.msra.mxu0 0.0
  %6422 = vmatpush.msra.mxu0 0.0
  %6423 = vmatpush.msra.mxu0 0.0
  %6424 = vmatpush.msra.mxu0 %v6380
  %6425 = vmatpush.msra.mxu0 %v6378
  %6426 = vmatmul.f32.gmra.mxu0 %v6388
  %v6427 = vpop.f32.mrf.mxu0
  %v6428 = vadd.f32 0.0, %v6427
  %6429 = vdwg.mxu0
  %6430 = vmatpush.msra.mxu0 0.0
  %6431 = vmatpush.msra.mxu0 0.0
  %6432 = vmatpush.msra.mxu0 0.0
  %6433 = vmatpush.msra.mxu0 0.0
  %6434 = vmatpush.msra.mxu0 0.0
  %6435 = vmatpush.msra.mxu0 0.0
  %6436 = vmatpush.msra.mxu0 0.0
  %6437 = vmatpush.msra.mxu0 0.0
  %6438 = vmatpush.msra.mxu0 0.0
  %6439 = vmatpush.msra.mxu0 0.0
  %6440 = vmatpush.msra.mxu0 0.0
  %6441 = vmatpush.msra.mxu0 0.0
  %6442 = vmatpush.msra.mxu0 0.0
  %6443 = vmatpush.msra.mxu0 0.0
  %6444 = vmatpush.msra.mxu0 %v6376
  %6445 = vmatpush.msra.mxu0 %v6370
  %6446 = vmatmul.f32.gmra.mxu0 %v6388
  %v6447 = vpop.f32.mrf.mxu0
  %v6448 = vadd.f32 0.0, %v6447
  %6449 = vdwg.mxu0
  %v6450 = vadd.f32 %v6361, %v6408
  %v6451 = vadd.f32 %v6362, %v6428
  %v6452 = vadd.f32 %v6363, %v6448
  %v6453 = vld [vmem:[%s3 + $0x300] sm:$0xff]
  %6454 = vrot.lane.b32.xlu0 %v5356, 102
  %v6455 = vpop.permute.xlu0 %6454
  %6456 = vrot.lane.b32.xlu0 %v5379, 102
  %v6457 = vpop.permute.xlu0 %6456
  %6458 = vrot.lane.b32.xlu0 %v5402, 102
  %v6459 = vpop.permute.xlu0 %6458
  %6460 = vrot.lane.b32.xlu0 %v5359, 102
  %v6461 = vpop.permute.xlu0 %6460
  %6462 = vrot.lane.b32.xlu0 %v5382, 102
  %v6463 = vpop.permute.xlu0 %6462
  %6464 = vrot.lane.b32.xlu0 %v5405, 102
  %v6465 = vpop.permute.xlu0 %6464
  %v6466 = vsel %vm3957, %v6455, %v6457
  %v6467 = vsel %vm3957, %v6457, %v6459
  %v6468 = vsel %vm3957, %v6461, %v6463
  %v6469 = vsel %vm3957, %v6463, %v6465
  %v6477 = vsel %vm613, %v6453, 0
  %6479 = vmatpush.msra.mxu0 0.0
  %6480 = vmatpush.msra.mxu0 0.0
  %6481 = vmatpush.msra.mxu0 0.0
  %6482 = vmatpush.msra.mxu0 0.0
  %6483 = vmatpush.msra.mxu0 0.0
  %6484 = vmatpush.msra.mxu0 0.0
  %6485 = vmatpush.msra.mxu0 0.0
  %6486 = vmatpush.msra.mxu0 0.0
  %6487 = vmatpush.msra.mxu0 0.0
  %6488 = vmatpush.msra.mxu0 0.0
  %6489 = vmatpush.msra.mxu0 0.0
  %6490 = vmatpush.msra.mxu0 0.0
  %6491 = vmatpush.msra.mxu0 0.0
  %6492 = vmatpush.msra.mxu0 0.0
  %6493 = vmatpush.msra.mxu0 %v6468
  %6494 = vmatpush.msra.mxu0 %v6466
  %6495 = vmatmul.f32.gmra.mxu0 %v6477
  %v6496 = vpop.f32.mrf.mxu0
  %v6497 = vadd.f32 0.0, %v6496
  %6498 = vdwg.mxu0
  %6499 = vmatpush.msra.mxu0 0.0
  %6500 = vmatpush.msra.mxu0 0.0
  %6501 = vmatpush.msra.mxu0 0.0
  %6502 = vmatpush.msra.mxu0 0.0
  %6503 = vmatpush.msra.mxu0 0.0
  %6504 = vmatpush.msra.mxu0 0.0
  %6505 = vmatpush.msra.mxu0 0.0
  %6506 = vmatpush.msra.mxu0 0.0
  %6507 = vmatpush.msra.mxu0 0.0
  %6508 = vmatpush.msra.mxu0 0.0
  %6509 = vmatpush.msra.mxu0 0.0
  %6510 = vmatpush.msra.mxu0 0.0
  %6511 = vmatpush.msra.mxu0 0.0
  %6512 = vmatpush.msra.mxu0 0.0
  %6513 = vmatpush.msra.mxu0 %v6469
  %6514 = vmatpush.msra.mxu0 %v6467
  %6515 = vmatmul.f32.gmra.mxu0 %v6477
  %v6516 = vpop.f32.mrf.mxu0
  %v6517 = vadd.f32 0.0, %v6516
  %6518 = vdwg.mxu0
  %6519 = vmatpush.msra.mxu0 0.0
  %6520 = vmatpush.msra.mxu0 0.0
  %6521 = vmatpush.msra.mxu0 0.0
  %6522 = vmatpush.msra.mxu0 0.0
  %6523 = vmatpush.msra.mxu0 0.0
  %6524 = vmatpush.msra.mxu0 0.0
  %6525 = vmatpush.msra.mxu0 0.0
  %6526 = vmatpush.msra.mxu0 0.0
  %6527 = vmatpush.msra.mxu0 0.0
  %6528 = vmatpush.msra.mxu0 0.0
  %6529 = vmatpush.msra.mxu0 0.0
  %6530 = vmatpush.msra.mxu0 0.0
  %6531 = vmatpush.msra.mxu0 0.0
  %6532 = vmatpush.msra.mxu0 0.0
  %6533 = vmatpush.msra.mxu0 %v6465
  %6534 = vmatpush.msra.mxu0 %v6459
  %6535 = vmatmul.f32.gmra.mxu0 %v6477
  %v6536 = vpop.f32.mrf.mxu0
  %v6537 = vadd.f32 0.0, %v6536
  %6538 = vdwg.mxu0
  %v6539 = vadd.f32 %v6450, %v6497
  %v6540 = vadd.f32 %v6451, %v6517
  %v6541 = vadd.f32 %v6452, %v6537
  %v6542 = vld [vmem:[%s3 + $0x308] sm:$0xff]
  %6543 = vrot.lane.b32.xlu0 %v5356, 101
  %v6544 = vpop.permute.xlu0 %6543
  %6545 = vrot.lane.b32.xlu0 %v5379, 101
  %v6546 = vpop.permute.xlu0 %6545
  %6547 = vrot.lane.b32.xlu0 %v5402, 101
  %v6548 = vpop.permute.xlu0 %6547
  %6549 = vrot.lane.b32.xlu0 %v5359, 101
  %v6550 = vpop.permute.xlu0 %6549
  %6551 = vrot.lane.b32.xlu0 %v5382, 101
  %v6552 = vpop.permute.xlu0 %6551
  %6553 = vrot.lane.b32.xlu0 %v5405, 101
  %v6554 = vpop.permute.xlu0 %6553
  %v6555 = vsel %vm4052, %v6544, %v6546
  %v6556 = vsel %vm4052, %v6546, %v6548
  %v6557 = vsel %vm4052, %v6550, %v6552
  %v6558 = vsel %vm4052, %v6552, %v6554
  %v6566 = vsel %vm613, %v6542, 0
  %6568 = vmatpush.msra.mxu0 0.0
  %6569 = vmatpush.msra.mxu0 0.0
  %6570 = vmatpush.msra.mxu0 0.0
  %6571 = vmatpush.msra.mxu0 0.0
  %6572 = vmatpush.msra.mxu0 0.0
  %6573 = vmatpush.msra.mxu0 0.0
  %6574 = vmatpush.msra.mxu0 0.0
  %6575 = vmatpush.msra.mxu0 0.0
  %6576 = vmatpush.msra.mxu0 0.0
  %6577 = vmatpush.msra.mxu0 0.0
  %6578 = vmatpush.msra.mxu0 0.0
  %6579 = vmatpush.msra.mxu0 0.0
  %6580 = vmatpush.msra.mxu0 0.0
  %6581 = vmatpush.msra.mxu0 0.0
  %6582 = vmatpush.msra.mxu0 %v6557
  %6583 = vmatpush.msra.mxu0 %v6555
  %6584 = vmatmul.f32.gmra.mxu0 %v6566
  %v6585 = vpop.f32.mrf.mxu0
  %v6586 = vadd.f32 0.0, %v6585
  %6587 = vdwg.mxu0
  %6588 = vmatpush.msra.mxu0 0.0
  %6589 = vmatpush.msra.mxu0 0.0
  %6590 = vmatpush.msra.mxu0 0.0
  %6591 = vmatpush.msra.mxu0 0.0
  %6592 = vmatpush.msra.mxu0 0.0
  %6593 = vmatpush.msra.mxu0 0.0
  %6594 = vmatpush.msra.mxu0 0.0
  %6595 = vmatpush.msra.mxu0 0.0
  %6596 = vmatpush.msra.mxu0 0.0
  %6597 = vmatpush.msra.mxu0 0.0
  %6598 = vmatpush.msra.mxu0 0.0
  %6599 = vmatpush.msra.mxu0 0.0
  %6600 = vmatpush.msra.mxu0 0.0
  %6601 = vmatpush.msra.mxu0 0.0
  %6602 = vmatpush.msra.mxu0 %v6558
  %6603 = vmatpush.msra.mxu0 %v6556
  %6604 = vmatmul.f32.gmra.mxu0 %v6566
  %v6605 = vpop.f32.mrf.mxu0
  %v6606 = vadd.f32 0.0, %v6605
  %6607 = vdwg.mxu0
  %6608 = vmatpush.msra.mxu0 0.0
  %6609 = vmatpush.msra.mxu0 0.0
  %6610 = vmatpush.msra.mxu0 0.0
  %6611 = vmatpush.msra.mxu0 0.0
  %6612 = vmatpush.msra.mxu0 0.0
  %6613 = vmatpush.msra.mxu0 0.0
  %6614 = vmatpush.msra.mxu0 0.0
  %6615 = vmatpush.msra.mxu0 0.0
  %6616 = vmatpush.msra.mxu0 0.0
  %6617 = vmatpush.msra.mxu0 0.0
  %6618 = vmatpush.msra.mxu0 0.0
  %6619 = vmatpush.msra.mxu0 0.0
  %6620 = vmatpush.msra.mxu0 0.0
  %6621 = vmatpush.msra.mxu0 0.0
  %6622 = vmatpush.msra.mxu0 %v6554
  %6623 = vmatpush.msra.mxu0 %v6548
  %6624 = vmatmul.f32.gmra.mxu0 %v6566
  %v6625 = vpop.f32.mrf.mxu0
  %v6626 = vadd.f32 0.0, %v6625
  %6627 = vdwg.mxu0
  %v6628 = vadd.f32 %v6539, %v6586
  %v6629 = vadd.f32 %v6540, %v6606
  %v6630 = vadd.f32 %v6541, %v6626
  %v6631 = vld [vmem:[%s3 + $0x310] sm:$0xff]
  %6632 = vrot.lane.b32.xlu0 %v5356, 100
  %v6633 = vpop.permute.xlu0 %6632
  %6634 = vrot.lane.b32.xlu0 %v5379, 100
  %v6635 = vpop.permute.xlu0 %6634
  %6636 = vrot.lane.b32.xlu0 %v5402, 100
  %v6637 = vpop.permute.xlu0 %6636
  %6638 = vrot.lane.b32.xlu0 %v5359, 100
  %v6639 = vpop.permute.xlu0 %6638
  %6640 = vrot.lane.b32.xlu0 %v5382, 100
  %v6641 = vpop.permute.xlu0 %6640
  %6642 = vrot.lane.b32.xlu0 %v5405, 100
  %v6643 = vpop.permute.xlu0 %6642
  %v6644 = vsel %vm4147, %v6633, %v6635
  %v6645 = vsel %vm4147, %v6635, %v6637
  %v6646 = vsel %vm4147, %v6639, %v6641
  %v6647 = vsel %vm4147, %v6641, %v6643
  %v6655 = vsel %vm613, %v6631, 0
  %6657 = vmatpush.msra.mxu0 0.0
  %6658 = vmatpush.msra.mxu0 0.0
  %6659 = vmatpush.msra.mxu0 0.0
  %6660 = vmatpush.msra.mxu0 0.0
  %6661 = vmatpush.msra.mxu0 0.0
  %6662 = vmatpush.msra.mxu0 0.0
  %6663 = vmatpush.msra.mxu0 0.0
  %6664 = vmatpush.msra.mxu0 0.0
  %6665 = vmatpush.msra.mxu0 0.0
  %6666 = vmatpush.msra.mxu0 0.0
  %6667 = vmatpush.msra.mxu0 0.0
  %6668 = vmatpush.msra.mxu0 0.0
  %6669 = vmatpush.msra.mxu0 0.0
  %6670 = vmatpush.msra.mxu0 0.0
  %6671 = vmatpush.msra.mxu0 %v6646
  %6672 = vmatpush.msra.mxu0 %v6644
  %6673 = vmatmul.f32.gmra.mxu0 %v6655
  %v6674 = vpop.f32.mrf.mxu0
  %v6675 = vadd.f32 0.0, %v6674
  %6676 = vdwg.mxu0
  %6677 = vmatpush.msra.mxu0 0.0
  %6678 = vmatpush.msra.mxu0 0.0
  %6679 = vmatpush.msra.mxu0 0.0
  %6680 = vmatpush.msra.mxu0 0.0
  %6681 = vmatpush.msra.mxu0 0.0
  %6682 = vmatpush.msra.mxu0 0.0
  %6683 = vmatpush.msra.mxu0 0.0
  %6684 = vmatpush.msra.mxu0 0.0
  %6685 = vmatpush.msra.mxu0 0.0
  %6686 = vmatpush.msra.mxu0 0.0
  %6687 = vmatpush.msra.mxu0 0.0
  %6688 = vmatpush.msra.mxu0 0.0
  %6689 = vmatpush.msra.mxu0 0.0
  %6690 = vmatpush.msra.mxu0 0.0
  %6691 = vmatpush.msra.mxu0 %v6647
  %6692 = vmatpush.msra.mxu0 %v6645
  %6693 = vmatmul.f32.gmra.mxu0 %v6655
  %v6694 = vpop.f32.mrf.mxu0
  %v6695 = vadd.f32 0.0, %v6694
  %6696 = vdwg.mxu0
  %6697 = vmatpush.msra.mxu0 0.0
  %6698 = vmatpush.msra.mxu0 0.0
  %6699 = vmatpush.msra.mxu0 0.0
  %6700 = vmatpush.msra.mxu0 0.0
  %6701 = vmatpush.msra.mxu0 0.0
  %6702 = vmatpush.msra.mxu0 0.0
  %6703 = vmatpush.msra.mxu0 0.0
  %6704 = vmatpush.msra.mxu0 0.0
  %6705 = vmatpush.msra.mxu0 0.0
  %6706 = vmatpush.msra.mxu0 0.0
  %6707 = vmatpush.msra.mxu0 0.0
  %6708 = vmatpush.msra.mxu0 0.0
  %6709 = vmatpush.msra.mxu0 0.0
  %6710 = vmatpush.msra.mxu0 0.0
  %6711 = vmatpush.msra.mxu0 %v6643
  %6712 = vmatpush.msra.mxu0 %v6637
  %6713 = vmatmul.f32.gmra.mxu0 %v6655
  %v6714 = vpop.f32.mrf.mxu0
  %v6715 = vadd.f32 0.0, %v6714
  %6716 = vdwg.mxu0
  %v6717 = vadd.f32 %v6628, %v6675
  %v6718 = vadd.f32 %v6629, %v6695
  %v6719 = vadd.f32 %v6630, %v6715
  %v6720 = vld [vmem:[%s3 + $0x318] sm:$0xff]
  %6721 = vrot.lane.b32.xlu0 %v5356, 92
  %v6722 = vpop.permute.xlu0 %6721
  %6723 = vrot.lane.b32.xlu0 %v5379, 92
  %v6724 = vpop.permute.xlu0 %6723
  %6725 = vrot.lane.b32.xlu0 %v5402, 92
  %v6726 = vpop.permute.xlu0 %6725
  %6727 = vrot.lane.b32.xlu0 %v5359, 92
  %v6728 = vpop.permute.xlu0 %6727
  %6729 = vrot.lane.b32.xlu0 %v5382, 92
  %v6730 = vpop.permute.xlu0 %6729
  %6731 = vrot.lane.b32.xlu0 %v5405, 92
  %v6732 = vpop.permute.xlu0 %6731
  %v6733 = vsel %vm4242, %v6722, %v6724
  %v6734 = vsel %vm4242, %v6724, %v6726
  %v6735 = vsel %vm4242, %v6728, %v6730
  %v6736 = vsel %vm4242, %v6730, %v6732
  %v6744 = vsel %vm613, %v6720, 0
  %6746 = vmatpush.msra.mxu0 0.0
  %6747 = vmatpush.msra.mxu0 0.0
  %6748 = vmatpush.msra.mxu0 0.0
  %6749 = vmatpush.msra.mxu0 0.0
  %6750 = vmatpush.msra.mxu0 0.0
  %6751 = vmatpush.msra.mxu0 0.0
  %6752 = vmatpush.msra.mxu0 0.0
  %6753 = vmatpush.msra.mxu0 0.0
  %6754 = vmatpush.msra.mxu0 0.0
  %6755 = vmatpush.msra.mxu0 0.0
  %6756 = vmatpush.msra.mxu0 0.0
  %6757 = vmatpush.msra.mxu0 0.0
  %6758 = vmatpush.msra.mxu0 0.0
  %6759 = vmatpush.msra.mxu0 0.0
  %6760 = vmatpush.msra.mxu0 %v6735
  %6761 = vmatpush.msra.mxu0 %v6733
  %6762 = vmatmul.f32.gmra.mxu0 %v6744
  %v6763 = vpop.f32.mrf.mxu0
  %v6764 = vadd.f32 0.0, %v6763
  %6765 = vdwg.mxu0
  %6766 = vmatpush.msra.mxu0 0.0
  %6767 = vmatpush.msra.mxu0 0.0
  %6768 = vmatpush.msra.mxu0 0.0
  %6769 = vmatpush.msra.mxu0 0.0
  %6770 = vmatpush.msra.mxu0 0.0
  %6771 = vmatpush.msra.mxu0 0.0
  %6772 = vmatpush.msra.mxu0 0.0
  %6773 = vmatpush.msra.mxu0 0.0
  %6774 = vmatpush.msra.mxu0 0.0
  %6775 = vmatpush.msra.mxu0 0.0
  %6776 = vmatpush.msra.mxu0 0.0
  %6777 = vmatpush.msra.mxu0 0.0
  %6778 = vmatpush.msra.mxu0 0.0
  %6779 = vmatpush.msra.mxu0 0.0
  %6780 = vmatpush.msra.mxu0 %v6736
  %6781 = vmatpush.msra.mxu0 %v6734
  %6782 = vmatmul.f32.gmra.mxu0 %v6744
  %v6783 = vpop.f32.mrf.mxu0
  %v6784 = vadd.f32 0.0, %v6783
  %6785 = vdwg.mxu0
  %6786 = vmatpush.msra.mxu0 0.0
  %6787 = vmatpush.msra.mxu0 0.0
  %6788 = vmatpush.msra.mxu0 0.0
  %6789 = vmatpush.msra.mxu0 0.0
  %6790 = vmatpush.msra.mxu0 0.0
  %6791 = vmatpush.msra.mxu0 0.0
  %6792 = vmatpush.msra.mxu0 0.0
  %6793 = vmatpush.msra.mxu0 0.0
  %6794 = vmatpush.msra.mxu0 0.0
  %6795 = vmatpush.msra.mxu0 0.0
  %6796 = vmatpush.msra.mxu0 0.0
  %6797 = vmatpush.msra.mxu0 0.0
  %6798 = vmatpush.msra.mxu0 0.0
  %6799 = vmatpush.msra.mxu0 0.0
  %6800 = vmatpush.msra.mxu0 %v6732
  %6801 = vmatpush.msra.mxu0 %v6726
  %6802 = vmatmul.f32.gmra.mxu0 %v6744
  %v6803 = vpop.f32.mrf.mxu0
  %v6804 = vadd.f32 0.0, %v6803
  %6805 = vdwg.mxu0
  %v6806 = vadd.f32 %v6717, %v6764
  %v6807 = vadd.f32 %v6718, %v6784
  %v6808 = vadd.f32 %v6719, %v6804
  %v6809 = vld [vmem:[%s3 + $0x320] sm:$0xff]
  %6810 = vrot.lane.b32.xlu0 %v5356, 91
  %v6811 = vpop.permute.xlu0 %6810
  %6812 = vrot.lane.b32.xlu0 %v5379, 91
  %v6813 = vpop.permute.xlu0 %6812
  %6814 = vrot.lane.b32.xlu0 %v5402, 91
  %v6815 = vpop.permute.xlu0 %6814
  %6816 = vrot.lane.b32.xlu0 %v5359, 91
  %v6817 = vpop.permute.xlu0 %6816
  %6818 = vrot.lane.b32.xlu0 %v5382, 91
  %v6819 = vpop.permute.xlu0 %6818
  %6820 = vrot.lane.b32.xlu0 %v5405, 91
  %v6821 = vpop.permute.xlu0 %6820
  %v6822 = vsel %vm4337, %v6811, %v6813
  %v6823 = vsel %vm4337, %v6813, %v6815
  %v6824 = vsel %vm4337, %v6817, %v6819
  %v6825 = vsel %vm4337, %v6819, %v6821
  %v6833 = vsel %vm613, %v6809, 0
  %6835 = vmatpush.msra.mxu0 0.0
  %6836 = vmatpush.msra.mxu0 0.0
  %6837 = vmatpush.msra.mxu0 0.0
  %6838 = vmatpush.msra.mxu0 0.0
  %6839 = vmatpush.msra.mxu0 0.0
  %6840 = vmatpush.msra.mxu0 0.0
  %6841 = vmatpush.msra.mxu0 0.0
  %6842 = vmatpush.msra.mxu0 0.0
  %6843 = vmatpush.msra.mxu0 0.0
  %6844 = vmatpush.msra.mxu0 0.0
  %6845 = vmatpush.msra.mxu0 0.0
  %6846 = vmatpush.msra.mxu0 0.0
  %6847 = vmatpush.msra.mxu0 0.0
  %6848 = vmatpush.msra.mxu0 0.0
  %6849 = vmatpush.msra.mxu0 %v6824
  %6850 = vmatpush.msra.mxu0 %v6822
  %6851 = vmatmul.f32.gmra.mxu0 %v6833
  %v6852 = vpop.f32.mrf.mxu0
  %v6853 = vadd.f32 0.0, %v6852
  %6854 = vdwg.mxu0
  %6855 = vmatpush.msra.mxu0 0.0
  %6856 = vmatpush.msra.mxu0 0.0
  %6857 = vmatpush.msra.mxu0 0.0
  %6858 = vmatpush.msra.mxu0 0.0
  %6859 = vmatpush.msra.mxu0 0.0
  %6860 = vmatpush.msra.mxu0 0.0
  %6861 = vmatpush.msra.mxu0 0.0
  %6862 = vmatpush.msra.mxu0 0.0
  %6863 = vmatpush.msra.mxu0 0.0
  %6864 = vmatpush.msra.mxu0 0.0
  %6865 = vmatpush.msra.mxu0 0.0
  %6866 = vmatpush.msra.mxu0 0.0
  %6867 = vmatpush.msra.mxu0 0.0
  %6868 = vmatpush.msra.mxu0 0.0
  %6869 = vmatpush.msra.mxu0 %v6825
  %6870 = vmatpush.msra.mxu0 %v6823
  %6871 = vmatmul.f32.gmra.mxu0 %v6833
  %v6872 = vpop.f32.mrf.mxu0
  %v6873 = vadd.f32 0.0, %v6872
  %6874 = vdwg.mxu0
  %6875 = vmatpush.msra.mxu0 0.0
  %6876 = vmatpush.msra.mxu0 0.0
  %6877 = vmatpush.msra.mxu0 0.0
  %6878 = vmatpush.msra.mxu0 0.0
  %6879 = vmatpush.msra.mxu0 0.0
  %6880 = vmatpush.msra.mxu0 0.0
  %6881 = vmatpush.msra.mxu0 0.0
  %6882 = vmatpush.msra.mxu0 0.0
  %6883 = vmatpush.msra.mxu0 0.0
  %6884 = vmatpush.msra.mxu0 0.0
  %6885 = vmatpush.msra.mxu0 0.0
  %6886 = vmatpush.msra.mxu0 0.0
  %6887 = vmatpush.msra.mxu0 0.0
  %6888 = vmatpush.msra.mxu0 0.0
  %6889 = vmatpush.msra.mxu0 %v6821
  %6890 = vmatpush.msra.mxu0 %v6815
  %6891 = vmatmul.f32.gmra.mxu0 %v6833
  %v6892 = vpop.f32.mrf.mxu0
  %v6893 = vadd.f32 0.0, %v6892
  %6894 = vdwg.mxu0
  %v6895 = vadd.f32 %v6806, %v6853
  %v6896 = vadd.f32 %v6807, %v6873
  %v6897 = vadd.f32 %v6808, %v6893
  %v6898 = vld [vmem:[%s3 + $0x328] sm:$0xff]
  %6899 = vrot.lane.b32.xlu0 %v5356, 90
  %v6900 = vpop.permute.xlu0 %6899
  %6901 = vrot.lane.b32.xlu0 %v5379, 90
  %v6902 = vpop.permute.xlu0 %6901
  %6903 = vrot.lane.b32.xlu0 %v5402, 90
  %v6904 = vpop.permute.xlu0 %6903
  %6905 = vrot.lane.b32.xlu0 %v5359, 90
  %v6906 = vpop.permute.xlu0 %6905
  %6907 = vrot.lane.b32.xlu0 %v5382, 90
  %v6908 = vpop.permute.xlu0 %6907
  %6909 = vrot.lane.b32.xlu0 %v5405, 90
  %v6910 = vpop.permute.xlu0 %6909
  %v6911 = vsel %vm4432, %v6900, %v6902
  %v6912 = vsel %vm4432, %v6902, %v6904
  %v6913 = vsel %vm4432, %v6906, %v6908
  %v6914 = vsel %vm4432, %v6908, %v6910
  %v6922 = vsel %vm613, %v6898, 0
  %6924 = vmatpush.msra.mxu0 0.0
  %6925 = vmatpush.msra.mxu0 0.0
  %6926 = vmatpush.msra.mxu0 0.0
  %6927 = vmatpush.msra.mxu0 0.0
  %6928 = vmatpush.msra.mxu0 0.0
  %6929 = vmatpush.msra.mxu0 0.0
  %6930 = vmatpush.msra.mxu0 0.0
  %6931 = vmatpush.msra.mxu0 0.0
  %6932 = vmatpush.msra.mxu0 0.0
  %6933 = vmatpush.msra.mxu0 0.0
  %6934 = vmatpush.msra.mxu0 0.0
  %6935 = vmatpush.msra.mxu0 0.0
  %6936 = vmatpush.msra.mxu0 0.0
  %6937 = vmatpush.msra.mxu0 0.0
  %6938 = vmatpush.msra.mxu0 %v6913
  %6939 = vmatpush.msra.mxu0 %v6911
  %6940 = vmatmul.f32.gmra.mxu0 %v6922
  %v6941 = vpop.f32.mrf.mxu0
  %v6942 = vadd.f32 0.0, %v6941
  %6943 = vdwg.mxu0
  %6944 = vmatpush.msra.mxu0 0.0
  %6945 = vmatpush.msra.mxu0 0.0
  %6946 = vmatpush.msra.mxu0 0.0
  %6947 = vmatpush.msra.mxu0 0.0
  %6948 = vmatpush.msra.mxu0 0.0
  %6949 = vmatpush.msra.mxu0 0.0
  %6950 = vmatpush.msra.mxu0 0.0
  %6951 = vmatpush.msra.mxu0 0.0
  %6952 = vmatpush.msra.mxu0 0.0
  %6953 = vmatpush.msra.mxu0 0.0
  %6954 = vmatpush.msra.mxu0 0.0
  %6955 = vmatpush.msra.mxu0 0.0
  %6956 = vmatpush.msra.mxu0 0.0
  %6957 = vmatpush.msra.mxu0 0.0
  %6958 = vmatpush.msra.mxu0 %v6914
  %6959 = vmatpush.msra.mxu0 %v6912
  %6960 = vmatmul.f32.gmra.mxu0 %v6922
  %v6961 = vpop.f32.mrf.mxu0
  %v6962 = vadd.f32 0.0, %v6961
  %6963 = vdwg.mxu0
  %6964 = vmatpush.msra.mxu0 0.0
  %6965 = vmatpush.msra.mxu0 0.0
  %6966 = vmatpush.msra.mxu0 0.0
  %6967 = vmatpush.msra.mxu0 0.0
  %6968 = vmatpush.msra.mxu0 0.0
  %6969 = vmatpush.msra.mxu0 0.0
  %6970 = vmatpush.msra.mxu0 0.0
  %6971 = vmatpush.msra.mxu0 0.0
  %6972 = vmatpush.msra.mxu0 0.0
  %6973 = vmatpush.msra.mxu0 0.0
  %6974 = vmatpush.msra.mxu0 0.0
  %6975 = vmatpush.msra.mxu0 0.0
  %6976 = vmatpush.msra.mxu0 0.0
  %6977 = vmatpush.msra.mxu0 0.0
  %6978 = vmatpush.msra.mxu0 %v6910
  %6979 = vmatpush.msra.mxu0 %v6904
  %6980 = vmatmul.f32.gmra.mxu0 %v6922
  %v6981 = vpop.f32.mrf.mxu0
  %v6982 = vadd.f32 0.0, %v6981
  %6983 = vdwg.mxu0
  %v6984 = vadd.f32 %v6895, %v6942
  %v6985 = vadd.f32 %v6896, %v6962
  %v6986 = vadd.f32 %v6897, %v6982
  %v6987 = vld [vmem:[%s3 + $0x330] sm:$0xff]
  %6988 = vrot.lane.b32.xlu0 %v5356, 89
  %v6989 = vpop.permute.xlu0 %6988
  %6990 = vrot.lane.b32.xlu0 %v5379, 89
  %v6991 = vpop.permute.xlu0 %6990
  %6992 = vrot.lane.b32.xlu0 %v5402, 89
  %v6993 = vpop.permute.xlu0 %6992
  %6994 = vrot.lane.b32.xlu0 %v5359, 89
  %v6995 = vpop.permute.xlu0 %6994
  %6996 = vrot.lane.b32.xlu0 %v5382, 89
  %v6997 = vpop.permute.xlu0 %6996
  %6998 = vrot.lane.b32.xlu0 %v5405, 89
  %v6999 = vpop.permute.xlu0 %6998
  %v7000 = vsel %vm4527, %v6989, %v6991
  %v7001 = vsel %vm4527, %v6991, %v6993
  %v7002 = vsel %vm4527, %v6995, %v6997
  %v7003 = vsel %vm4527, %v6997, %v6999
  %v7011 = vsel %vm613, %v6987, 0
  %7013 = vmatpush.msra.mxu0 0.0
  %7014 = vmatpush.msra.mxu0 0.0
  %7015 = vmatpush.msra.mxu0 0.0
  %7016 = vmatpush.msra.mxu0 0.0
  %7017 = vmatpush.msra.mxu0 0.0
  %7018 = vmatpush.msra.mxu0 0.0
  %7019 = vmatpush.msra.mxu0 0.0
  %7020 = vmatpush.msra.mxu0 0.0
  %7021 = vmatpush.msra.mxu0 0.0
  %7022 = vmatpush.msra.mxu0 0.0
  %7023 = vmatpush.msra.mxu0 0.0
  %7024 = vmatpush.msra.mxu0 0.0
  %7025 = vmatpush.msra.mxu0 0.0
  %7026 = vmatpush.msra.mxu0 0.0
  %7027 = vmatpush.msra.mxu0 %v7002
  %7028 = vmatpush.msra.mxu0 %v7000
  %7029 = vmatmul.f32.gmra.mxu0 %v7011
  %v7030 = vpop.f32.mrf.mxu0
  %v7031 = vadd.f32 0.0, %v7030
  %7032 = vdwg.mxu0
  %7033 = vmatpush.msra.mxu0 0.0
  %7034 = vmatpush.msra.mxu0 0.0
  %7035 = vmatpush.msra.mxu0 0.0
  %7036 = vmatpush.msra.mxu0 0.0
  %7037 = vmatpush.msra.mxu0 0.0
  %7038 = vmatpush.msra.mxu0 0.0
  %7039 = vmatpush.msra.mxu0 0.0
  %7040 = vmatpush.msra.mxu0 0.0
  %7041 = vmatpush.msra.mxu0 0.0
  %7042 = vmatpush.msra.mxu0 0.0
  %7043 = vmatpush.msra.mxu0 0.0
  %7044 = vmatpush.msra.mxu0 0.0
  %7045 = vmatpush.msra.mxu0 0.0
  %7046 = vmatpush.msra.mxu0 0.0
  %7047 = vmatpush.msra.mxu0 %v7003
  %7048 = vmatpush.msra.mxu0 %v7001
  %7049 = vmatmul.f32.gmra.mxu0 %v7011
  %v7050 = vpop.f32.mrf.mxu0
  %v7051 = vadd.f32 0.0, %v7050
  %7052 = vdwg.mxu0
  %7053 = vmatpush.msra.mxu0 0.0
  %7054 = vmatpush.msra.mxu0 0.0
  %7055 = vmatpush.msra.mxu0 0.0
  %7056 = vmatpush.msra.mxu0 0.0
  %7057 = vmatpush.msra.mxu0 0.0
  %7058 = vmatpush.msra.mxu0 0.0
  %7059 = vmatpush.msra.mxu0 0.0
  %7060 = vmatpush.msra.mxu0 0.0
  %7061 = vmatpush.msra.mxu0 0.0
  %7062 = vmatpush.msra.mxu0 0.0
  %7063 = vmatpush.msra.mxu0 0.0
  %7064 = vmatpush.msra.mxu0 0.0
  %7065 = vmatpush.msra.mxu0 0.0
  %7066 = vmatpush.msra.mxu0 0.0
  %7067 = vmatpush.msra.mxu0 %v6999
  %7068 = vmatpush.msra.mxu0 %v6993
  %7069 = vmatmul.f32.gmra.mxu0 %v7011
  %v7070 = vpop.f32.mrf.mxu0
  %v7071 = vadd.f32 0.0, %v7070
  %7072 = vdwg.mxu0
  %v7073 = vadd.f32 %v6984, %v7031
  %v7074 = vadd.f32 %v6985, %v7051
  %v7075 = vadd.f32 %v6986, %v7071
  %v7076 = vld [vmem:[%s3 + $0x338] sm:$0xff]
  %7077 = vrot.lane.b32.xlu0 %v5356, 88
  %v7078 = vpop.permute.xlu0 %7077
  %7079 = vrot.lane.b32.xlu0 %v5379, 88
  %v7080 = vpop.permute.xlu0 %7079
  %7081 = vrot.lane.b32.xlu0 %v5402, 88
  %v7082 = vpop.permute.xlu0 %7081
  %7083 = vrot.lane.b32.xlu0 %v5359, 88
  %v7084 = vpop.permute.xlu0 %7083
  %7085 = vrot.lane.b32.xlu0 %v5382, 88
  %v7086 = vpop.permute.xlu0 %7085
  %7087 = vrot.lane.b32.xlu0 %v5405, 88
  %v7088 = vpop.permute.xlu0 %7087
  %v7089 = vsel %vm4622, %v7078, %v7080
  %v7090 = vsel %vm4622, %v7080, %v7082
  %v7091 = vsel %vm4622, %v7084, %v7086
  %v7092 = vsel %vm4622, %v7086, %v7088
  %v7100 = vsel %vm613, %v7076, 0
  %7102 = vmatpush.msra.mxu0 0.0
  %7103 = vmatpush.msra.mxu0 0.0
  %7104 = vmatpush.msra.mxu0 0.0
  %7105 = vmatpush.msra.mxu0 0.0
  %7106 = vmatpush.msra.mxu0 0.0
  %7107 = vmatpush.msra.mxu0 0.0
  %7108 = vmatpush.msra.mxu0 0.0
  %7109 = vmatpush.msra.mxu0 0.0
  %7110 = vmatpush.msra.mxu0 0.0
  %7111 = vmatpush.msra.mxu0 0.0
  %7112 = vmatpush.msra.mxu0 0.0
  %7113 = vmatpush.msra.mxu0 0.0
  %7114 = vmatpush.msra.mxu0 0.0
  %7115 = vmatpush.msra.mxu0 0.0
  %7116 = vmatpush.msra.mxu0 %v7091
  %7117 = vmatpush.msra.mxu0 %v7089
  %7118 = vmatmul.f32.gmra.mxu0 %v7100
  %v7119 = vpop.f32.mrf.mxu0
  %v7120 = vadd.f32 0.0, %v7119
  %7121 = vdwg.mxu0
  %7122 = vmatpush.msra.mxu0 0.0
  %7123 = vmatpush.msra.mxu0 0.0
  %7124 = vmatpush.msra.mxu0 0.0
  %7125 = vmatpush.msra.mxu0 0.0
  %7126 = vmatpush.msra.mxu0 0.0
  %7127 = vmatpush.msra.mxu0 0.0
  %7128 = vmatpush.msra.mxu0 0.0
  %7129 = vmatpush.msra.mxu0 0.0
  %7130 = vmatpush.msra.mxu0 0.0
  %7131 = vmatpush.msra.mxu0 0.0
  %7132 = vmatpush.msra.mxu0 0.0
  %7133 = vmatpush.msra.mxu0 0.0
  %7134 = vmatpush.msra.mxu0 0.0
  %7135 = vmatpush.msra.mxu0 0.0
  %7136 = vmatpush.msra.mxu0 %v7092
  %7137 = vmatpush.msra.mxu0 %v7090
  %7138 = vmatmul.f32.gmra.mxu0 %v7100
  %v7139 = vpop.f32.mrf.mxu0
  %v7140 = vadd.f32 0.0, %v7139
  %7141 = vdwg.mxu0
  %7142 = vmatpush.msra.mxu0 0.0
  %7143 = vmatpush.msra.mxu0 0.0
  %7144 = vmatpush.msra.mxu0 0.0
  %7145 = vmatpush.msra.mxu0 0.0
  %7146 = vmatpush.msra.mxu0 0.0
  %7147 = vmatpush.msra.mxu0 0.0
  %7148 = vmatpush.msra.mxu0 0.0
  %7149 = vmatpush.msra.mxu0 0.0
  %7150 = vmatpush.msra.mxu0 0.0
  %7151 = vmatpush.msra.mxu0 0.0
  %7152 = vmatpush.msra.mxu0 0.0
  %7153 = vmatpush.msra.mxu0 0.0
  %7154 = vmatpush.msra.mxu0 0.0
  %7155 = vmatpush.msra.mxu0 0.0
  %7156 = vmatpush.msra.mxu0 %v7088
  %7157 = vmatpush.msra.mxu0 %v7082
  %7158 = vmatmul.f32.gmra.mxu0 %v7100
  %v7159 = vpop.f32.mrf.mxu0
  %v7160 = vadd.f32 0.0, %v7159
  %7161 = vdwg.mxu0
  %v7162 = vadd.f32 %v7073, %v7120
  %v7163 = vadd.f32 %v7074, %v7140
  %v7164 = vadd.f32 %v7075, %v7160
  %v7165 = vld [vmem:[%s3 + $0x340] sm:$0xff]
  %7166 = vrot.lane.b32.xlu0 %v5356, 80
  %v7167 = vpop.permute.xlu0 %7166
  %7168 = vrot.lane.b32.xlu0 %v5379, 80
  %v7169 = vpop.permute.xlu0 %7168
  %7170 = vrot.lane.b32.xlu0 %v5402, 80
  %v7171 = vpop.permute.xlu0 %7170
  %7172 = vrot.lane.b32.xlu0 %v5359, 80
  %v7173 = vpop.permute.xlu0 %7172
  %7174 = vrot.lane.b32.xlu0 %v5382, 80
  %v7175 = vpop.permute.xlu0 %7174
  %7176 = vrot.lane.b32.xlu0 %v5405, 80
  %v7177 = vpop.permute.xlu0 %7176
  %v7178 = vsel %vm4717, %v7167, %v7169
  %v7179 = vsel %vm4717, %v7169, %v7171
  %v7180 = vsel %vm4717, %v7173, %v7175
  %v7181 = vsel %vm4717, %v7175, %v7177
  %v7189 = vsel %vm613, %v7165, 0
  %7191 = vmatpush.msra.mxu0 0.0
  %7192 = vmatpush.msra.mxu0 0.0
  %7193 = vmatpush.msra.mxu0 0.0
  %7194 = vmatpush.msra.mxu0 0.0
  %7195 = vmatpush.msra.mxu0 0.0
  %7196 = vmatpush.msra.mxu0 0.0
  %7197 = vmatpush.msra.mxu0 0.0
  %7198 = vmatpush.msra.mxu0 0.0
  %7199 = vmatpush.msra.mxu0 0.0
  %7200 = vmatpush.msra.mxu0 0.0
  %7201 = vmatpush.msra.mxu0 0.0
  %7202 = vmatpush.msra.mxu0 0.0
  %7203 = vmatpush.msra.mxu0 0.0
  %7204 = vmatpush.msra.mxu0 0.0
  %7205 = vmatpush.msra.mxu0 %v7180
  %7206 = vmatpush.msra.mxu0 %v7178
  %7207 = vmatmul.f32.gmra.mxu0 %v7189
  %v7208 = vpop.f32.mrf.mxu0
  %v7209 = vadd.f32 0.0, %v7208
  %7210 = vdwg.mxu0
  %7211 = vmatpush.msra.mxu0 0.0
  %7212 = vmatpush.msra.mxu0 0.0
  %7213 = vmatpush.msra.mxu0 0.0
  %7214 = vmatpush.msra.mxu0 0.0
  %7215 = vmatpush.msra.mxu0 0.0
  %7216 = vmatpush.msra.mxu0 0.0
  %7217 = vmatpush.msra.mxu0 0.0
  %7218 = vmatpush.msra.mxu0 0.0
  %7219 = vmatpush.msra.mxu0 0.0
  %7220 = vmatpush.msra.mxu0 0.0
  %7221 = vmatpush.msra.mxu0 0.0
  %7222 = vmatpush.msra.mxu0 0.0
  %7223 = vmatpush.msra.mxu0 0.0
  %7224 = vmatpush.msra.mxu0 0.0
  %7225 = vmatpush.msra.mxu0 %v7181
  %7226 = vmatpush.msra.mxu0 %v7179
  %7227 = vmatmul.f32.gmra.mxu0 %v7189
  %v7228 = vpop.f32.mrf.mxu0
  %v7229 = vadd.f32 0.0, %v7228
  %7230 = vdwg.mxu0
  %7231 = vmatpush.msra.mxu0 0.0
  %7232 = vmatpush.msra.mxu0 0.0
  %7233 = vmatpush.msra.mxu0 0.0
  %7234 = vmatpush.msra.mxu0 0.0
  %7235 = vmatpush.msra.mxu0 0.0
  %7236 = vmatpush.msra.mxu0 0.0
  %7237 = vmatpush.msra.mxu0 0.0
  %7238 = vmatpush.msra.mxu0 0.0
  %7239 = vmatpush.msra.mxu0 0.0
  %7240 = vmatpush.msra.mxu0 0.0
  %7241 = vmatpush.msra.mxu0 0.0
  %7242 = vmatpush.msra.mxu0 0.0
  %7243 = vmatpush.msra.mxu0 0.0
  %7244 = vmatpush.msra.mxu0 0.0
  %7245 = vmatpush.msra.mxu0 %v7177
  %7246 = vmatpush.msra.mxu0 %v7171
  %7247 = vmatmul.f32.gmra.mxu0 %v7189
  %v7248 = vpop.f32.mrf.mxu0
  %v7249 = vadd.f32 0.0, %v7248
  %7250 = vdwg.mxu0
  %v7251 = vadd.f32 %v7162, %v7209
  %v7252 = vadd.f32 %v7163, %v7229
  %v7253 = vadd.f32 %v7164, %v7249
  %v7254 = vld [vmem:[%s3 + $0x348] sm:$0xff]
  %7255 = vrot.lane.b32.xlu0 %v5356, 79
  %v7256 = vpop.permute.xlu0 %7255
  %7257 = vrot.lane.b32.xlu0 %v5379, 79
  %v7258 = vpop.permute.xlu0 %7257
  %7259 = vrot.lane.b32.xlu0 %v5402, 79
  %v7260 = vpop.permute.xlu0 %7259
  %7261 = vrot.lane.b32.xlu0 %v5359, 79
  %v7262 = vpop.permute.xlu0 %7261
  %7263 = vrot.lane.b32.xlu0 %v5382, 79
  %v7264 = vpop.permute.xlu0 %7263
  %7265 = vrot.lane.b32.xlu0 %v5405, 79
  %v7266 = vpop.permute.xlu0 %7265
  %v7267 = vsel %vm4812, %v7256, %v7258
  %v7268 = vsel %vm4812, %v7258, %v7260
  %v7269 = vsel %vm4812, %v7262, %v7264
  %v7270 = vsel %vm4812, %v7264, %v7266
  %v7278 = vsel %vm613, %v7254, 0
  %7280 = vmatpush.msra.mxu0 0.0
  %7281 = vmatpush.msra.mxu0 0.0
  %7282 = vmatpush.msra.mxu0 0.0
  %7283 = vmatpush.msra.mxu0 0.0
  %7284 = vmatpush.msra.mxu0 0.0
  %7285 = vmatpush.msra.mxu0 0.0
  %7286 = vmatpush.msra.mxu0 0.0
  %7287 = vmatpush.msra.mxu0 0.0
  %7288 = vmatpush.msra.mxu0 0.0
  %7289 = vmatpush.msra.mxu0 0.0
  %7290 = vmatpush.msra.mxu0 0.0
  %7291 = vmatpush.msra.mxu0 0.0
  %7292 = vmatpush.msra.mxu0 0.0
  %7293 = vmatpush.msra.mxu0 0.0
  %7294 = vmatpush.msra.mxu0 %v7269
  %7295 = vmatpush.msra.mxu0 %v7267
  %7296 = vmatmul.f32.gmra.mxu0 %v7278
  %v7297 = vpop.f32.mrf.mxu0
  %v7298 = vadd.f32 0.0, %v7297
  %7299 = vdwg.mxu0
  %7300 = vmatpush.msra.mxu0 0.0
  %7301 = vmatpush.msra.mxu0 0.0
  %7302 = vmatpush.msra.mxu0 0.0
  %7303 = vmatpush.msra.mxu0 0.0
  %7304 = vmatpush.msra.mxu0 0.0
  %7305 = vmatpush.msra.mxu0 0.0
  %7306 = vmatpush.msra.mxu0 0.0
  %7307 = vmatpush.msra.mxu0 0.0
  %7308 = vmatpush.msra.mxu0 0.0
  %7309 = vmatpush.msra.mxu0 0.0
  %7310 = vmatpush.msra.mxu0 0.0
  %7311 = vmatpush.msra.mxu0 0.0
  %7312 = vmatpush.msra.mxu0 0.0
  %7313 = vmatpush.msra.mxu0 0.0
  %7314 = vmatpush.msra.mxu0 %v7270
  %7315 = vmatpush.msra.mxu0 %v7268
  %7316 = vmatmul.f32.gmra.mxu0 %v7278
  %v7317 = vpop.f32.mrf.mxu0
  %v7318 = vadd.f32 0.0, %v7317
  %7319 = vdwg.mxu0
  %7320 = vmatpush.msra.mxu0 0.0
  %7321 = vmatpush.msra.mxu0 0.0
  %7322 = vmatpush.msra.mxu0 0.0
  %7323 = vmatpush.msra.mxu0 0.0
  %7324 = vmatpush.msra.mxu0 0.0
  %7325 = vmatpush.msra.mxu0 0.0
  %7326 = vmatpush.msra.mxu0 0.0
  %7327 = vmatpush.msra.mxu0 0.0
  %7328 = vmatpush.msra.mxu0 0.0
  %7329 = vmatpush.msra.mxu0 0.0
  %7330 = vmatpush.msra.mxu0 0.0
  %7331 = vmatpush.msra.mxu0 0.0
  %7332 = vmatpush.msra.mxu0 0.0
  %7333 = vmatpush.msra.mxu0 0.0
  %7334 = vmatpush.msra.mxu0 %v7266
  %7335 = vmatpush.msra.mxu0 %v7260
  %7336 = vmatmul.f32.gmra.mxu0 %v7278
  %v7337 = vpop.f32.mrf.mxu0
  %v7338 = vadd.f32 0.0, %v7337
  %7339 = vdwg.mxu0
  %v7340 = vadd.f32 %v7251, %v7298
  %v7341 = vadd.f32 %v7252, %v7318
  %v7342 = vadd.f32 %v7253, %v7338
  %v7343 = vld [vmem:[%s3 + $0x350] sm:$0xff]
  %7344 = vrot.lane.b32.xlu0 %v5356, 78
  %v7345 = vpop.permute.xlu0 %7344
  %7346 = vrot.lane.b32.xlu0 %v5379, 78
  %v7347 = vpop.permute.xlu0 %7346
  %7348 = vrot.lane.b32.xlu0 %v5402, 78
  %v7349 = vpop.permute.xlu0 %7348
  %7350 = vrot.lane.b32.xlu0 %v5359, 78
  %v7351 = vpop.permute.xlu0 %7350
  %7352 = vrot.lane.b32.xlu0 %v5382, 78
  %v7353 = vpop.permute.xlu0 %7352
  %7354 = vrot.lane.b32.xlu0 %v5405, 78
  %v7355 = vpop.permute.xlu0 %7354
  %v7356 = vsel %vm4907, %v7345, %v7347
  %v7357 = vsel %vm4907, %v7347, %v7349
  %v7358 = vsel %vm4907, %v7351, %v7353
  %v7359 = vsel %vm4907, %v7353, %v7355
  %v7367 = vsel %vm613, %v7343, 0
  %7369 = vmatpush.msra.mxu0 0.0
  %7370 = vmatpush.msra.mxu0 0.0
  %7371 = vmatpush.msra.mxu0 0.0
  %7372 = vmatpush.msra.mxu0 0.0
  %7373 = vmatpush.msra.mxu0 0.0
  %7374 = vmatpush.msra.mxu0 0.0
  %7375 = vmatpush.msra.mxu0 0.0
  %7376 = vmatpush.msra.mxu0 0.0
  %7377 = vmatpush.msra.mxu0 0.0
  %7378 = vmatpush.msra.mxu0 0.0
  %7379 = vmatpush.msra.mxu0 0.0
  %7380 = vmatpush.msra.mxu0 0.0
  %7381 = vmatpush.msra.mxu0 0.0
  %7382 = vmatpush.msra.mxu0 0.0
  %7383 = vmatpush.msra.mxu0 %v7358
  %7384 = vmatpush.msra.mxu0 %v7356
  %7385 = vmatmul.f32.gmra.mxu0 %v7367
  %v7386 = vpop.f32.mrf.mxu0
  %v7387 = vadd.f32 0.0, %v7386
  %7388 = vdwg.mxu0
  %7389 = vmatpush.msra.mxu0 0.0
  %7390 = vmatpush.msra.mxu0 0.0
  %7391 = vmatpush.msra.mxu0 0.0
  %7392 = vmatpush.msra.mxu0 0.0
  %7393 = vmatpush.msra.mxu0 0.0
  %7394 = vmatpush.msra.mxu0 0.0
  %7395 = vmatpush.msra.mxu0 0.0
  %7396 = vmatpush.msra.mxu0 0.0
  %7397 = vmatpush.msra.mxu0 0.0
  %7398 = vmatpush.msra.mxu0 0.0
  %7399 = vmatpush.msra.mxu0 0.0
  %7400 = vmatpush.msra.mxu0 0.0
  %7401 = vmatpush.msra.mxu0 0.0
  %7402 = vmatpush.msra.mxu0 0.0
  %7403 = vmatpush.msra.mxu0 %v7359
  %7404 = vmatpush.msra.mxu0 %v7357
  %7405 = vmatmul.f32.gmra.mxu0 %v7367
  %v7406 = vpop.f32.mrf.mxu0
  %v7407 = vadd.f32 0.0, %v7406
  %7408 = vdwg.mxu0
  %7409 = vmatpush.msra.mxu0 0.0
  %7410 = vmatpush.msra.mxu0 0.0
  %7411 = vmatpush.msra.mxu0 0.0
  %7412 = vmatpush.msra.mxu0 0.0
  %7413 = vmatpush.msra.mxu0 0.0
  %7414 = vmatpush.msra.mxu0 0.0
  %7415 = vmatpush.msra.mxu0 0.0
  %7416 = vmatpush.msra.mxu0 0.0
  %7417 = vmatpush.msra.mxu0 0.0
  %7418 = vmatpush.msra.mxu0 0.0
  %7419 = vmatpush.msra.mxu0 0.0
  %7420 = vmatpush.msra.mxu0 0.0
  %7421 = vmatpush.msra.mxu0 0.0
  %7422 = vmatpush.msra.mxu0 0.0
  %7423 = vmatpush.msra.mxu0 %v7355
  %7424 = vmatpush.msra.mxu0 %v7349
  %7425 = vmatmul.f32.gmra.mxu0 %v7367
  %v7426 = vpop.f32.mrf.mxu0
  %v7427 = vadd.f32 0.0, %v7426
  %7428 = vdwg.mxu0
  %v7429 = vadd.f32 %v7340, %v7387
  %v7430 = vadd.f32 %v7341, %v7407
  %v7431 = vadd.f32 %v7342, %v7427
  %v7432 = vld [vmem:[%s3 + $0x358] sm:$0xff]
  %7433 = vrot.lane.b32.xlu0 %v5356, 77
  %v7434 = vpop.permute.xlu0 %7433
  %7435 = vrot.lane.b32.xlu0 %v5379, 77
  %v7436 = vpop.permute.xlu0 %7435
  %7437 = vrot.lane.b32.xlu0 %v5402, 77
  %v7438 = vpop.permute.xlu0 %7437
  %7439 = vrot.lane.b32.xlu0 %v5359, 77
  %v7440 = vpop.permute.xlu0 %7439
  %7441 = vrot.lane.b32.xlu0 %v5382, 77
  %v7442 = vpop.permute.xlu0 %7441
  %7443 = vrot.lane.b32.xlu0 %v5405, 77
  %v7444 = vpop.permute.xlu0 %7443
  %v7445 = vsel %vm5002, %v7434, %v7436
  %v7446 = vsel %vm5002, %v7436, %v7438
  %v7447 = vsel %vm5002, %v7440, %v7442
  %v7448 = vsel %vm5002, %v7442, %v7444
  %v7456 = vsel %vm613, %v7432, 0
  %7458 = vmatpush.msra.mxu0 0.0
  %7459 = vmatpush.msra.mxu0 0.0
  %7460 = vmatpush.msra.mxu0 0.0
  %7461 = vmatpush.msra.mxu0 0.0
  %7462 = vmatpush.msra.mxu0 0.0
  %7463 = vmatpush.msra.mxu0 0.0
  %7464 = vmatpush.msra.mxu0 0.0
  %7465 = vmatpush.msra.mxu0 0.0
  %7466 = vmatpush.msra.mxu0 0.0
  %7467 = vmatpush.msra.mxu0 0.0
  %7468 = vmatpush.msra.mxu0 0.0
  %7469 = vmatpush.msra.mxu0 0.0
  %7470 = vmatpush.msra.mxu0 0.0
  %7471 = vmatpush.msra.mxu0 0.0
  %7472 = vmatpush.msra.mxu0 %v7447
  %7473 = vmatpush.msra.mxu0 %v7445
  %7474 = vmatmul.f32.gmra.mxu0 %v7456
  %v7475 = vpop.f32.mrf.mxu0
  %v7476 = vadd.f32 0.0, %v7475
  %7477 = vdwg.mxu0
  %7478 = vmatpush.msra.mxu0 0.0
  %7479 = vmatpush.msra.mxu0 0.0
  %7480 = vmatpush.msra.mxu0 0.0
  %7481 = vmatpush.msra.mxu0 0.0
  %7482 = vmatpush.msra.mxu0 0.0
  %7483 = vmatpush.msra.mxu0 0.0
  %7484 = vmatpush.msra.mxu0 0.0
  %7485 = vmatpush.msra.mxu0 0.0
  %7486 = vmatpush.msra.mxu0 0.0
  %7487 = vmatpush.msra.mxu0 0.0
  %7488 = vmatpush.msra.mxu0 0.0
  %7489 = vmatpush.msra.mxu0 0.0
  %7490 = vmatpush.msra.mxu0 0.0
  %7491 = vmatpush.msra.mxu0 0.0
  %7492 = vmatpush.msra.mxu0 %v7448
  %7493 = vmatpush.msra.mxu0 %v7446
  %7494 = vmatmul.f32.gmra.mxu0 %v7456
  %v7495 = vpop.f32.mrf.mxu0
  %v7496 = vadd.f32 0.0, %v7495
  %7497 = vdwg.mxu0
  %7498 = vmatpush.msra.mxu0 0.0
  %7499 = vmatpush.msra.mxu0 0.0
  %7500 = vmatpush.msra.mxu0 0.0
  %7501 = vmatpush.msra.mxu0 0.0
  %7502 = vmatpush.msra.mxu0 0.0
  %7503 = vmatpush.msra.mxu0 0.0
  %7504 = vmatpush.msra.mxu0 0.0
  %7505 = vmatpush.msra.mxu0 0.0
  %7506 = vmatpush.msra.mxu0 0.0
  %7507 = vmatpush.msra.mxu0 0.0
  %7508 = vmatpush.msra.mxu0 0.0
  %7509 = vmatpush.msra.mxu0 0.0
  %7510 = vmatpush.msra.mxu0 0.0
  %7511 = vmatpush.msra.mxu0 0.0
  %7512 = vmatpush.msra.mxu0 %v7444
  %7513 = vmatpush.msra.mxu0 %v7438
  %7514 = vmatmul.f32.gmra.mxu0 %v7456
  %v7515 = vpop.f32.mrf.mxu0
  %v7516 = vadd.f32 0.0, %v7515
  %7517 = vdwg.mxu0
  %v7518 = vadd.f32 %v7429, %v7476
  %v7519 = vadd.f32 %v7430, %v7496
  %v7520 = vadd.f32 %v7431, %v7516
  %v7521 = vld [vmem:[%s3 + $0x360] sm:$0xff]
  %7522 = vrot.lane.b32.xlu0 %v5356, 76
  %v7523 = vpop.permute.xlu0 %7522
  %7524 = vrot.lane.b32.xlu0 %v5379, 76
  %v7525 = vpop.permute.xlu0 %7524
  %7526 = vrot.lane.b32.xlu0 %v5402, 76
  %v7527 = vpop.permute.xlu0 %7526
  %7528 = vrot.lane.b32.xlu0 %v5359, 76
  %v7529 = vpop.permute.xlu0 %7528
  %7530 = vrot.lane.b32.xlu0 %v5382, 76
  %v7531 = vpop.permute.xlu0 %7530
  %7532 = vrot.lane.b32.xlu0 %v5405, 76
  %v7533 = vpop.permute.xlu0 %7532
  %v7534 = vsel %vm5097, %v7523, %v7525
  %v7535 = vsel %vm5097, %v7525, %v7527
  %v7536 = vsel %vm5097, %v7529, %v7531
  %v7537 = vsel %vm5097, %v7531, %v7533
  %v7545 = vsel %vm613, %v7521, 0
  %7547 = vmatpush.msra.mxu0 0.0
  %7548 = vmatpush.msra.mxu0 0.0
  %7549 = vmatpush.msra.mxu0 0.0
  %7550 = vmatpush.msra.mxu0 0.0
  %7551 = vmatpush.msra.mxu0 0.0
  %7552 = vmatpush.msra.mxu0 0.0
  %7553 = vmatpush.msra.mxu0 0.0
  %7554 = vmatpush.msra.mxu0 0.0
  %7555 = vmatpush.msra.mxu0 0.0
  %7556 = vmatpush.msra.mxu0 0.0
  %7557 = vmatpush.msra.mxu0 0.0
  %7558 = vmatpush.msra.mxu0 0.0
  %7559 = vmatpush.msra.mxu0 0.0
  %7560 = vmatpush.msra.mxu0 0.0
  %7561 = vmatpush.msra.mxu0 %v7536
  %7562 = vmatpush.msra.mxu0 %v7534
  %7563 = vmatmul.f32.gmra.mxu0 %v7545
  %v7564 = vpop.f32.mrf.mxu0
  %v7565 = vadd.f32 0.0, %v7564
  %7566 = vdwg.mxu0
  %7567 = vmatpush.msra.mxu0 0.0
  %7568 = vmatpush.msra.mxu0 0.0
  %7569 = vmatpush.msra.mxu0 0.0
  %7570 = vmatpush.msra.mxu0 0.0
  %7571 = vmatpush.msra.mxu0 0.0
  %7572 = vmatpush.msra.mxu0 0.0
  %7573 = vmatpush.msra.mxu0 0.0
  %7574 = vmatpush.msra.mxu0 0.0
  %7575 = vmatpush.msra.mxu0 0.0
  %7576 = vmatpush.msra.mxu0 0.0
  %7577 = vmatpush.msra.mxu0 0.0
  %7578 = vmatpush.msra.mxu0 0.0
  %7579 = vmatpush.msra.mxu0 0.0
  %7580 = vmatpush.msra.mxu0 0.0
  %7581 = vmatpush.msra.mxu0 %v7537
  %7582 = vmatpush.msra.mxu0 %v7535
  %7583 = vmatmul.f32.gmra.mxu0 %v7545
  %v7584 = vpop.f32.mrf.mxu0
  %v7585 = vadd.f32 0.0, %v7584
  %7586 = vdwg.mxu0
  %7587 = vmatpush.msra.mxu0 0.0
  %7588 = vmatpush.msra.mxu0 0.0
  %7589 = vmatpush.msra.mxu0 0.0
  %7590 = vmatpush.msra.mxu0 0.0
  %7591 = vmatpush.msra.mxu0 0.0
  %7592 = vmatpush.msra.mxu0 0.0
  %7593 = vmatpush.msra.mxu0 0.0
  %7594 = vmatpush.msra.mxu0 0.0
  %7595 = vmatpush.msra.mxu0 0.0
  %7596 = vmatpush.msra.mxu0 0.0
  %7597 = vmatpush.msra.mxu0 0.0
  %7598 = vmatpush.msra.mxu0 0.0
  %7599 = vmatpush.msra.mxu0 0.0
  %7600 = vmatpush.msra.mxu0 0.0
  %7601 = vmatpush.msra.mxu0 %v7533
  %7602 = vmatpush.msra.mxu0 %v7527
  %7603 = vmatmul.f32.gmra.mxu0 %v7545
  %v7604 = vpop.f32.mrf.mxu0
  %v7605 = vadd.f32 0.0, %v7604
  %7606 = vdwg.mxu0
  %v7607 = vadd.f32 %v7518, %v7565
  %v7608 = vadd.f32 %v7519, %v7585
  %v7609 = vadd.f32 %v7520, %v7605
  %v7610 = vld [vmem:[%s2 + $0x210] sm:$0xff]
  %7612 = vset.pattern.permute.xlu0 0
  %7613 = vperm.xlu0 %7612, %v7610
  %v7614 = vpop.permute.xlu0 %7613
  %v7617 = vsel %vm5232, %v7609, 0
  %7619 = vmatpush.msra.mxu0 %v5199
  %7620 = vmatpush.msra.mxu0 %v5198
  %7621 = vmatpush.msra.mxu0 %v5197
  %7622 = vmatpush.msra.mxu0 %v5196
  %7623 = vmatpush.msra.mxu0 %v5195
  %7624 = vmatpush.msra.mxu0 %v5194
  %7625 = vmatpush.msra.mxu0 %v5193
  %7626 = vmatpush.msra.mxu0 %v5192
  %7627 = vmatpush.msra.mxu0 %v5191
  %7628 = vmatpush.msra.mxu0 %v5190
  %7629 = vmatpush.msra.mxu0 %v5189
  %7630 = vmatpush.msra.mxu0 %v5188
  %7631 = vmatpush.msra.mxu0 %v5187
  %7632 = vmatpush.msra.mxu0 %v5186
  %7633 = vmatpush.msra.mxu0 %v5185
  %7634 = vmatpush.msra.mxu0 %v5184
  %7635 = vmatmul.f32.gmra.mxu0 %v7607
  %v7636 = vpop.f32.mrf.mxu0
  %v7637 = vadd.f32 %v7614, %v7636
  %7638 = vdwg.mxu0
  %7639 = vmatpush.msra.mxu0 %v5215
  %7640 = vmatpush.msra.mxu0 %v5214
  %7641 = vmatpush.msra.mxu0 %v5213
  %7642 = vmatpush.msra.mxu0 %v5212
  %7643 = vmatpush.msra.mxu0 %v5211
  %7644 = vmatpush.msra.mxu0 %v5210
  %7645 = vmatpush.msra.mxu0 %v5209
  %7646 = vmatpush.msra.mxu0 %v5208
  %7647 = vmatpush.msra.mxu0 %v5207
  %7648 = vmatpush.msra.mxu0 %v5206
  %7649 = vmatpush.msra.mxu0 %v5205
  %7650 = vmatpush.msra.mxu0 %v5204
  %7651 = vmatpush.msra.mxu0 %v5203
  %7652 = vmatpush.msra.mxu0 %v5202
  %7653 = vmatpush.msra.mxu0 %v5201
  %7654 = vmatpush.msra.mxu0 %v5200
  %7655 = vmatmul.f32.gmra.mxu0 %v7608
  %v7656 = vpop.f32.mrf.mxu0
  %v7657 = vadd.f32 %v7637, %v7656
  %7658 = vdwg.mxu0
  %7659 = vmatpush.msra.mxu0 0.0
  %7660 = vmatpush.msra.mxu0 0.0
  %7661 = vmatpush.msra.mxu0 0.0
  %7662 = vmatpush.msra.mxu0 0.0
  %7663 = vmatpush.msra.mxu0 0.0
  %7664 = vmatpush.msra.mxu0 0.0
  %7665 = vmatpush.msra.mxu0 0.0
  %7666 = vmatpush.msra.mxu0 0.0
  %7667 = vmatpush.msra.mxu0 0.0
  %7668 = vmatpush.msra.mxu0 0.0
  %7669 = vmatpush.msra.mxu0 0.0
  %7670 = vmatpush.msra.mxu0 0.0
  %7671 = vmatpush.msra.mxu0 %v5219
  %7672 = vmatpush.msra.mxu0 %v5218
  %7673 = vmatpush.msra.mxu0 %v5217
  %7674 = vmatpush.msra.mxu0 %v5216
  %7675 = vmatmul.f32.gmra.mxu0 %v7617
  %v7676 = vpop.f32.mrf.mxu0
  %v7677 = vadd.f32 %v7657, %v7676
  %7678 = vdwg.mxu0
  %7679 = vst [vmem:[%s9] sm:$0xff] %v335
  %7680 = vst [vmem:[%s9 + $0x8] sm:$0xff] %v574
  %7681 = vst [vmem:[%s9 + $0x10] sm:$0xff] %v2280
  %7682 = vst [vmem:[%s9 + $0x18] sm:$0xff] %v2511
  %7683 = vst [vmem:[%s9 + $0x20] sm:$0xff] %v2603
  %7684 = vst [vmem:[%s9 + $0x28] sm:$0xff] %v7677
  // Predicated region
  $region38: #{fwd.1} parent=0 // pred_check
    _
  $region39: #{fwd.1} parent=0 // pred_check_branch
    %7686 = sbr.rel (0) target = $region41
  $region40: #{fwd.1} parent=0 // pred_region
    _
  $region41: #{fwd.1} parent=0 // pred_fallthru
    _
  // Predicated region
  $region42: #{fwd.1} parent=0 // pred_check
    _
  $region43: #{fwd.1} parent=0 // pred_check_branch
    %7688 = sbr.rel (0) target = $region45
  $region44: #{fwd.1} parent=0 // pred_region
    _
  $region45: #{fwd.1} parent=0 // pred_fallthru
    _

</llo_original>
